<compile_context>
chip_gen: v5e
topology: v5e:2x2
jax: 0.10.0
libtpu: 0.0.40
codegen_flags: <defaults>
</compile_context>

<pallas_src>
import math
import numpy as np
import jax
import jax.numpy as jnp
from jax import lax
from jax.experimental import pallas as pl
from jax.experimental.pallas import tpu as pltpu


# ----------------------------------------------------------------------------
# Deterministic parameter construction (matches the PyTorch module init)
# ----------------------------------------------------------------------------
def make_seg_params(key, in_ch, classes):
    # nn.Conv2d(in_ch, classes, kernel_size=1, bias=True)
    # init: weight ~ N(0, sqrt(2/n)), n = kh*kw*out_channels = classes; bias = 0
    n = 1 * 1 * classes
    std = math.sqrt(2.0 / n)
    w = std * jax.random.normal(key, (classes, in_ch), dtype=jnp.float32)
    b = jnp.zeros((classes,), dtype=jnp.float32)
    return w, b


def make_up_matrix(in_size, kernel=16, stride=8, padding=4):
    """1-D upsampling matrix G with conv_transpose1d(x, w1, s, p) == G @ x,
    using the exact `fill_up_weights` bilinear profile (separable 2-D kernel)."""
    f = math.ceil(kernel / 2)
    c = (2 * f - 1 - f % 2) / (2.0 * f)
    w1 = np.array([(1.0 - abs(i / f - c)) for i in range(kernel)], dtype=np.float64)
    out_size = (in_size - 1) * stride - 2 * padding + kernel
    G = np.zeros((out_size, in_size), dtype=np.float64)
    for o in range(out_size):
        for i in range(in_size):
            k = o + padding - i * stride
            if 0 <= k < kernel:
                G[o, i] = w1[k]
    return jnp.asarray(G, dtype=jnp.float32)


# ----------------------------------------------------------------------------
# Fused kernel: 1x1 conv (VPU) + separable bilinear upsample (2 batched MXU
# matmuls at HIGHEST precision) + channel log_softmax.  NB batch elements per
# grid step, stacked along sublanes (pre-upsample) / lanes (post-upsample).
# ----------------------------------------------------------------------------
def _drnseg_kernel(x_ref, xf_ref, w_ref, b_ref, gh_ref, gwt_ref,   # inputs
                   logp_ref, xsegf_ref,                            # outputs
                   xs_sc, t2_sc, y_sc):                            # VMEM scratch
    # x_ref    : [NB, C, Hin, Win]     (VMEM)  2-D view for the upsample path
    # xf_ref   : [NB, C, 1, Hin*Win]   (VMEM)  flat view for lane-dense x_seg
    # w_ref    : [K, C]                (SMEM scalars)
    # b_ref    : [K]                   (SMEM scalars)
    # gh_ref   : [Hout, Hin]           (VMEM)
    # gwt_ref  : [Win, Wout]           (VMEM)
    # logp_ref : [NB, K, Hout, Wout]
    # xsegf_ref: [NB, K, 1, Hin*Win]   (lane-dense x_seg output)
    # xs_sc    : [NB*K*Hin, Win]   seg result, (batch, channel) stacked on sublanes
    # t2_sc    : [Hin, NB*K*Wout]  W-upsampled, (batch, channel) stacked on lanes
    # y_sc     : [Hout, NB*K*Wout] fully upsampled logits (pre log-softmax)
    NB = x_ref.shape[0]
    K, C = w_ref.shape
    Hin, Win = x_ref.shape[2], x_ref.shape[3]
    Hout = gh_ref.shape[0]
    Wout = gwt_ref.shape[1]

    # ---- seg: 1x1 conv + bias on the VPU (contraction dim C is tiny) -------
    # 2-D layout feeds the MXU path; flat layout feeds the lane-dense x_seg
    # store.  The duplicated FMAs (NB*K*C of them) ride on VALU slack.
    for n in range(NB):
        xc = [x_ref[n, c] for c in range(C)]      # C x [Hin, Win]
        xfc = [xf_ref[n, c] for c in range(C)]    # C x [1, Hin*Win]
        for k in range(K):
            acc = w_ref[k, 0] * xc[0] + b_ref[k]          # bias folded in
            accf = w_ref[k, 0] * xfc[0] + b_ref[k]
            for c in range(1, C):
                acc = acc + w_ref[k, c] * xc[c]
                accf = accf + w_ref[k, c] * xfc[c]
            base = (n * K + k) * Hin
            xs_sc[base:base + Hin, :] = acc               # matmul operand
            xsegf_ref[n, k] = accf.astype(xsegf_ref.dtype)  # lane-dense x_seg

    # ---- up (separable bilinear): two *batched* MXU matmuls ----------------
    # W upsample, all batch*channels at once: [NB*K*Hin, Win] @ [Win, Wout]
    t = jnp.dot(xs_sc[...], gwt_ref[...],
                preferred_element_type=jnp.float32,
                precision=lax.Precision.HIGHEST)          # [NB*K*Hin, Wout]
    # regroup (batch,channel) blocks from sublanes to lanes; all slice starts
    # are multiples of (8, 128) so these are pure aligned VMEM copies.
    for nk in range(NB * K):
        t2_sc[:, nk * Wout:(nk + 1) * Wout] = t[nk * Hin:(nk + 1) * Hin, :]
    # H upsample, lane-dense rhs: [Hout, Hin] @ [Hin, NB*K*Wout]
    y_sc[...] = jnp.dot(gh_ref[...], t2_sc[...],
                        preferred_element_type=jnp.float32,
                        precision=lax.Precision.HIGHEST)  # [Hout, NB*K*Wout]

    # ---- log_softmax over channels (dim=1), streamed from VMEM scratch -----
    for n in range(NB):
        def col(k):
            off = (n * K + k) * Wout
            return slice(off, off + Wout)
        m = y_sc[:, col(0)]
        for k in range(1, K):
            m = jnp.maximum(m, y_sc[:, col(k)])
        s = jnp.exp(y_sc[:, col(0)] - m)
        for k in range(1, K):
            s = s + jnp.exp(y_sc[:, col(k)] - m)
        sub = m + jnp.log(s)                              # max + logsumexp
        for k in range(K):
            logp_ref[n, k] = (y_sc[:, col(k)] - sub).astype(logp_ref.dtype)


# ----------------------------------------------------------------------------
# DRNSeg.forward
# ----------------------------------------------------------------------------
def drnseg_forward(x, params, batch_block=None):
    # TODO(synk): drn.drn_d_22 backbone (self.base) source is not in the
    # reference module; it is treated as identity (feat = x).
    feat = x
    N, C, H, W = feat.shape
    seg_w, seg_b = params["seg_w"], params["seg_b"]
    G_h, G_wT = params["G_h"], params["G_wT"]          # G_w^T pre-hoisted
    K = seg_w.shape[0]
    Hout = G_h.shape[0]
    Wout = G_wT.shape[1]
    HW = H * W

    # Batch folding: process NB batch elements per grid step (default: all).
    # For real sizes cap NB by VMEM and keep >= 2 steps on v7x.
    nb = N if batch_block is None else batch_block
    assert N % nb == 0, "batch_block must divide the batch size"

    feat_flat = feat.reshape(N, C, 1, HW)               # free bitcast view

    logp, xseg_flat = pl.pallas_call(
        _drnseg_kernel,
        out_shape=(jax.ShapeDtypeStruct((N, K, Hout, Wout), feat.dtype),
                   jax.ShapeDtypeStruct((N, K, 1, HW), feat.dtype)),
        grid_spec=pltpu.PrefetchScalarGridSpec(
            num_scalar_prefetch=0,
            grid=(N // nb,),
            in_specs=[
                pl.BlockSpec((nb, C, H, W), lambda i: (i, 0, 0, 0)),   # x (2-D view)
                pl.BlockSpec((nb, C, 1, HW), lambda i: (i, 0, 0, 0)),  # x (flat view)
                pl.BlockSpec(memory_space=pltpu.MemorySpace.SMEM),     # seg weight
                pl.BlockSpec(memory_space=pltpu.MemorySpace.SMEM),     # seg bias
                pl.BlockSpec((Hout, H), lambda i: (0, 0)),             # G_h
                pl.BlockSpec((W, Wout), lambda i: (0, 0)),             # G_w^T
            ],
            out_specs=(
                pl.BlockSpec((nb, K, Hout, Wout), lambda i: (i, 0, 0, 0)),
                pl.BlockSpec((nb, K, 1, HW), lambda i: (i, 0, 0, 0)),
            ),
            scratch_shapes=[
                pltpu.VMEM((nb * K * H, W), jnp.float32),
                pltpu.VMEM((H, nb * K * Wout), jnp.float32),
                pltpu.VMEM((Hout, nb * K * Wout), jnp.float32),
            ],
        ),
        compiler_params=pltpu.CompilerParams(
            dimension_semantics=("parallel",)),   # batch steps split across TCs
    )(feat, feat_flat, seg_w, seg_b, G_h, G_wT)

    x_seg = xseg_flat.reshape(N, K, H, W)               # free bitcast back
    return logp, x_seg


# ----------------------------------------------------------------------------
if __name__ == "__main__":
    key = jax.random.PRNGKey(0)
    kx, kw = jax.random.split(key)

    N, C, H, W = 2, 4, 16, 16
    classes = 5
    kernel, stride, padding = 16, 8, 4

    x = jax.random.normal(kx, (N, C, H, W), dtype=jnp.float32)
    seg_w, seg_b = make_seg_params(kw, C, classes)
    G_h = make_up_matrix(H, kernel, stride, padding)     # [128, 16]
    G_w = make_up_matrix(W, kernel, stride, padding)     # [128, 16]
    params = dict(seg_w=seg_w, seg_b=seg_b,
                  G_h=G_h, G_wT=jnp.transpose(G_w))      # G_w^T hoisted once

    logp, x_seg = drnseg_forward(x, params)
    jax.block_until_ready((logp, x_seg))

    # ---------------- reference check (pure JAX / XLA) ----------------------
    ref_seg = jnp.einsum("nchw,kc->nkhw", x, seg_w,
                         precision=lax.Precision.HIGHEST) \
        + seg_b[None, :, None, None]

    f = math.ceil(kernel / 2)
    cc = (2 * f - 1 - f % 2) / (2.0 * f)
    w1 = jnp.asarray([(1.0 - abs(i / f - cc)) for i in range(kernel)],
                     dtype=jnp.float32)
    w2d = jnp.outer(w1, w1)
    wt = jnp.broadcast_to(w2d, (classes, 1, kernel, kernel))
    # ConvTranspose2d(k,s,p, groups=classes) == dilated conv with flipped kernel
    ref_up = lax.conv_general_dilated(
        ref_seg, wt[:, :, ::-1, ::-1],
        window_strides=(1, 1),
        padding=((kernel - 1 - padding,) * 2,) * 2,
        lhs_dilation=(stride, stride),
        dimension_numbers=("NCHW", "OIHW", "NCHW"),
        feature_group_count=classes,
        precision=lax.Precision.HIGHEST)
    ref_logp = jax.nn.log_softmax(ref_up, axis=1)

    # x_seg: exact f32 VPU path -> tight tolerance.
    np.testing.assert_allclose(np.asarray(x_seg), np.asarray(ref_seg),
                               rtol=1e-4, atol=1e-5)
    # logp: both MXU dots now run at HIGHEST precision -> tight tolerance.
    np.testing.assert_allclose(np.asarray(logp), np.asarray(ref_logp),
                               rtol=1e-4, atol=1e-4)

    print("KERNEL_OK")
</pallas_src>

<mosaic_0001>
module attributes {stable_mosaic.version = 11 : i64} {
  func.func @_drnseg_kernel(%arg0: i32, %arg1: memref<2x4x16x16xf32, #tpu.memory_space<vmem>>, %arg2: memref<2x4x1x256xf32, #tpu.memory_space<vmem>>, %arg3: memref<5x4xf32, #tpu.memory_space<smem>>, %arg4: memref<5xf32, #tpu.memory_space<smem>>, %arg5: memref<128x16xf32, #tpu.memory_space<vmem>>, %arg6: memref<16x128xf32, #tpu.memory_space<vmem>>, %arg7: memref<2x5x128x128xf32, #tpu.memory_space<vmem>>, %arg8: memref<2x5x1x256xf32, #tpu.memory_space<vmem>>, %arg9: memref<160x16xf32, #tpu.memory_space<vmem>>, %arg10: memref<16x1280xf32, #tpu.memory_space<vmem>>, %arg11: memref<128x1280xf32, #tpu.memory_space<vmem>>) attributes {dimension_semantics = [#tpu.dimension_semantics<parallel>], iteration_bounds = array<i64: 1>, scalar_prefetch = 0 : i64, scratch_operands = 3 : i64, tpu.core_type = #tpu.core_type<tc>, window_params = [{transform_indices = @transform_0, window_bounds = array<i64: 2, 4, 16, 16>}, {transform_indices = @transform_1, window_bounds = array<i64: 2, 4, 1, 256>}, {transform_indices = @transform_2, window_bounds = array<i64: 5, 4>}, {transform_indices = @transform_3, window_bounds = array<i64: 5>}, {pipeline_mode = #tpu.pipeline_mode<synchronous>, transform_indices = @transform_4, window_bounds = array<i64: 128, 16>}, {pipeline_mode = #tpu.pipeline_mode<synchronous>, transform_indices = @transform_5, window_bounds = array<i64: 16, 128>}, {transform_indices = @transform_6, window_bounds = array<i64: 2, 5, 128, 128>}, {transform_indices = @transform_7, window_bounds = array<i64: 2, 5, 1, 256>}]} {
    %c0 = arith.constant 0 : index
    %c0_0 = arith.constant 0 : index
    %c0_1 = arith.constant 0 : index
    %c0_2 = arith.constant 0 : index
    %0 = vector.load %arg1[%c0, %c0_0, %c0_1, %c0_2] : memref<2x4x16x16xf32, #tpu.memory_space<vmem>>, vector<1x1x16x16xf32>
    %1 = vector.shape_cast %0 : vector<1x1x16x16xf32> to vector<16x16xf32>
    %c0_3 = arith.constant 0 : index
    %c1 = arith.constant 1 : index
    %c0_4 = arith.constant 0 : index
    %c0_5 = arith.constant 0 : index
    %2 = vector.load %arg1[%c0_3, %c1, %c0_4, %c0_5] : memref<2x4x16x16xf32, #tpu.memory_space<vmem>>, vector<1x1x16x16xf32>
    %3 = vector.shape_cast %2 : vector<1x1x16x16xf32> to vector<16x16xf32>
    %c0_6 = arith.constant 0 : index
    %c2 = arith.constant 2 : index
    %c0_7 = arith.constant 0 : index
    %c0_8 = arith.constant 0 : index
    %4 = vector.load %arg1[%c0_6, %c2, %c0_7, %c0_8] : memref<2x4x16x16xf32, #tpu.memory_space<vmem>>, vector<1x1x16x16xf32>
    %5 = vector.shape_cast %4 : vector<1x1x16x16xf32> to vector<16x16xf32>
    %c0_9 = arith.constant 0 : index
    %c3 = arith.constant 3 : index
    %c0_10 = arith.constant 0 : index
    %c0_11 = arith.constant 0 : index
    %6 = vector.load %arg1[%c0_9, %c3, %c0_10, %c0_11] : memref<2x4x16x16xf32, #tpu.memory_space<vmem>>, vector<1x1x16x16xf32>
    %7 = vector.shape_cast %6 : vector<1x1x16x16xf32> to vector<16x16xf32>
    %c0_12 = arith.constant 0 : index
    %c0_13 = arith.constant 0 : index
    %c0_14 = arith.constant 0 : index
    %c0_15 = arith.constant 0 : index
    %8 = vector.load %arg2[%c0_12, %c0_13, %c0_14, %c0_15] : memref<2x4x1x256xf32, #tpu.memory_space<vmem>>, vector<1x1x1x256xf32>
    %9 = vector.shape_cast %8 : vector<1x1x1x256xf32> to vector<1x256xf32>
    %c0_16 = arith.constant 0 : index
    %c1_17 = arith.constant 1 : index
    %c0_18 = arith.constant 0 : index
    %c0_19 = arith.constant 0 : index
    %10 = vector.load %arg2[%c0_16, %c1_17, %c0_18, %c0_19] : memref<2x4x1x256xf32, #tpu.memory_space<vmem>>, vector<1x1x1x256xf32>
    %11 = vector.shape_cast %10 : vector<1x1x1x256xf32> to vector<1x256xf32>
    %c0_20 = arith.constant 0 : index
    %c2_21 = arith.constant 2 : index
    %c0_22 = arith.constant 0 : index
    %c0_23 = arith.constant 0 : index
    %12 = vector.load %arg2[%c0_20, %c2_21, %c0_22, %c0_23] : memref<2x4x1x256xf32, #tpu.memory_space<vmem>>, vector<1x1x1x256xf32>
    %13 = vector.shape_cast %12 : vector<1x1x1x256xf32> to vector<1x256xf32>
    %c0_24 = arith.constant 0 : index
    %c3_25 = arith.constant 3 : index
    %c0_26 = arith.constant 0 : index
    %c0_27 = arith.constant 0 : index
    %14 = vector.load %arg2[%c0_24, %c3_25, %c0_26, %c0_27] : memref<2x4x1x256xf32, #tpu.memory_space<vmem>>, vector<1x1x1x256xf32>
    %15 = vector.shape_cast %14 : vector<1x1x1x256xf32> to vector<1x256xf32>
    %c0_28 = arith.constant 0 : index
    %c0_29 = arith.constant 0 : index
    %16 = memref.load %arg3[%c0_28, %c0_29] : memref<5x4xf32, #tpu.memory_space<smem>>
    %17 = vector.broadcast %16 : f32 to vector<16x16xf32>
    %18 = arith.mulf %17, %1 : vector<16x16xf32>
    %c0_30 = arith.constant 0 : index
    %19 = memref.load %arg4[%c0_30] : memref<5xf32, #tpu.memory_space<smem>>
    %20 = vector.broadcast %19 : f32 to vector<16x16xf32>
    %21 = arith.addf %18, %20 : vector<16x16xf32>
    %c0_31 = arith.constant 0 : index
    %c0_32 = arith.constant 0 : index
    %22 = memref.load %arg3[%c0_31, %c0_32] : memref<5x4xf32, #tpu.memory_space<smem>>
    %23 = vector.broadcast %22 : f32 to vector<1x256xf32>
    %24 = arith.mulf %23, %9 : vector<1x256xf32>
    %c0_33 = arith.constant 0 : index
    %25 = memref.load %arg4[%c0_33] : memref<5xf32, #tpu.memory_space<smem>>
    %26 = vector.broadcast %25 : f32 to vector<1x256xf32>
    %27 = arith.addf %24, %26 : vector<1x256xf32>
    %c0_34 = arith.constant 0 : index
    %c1_35 = arith.constant 1 : index
    %28 = memref.load %arg3[%c0_34, %c1_35] : memref<5x4xf32, #tpu.memory_space<smem>>
    %29 = vector.broadcast %28 : f32 to vector<16x16xf32>
    %30 = arith.mulf %29, %3 : vector<16x16xf32>
    %31 = arith.addf %21, %30 : vector<16x16xf32>
    %c0_36 = arith.constant 0 : index
    %c1_37 = arith.constant 1 : index
    %32 = memref.load %arg3[%c0_36, %c1_37] : memref<5x4xf32, #tpu.memory_space<smem>>
    %33 = vector.broadcast %32 : f32 to vector<1x256xf32>
    %34 = arith.mulf %33, %11 : vector<1x256xf32>
    %35 = arith.addf %27, %34 : vector<1x256xf32>
    %c0_38 = arith.constant 0 : index
    %c2_39 = arith.constant 2 : index
    %36 = memref.load %arg3[%c0_38, %c2_39] : memref<5x4xf32, #tpu.memory_space<smem>>
    %37 = vector.broadcast %36 : f32 to vector<16x16xf32>
    %38 = arith.mulf %37, %5 : vector<16x16xf32>
    %39 = arith.addf %31, %38 : vector<16x16xf32>
    %c0_40 = arith.constant 0 : index
    %c2_41 = arith.constant 2 : index
    %40 = memref.load %arg3[%c0_40, %c2_41] : memref<5x4xf32, #tpu.memory_space<smem>>
    %41 = vector.broadcast %40 : f32 to vector<1x256xf32>
    %42 = arith.mulf %41, %13 : vector<1x256xf32>
    %43 = arith.addf %35, %42 : vector<1x256xf32>
    %c0_42 = arith.constant 0 : index
    %c3_43 = arith.constant 3 : index
    %44 = memref.load %arg3[%c0_42, %c3_43] : memref<5x4xf32, #tpu.memory_space<smem>>
    %45 = vector.broadcast %44 : f32 to vector<16x16xf32>
    %46 = arith.mulf %45, %7 : vector<16x16xf32>
    %47 = arith.addf %39, %46 : vector<16x16xf32>
    %c0_44 = arith.constant 0 : index
    %c3_45 = arith.constant 3 : index
    %48 = memref.load %arg3[%c0_44, %c3_45] : memref<5x4xf32, #tpu.memory_space<smem>>
    %49 = vector.broadcast %48 : f32 to vector<1x256xf32>
    %50 = arith.mulf %49, %15 : vector<1x256xf32>
    %51 = arith.addf %43, %50 : vector<1x256xf32>
    %c0_46 = arith.constant 0 : index
    %c0_47 = arith.constant 0 : index
    %52 = vector.load %arg9[%c0_46, %c0_47] : memref<160x16xf32, #tpu.memory_space<vmem>>, vector<16x16xf32>
    tpu.vector_store %arg9[%c0_46, %c0_47], %47 {strides = array<i32>} : memref<160x16xf32, #tpu.memory_space<vmem>>, vector<16x16xf32>,
    %c0_48 = arith.constant 0 : index
    %c0_49 = arith.constant 0 : index
    %c0_50 = arith.constant 0 : index
    %c0_51 = arith.constant 0 : index
    %53 = vector.load %arg8[%c0_48, %c0_49, %c0_50, %c0_51] : memref<2x5x1x256xf32, #tpu.memory_space<vmem>>, vector<1x1x1x256xf32>
    %54 = vector.shape_cast %53 : vector<1x1x1x256xf32> to vector<1x256xf32>
    %55 = vector.shape_cast %51 : vector<1x256xf32> to vector<1x1x1x256xf32>
    tpu.vector_store %arg8[%c0_48, %c0_49, %c0_50, %c0_51], %55 {strides = array<i32>} : memref<2x5x1x256xf32, #tpu.memory_space<vmem>>, vector<1x1x1x256xf32>,
    %c1_52 = arith.constant 1 : index
    %c0_53 = arith.constant 0 : index
    %56 = memref.load %arg3[%c1_52, %c0_53] : memref<5x4xf32, #tpu.memory_space<smem>>
    %57 = vector.broadcast %56 : f32 to vector<16x16xf32>
    %58 = arith.mulf %57, %1 : vector<16x16xf32>
    %c1_54 = arith.constant 1 : index
    %59 = memref.load %arg4[%c1_54] : memref<5xf32, #tpu.memory_space<smem>>
    %60 = vector.broadcast %59 : f32 to vector<16x16xf32>
    %61 = arith.addf %58, %60 : vector<16x16xf32>
    %c1_55 = arith.constant 1 : index
    %c0_56 = arith.constant 0 : index
    %62 = memref.load %arg3[%c1_55, %c0_56] : memref<5x4xf32, #tpu.memory_space<smem>>
    %63 = vector.broadcast %62 : f32 to vector<1x256xf32>
    %64 = arith.mulf %63, %9 : vector<1x256xf32>
    %c1_57 = arith.constant 1 : index
    %65 = memref.load %arg4[%c1_57] : memref<5xf32, #tpu.memory_space<smem>>
    %66 = vector.broadcast %65 : f32 to vector<1x256xf32>
    %67 = arith.addf %64, %66 : vector<1x256xf32>
    %c1_58 = arith.constant 1 : index
    %c1_59 = arith.constant 1 : index
    %68 = memref.load %arg3[%c1_58, %c1_59] : memref<5x4xf32, #tpu.memory_space<smem>>
    %69 = vector.broadcast %68 : f32 to vector<16x16xf32>
    %70 = arith.mulf %69, %3 : vector<16x16xf32>
    %71 = arith.addf %61, %70 : vector<16x16xf32>
    %c1_60 = arith.constant 1 : index
    %c1_61 = arith.constant 1 : index
    %72 = memref.load %arg3[%c1_60, %c1_61] : memref<5x4xf32, #tpu.memory_space<smem>>
    %73 = vector.broadcast %72 : f32 to vector<1x256xf32>
    %74 = arith.mulf %73, %11 : vector<1x256xf32>
    %75 = arith.addf %67, %74 : vector<1x256xf32>
    %c1_62 = arith.constant 1 : index
    %c2_63 = arith.constant 2 : index
    %76 = memref.load %arg3[%c1_62, %c2_63] : memref<5x4xf32, #tpu.memory_space<smem>>
    %77 = vector.broadcast %76 : f32 to vector<16x16xf32>
    %78 = arith.mulf %77, %5 : vector<16x16xf32>
    %79 = arith.addf %71, %78 : vector<16x16xf32>
    %c1_64 = arith.constant 1 : index
    %c2_65 = arith.constant 2 : index
    %80 = memref.load %arg3[%c1_64, %c2_65] : memref<5x4xf32, #tpu.memory_space<smem>>
    %81 = vector.broadcast %80 : f32 to vector<1x256xf32>
    %82 = arith.mulf %81, %13 : vector<1x256xf32>
    %83 = arith.addf %75, %82 : vector<1x256xf32>
    %c1_66 = arith.constant 1 : index
    %c3_67 = arith.constant 3 : index
    %84 = memref.load %arg3[%c1_66, %c3_67] : memref<5x4xf32, #tpu.memory_space<smem>>
    %85 = vector.broadcast %84 : f32 to vector<16x16xf32>
    %86 = arith.mulf %85, %7 : vector<16x16xf32>
    %87 = arith.addf %79, %86 : vector<16x16xf32>
    %c1_68 = arith.constant 1 : index
    %c3_69 = arith.constant 3 : index
    %88 = memref.load %arg3[%c1_68, %c3_69] : memref<5x4xf32, #tpu.memory_space<smem>>
    %89 = vector.broadcast %88 : f32 to vector<1x256xf32>
    %90 = arith.mulf %89, %15 : vector<1x256xf32>
    %91 = arith.addf %83, %90 : vector<1x256xf32>
    %c16 = arith.constant 16 : index
    %c0_70 = arith.constant 0 : index
    %92 = vector.load %arg9[%c16, %c0_70] : memref<160x16xf32, #tpu.memory_space<vmem>>, vector<16x16xf32>
    tpu.vector_store %arg9[%c16, %c0_70], %87 {strides = array<i32>} : memref<160x16xf32, #tpu.memory_space<vmem>>, vector<16x16xf32>,
    %c0_71 = arith.constant 0 : index
    %c1_72 = arith.constant 1 : index
    %c0_73 = arith.constant 0 : index
    %c0_74 = arith.constant 0 : index
    %93 = vector.load %arg8[%c0_71, %c1_72, %c0_73, %c0_74] : memref<2x5x1x256xf32, #tpu.memory_space<vmem>>, vector<1x1x1x256xf32>
    %94 = vector.shape_cast %93 : vector<1x1x1x256xf32> to vector<1x256xf32>
    %95 = vector.shape_cast %91 : vector<1x256xf32> to vector<1x1x1x256xf32>
    tpu.vector_store %arg8[%c0_71, %c1_72, %c0_73, %c0_74], %95 {strides = array<i32>} : memref<2x5x1x256xf32, #tpu.memory_space<vmem>>, vector<1x1x1x256xf32>,
    %c2_75 = arith.constant 2 : index
    %c0_76 = arith.constant 0 : index
    %96 = memref.load %arg3[%c2_75, %c0_76] : memref<5x4xf32, #tpu.memory_space<smem>>
    %97 = vector.broadcast %96 : f32 to vector<16x16xf32>
    %98 = arith.mulf %97, %1 : vector<16x16xf32>
    %c2_77 = arith.constant 2 : index
    %99 = memref.load %arg4[%c2_77] : memref<5xf32, #tpu.memory_space<smem>>
    %100 = vector.broadcast %99 : f32 to vector<16x16xf32>
    %101 = arith.addf %98, %100 : vector<16x16xf32>
    %c2_78 = arith.constant 2 : index
    %c0_79 = arith.constant 0 : index
    %102 = memref.load %arg3[%c2_78, %c0_79] : memref<5x4xf32, #tpu.memory_space<smem>>
    %103 = vector.broadcast %102 : f32 to vector<1x256xf32>
    %104 = arith.mulf %103, %9 : vector<1x256xf32>
    %c2_80 = arith.constant 2 : index
    %105 = memref.load %arg4[%c2_80] : memref<5xf32, #tpu.memory_space<smem>>
    %106 = vector.broadcast %105 : f32 to vector<1x256xf32>
    %107 = arith.addf %104, %106 : vector<1x256xf32>
    %c2_81 = arith.constant 2 : index
    %c1_82 = arith.constant 1 : index
    %108 = memref.load %arg3[%c2_81, %c1_82] : memref<5x4xf32, #tpu.memory_space<smem>>
    %109 = vector.broadcast %108 : f32 to vector<16x16xf32>
    %110 = arith.mulf %109, %3 : vector<16x16xf32>
    %111 = arith.addf %101, %110 : vector<16x16xf32>
    %c2_83 = arith.constant 2 : index
    %c1_84 = arith.constant 1 : index
    %112 = memref.load %arg3[%c2_83, %c1_84] : memref<5x4xf32, #tpu.memory_space<smem>>
    %113 = vector.broadcast %112 : f32 to vector<1x256xf32>
    %114 = arith.mulf %113, %11 : vector<1x256xf32>
    %115 = arith.addf %107, %114 : vector<1x256xf32>
    %c2_85 = arith.constant 2 : index
    %c2_86 = arith.constant 2 : index
    %116 = memref.load %arg3[%c2_85, %c2_86] : memref<5x4xf32, #tpu.memory_space<smem>>
    %117 = vector.broadcast %116 : f32 to vector<16x16xf32>
    %118 = arith.mulf %117, %5 : vector<16x16xf32>
    %119 = arith.addf %111, %118 : vector<16x16xf32>
    %c2_87 = arith.constant 2 : index
    %c2_88 = arith.constant 2 : index
    %120 = memref.load %arg3[%c2_87, %c2_88] : memref<5x4xf32, #tpu.memory_space<smem>>
    %121 = vector.broadcast %120 : f32 to vector<1x256xf32>
    %122 = arith.mulf %121, %13 : vector<1x256xf32>
    %123 = arith.addf %115, %122 : vector<1x256xf32>
    %c2_89 = arith.constant 2 : index
    %c3_90 = arith.constant 3 : index
    %124 = memref.load %arg3[%c2_89, %c3_90] : memref<5x4xf32, #tpu.memory_space<smem>>
    %125 = vector.broadcast %124 : f32 to vector<16x16xf32>
    %126 = arith.mulf %125, %7 : vector<16x16xf32>
    %127 = arith.addf %119, %126 : vector<16x16xf32>
    %c2_91 = arith.constant 2 : index
    %c3_92 = arith.constant 3 : index
    %128 = memref.load %arg3[%c2_91, %c3_92] : memref<5x4xf32, #tpu.memory_space<smem>>
    %129 = vector.broadcast %128 : f32 to vector<1x256xf32>
    %130 = arith.mulf %129, %15 : vector<1x256xf32>
    %131 = arith.addf %123, %130 : vector<1x256xf32>
    %c32 = arith.constant 32 : index
    %c0_93 = arith.constant 0 : index
    %132 = vector.load %arg9[%c32, %c0_93] : memref<160x16xf32, #tpu.memory_space<vmem>>, vector<16x16xf32>
    tpu.vector_store %arg9[%c32, %c0_93], %127 {strides = array<i32>} : memref<160x16xf32, #tpu.memory_space<vmem>>, vector<16x16xf32>,
    %c0_94 = arith.constant 0 : index
    %c2_95 = arith.constant 2 : index
    %c0_96 = arith.constant 0 : index
    %c0_97 = arith.constant 0 : index
    %133 = vector.load %arg8[%c0_94, %c2_95, %c0_96, %c0_97] : memref<2x5x1x256xf32, #tpu.memory_space<vmem>>, vector<1x1x1x256xf32>
    %134 = vector.shape_cast %133 : vector<1x1x1x256xf32> to vector<1x256xf32>
    %135 = vector.shape_cast %131 : vector<1x256xf32> to vector<1x1x1x256xf32>
    tpu.vector_store %arg8[%c0_94, %c2_95, %c0_96, %c0_97], %135 {strides = array<i32>} : memref<2x5x1x256xf32, #tpu.memory_space<vmem>>, vector<1x1x1x256xf32>,
    %c3_98 = arith.constant 3 : index
    %c0_99 = arith.constant 0 : index
    %136 = memref.load %arg3[%c3_98, %c0_99] : memref<5x4xf32, #tpu.memory_space<smem>>
    %137 = vector.broadcast %136 : f32 to vector<16x16xf32>
    %138 = arith.mulf %137, %1 : vector<16x16xf32>
    %c3_100 = arith.constant 3 : index
    %139 = memref.load %arg4[%c3_100] : memref<5xf32, #tpu.memory_space<smem>>
    %140 = vector.broadcast %139 : f32 to vector<16x16xf32>
    %141 = arith.addf %138, %140 : vector<16x16xf32>
    %c3_101 = arith.constant 3 : index
    %c0_102 = arith.constant 0 : index
    %142 = memref.load %arg3[%c3_101, %c0_102] : memref<5x4xf32, #tpu.memory_space<smem>>
    %143 = vector.broadcast %142 : f32 to vector<1x256xf32>
    %144 = arith.mulf %143, %9 : vector<1x256xf32>
    %c3_103 = arith.constant 3 : index
    %145 = memref.load %arg4[%c3_103] : memref<5xf32, #tpu.memory_space<smem>>
    %146 = vector.broadcast %145 : f32 to vector<1x256xf32>
    %147 = arith.addf %144, %146 : vector<1x256xf32>
    %c3_104 = arith.constant 3 : index
    %c1_105 = arith.constant 1 : index
    %148 = memref.load %arg3[%c3_104, %c1_105] : memref<5x4xf32, #tpu.memory_space<smem>>
    %149 = vector.broadcast %148 : f32 to vector<16x16xf32>
    %150 = arith.mulf %149, %3 : vector<16x16xf32>
    %151 = arith.addf %141, %150 : vector<16x16xf32>
    %c3_106 = arith.constant 3 : index
    %c1_107 = arith.constant 1 : index
    %152 = memref.load %arg3[%c3_106, %c1_107] : memref<5x4xf32, #tpu.memory_space<smem>>
    %153 = vector.broadcast %152 : f32 to vector<1x256xf32>
    %154 = arith.mulf %153, %11 : vector<1x256xf32>
    %155 = arith.addf %147, %154 : vector<1x256xf32>
    %c3_108 = arith.constant 3 : index
    %c2_109 = arith.constant 2 : index
    %156 = memref.load %arg3[%c3_108, %c2_109] : memref<5x4xf32, #tpu.memory_space<smem>>
    %157 = vector.broadcast %156 : f32 to vector<16x16xf32>
    %158 = arith.mulf %157, %5 : vector<16x16xf32>
    %159 = arith.addf %151, %158 : vector<16x16xf32>
    %c3_110 = arith.constant 3 : index
    %c2_111 = arith.constant 2 : index
    %160 = memref.load %arg3[%c3_110, %c2_111] : memref<5x4xf32, #tpu.memory_space<smem>>
    %161 = vector.broadcast %160 : f32 to vector<1x256xf32>
    %162 = arith.mulf %161, %13 : vector<1x256xf32>
    %163 = arith.addf %155, %162 : vector<1x256xf32>
    %c3_112 = arith.constant 3 : index
    %c3_113 = arith.constant 3 : index
    %164 = memref.load %arg3[%c3_112, %c3_113] : memref<5x4xf32, #tpu.memory_space<smem>>
    %165 = vector.broadcast %164 : f32 to vector<16x16xf32>
    %166 = arith.mulf %165, %7 : vector<16x16xf32>
    %167 = arith.addf %159, %166 : vector<16x16xf32>
    %c3_114 = arith.constant 3 : index
    %c3_115 = arith.constant 3 : index
    %168 = memref.load %arg3[%c3_114, %c3_115] : memref<5x4xf32, #tpu.memory_space<smem>>
    %169 = vector.broadcast %168 : f32 to vector<1x256xf32>
    %170 = arith.mulf %169, %15 : vector<1x256xf32>
    %171 = arith.addf %163, %170 : vector<1x256xf32>
    %c48 = arith.constant 48 : index
    %c0_116 = arith.constant 0 : index
    %172 = vector.load %arg9[%c48, %c0_116] : memref<160x16xf32, #tpu.memory_space<vmem>>, vector<16x16xf32>
    tpu.vector_store %arg9[%c48, %c0_116], %167 {strides = array<i32>} : memref<160x16xf32, #tpu.memory_space<vmem>>, vector<16x16xf32>,
    %c0_117 = arith.constant 0 : index
    %c3_118 = arith.constant 3 : index
    %c0_119 = arith.constant 0 : index
    %c0_120 = arith.constant 0 : index
    %173 = vector.load %arg8[%c0_117, %c3_118, %c0_119, %c0_120] : memref<2x5x1x256xf32, #tpu.memory_space<vmem>>, vector<1x1x1x256xf32>
    %174 = vector.shape_cast %173 : vector<1x1x1x256xf32> to vector<1x256xf32>
    %175 = vector.shape_cast %171 : vector<1x256xf32> to vector<1x1x1x256xf32>
    tpu.vector_store %arg8[%c0_117, %c3_118, %c0_119, %c0_120], %175 {strides = array<i32>} : memref<2x5x1x256xf32, #tpu.memory_space<vmem>>, vector<1x1x1x256xf32>,
    %c4 = arith.constant 4 : index
    %c0_121 = arith.constant 0 : index
    %176 = memref.load %arg3[%c4, %c0_121] : memref<5x4xf32, #tpu.memory_space<smem>>
    %177 = vector.broadcast %176 : f32 to vector<16x16xf32>
    %178 = arith.mulf %177, %1 : vector<16x16xf32>
    %c4_122 = arith.constant 4 : index
    %179 = memref.load %arg4[%c4_122] : memref<5xf32, #tpu.memory_space<smem>>
    %180 = vector.broadcast %179 : f32 to vector<16x16xf32>
    %181 = arith.addf %178, %180 : vector<16x16xf32>
    %c4_123 = arith.constant 4 : index
    %c0_124 = arith.constant 0 : index
    %182 = memref.load %arg3[%c4_123, %c0_124] : memref<5x4xf32, #tpu.memory_space<smem>>
    %183 = vector.broadcast %182 : f32 to vector<1x256xf32>
    %184 = arith.mulf %183, %9 : vector<1x256xf32>
    %c4_125 = arith.constant 4 : index
    %185 = memref.load %arg4[%c4_125] : memref<5xf32, #tpu.memory_space<smem>>
    %186 = vector.broadcast %185 : f32 to vector<1x256xf32>
    %187 = arith.addf %184, %186 : vector<1x256xf32>
    %c4_126 = arith.constant 4 : index
    %c1_127 = arith.constant 1 : index
    %188 = memref.load %arg3[%c4_126, %c1_127] : memref<5x4xf32, #tpu.memory_space<smem>>
    %189 = vector.broadcast %188 : f32 to vector<16x16xf32>
    %190 = arith.mulf %189, %3 : vector<16x16xf32>
    %191 = arith.addf %181, %190 : vector<16x16xf32>
    %c4_128 = arith.constant 4 : index
    %c1_129 = arith.constant 1 : index
    %192 = memref.load %arg3[%c4_128, %c1_129] : memref<5x4xf32, #tpu.memory_space<smem>>
    %193 = vector.broadcast %192 : f32 to vector<1x256xf32>
    %194 = arith.mulf %193, %11 : vector<1x256xf32>
    %195 = arith.addf %187, %194 : vector<1x256xf32>
    %c4_130 = arith.constant 4 : index
    %c2_131 = arith.constant 2 : index
    %196 = memref.load %arg3[%c4_130, %c2_131] : memref<5x4xf32, #tpu.memory_space<smem>>
    %197 = vector.broadcast %196 : f32 to vector<16x16xf32>
    %198 = arith.mulf %197, %5 : vector<16x16xf32>
    %199 = arith.addf %191, %198 : vector<16x16xf32>
    %c4_132 = arith.constant 4 : index
    %c2_133 = arith.constant 2 : index
    %200 = memref.load %arg3[%c4_132, %c2_133] : memref<5x4xf32, #tpu.memory_space<smem>>
    %201 = vector.broadcast %200 : f32 to vector<1x256xf32>
    %202 = arith.mulf %201, %13 : vector<1x256xf32>
    %203 = arith.addf %195, %202 : vector<1x256xf32>
    %c4_134 = arith.constant 4 : index
    %c3_135 = arith.constant 3 : index
    %204 = memref.load %arg3[%c4_134, %c3_135] : memref<5x4xf32, #tpu.memory_space<smem>>
    %205 = vector.broadcast %204 : f32 to vector<16x16xf32>
    %206 = arith.mulf %205, %7 : vector<16x16xf32>
    %207 = arith.addf %199, %206 : vector<16x16xf32>
    %c4_136 = arith.constant 4 : index
    %c3_137 = arith.constant 3 : index
    %208 = memref.load %arg3[%c4_136, %c3_137] : memref<5x4xf32, #tpu.memory_space<smem>>
    %209 = vector.broadcast %208 : f32 to vector<1x256xf32>
    %210 = arith.mulf %209, %15 : vector<1x256xf32>
    %211 = arith.addf %203, %210 : vector<1x256xf32>
    %c64 = arith.constant 64 : index
    %c0_138 = arith.constant 0 : index
    %212 = vector.load %arg9[%c64, %c0_138] : memref<160x16xf32, #tpu.memory_space<vmem>>, vector<16x16xf32>
    tpu.vector_store %arg9[%c64, %c0_138], %207 {strides = array<i32>} : memref<160x16xf32, #tpu.memory_space<vmem>>, vector<16x16xf32>,
    %c0_139 = arith.constant 0 : index
    %c4_140 = arith.constant 4 : index
    %c0_141 = arith.constant 0 : index
    %c0_142 = arith.constant 0 : index
    %213 = vector.load %arg8[%c0_139, %c4_140, %c0_141, %c0_142] : memref<2x5x1x256xf32, #tpu.memory_space<vmem>>, vector<1x1x1x256xf32>
    %214 = vector.shape_cast %213 : vector<1x1x1x256xf32> to vector<1x256xf32>
    %215 = vector.shape_cast %211 : vector<1x256xf32> to vector<1x1x1x256xf32>
    tpu.vector_store %arg8[%c0_139, %c4_140, %c0_141, %c0_142], %215 {strides = array<i32>} : memref<2x5x1x256xf32, #tpu.memory_space<vmem>>, vector<1x1x1x256xf32>,
    %c1_143 = arith.constant 1 : index
    %c0_144 = arith.constant 0 : index
    %c0_145 = arith.constant 0 : index
    %c0_146 = arith.constant 0 : index
    %216 = vector.load %arg1[%c1_143, %c0_144, %c0_145, %c0_146] : memref<2x4x16x16xf32, #tpu.memory_space<vmem>>, vector<1x1x16x16xf32>
    %217 = vector.shape_cast %216 : vector<1x1x16x16xf32> to vector<16x16xf32>
    %c1_147 = arith.constant 1 : index
    %c1_148 = arith.constant 1 : index
    %c0_149 = arith.constant 0 : index
    %c0_150 = arith.constant 0 : index
    %218 = vector.load %arg1[%c1_147, %c1_148, %c0_149, %c0_150] : memref<2x4x16x16xf32, #tpu.memory_space<vmem>>, vector<1x1x16x16xf32>
    %219 = vector.shape_cast %218 : vector<1x1x16x16xf32> to vector<16x16xf32>
    %c1_151 = arith.constant 1 : index
    %c2_152 = arith.constant 2 : index
    %c0_153 = arith.constant 0 : index
    %c0_154 = arith.constant 0 : index
    %220 = vector.load %arg1[%c1_151, %c2_152, %c0_153, %c0_154] : memref<2x4x16x16xf32, #tpu.memory_space<vmem>>, vector<1x1x16x16xf32>
    %221 = vector.shape_cast %220 : vector<1x1x16x16xf32> to vector<16x16xf32>
    %c1_155 = arith.constant 1 : index
    %c3_156 = arith.constant 3 : index
    %c0_157 = arith.constant 0 : index
    %c0_158 = arith.constant 0 : index
    %222 = vector.load %arg1[%c1_155, %c3_156, %c0_157, %c0_158] : memref<2x4x16x16xf32, #tpu.memory_space<vmem>>, vector<1x1x16x16xf32>
    %223 = vector.shape_cast %222 : vector<1x1x16x16xf32> to vector<16x16xf32>
    %c1_159 = arith.constant 1 : index
    %c0_160 = arith.constant 0 : index
    %c0_161 = arith.constant 0 : index
    %c0_162 = arith.constant 0 : index
    %224 = vector.load %arg2[%c1_159, %c0_160, %c0_161, %c0_162] : memref<2x4x1x256xf32, #tpu.memory_space<vmem>>, vector<1x1x1x256xf32>
    %225 = vector.shape_cast %224 : vector<1x1x1x256xf32> to vector<1x256xf32>
    %c1_163 = arith.constant 1 : index
    %c1_164 = arith.constant 1 : index
    %c0_165 = arith.constant 0 : index
    %c0_166 = arith.constant 0 : index
    %226 = vector.load %arg2[%c1_163, %c1_164, %c0_165, %c0_166] : memref<2x4x1x256xf32, #tpu.memory_space<vmem>>, vector<1x1x1x256xf32>
    %227 = vector.shape_cast %226 : vector<1x1x1x256xf32> to vector<1x256xf32>
    %c1_167 = arith.constant 1 : index
    %c2_168 = arith.constant 2 : index
    %c0_169 = arith.constant 0 : index
    %c0_170 = arith.constant 0 : index
    %228 = vector.load %arg2[%c1_167, %c2_168, %c0_169, %c0_170] : memref<2x4x1x256xf32, #tpu.memory_space<vmem>>, vector<1x1x1x256xf32>
    %229 = vector.shape_cast %228 : vector<1x1x1x256xf32> to vector<1x256xf32>
    %c1_171 = arith.constant 1 : index
    %c3_172 = arith.constant 3 : index
    %c0_173 = arith.constant 0 : index
    %c0_174 = arith.constant 0 : index
    %230 = vector.load %arg2[%c1_171, %c3_172, %c0_173, %c0_174] : memref<2x4x1x256xf32, #tpu.memory_space<vmem>>, vector<1x1x1x256xf32>
    %231 = vector.shape_cast %230 : vector<1x1x1x256xf32> to vector<1x256xf32>
    %c0_175 = arith.constant 0 : index
    %c0_176 = arith.constant 0 : index
    %232 = memref.load %arg3[%c0_175, %c0_176] : memref<5x4xf32, #tpu.memory_space<smem>>
    %233 = vector.broadcast %232 : f32 to vector<16x16xf32>
    %234 = arith.mulf %233, %217 : vector<16x16xf32>
    %c0_177 = arith.constant 0 : index
    %235 = memref.load %arg4[%c0_177] : memref<5xf32, #tpu.memory_space<smem>>
    %236 = vector.broadcast %235 : f32 to vector<16x16xf32>
    %237 = arith.addf %234, %236 : vector<16x16xf32>
    %c0_178 = arith.constant 0 : index
    %c0_179 = arith.constant 0 : index
    %238 = memref.load %arg3[%c0_178, %c0_179] : memref<5x4xf32, #tpu.memory_space<smem>>
    %239 = vector.broadcast %238 : f32 to vector<1x256xf32>
    %240 = arith.mulf %239, %225 : vector<1x256xf32>
    %c0_180 = arith.constant 0 : index
    %241 = memref.load %arg4[%c0_180] : memref<5xf32, #tpu.memory_space<smem>>
    %242 = vector.broadcast %241 : f32 to vector<1x256xf32>
    %243 = arith.addf %240, %242 : vector<1x256xf32>
    %c0_181 = arith.constant 0 : index
    %c1_182 = arith.constant 1 : index
    %244 = memref.load %arg3[%c0_181, %c1_182] : memref<5x4xf32, #tpu.memory_space<smem>>
    %245 = vector.broadcast %244 : f32 to vector<16x16xf32>
    %246 = arith.mulf %245, %219 : vector<16x16xf32>
    %247 = arith.addf %237, %246 : vector<16x16xf32>
    %c0_183 = arith.constant 0 : index
    %c1_184 = arith.constant 1 : index
    %248 = memref.load %arg3[%c0_183, %c1_184] : memref<5x4xf32, #tpu.memory_space<smem>>
    %249 = vector.broadcast %248 : f32 to vector<1x256xf32>
    %250 = arith.mulf %249, %227 : vector<1x256xf32>
    %251 = arith.addf %243, %250 : vector<1x256xf32>
    %c0_185 = arith.constant 0 : index
    %c2_186 = arith.constant 2 : index
    %252 = memref.load %arg3[%c0_185, %c2_186] : memref<5x4xf32, #tpu.memory_space<smem>>
    %253 = vector.broadcast %252 : f32 to vector<16x16xf32>
    %254 = arith.mulf %253, %221 : vector<16x16xf32>
    %255 = arith.addf %247, %254 : vector<16x16xf32>
    %c0_187 = arith.constant 0 : index
    %c2_188 = arith.constant 2 : index
    %256 = memref.load %arg3[%c0_187, %c2_188] : memref<5x4xf32, #tpu.memory_space<smem>>
    %257 = vector.broadcast %256 : f32 to vector<1x256xf32>
    %258 = arith.mulf %257, %229 : vector<1x256xf32>
    %259 = arith.addf %251, %258 : vector<1x256xf32>
    %c0_189 = arith.constant 0 : index
    %c3_190 = arith.constant 3 : index
    %260 = memref.load %arg3[%c0_189, %c3_190] : memref<5x4xf32, #tpu.memory_space<smem>>
    %261 = vector.broadcast %260 : f32 to vector<16x16xf32>
    %262 = arith.mulf %261, %223 : vector<16x16xf32>
    %263 = arith.addf %255, %262 : vector<16x16xf32>
    %c0_191 = arith.constant 0 : index
    %c3_192 = arith.constant 3 : index
    %264 = memref.load %arg3[%c0_191, %c3_192] : memref<5x4xf32, #tpu.memory_space<smem>>
    %265 = vector.broadcast %264 : f32 to vector<1x256xf32>
    %266 = arith.mulf %265, %231 : vector<1x256xf32>
    %267 = arith.addf %259, %266 : vector<1x256xf32>
    %c80 = arith.constant 80 : index
    %c0_193 = arith.constant 0 : index
    %268 = vector.load %arg9[%c80, %c0_193] : memref<160x16xf32, #tpu.memory_space<vmem>>, vector<16x16xf32>
    tpu.vector_store %arg9[%c80, %c0_193], %263 {strides = array<i32>} : memref<160x16xf32, #tpu.memory_space<vmem>>, vector<16x16xf32>,
    %c1_194 = arith.constant 1 : index
    %c0_195 = arith.constant 0 : index
    %c0_196 = arith.constant 0 : index
    %c0_197 = arith.constant 0 : index
    %269 = vector.load %arg8[%c1_194, %c0_195, %c0_196, %c0_197] : memref<2x5x1x256xf32, #tpu.memory_space<vmem>>, vector<1x1x1x256xf32>
    %270 = vector.shape_cast %269 : vector<1x1x1x256xf32> to vector<1x256xf32>
    %271 = vector.shape_cast %267 : vector<1x256xf32> to vector<1x1x1x256xf32>
    tpu.vector_store %arg8[%c1_194, %c0_195, %c0_196, %c0_197], %271 {strides = array<i32>} : memref<2x5x1x256xf32, #tpu.memory_space<vmem>>, vector<1x1x1x256xf32>,
    %c1_198 = arith.constant 1 : index
    %c0_199 = arith.constant 0 : index
    %272 = memref.load %arg3[%c1_198, %c0_199] : memref<5x4xf32, #tpu.memory_space<smem>>
    %273 = vector.broadcast %272 : f32 to vector<16x16xf32>
    %274 = arith.mulf %273, %217 : vector<16x16xf32>
    %c1_200 = arith.constant 1 : index
    %275 = memref.load %arg4[%c1_200] : memref<5xf32, #tpu.memory_space<smem>>
    %276 = vector.broadcast %275 : f32 to vector<16x16xf32>
    %277 = arith.addf %274, %276 : vector<16x16xf32>
    %c1_201 = arith.constant 1 : index
    %c0_202 = arith.constant 0 : index
    %278 = memref.load %arg3[%c1_201, %c0_202] : memref<5x4xf32, #tpu.memory_space<smem>>
    %279 = vector.broadcast %278 : f32 to vector<1x256xf32>
    %280 = arith.mulf %279, %225 : vector<1x256xf32>
    %c1_203 = arith.constant 1 : index
    %281 = memref.load %arg4[%c1_203] : memref<5xf32, #tpu.memory_space<smem>>
    %282 = vector.broadcast %281 : f32 to vector<1x256xf32>
    %283 = arith.addf %280, %282 : vector<1x256xf32>
    %c1_204 = arith.constant 1 : index
    %c1_205 = arith.constant 1 : index
    %284 = memref.load %arg3[%c1_204, %c1_205] : memref<5x4xf32, #tpu.memory_space<smem>>
    %285 = vector.broadcast %284 : f32 to vector<16x16xf32>
    %286 = arith.mulf %285, %219 : vector<16x16xf32>
    %287 = arith.addf %277, %286 : vector<16x16xf32>
    %c1_206 = arith.constant 1 : index
    %c1_207 = arith.constant 1 : index
    %288 = memref.load %arg3[%c1_206, %c1_207] : memref<5x4xf32, #tpu.memory_space<smem>>
    %289 = vector.broadcast %288 : f32 to vector<1x256xf32>
    %290 = arith.mulf %289, %227 : vector<1x256xf32>
    %291 = arith.addf %283, %290 : vector<1x256xf32>
    %c1_208 = arith.constant 1 : index
    %c2_209 = arith.constant 2 : index
    %292 = memref.load %arg3[%c1_208, %c2_209] : memref<5x4xf32, #tpu.memory_space<smem>>
    %293 = vector.broadcast %292 : f32 to vector<16x16xf32>
    %294 = arith.mulf %293, %221 : vector<16x16xf32>
    %295 = arith.addf %287, %294 : vector<16x16xf32>
    %c1_210 = arith.constant 1 : index
    %c2_211 = arith.constant 2 : index
    %296 = memref.load %arg3[%c1_210, %c2_211] : memref<5x4xf32, #tpu.memory_space<smem>>
    %297 = vector.broadcast %296 : f32 to vector<1x256xf32>
    %298 = arith.mulf %297, %229 : vector<1x256xf32>
    %299 = arith.addf %291, %298 : vector<1x256xf32>
    %c1_212 = arith.constant 1 : index
    %c3_213 = arith.constant 3 : index
    %300 = memref.load %arg3[%c1_212, %c3_213] : memref<5x4xf32, #tpu.memory_space<smem>>
    %301 = vector.broadcast %300 : f32 to vector<16x16xf32>
    %302 = arith.mulf %301, %223 : vector<16x16xf32>
    %303 = arith.addf %295, %302 : vector<16x16xf32>
    %c1_214 = arith.constant 1 : index
    %c3_215 = arith.constant 3 : index
    %304 = memref.load %arg3[%c1_214, %c3_215] : memref<5x4xf32, #tpu.memory_space<smem>>
    %305 = vector.broadcast %304 : f32 to vector<1x256xf32>
    %306 = arith.mulf %305, %231 : vector<1x256xf32>
    %307 = arith.addf %299, %306 : vector<1x256xf32>
    %c96 = arith.constant 96 : index
    %c0_216 = arith.constant 0 : index
    %308 = vector.load %arg9[%c96, %c0_216] : memref<160x16xf32, #tpu.memory_space<vmem>>, vector<16x16xf32>
    tpu.vector_store %arg9[%c96, %c0_216], %303 {strides = array<i32>} : memref<160x16xf32, #tpu.memory_space<vmem>>, vector<16x16xf32>,
    %c1_217 = arith.constant 1 : index
    %c1_218 = arith.constant 1 : index
    %c0_219 = arith.constant 0 : index
    %c0_220 = arith.constant 0 : index
    %309 = vector.load %arg8[%c1_217, %c1_218, %c0_219, %c0_220] : memref<2x5x1x256xf32, #tpu.memory_space<vmem>>, vector<1x1x1x256xf32>
    %310 = vector.shape_cast %309 : vector<1x1x1x256xf32> to vector<1x256xf32>
    %311 = vector.shape_cast %307 : vector<1x256xf32> to vector<1x1x1x256xf32>
    tpu.vector_store %arg8[%c1_217, %c1_218, %c0_219, %c0_220], %311 {strides = array<i32>} : memref<2x5x1x256xf32, #tpu.memory_space<vmem>>, vector<1x1x1x256xf32>,
    %c2_221 = arith.constant 2 : index
    %c0_222 = arith.constant 0 : index
    %312 = memref.load %arg3[%c2_221, %c0_222] : memref<5x4xf32, #tpu.memory_space<smem>>
    %313 = vector.broadcast %312 : f32 to vector<16x16xf32>
    %314 = arith.mulf %313, %217 : vector<16x16xf32>
    %c2_223 = arith.constant 2 : index
    %315 = memref.load %arg4[%c2_223] : memref<5xf32, #tpu.memory_space<smem>>
    %316 = vector.broadcast %315 : f32 to vector<16x16xf32>
    %317 = arith.addf %314, %316 : vector<16x16xf32>
    %c2_224 = arith.constant 2 : index
    %c0_225 = arith.constant 0 : index
    %318 = memref.load %arg3[%c2_224, %c0_225] : memref<5x4xf32, #tpu.memory_space<smem>>
    %319 = vector.broadcast %318 : f32 to vector<1x256xf32>
    %320 = arith.mulf %319, %225 : vector<1x256xf32>
    %c2_226 = arith.constant 2 : index
    %321 = memref.load %arg4[%c2_226] : memref<5xf32, #tpu.memory_space<smem>>
    %322 = vector.broadcast %321 : f32 to vector<1x256xf32>
    %323 = arith.addf %320, %322 : vector<1x256xf32>
    %c2_227 = arith.constant 2 : index
    %c1_228 = arith.constant 1 : index
    %324 = memref.load %arg3[%c2_227, %c1_228] : memref<5x4xf32, #tpu.memory_space<smem>>
    %325 = vector.broadcast %324 : f32 to vector<16x16xf32>
    %326 = arith.mulf %325, %219 : vector<16x16xf32>
    %327 = arith.addf %317, %326 : vector<16x16xf32>
    %c2_229 = arith.constant 2 : index
    %c1_230 = arith.constant 1 : index
    %328 = memref.load %arg3[%c2_229, %c1_230] : memref<5x4xf32, #tpu.memory_space<smem>>
    %329 = vector.broadcast %328 : f32 to vector<1x256xf32>
    %330 = arith.mulf %329, %227 : vector<1x256xf32>
    %331 = arith.addf %323, %330 : vector<1x256xf32>
    %c2_231 = arith.constant 2 : index
    %c2_232 = arith.constant 2 : index
    %332 = memref.load %arg3[%c2_231, %c2_232] : memref<5x4xf32, #tpu.memory_space<smem>>
    %333 = vector.broadcast %332 : f32 to vector<16x16xf32>
    %334 = arith.mulf %333, %221 : vector<16x16xf32>
    %335 = arith.addf %327, %334 : vector<16x16xf32>
    %c2_233 = arith.constant 2 : index
    %c2_234 = arith.constant 2 : index
    %336 = memref.load %arg3[%c2_233, %c2_234] : memref<5x4xf32, #tpu.memory_space<smem>>
    %337 = vector.broadcast %336 : f32 to vector<1x256xf32>
    %338 = arith.mulf %337, %229 : vector<1x256xf32>
    %339 = arith.addf %331, %338 : vector<1x256xf32>
    %c2_235 = arith.constant 2 : index
    %c3_236 = arith.constant 3 : index
    %340 = memref.load %arg3[%c2_235, %c3_236] : memref<5x4xf32, #tpu.memory_space<smem>>
    %341 = vector.broadcast %340 : f32 to vector<16x16xf32>
    %342 = arith.mulf %341, %223 : vector<16x16xf32>
    %343 = arith.addf %335, %342 : vector<16x16xf32>
    %c2_237 = arith.constant 2 : index
    %c3_238 = arith.constant 3 : index
    %344 = memref.load %arg3[%c2_237, %c3_238] : memref<5x4xf32, #tpu.memory_space<smem>>
    %345 = vector.broadcast %344 : f32 to vector<1x256xf32>
    %346 = arith.mulf %345, %231 : vector<1x256xf32>
    %347 = arith.addf %339, %346 : vector<1x256xf32>
    %c112 = arith.constant 112 : index
    %c0_239 = arith.constant 0 : index
    %348 = vector.load %arg9[%c112, %c0_239] : memref<160x16xf32, #tpu.memory_space<vmem>>, vector<16x16xf32>
    tpu.vector_store %arg9[%c112, %c0_239], %343 {strides = array<i32>} : memref<160x16xf32, #tpu.memory_space<vmem>>, vector<16x16xf32>,
    %c1_240 = arith.constant 1 : index
    %c2_241 = arith.constant 2 : index
    %c0_242 = arith.constant 0 : index
    %c0_243 = arith.constant 0 : index
    %349 = vector.load %arg8[%c1_240, %c2_241, %c0_242, %c0_243] : memref<2x5x1x256xf32, #tpu.memory_space<vmem>>, vector<1x1x1x256xf32>
    %350 = vector.shape_cast %349 : vector<1x1x1x256xf32> to vector<1x256xf32>
    %351 = vector.shape_cast %347 : vector<1x256xf32> to vector<1x1x1x256xf32>
    tpu.vector_store %arg8[%c1_240, %c2_241, %c0_242, %c0_243], %351 {strides = array<i32>} : memref<2x5x1x256xf32, #tpu.memory_space<vmem>>, vector<1x1x1x256xf32>,
    %c3_244 = arith.constant 3 : index
    %c0_245 = arith.constant 0 : index
    %352 = memref.load %arg3[%c3_244, %c0_245] : memref<5x4xf32, #tpu.memory_space<smem>>
    %353 = vector.broadcast %352 : f32 to vector<16x16xf32>
    %354 = arith.mulf %353, %217 : vector<16x16xf32>
    %c3_246 = arith.constant 3 : index
    %355 = memref.load %arg4[%c3_246] : memref<5xf32, #tpu.memory_space<smem>>
    %356 = vector.broadcast %355 : f32 to vector<16x16xf32>
    %357 = arith.addf %354, %356 : vector<16x16xf32>
    %c3_247 = arith.constant 3 : index
    %c0_248 = arith.constant 0 : index
    %358 = memref.load %arg3[%c3_247, %c0_248] : memref<5x4xf32, #tpu.memory_space<smem>>
    %359 = vector.broadcast %358 : f32 to vector<1x256xf32>
    %360 = arith.mulf %359, %225 : vector<1x256xf32>
    %c3_249 = arith.constant 3 : index
    %361 = memref.load %arg4[%c3_249] : memref<5xf32, #tpu.memory_space<smem>>
    %362 = vector.broadcast %361 : f32 to vector<1x256xf32>
    %363 = arith.addf %360, %362 : vector<1x256xf32>
    %c3_250 = arith.constant 3 : index
    %c1_251 = arith.constant 1 : index
    %364 = memref.load %arg3[%c3_250, %c1_251] : memref<5x4xf32, #tpu.memory_space<smem>>
    %365 = vector.broadcast %364 : f32 to vector<16x16xf32>
    %366 = arith.mulf %365, %219 : vector<16x16xf32>
    %367 = arith.addf %357, %366 : vector<16x16xf32>
    %c3_252 = arith.constant 3 : index
    %c1_253 = arith.constant 1 : index
    %368 = memref.load %arg3[%c3_252, %c1_253] : memref<5x4xf32, #tpu.memory_space<smem>>
    %369 = vector.broadcast %368 : f32 to vector<1x256xf32>
    %370 = arith.mulf %369, %227 : vector<1x256xf32>
    %371 = arith.addf %363, %370 : vector<1x256xf32>
    %c3_254 = arith.constant 3 : index
    %c2_255 = arith.constant 2 : index
    %372 = memref.load %arg3[%c3_254, %c2_255] : memref<5x4xf32, #tpu.memory_space<smem>>
    %373 = vector.broadcast %372 : f32 to vector<16x16xf32>
    %374 = arith.mulf %373, %221 : vector<16x16xf32>
    %375 = arith.addf %367, %374 : vector<16x16xf32>
    %c3_256 = arith.constant 3 : index
    %c2_257 = arith.constant 2 : index
    %376 = memref.load %arg3[%c3_256, %c2_257] : memref<5x4xf32, #tpu.memory_space<smem>>
    %377 = vector.broadcast %376 : f32 to vector<1x256xf32>
    %378 = arith.mulf %377, %229 : vector<1x256xf32>
    %379 = arith.addf %371, %378 : vector<1x256xf32>
    %c3_258 = arith.constant 3 : index
    %c3_259 = arith.constant 3 : index
    %380 = memref.load %arg3[%c3_258, %c3_259] : memref<5x4xf32, #tpu.memory_space<smem>>
    %381 = vector.broadcast %380 : f32 to vector<16x16xf32>
    %382 = arith.mulf %381, %223 : vector<16x16xf32>
    %383 = arith.addf %375, %382 : vector<16x16xf32>
    %c3_260 = arith.constant 3 : index
    %c3_261 = arith.constant 3 : index
    %384 = memref.load %arg3[%c3_260, %c3_261] : memref<5x4xf32, #tpu.memory_space<smem>>
    %385 = vector.broadcast %384 : f32 to vector<1x256xf32>
    %386 = arith.mulf %385, %231 : vector<1x256xf32>
    %387 = arith.addf %379, %386 : vector<1x256xf32>
    %c128 = arith.constant 128 : index
    %c0_262 = arith.constant 0 : index
    %388 = vector.load %arg9[%c128, %c0_262] : memref<160x16xf32, #tpu.memory_space<vmem>>, vector<16x16xf32>
    tpu.vector_store %arg9[%c128, %c0_262], %383 {strides = array<i32>} : memref<160x16xf32, #tpu.memory_space<vmem>>, vector<16x16xf32>,
    %c1_263 = arith.constant 1 : index
    %c3_264 = arith.constant 3 : index
    %c0_265 = arith.constant 0 : index
    %c0_266 = arith.constant 0 : index
    %389 = vector.load %arg8[%c1_263, %c3_264, %c0_265, %c0_266] : memref<2x5x1x256xf32, #tpu.memory_space<vmem>>, vector<1x1x1x256xf32>
    %390 = vector.shape_cast %389 : vector<1x1x1x256xf32> to vector<1x256xf32>
    %391 = vector.shape_cast %387 : vector<1x256xf32> to vector<1x1x1x256xf32>
    tpu.vector_store %arg8[%c1_263, %c3_264, %c0_265, %c0_266], %391 {strides = array<i32>} : memref<2x5x1x256xf32, #tpu.memory_space<vmem>>, vector<1x1x1x256xf32>,
    %c4_267 = arith.constant 4 : index
    %c0_268 = arith.constant 0 : index
    %392 = memref.load %arg3[%c4_267, %c0_268] : memref<5x4xf32, #tpu.memory_space<smem>>
    %393 = vector.broadcast %392 : f32 to vector<16x16xf32>
    %394 = arith.mulf %393, %217 : vector<16x16xf32>
    %c4_269 = arith.constant 4 : index
    %395 = memref.load %arg4[%c4_269] : memref<5xf32, #tpu.memory_space<smem>>
    %396 = vector.broadcast %395 : f32 to vector<16x16xf32>
    %397 = arith.addf %394, %396 : vector<16x16xf32>
    %c4_270 = arith.constant 4 : index
    %c0_271 = arith.constant 0 : index
    %398 = memref.load %arg3[%c4_270, %c0_271] : memref<5x4xf32, #tpu.memory_space<smem>>
    %399 = vector.broadcast %398 : f32 to vector<1x256xf32>
    %400 = arith.mulf %399, %225 : vector<1x256xf32>
    %c4_272 = arith.constant 4 : index
    %401 = memref.load %arg4[%c4_272] : memref<5xf32, #tpu.memory_space<smem>>
    %402 = vector.broadcast %401 : f32 to vector<1x256xf32>
    %403 = arith.addf %400, %402 : vector<1x256xf32>
    %c4_273 = arith.constant 4 : index
    %c1_274 = arith.constant 1 : index
    %404 = memref.load %arg3[%c4_273, %c1_274] : memref<5x4xf32, #tpu.memory_space<smem>>
    %405 = vector.broadcast %404 : f32 to vector<16x16xf32>
    %406 = arith.mulf %405, %219 : vector<16x16xf32>
    %407 = arith.addf %397, %406 : vector<16x16xf32>
    %c4_275 = arith.constant 4 : index
    %c1_276 = arith.constant 1 : index
    %408 = memref.load %arg3[%c4_275, %c1_276] : memref<5x4xf32, #tpu.memory_space<smem>>
    %409 = vector.broadcast %408 : f32 to vector<1x256xf32>
    %410 = arith.mulf %409, %227 : vector<1x256xf32>
    %411 = arith.addf %403, %410 : vector<1x256xf32>
    %c4_277 = arith.constant 4 : index
    %c2_278 = arith.constant 2 : index
    %412 = memref.load %arg3[%c4_277, %c2_278] : memref<5x4xf32, #tpu.memory_space<smem>>
    %413 = vector.broadcast %412 : f32 to vector<16x16xf32>
    %414 = arith.mulf %413, %221 : vector<16x16xf32>
    %415 = arith.addf %407, %414 : vector<16x16xf32>
    %c4_279 = arith.constant 4 : index
    %c2_280 = arith.constant 2 : index
    %416 = memref.load %arg3[%c4_279, %c2_280] : memref<5x4xf32, #tpu.memory_space<smem>>
    %417 = vector.broadcast %416 : f32 to vector<1x256xf32>
    %418 = arith.mulf %417, %229 : vector<1x256xf32>
    %419 = arith.addf %411, %418 : vector<1x256xf32>
    %c4_281 = arith.constant 4 : index
    %c3_282 = arith.constant 3 : index
    %420 = memref.load %arg3[%c4_281, %c3_282] : memref<5x4xf32, #tpu.memory_space<smem>>
    %421 = vector.broadcast %420 : f32 to vector<16x16xf32>
    %422 = arith.mulf %421, %223 : vector<16x16xf32>
    %423 = arith.addf %415, %422 : vector<16x16xf32>
    %c4_283 = arith.constant 4 : index
    %c3_284 = arith.constant 3 : index
    %424 = memref.load %arg3[%c4_283, %c3_284] : memref<5x4xf32, #tpu.memory_space<smem>>
    %425 = vector.broadcast %424 : f32 to vector<1x256xf32>
    %426 = arith.mulf %425, %231 : vector<1x256xf32>
    %427 = arith.addf %419, %426 : vector<1x256xf32>
    %c144 = arith.constant 144 : index
    %c0_285 = arith.constant 0 : index
    %428 = vector.load %arg9[%c144, %c0_285] : memref<160x16xf32, #tpu.memory_space<vmem>>, vector<16x16xf32>
    tpu.vector_store %arg9[%c144, %c0_285], %423 {strides = array<i32>} : memref<160x16xf32, #tpu.memory_space<vmem>>, vector<16x16xf32>,
    %c1_286 = arith.constant 1 : index
    %c4_287 = arith.constant 4 : index
    %c0_288 = arith.constant 0 : index
    %c0_289 = arith.constant 0 : index
    %429 = vector.load %arg8[%c1_286, %c4_287, %c0_288, %c0_289] : memref<2x5x1x256xf32, #tpu.memory_space<vmem>>, vector<1x1x1x256xf32>
    %430 = vector.shape_cast %429 : vector<1x1x1x256xf32> to vector<1x256xf32>
    %431 = vector.shape_cast %427 : vector<1x256xf32> to vector<1x1x1x256xf32>
    tpu.vector_store %arg8[%c1_286, %c4_287, %c0_288, %c0_289], %431 {strides = array<i32>} : memref<2x5x1x256xf32, #tpu.memory_space<vmem>>, vector<1x1x1x256xf32>,
    %c0_290 = arith.constant 0 : index
    %c0_291 = arith.constant 0 : index
    %432 = vector.load %arg9[%c0_290, %c0_291] : memref<160x16xf32, #tpu.memory_space<vmem>>, vector<160x16xf32>
    %c0_292 = arith.constant 0 : index
    %c0_293 = arith.constant 0 : index
    %433 = vector.load %arg6[%c0_292, %c0_293] : memref<16x128xf32, #tpu.memory_space<vmem>>, vector<16x128xf32>
    %cst = arith.constant dense<0.000000e+00> : vector<160x128xf32>
    %434 = tpu.matmul %432, %433, %cst {dimension_numbers = #tpu.dot_dimension_numbers<[1], [0], [0], [1], [0, 0, 1, 1], [], []>, precision = #tpu.contract_precision<fp32>} : vector<160x16xf32>, vector<16x128xf32>, vector<160x128xf32> -> vector<160x128xf32>
    %435 = vector.extract_strided_slice %434 {offsets = [0, 0], sizes = [16, 128], strides = [1, 1]} : vector<160x128xf32> to vector<16x128xf32>
    %c0_294 = arith.constant 0 : index
    %c0_295 = arith.constant 0 : index
    %436 = vector.load %arg10[%c0_294, %c0_295] : memref<16x1280xf32, #tpu.memory_space<vmem>>, vector<16x128xf32>
    tpu.vector_store %arg10[%c0_294, %c0_295], %435 {strides = array<i32>} : memref<16x1280xf32, #tpu.memory_space<vmem>>, vector<16x128xf32>,
    %437 = vector.extract_strided_slice %434 {offsets = [16, 0], sizes = [16, 128], strides = [1, 1]} : vector<160x128xf32> to vector<16x128xf32>
    %c0_296 = arith.constant 0 : index
    %c128_297 = arith.constant 128 : index
    %438 = vector.load %arg10[%c0_296, %c128_297] : memref<16x1280xf32, #tpu.memory_space<vmem>>, vector<16x128xf32>
    tpu.vector_store %arg10[%c0_296, %c128_297], %437 {strides = array<i32>} : memref<16x1280xf32, #tpu.memory_space<vmem>>, vector<16x128xf32>,
    %439 = vector.extract_strided_slice %434 {offsets = [32, 0], sizes = [16, 128], strides = [1, 1]} : vector<160x128xf32> to vector<16x128xf32>
    %c0_298 = arith.constant 0 : index
    %c256 = arith.constant 256 : index
    %440 = vector.load %arg10[%c0_298, %c256] : memref<16x1280xf32, #tpu.memory_space<vmem>>, vector<16x128xf32>
    tpu.vector_store %arg10[%c0_298, %c256], %439 {strides = array<i32>} : memref<16x1280xf32, #tpu.memory_space<vmem>>, vector<16x128xf32>,
    %441 = vector.extract_strided_slice %434 {offsets = [48, 0], sizes = [16, 128], strides = [1, 1]} : vector<160x128xf32> to vector<16x128xf32>
    %c0_299 = arith.constant 0 : index
    %c384 = arith.constant 384 : index
    %442 = vector.load %arg10[%c0_299, %c384] : memref<16x1280xf32, #tpu.memory_space<vmem>>, vector<16x128xf32>
    tpu.vector_store %arg10[%c0_299, %c384], %441 {strides = array<i32>} : memref<16x1280xf32, #tpu.memory_space<vmem>>, vector<16x128xf32>,
    %443 = vector.extract_strided_slice %434 {offsets = [64, 0], sizes = [16, 128], strides = [1, 1]} : vector<160x128xf32> to vector<16x128xf32>
    %c0_300 = arith.constant 0 : index
    %c512 = arith.constant 512 : index
    %444 = vector.load %arg10[%c0_300, %c512] : memref<16x1280xf32, #tpu.memory_space<vmem>>, vector<16x128xf32>
    tpu.vector_store %arg10[%c0_300, %c512], %443 {strides = array<i32>} : memref<16x1280xf32, #tpu.memory_space<vmem>>, vector<16x128xf32>,
    %445 = vector.extract_strided_slice %434 {offsets = [80, 0], sizes = [16, 128], strides = [1, 1]} : vector<160x128xf32> to vector<16x128xf32>
    %c0_301 = arith.constant 0 : index
    %c640 = arith.constant 640 : index
    %446 = vector.load %arg10[%c0_301, %c640] : memref<16x1280xf32, #tpu.memory_space<vmem>>, vector<16x128xf32>
    tpu.vector_store %arg10[%c0_301, %c640], %445 {strides = array<i32>} : memref<16x1280xf32, #tpu.memory_space<vmem>>, vector<16x128xf32>,
    %447 = vector.extract_strided_slice %434 {offsets = [96, 0], sizes = [16, 128], strides = [1, 1]} : vector<160x128xf32> to vector<16x128xf32>
    %c0_302 = arith.constant 0 : index
    %c768 = arith.constant 768 : index
    %448 = vector.load %arg10[%c0_302, %c768] : memref<16x1280xf32, #tpu.memory_space<vmem>>, vector<16x128xf32>
    tpu.vector_store %arg10[%c0_302, %c768], %447 {strides = array<i32>} : memref<16x1280xf32, #tpu.memory_space<vmem>>, vector<16x128xf32>,
    %449 = vector.extract_strided_slice %434 {offsets = [112, 0], sizes = [16, 128], strides = [1, 1]} : vector<160x128xf32> to vector<16x128xf32>
    %c0_303 = arith.constant 0 : index
    %c896 = arith.constant 896 : index
    %450 = vector.load %arg10[%c0_303, %c896] : memref<16x1280xf32, #tpu.memory_space<vmem>>, vector<16x128xf32>
    tpu.vector_store %arg10[%c0_303, %c896], %449 {strides = array<i32>} : memref<16x1280xf32, #tpu.memory_space<vmem>>, vector<16x128xf32>,
    %451 = vector.extract_strided_slice %434 {offsets = [128, 0], sizes = [16, 128], strides = [1, 1]} : vector<160x128xf32> to vector<16x128xf32>
    %c0_304 = arith.constant 0 : index
    %c1024 = arith.constant 1024 : index
    %452 = vector.load %arg10[%c0_304, %c1024] : memref<16x1280xf32, #tpu.memory_space<vmem>>, vector<16x128xf32>
    tpu.vector_store %arg10[%c0_304, %c1024], %451 {strides = array<i32>} : memref<16x1280xf32, #tpu.memory_space<vmem>>, vector<16x128xf32>,
    %453 = vector.extract_strided_slice %434 {offsets = [144, 0], sizes = [16, 128], strides = [1, 1]} : vector<160x128xf32> to vector<16x128xf32>
    %c0_305 = arith.constant 0 : index
    %c1152 = arith.constant 1152 : index
    %454 = vector.load %arg10[%c0_305, %c1152] : memref<16x1280xf32, #tpu.memory_space<vmem>>, vector<16x128xf32>
    tpu.vector_store %arg10[%c0_305, %c1152], %453 {strides = array<i32>} : memref<16x1280xf32, #tpu.memory_space<vmem>>, vector<16x128xf32>,
    %c0_306 = arith.constant 0 : index
    %c0_307 = arith.constant 0 : index
    %455 = vector.load %arg5[%c0_306, %c0_307] : memref<128x16xf32, #tpu.memory_space<vmem>>, vector<128x16xf32>
    %c0_308 = arith.constant 0 : index
    %c0_309 = arith.constant 0 : index
    %456 = vector.load %arg10[%c0_308, %c0_309] : memref<16x1280xf32, #tpu.memory_space<vmem>>, vector<16x1280xf32>
    %cst_310 = arith.constant dense<0.000000e+00> : vector<128x1280xf32>
    %457 = tpu.matmul %455, %456, %cst_310 {dimension_numbers = #tpu.dot_dimension_numbers<[1], [0], [0], [1], [0, 0, 1, 1], [], []>, precision = #tpu.contract_precision<fp32>} : vector<128x16xf32>, vector<16x1280xf32>, vector<128x1280xf32> -> vector<128x1280xf32>
    %c0_311 = arith.constant 0 : index
    %c0_312 = arith.constant 0 : index
    %458 = vector.load %arg11[%c0_311, %c0_312] : memref<128x1280xf32, #tpu.memory_space<vmem>>, vector<128x1280xf32>
    tpu.vector_store %arg11[%c0_311, %c0_312], %457 {strides = array<i32>} : memref<128x1280xf32, #tpu.memory_space<vmem>>, vector<128x1280xf32>,
    %c0_313 = arith.constant 0 : index
    %c0_314 = arith.constant 0 : index
    %459 = vector.load %arg11[%c0_313, %c0_314] : memref<128x1280xf32, #tpu.memory_space<vmem>>, vector<128x128xf32>
    %c0_315 = arith.constant 0 : index
    %c128_316 = arith.constant 128 : index
    %460 = vector.load %arg11[%c0_315, %c128_316] : memref<128x1280xf32, #tpu.memory_space<vmem>>, vector<128x128xf32>
    %461 = arith.maximumf %459, %460 : vector<128x128xf32>
    %c0_317 = arith.constant 0 : index
    %c256_318 = arith.constant 256 : index
    %462 = vector.load %arg11[%c0_317, %c256_318] : memref<128x1280xf32, #tpu.memory_space<vmem>>, vector<128x128xf32>
    %463 = arith.maximumf %461, %462 : vector<128x128xf32>
    %c0_319 = arith.constant 0 : index
    %c384_320 = arith.constant 384 : index
    %464 = vector.load %arg11[%c0_319, %c384_320] : memref<128x1280xf32, #tpu.memory_space<vmem>>, vector<128x128xf32>
    %465 = arith.maximumf %463, %464 : vector<128x128xf32>
    %c0_321 = arith.constant 0 : index
    %c512_322 = arith.constant 512 : index
    %466 = vector.load %arg11[%c0_321, %c512_322] : memref<128x1280xf32, #tpu.memory_space<vmem>>, vector<128x128xf32>
    %467 = arith.maximumf %465, %466 : vector<128x128xf32>
    %c0_323 = arith.constant 0 : index
    %c0_324 = arith.constant 0 : index
    %468 = vector.load %arg11[%c0_323, %c0_324] : memref<128x1280xf32, #tpu.memory_space<vmem>>, vector<128x128xf32>
    %469 = arith.subf %468, %467 : vector<128x128xf32>
    %470 = math.exp %469 : vector<128x128xf32>
    %c0_325 = arith.constant 0 : index
    %c128_326 = arith.constant 128 : index
    %471 = vector.load %arg11[%c0_325, %c128_326] : memref<128x1280xf32, #tpu.memory_space<vmem>>, vector<128x128xf32>
    %472 = arith.subf %471, %467 : vector<128x128xf32>
    %473 = math.exp %472 : vector<128x128xf32>
    %474 = arith.addf %470, %473 : vector<128x128xf32>
    %c0_327 = arith.constant 0 : index
    %c256_328 = arith.constant 256 : index
    %475 = vector.load %arg11[%c0_327, %c256_328] : memref<128x1280xf32, #tpu.memory_space<vmem>>, vector<128x128xf32>
    %476 = arith.subf %475, %467 : vector<128x128xf32>
    %477 = math.exp %476 : vector<128x128xf32>
    %478 = arith.addf %474, %477 : vector<128x128xf32>
    %c0_329 = arith.constant 0 : index
    %c384_330 = arith.constant 384 : index
    %479 = vector.load %arg11[%c0_329, %c384_330] : memref<128x1280xf32, #tpu.memory_space<vmem>>, vector<128x128xf32>
    %480 = arith.subf %479, %467 : vector<128x128xf32>
    %481 = math.exp %480 : vector<128x128xf32>
    %482 = arith.addf %478, %481 : vector<128x128xf32>
    %c0_331 = arith.constant 0 : index
    %c512_332 = arith.constant 512 : index
    %483 = vector.load %arg11[%c0_331, %c512_332] : memref<128x1280xf32, #tpu.memory_space<vmem>>, vector<128x128xf32>
    %484 = arith.subf %483, %467 : vector<128x128xf32>
    %485 = math.exp %484 : vector<128x128xf32>
    %486 = arith.addf %482, %485 : vector<128x128xf32>
    %487 = math.log %486 : vector<128x128xf32>
    %488 = arith.addf %467, %487 : vector<128x128xf32>
    %c0_333 = arith.constant 0 : index
    %c0_334 = arith.constant 0 : index
    %489 = vector.load %arg11[%c0_333, %c0_334] : memref<128x1280xf32, #tpu.memory_space<vmem>>, vector<128x128xf32>
    %490 = arith.subf %489, %488 : vector<128x128xf32>
    %c0_335 = arith.constant 0 : index
    %c0_336 = arith.constant 0 : index
    %c0_337 = arith.constant 0 : index
    %c0_338 = arith.constant 0 : index
    %491 = vector.load %arg7[%c0_335, %c0_336, %c0_337, %c0_338] : memref<2x5x128x128xf32, #tpu.memory_space<vmem>>, vector<1x1x128x128xf32>
    %492 = vector.shape_cast %491 : vector<1x1x128x128xf32> to vector<128x128xf32>
    %493 = vector.shape_cast %490 : vector<128x128xf32> to vector<1x1x128x128xf32>
    tpu.vector_store %arg7[%c0_335, %c0_336, %c0_337, %c0_338], %493 {strides = array<i32>} : memref<2x5x128x128xf32, #tpu.memory_space<vmem>>, vector<1x1x128x128xf32>,
    %c0_339 = arith.constant 0 : index
    %c128_340 = arith.constant 128 : index
    %494 = vector.load %arg11[%c0_339, %c128_340] : memref<128x1280xf32, #tpu.memory_space<vmem>>, vector<128x128xf32>
    %495 = arith.subf %494, %488 : vector<128x128xf32>
    %c0_341 = arith.constant 0 : index
    %c1_342 = arith.constant 1 : index
    %c0_343 = arith.constant 0 : index
    %c0_344 = arith.constant 0 : index
    %496 = vector.load %arg7[%c0_341, %c1_342, %c0_343, %c0_344] : memref<2x5x128x128xf32, #tpu.memory_space<vmem>>, vector<1x1x128x128xf32>
    %497 = vector.shape_cast %496 : vector<1x1x128x128xf32> to vector<128x128xf32>
    %498 = vector.shape_cast %495 : vector<128x128xf32> to vector<1x1x128x128xf32>
    tpu.vector_store %arg7[%c0_341, %c1_342, %c0_343, %c0_344], %498 {strides = array<i32>} : memref<2x5x128x128xf32, #tpu.memory_space<vmem>>, vector<1x1x128x128xf32>,
    %c0_345 = arith.constant 0 : index
    %c256_346 = arith.constant 256 : index
    %499 = vector.load %arg11[%c0_345, %c256_346] : memref<128x1280xf32, #tpu.memory_space<vmem>>, vector<128x128xf32>
    %500 = arith.subf %499, %488 : vector<128x128xf32>
    %c0_347 = arith.constant 0 : index
    %c2_348 = arith.constant 2 : index
    %c0_349 = arith.constant 0 : index
    %c0_350 = arith.constant 0 : index
    %501 = vector.load %arg7[%c0_347, %c2_348, %c0_349, %c0_350] : memref<2x5x128x128xf32, #tpu.memory_space<vmem>>, vector<1x1x128x128xf32>
    %502 = vector.shape_cast %501 : vector<1x1x128x128xf32> to vector<128x128xf32>
    %503 = vector.shape_cast %500 : vector<128x128xf32> to vector<1x1x128x128xf32>
    tpu.vector_store %arg7[%c0_347, %c2_348, %c0_349, %c0_350], %503 {strides = array<i32>} : memref<2x5x128x128xf32, #tpu.memory_space<vmem>>, vector<1x1x128x128xf32>,
    %c0_351 = arith.constant 0 : index
    %c384_352 = arith.constant 384 : index
    %504 = vector.load %arg11[%c0_351, %c384_352] : memref<128x1280xf32, #tpu.memory_space<vmem>>, vector<128x128xf32>
    %505 = arith.subf %504, %488 : vector<128x128xf32>
    %c0_353 = arith.constant 0 : index
    %c3_354 = arith.constant 3 : index
    %c0_355 = arith.constant 0 : index
    %c0_356 = arith.constant 0 : index
    %506 = vector.load %arg7[%c0_353, %c3_354, %c0_355, %c0_356] : memref<2x5x128x128xf32, #tpu.memory_space<vmem>>, vector<1x1x128x128xf32>
    %507 = vector.shape_cast %506 : vector<1x1x128x128xf32> to vector<128x128xf32>
    %508 = vector.shape_cast %505 : vector<128x128xf32> to vector<1x1x128x128xf32>
    tpu.vector_store %arg7[%c0_353, %c3_354, %c0_355, %c0_356], %508 {strides = array<i32>} : memref<2x5x128x128xf32, #tpu.memory_space<vmem>>, vector<1x1x128x128xf32>,
    %c0_357 = arith.constant 0 : index
    %c512_358 = arith.constant 512 : index
    %509 = vector.load %arg11[%c0_357, %c512_358] : memref<128x1280xf32, #tpu.memory_space<vmem>>, vector<128x128xf32>
    %510 = arith.subf %509, %488 : vector<128x128xf32>
    %c0_359 = arith.constant 0 : index
    %c4_360 = arith.constant 4 : index
    %c0_361 = arith.constant 0 : index
    %c0_362 = arith.constant 0 : index
    %511 = vector.load %arg7[%c0_359, %c4_360, %c0_361, %c0_362] : memref<2x5x128x128xf32, #tpu.memory_space<vmem>>, vector<1x1x128x128xf32>
    %512 = vector.shape_cast %511 : vector<1x1x128x128xf32> to vector<128x128xf32>
    %513 = vector.shape_cast %510 : vector<128x128xf32> to vector<1x1x128x128xf32>
    tpu.vector_store %arg7[%c0_359, %c4_360, %c0_361, %c0_362], %513 {strides = array<i32>} : memref<2x5x128x128xf32, #tpu.memory_space<vmem>>, vector<1x1x128x128xf32>,
    %c0_363 = arith.constant 0 : index
    %c640_364 = arith.constant 640 : index
    %514 = vector.load %arg11[%c0_363, %c640_364] : memref<128x1280xf32, #tpu.memory_space<vmem>>, vector<128x128xf32>
    %c0_365 = arith.constant 0 : index
    %c768_366 = arith.constant 768 : index
    %515 = vector.load %arg11[%c0_365, %c768_366] : memref<128x1280xf32, #tpu.memory_space<vmem>>, vector<128x128xf32>
    %516 = arith.maximumf %514, %515 : vector<128x128xf32>
    %c0_367 = arith.constant 0 : index
    %c896_368 = arith.constant 896 : index
    %517 = vector.load %arg11[%c0_367, %c896_368] : memref<128x1280xf32, #tpu.memory_space<vmem>>, vector<128x128xf32>
    %518 = arith.maximumf %516, %517 : vector<128x128xf32>
    %c0_369 = arith.constant 0 : index
    %c1024_370 = arith.constant 1024 : index
    %519 = vector.load %arg11[%c0_369, %c1024_370] : memref<128x1280xf32, #tpu.memory_space<vmem>>, vector<128x128xf32>
    %520 = arith.maximumf %518, %519 : vector<128x128xf32>
    %c0_371 = arith.constant 0 : index
    %c1152_372 = arith.constant 1152 : index
    %521 = vector.load %arg11[%c0_371, %c1152_372] : memref<128x1280xf32, #tpu.memory_space<vmem>>, vector<128x128xf32>
    %522 = arith.maximumf %520, %521 : vector<128x128xf32>
    %c0_373 = arith.constant 0 : index
    %c640_374 = arith.constant 640 : index
    %523 = vector.load %arg11[%c0_373, %c640_374] : memref<128x1280xf32, #tpu.memory_space<vmem>>, vector<128x128xf32>
    %524 = arith.subf %523, %522 : vector<128x128xf32>
    %525 = math.exp %524 : vector<128x128xf32>
    %c0_375 = arith.constant 0 : index
    %c768_376 = arith.constant 768 : index
    %526 = vector.load %arg11[%c0_375, %c768_376] : memref<128x1280xf32, #tpu.memory_space<vmem>>, vector<128x128xf32>
    %527 = arith.subf %526, %522 : vector<128x128xf32>
    %528 = math.exp %527 : vector<128x128xf32>
    %529 = arith.addf %525, %528 : vector<128x128xf32>
    %c0_377 = arith.constant 0 : index
    %c896_378 = arith.constant 896 : index
    %530 = vector.load %arg11[%c0_377, %c896_378] : memref<128x1280xf32, #tpu.memory_space<vmem>>, vector<128x128xf32>
    %531 = arith.subf %530, %522 : vector<128x128xf32>
    %532 = math.exp %531 : vector<128x128xf32>
    %533 = arith.addf %529, %532 : vector<128x128xf32>
    %c0_379 = arith.constant 0 : index
    %c1024_380 = arith.constant 1024 : index
    %534 = vector.load %arg11[%c0_379, %c1024_380] : memref<128x1280xf32, #tpu.memory_space<vmem>>, vector<128x128xf32>
    %535 = arith.subf %534, %522 : vector<128x128xf32>
    %536 = math.exp %535 : vector<128x128xf32>
    %537 = arith.addf %533, %536 : vector<128x128xf32>
    %c0_381 = arith.constant 0 : index
    %c1152_382 = arith.constant 1152 : index
    %538 = vector.load %arg11[%c0_381, %c1152_382] : memref<128x1280xf32, #tpu.memory_space<vmem>>, vector<128x128xf32>
    %539 = arith.subf %538, %522 : vector<128x128xf32>
    %540 = math.exp %539 : vector<128x128xf32>
    %541 = arith.addf %537, %540 : vector<128x128xf32>
    %542 = math.log %541 : vector<128x128xf32>
    %543 = arith.addf %522, %542 : vector<128x128xf32>
    %c0_383 = arith.constant 0 : index
    %c640_384 = arith.constant 640 : index
    %544 = vector.load %arg11[%c0_383, %c640_384] : memref<128x1280xf32, #tpu.memory_space<vmem>>, vector<128x128xf32>
    %545 = arith.subf %544, %543 : vector<128x128xf32>
    %c1_385 = arith.constant 1 : index
    %c0_386 = arith.constant 0 : index
    %c0_387 = arith.constant 0 : index
    %c0_388 = arith.constant 0 : index
    %546 = vector.load %arg7[%c1_385, %c0_386, %c0_387, %c0_388] : memref<2x5x128x128xf32, #tpu.memory_space<vmem>>, vector<1x1x128x128xf32>
    %547 = vector.shape_cast %546 : vector<1x1x128x128xf32> to vector<128x128xf32>
    %548 = vector.shape_cast %545 : vector<128x128xf32> to vector<1x1x128x128xf32>
    tpu.vector_store %arg7[%c1_385, %c0_386, %c0_387, %c0_388], %548 {strides = array<i32>} : memref<2x5x128x128xf32, #tpu.memory_space<vmem>>, vector<1x1x128x128xf32>,
    %c0_389 = arith.constant 0 : index
    %c768_390 = arith.constant 768 : index
    %549 = vector.load %arg11[%c0_389, %c768_390] : memref<128x1280xf32, #tpu.memory_space<vmem>>, vector<128x128xf32>
    %550 = arith.subf %549, %543 : vector<128x128xf32>
    %c1_391 = arith.constant 1 : index
    %c1_392 = arith.constant 1 : index
    %c0_393 = arith.constant 0 : index
    %c0_394 = arith.constant 0 : index
    %551 = vector.load %arg7[%c1_391, %c1_392, %c0_393, %c0_394] : memref<2x5x128x128xf32, #tpu.memory_space<vmem>>, vector<1x1x128x128xf32>
    %552 = vector.shape_cast %551 : vector<1x1x128x128xf32> to vector<128x128xf32>
    %553 = vector.shape_cast %550 : vector<128x128xf32> to vector<1x1x128x128xf32>
    tpu.vector_store %arg7[%c1_391, %c1_392, %c0_393, %c0_394], %553 {strides = array<i32>} : memref<2x5x128x128xf32, #tpu.memory_space<vmem>>, vector<1x1x128x128xf32>,
    %c0_395 = arith.constant 0 : index
    %c896_396 = arith.constant 896 : index
    %554 = vector.load %arg11[%c0_395, %c896_396] : memref<128x1280xf32, #tpu.memory_space<vmem>>, vector<128x128xf32>
    %555 = arith.subf %554, %543 : vector<128x128xf32>
    %c1_397 = arith.constant 1 : index
    %c2_398 = arith.constant 2 : index
    %c0_399 = arith.constant 0 : index
    %c0_400 = arith.constant 0 : index
    %556 = vector.load %arg7[%c1_397, %c2_398, %c0_399, %c0_400] : memref<2x5x128x128xf32, #tpu.memory_space<vmem>>, vector<1x1x128x128xf32>
    %557 = vector.shape_cast %556 : vector<1x1x128x128xf32> to vector<128x128xf32>
    %558 = vector.shape_cast %555 : vector<128x128xf32> to vector<1x1x128x128xf32>
    tpu.vector_store %arg7[%c1_397, %c2_398, %c0_399, %c0_400], %558 {strides = array<i32>} : memref<2x5x128x128xf32, #tpu.memory_space<vmem>>, vector<1x1x128x128xf32>,
    %c0_401 = arith.constant 0 : index
    %c1024_402 = arith.constant 1024 : index
    %559 = vector.load %arg11[%c0_401, %c1024_402] : memref<128x1280xf32, #tpu.memory_space<vmem>>, vector<128x128xf32>
    %560 = arith.subf %559, %543 : vector<128x128xf32>
    %c1_403 = arith.constant 1 : index
    %c3_404 = arith.constant 3 : index
    %c0_405 = arith.constant 0 : index
    %c0_406 = arith.constant 0 : index
    %561 = vector.load %arg7[%c1_403, %c3_404, %c0_405, %c0_406] : memref<2x5x128x128xf32, #tpu.memory_space<vmem>>, vector<1x1x128x128xf32>
    %562 = vector.shape_cast %561 : vector<1x1x128x128xf32> to vector<128x128xf32>
    %563 = vector.shape_cast %560 : vector<128x128xf32> to vector<1x1x128x128xf32>
    tpu.vector_store %arg7[%c1_403, %c3_404, %c0_405, %c0_406], %563 {strides = array<i32>} : memref<2x5x128x128xf32, #tpu.memory_space<vmem>>, vector<1x1x128x128xf32>,
    %c0_407 = arith.constant 0 : index
    %c1152_408 = arith.constant 1152 : index
    %564 = vector.load %arg11[%c0_407, %c1152_408] : memref<128x1280xf32, #tpu.memory_space<vmem>>, vector<128x128xf32>
    %565 = arith.subf %564, %543 : vector<128x128xf32>
    %c1_409 = arith.constant 1 : index
    %c4_410 = arith.constant 4 : index
    %c0_411 = arith.constant 0 : index
    %c0_412 = arith.constant 0 : index
    %566 = vector.load %arg7[%c1_409, %c4_410, %c0_411, %c0_412] : memref<2x5x128x128xf32, #tpu.memory_space<vmem>>, vector<1x1x128x128xf32>
    %567 = vector.shape_cast %566 : vector<1x1x128x128xf32> to vector<128x128xf32>
    %568 = vector.shape_cast %565 : vector<128x128xf32> to vector<1x1x128x128xf32>
    tpu.vector_store %arg7[%c1_409, %c4_410, %c0_411, %c0_412], %568 {strides = array<i32>} : memref<2x5x128x128xf32, #tpu.memory_space<vmem>>, vector<1x1x128x128xf32>,
    return
  }
  func.func @transform_0(%arg0: i32) -> (i32, i32, i32, i32) {
    %c0_i32 = arith.constant 0 : i32
    %c0_i32_0 = arith.constant 0 : i32
    %c0_i32_1 = arith.constant 0 : i32
    %c0_i32_2 = arith.constant 0 : i32
    return %arg0, %c0_i32, %c0_i32_0, %c0_i32_1 : i32, i32, i32, i32
  }
  func.func @transform_1(%arg0: i32) -> (i32, i32, i32, i32) {
    %c0_i32 = arith.constant 0 : i32
    %c0_i32_0 = arith.constant 0 : i32
    %c0_i32_1 = arith.constant 0 : i32
    %c0_i32_2 = arith.constant 0 : i32
    return %arg0, %c0_i32, %c0_i32_0, %c0_i32_1 : i32, i32, i32, i32
  }
  func.func @transform_2(%arg0: i32) -> (i32, i32) {
    %c0_i32 = arith.constant 0 : i32
    %c0_i32_0 = arith.constant 0 : i32
    %c0_i32_1 = arith.constant 0 : i32
    return %c0_i32, %c0_i32_0 : i32, i32
  }
  func.func @transform_3(%arg0: i32) -> i32 {
    %c0_i32 = arith.constant 0 : i32
    %c0_i32_0 = arith.constant 0 : i32
    return %c0_i32 : i32
  }
  func.func @transform_4(%arg0: i32) -> (i32, i32) {
    %c0_i32 = arith.constant 0 : i32
    %c0_i32_0 = arith.constant 0 : i32
    %c0_i32_1 = arith.constant 0 : i32
    return %c0_i32, %c0_i32_0 : i32, i32
  }
  func.func @transform_5(%arg0: i32) -> (i32, i32) {
    %c0_i32 = arith.constant 0 : i32
    %c0_i32_0 = arith.constant 0 : i32
    %c0_i32_1 = arith.constant 0 : i32
    return %c0_i32, %c0_i32_0 : i32, i32
  }
  func.func @transform_6(%arg0: i32) -> (i32, i32, i32, i32) {
    %c0_i32 = arith.constant 0 : i32
    %c0_i32_0 = arith.constant 0 : i32
    %c0_i32_1 = arith.constant 0 : i32
    %c0_i32_2 = arith.constant 0 : i32
    return %arg0, %c0_i32, %c0_i32_0, %c0_i32_1 : i32, i32, i32, i32
  }
  func.func @transform_7(%arg0: i32) -> (i32, i32, i32, i32) {
    %c0_i32 = arith.constant 0 : i32
    %c0_i32_0 = arith.constant 0 : i32
    %c0_i32_1 = arith.constant 0 : i32
    %c0_i32_2 = arith.constant 0 : i32
    return %arg0, %c0_i32, %c0_i32_0, %c0_i32_1 : i32, i32, i32, i32
  }
}

</mosaic_0001>

<llo_original>
// kernel: tpu_custom_call.1
$region0: #{tpu_custom_call.1}
  #allocation0 [shape = 'u32[]', space=smem, size = 0x4, offset = 0x4, fixed_abs, tag = 'smem constant byte address 0x4 - core index']
  #allocation1 [shape = 'u32[72,128]{1,0:T(1,128)}', space=vmem, size = 0x9000, scoped, tag = 'internal scratch']
  #allocation2 [shape = 'f32[160,16]{1,0:T(8,128)}', space=vmem, size = 0x14000, scoped, tag = 'scratch operand']
  #allocation3 [shape = 'f32[16,1280]{1,0:T(8,128)}', space=vmem, size = 0x14000, scoped, tag = 'scratch operand']
  #allocation4 [shape = 'f32[128,1280]{1,0:T(8,128)}', space=vmem, size = 0xa0000, scoped, tag = 'scratch operand']
  %s0 = inlined_call_operand.vmem [shape: f32[2,4,16,16], index: 0, kind: input, shape index: {}]
  %s1 = inlined_call_operand.vmem [shape: f32[2,4,1,256], index: 1, kind: input, shape index: {}]
  %s2 = inlined_call_operand.vmem [shape: f32[5,4], index: 2, kind: input, shape index: {}]
  %s3 = inlined_call_operand.vmem [shape: f32[5], index: 3, kind: input, shape index: {}]
  %s4 = inlined_call_operand.vmem [shape: f32[128,16], index: 4, kind: input, shape index: {}]
  %s5 = inlined_call_operand.hbm [shape: f32[16,128], index: 5, kind: input, shape index: {}]
  %s6 = inlined_call_operand.hbm [shape: f32[2,5,128,128], index: 6, kind: output, shape index: {0}]
  %s7 = inlined_call_operand.hbm [shape: f32[2,5,1,256], index: 7, kind: output, shape index: {1}]
  %8 = xla_tuple %s6, %s7
  %s9 = sld [smem:[#allocation0]]
  $region54: #{tpu_custom_call.1} parent=0
    _
  %s11 = ssub.s32 1, %s9
  %s12 = scalar_select 0, %s11, %s9
  $region1: #{tpu_custom_call.1} parent=0
    #allocation5 [shape = 'u8[4096]{0}', space=smem, size = 0x1000, scoped, tag = 'input window, operand 2, single buffered']
    #allocation6 [shape = 's32[1]{0}', space=sflag, size = 0x4, scoped, tag = 'scoped memory for tpu_custom_call.1']
    #allocation7 [shape = 's32[1]{0}', space=sflag, size = 0x4, scoped, tag = 'scoped memory for tpu_custom_call.1']
    #allocation8 [shape = 's32[1]{0}', space=sflag, size = 0x4, scoped, tag = 'scoped memory for tpu_custom_call.1']
    #allocation9 [shape = 'u8[512]{0}', space=smem, size = 0x200, scoped, tag = 'input window, operand 3, single buffered']
    #allocation10 [shape = 's32[1]{0}', space=sflag, size = 0x4, scoped, tag = 'scoped memory for tpu_custom_call.1']
    #allocation11 [shape = 'u8[8192]{0}', space=vmem, size = 0x2000, scoped, tag = 'input window, operand 5, single buffered']
    #allocation12 [shape = 'u8[655360]{0}', space=vmem, size = 0xa0000, scoped, tag = 'output window, operand 0, single buffered']
    #allocation13 [shape = 'u8[10240]{0}', space=vmem, size = 0x2800, scoped, tag = 'output window, operand 1, single buffered']
    #allocation14 [shape = 's32[1]{0}', space=sflag, size = 0x4, scoped, tag = 'scoped memory for tpu_custom_call.1']
    %13 = vsyncpa [#allocation8], 0
    %14 = vsyncpa [#allocation10], 0
    %15 = vsyncpa [#allocation6], 0
    %16 = vsyncpa [#allocation7], 0
    %17 = vsyncpa [#allocation14], 0
    // Predicated region
    $region2: #{tpu_custom_call.1} parent=1 // pred_check
      _
    $region3: #{tpu_custom_call.1} parent=1 // pred_check_branch
      %19 = sbr.rel (0) target = $region5
    $region4: #{tpu_custom_call.1} parent=1 // pred_region
      _
    $region5: #{tpu_custom_call.1} parent=1 // pred_fallthru
      _
    // Predicated region
    $region6: #{tpu_custom_call.1} parent=1 // pred_check
      _
    $region7: #{tpu_custom_call.1} parent=1 // pred_check_branch
      %21 = sbr.rel (0) target = $region9
    $region8: #{tpu_custom_call.1} parent=1 // pred_region
      _
    $region9: #{tpu_custom_call.1} parent=1 // pred_fallthru
      _
    // Predicated region
    $region10: #{tpu_custom_call.1} parent=1 // pred_check
      _
    $region11: #{tpu_custom_call.1} parent=1 // pred_check_branch
      %23 = sbr.rel (0) target = $region13
    $region12: #{tpu_custom_call.1} parent=1 // pred_region
      %25 = vsyncadd [#allocation8], 0
      %s27 = sshll.u32 %s2, 4
      %s28 = int_to_ptr.vmem [resolvable:$true] %s27
      %30 = dma.vmem_to_smem %s28, 128, [#allocation5], [#allocation8]
    $region13: #{tpu_custom_call.1} parent=1 // pred_fallthru
      _
    // Predicated region
    $region14: #{tpu_custom_call.1} parent=1 // pred_check
      _
    $region15: #{tpu_custom_call.1} parent=1 // pred_check_branch
      %32 = sbr.rel (0) target = $region17
    $region16: #{tpu_custom_call.1} parent=1 // pred_region
      %34 = vsyncadd [#allocation10], 0
      %s36 = sshll.u32 %s3, 4
      %s37 = int_to_ptr.vmem [resolvable:$true] %s36
      %39 = dma.vmem_to_smem %s37, 16, [#allocation9], [#allocation10]
    $region17: #{tpu_custom_call.1} parent=1 // pred_fallthru
      _
    // Predicated region
    $region18: #{tpu_custom_call.1} parent=1 // pred_check
      _
    $region19: #{tpu_custom_call.1} parent=1 // pred_check_branch
      %41 = sbr.rel (0) target = $region21
    $region20: #{tpu_custom_call.1} parent=1 // pred_region
      _
    $region21: #{tpu_custom_call.1} parent=1 // pred_fallthru
      _
    // Predicated region
    $region22: #{tpu_custom_call.1} parent=1 // pred_check
      _
    $region23: #{tpu_custom_call.1} parent=1 // pred_check_branch
      %43 = sbr.rel (0) target = $region25
    $region24: #{tpu_custom_call.1} parent=1 // pred_region
      %45 = vsyncadd [#allocation6], 0
      %s46 = sshll.u32 %s5, 4
      %s47 = int_to_ptr.hbm [resolvable:$true] %s46
      %s48 = sshll.u32 [#allocation11], 4
      %s49 = int_to_ptr.vmem [resolvable:$true] %s48
      %54 = dma.hbm_to_vmem [thread:$0]  %s47, 256, %s49, [#allocation6], 128, 128, 8
    $region25: #{tpu_custom_call.1} parent=1 // pred_fallthru
      _
    // Predicated region
    $region26: #{tpu_custom_call.1} parent=1 // pred_check
      _
    $region27: #{tpu_custom_call.1} parent=1 // pred_check_branch
      %56 = sbr.rel (0) target = $region29
    $region28: #{tpu_custom_call.1} parent=1 // pred_region
      %58 = dma.done [#allocation8], 128
    $region29: #{tpu_custom_call.1} parent=1 // pred_fallthru
      _
    // Predicated region
    $region30: #{tpu_custom_call.1} parent=1 // pred_check
      _
    $region31: #{tpu_custom_call.1} parent=1 // pred_check_branch
      %60 = sbr.rel (0) target = $region33
    $region32: #{tpu_custom_call.1} parent=1 // pred_region
      %62 = dma.done [#allocation10], 16
    $region33: #{tpu_custom_call.1} parent=1 // pred_fallthru
      _
    // Predicated region
    $region34: #{tpu_custom_call.1} parent=1 // pred_check
      _
    $region35: #{tpu_custom_call.1} parent=1 // pred_check_branch
      %64 = sbr.rel (0) target = $region37
    $region36: #{tpu_custom_call.1} parent=1 // pred_region
      %66 = dma.done [#allocation6], 256
    $region37: #{tpu_custom_call.1} parent=1 // pred_fallthru
      _
    %67 = sfence
    %v68 = vld [vmem:[%s0] sm:$0xff]
    %v69 = vld [vmem:[%s0 + $0x8] sm:$0xff]
    %s70 = scalar_lea.vmem %s0, 16
    %v71 = vld [vmem:[%s70] sm:$0xff]
    %v72 = vld [vmem:[%s70 + $0x8] sm:$0xff]
    %s73 = scalar_lea.vmem %s0, 32
    %v74 = vld [vmem:[%s73] sm:$0xff]
    %v75 = vld [vmem:[%s73 + $0x8] sm:$0xff]
    %s76 = scalar_lea.vmem %s0, 48
    %v77 = vld [vmem:[%s76] sm:$0xff]
    %v78 = vld [vmem:[%s76 + $0x8] sm:$0xff]
    %v79 = vld [vmem:[%s1] sm:$0x3]
    %s80 = scalar_lea.vmem %s1, 2
    %v81 = vld [vmem:[%s80] sm:$0x3]
    %s82 = scalar_lea.vmem %s1, 4
    %v83 = vld [vmem:[%s82] sm:$0x3]
    %s84 = scalar_lea.vmem %s1, 6
    %v85 = vld [vmem:[%s84] sm:$0x3]
    %s86 = sld [smem:[#allocation5]]
    %v87 = vstv %s86
    %v88 = vmul.f32 %v87, %v68
    %v89 = vmul.f32 %v87, %v69
    %s90 = sld [smem:[#allocation9]]
    %v91 = vstv %s90
    %v92 = vadd.f32 %v88, %v91
    %v93 = vadd.f32 %v89, %v91
    %v94 = vmul.f32 %v87, %v79
    %v95 = vadd.f32 %v94, %v91
    %s96 = sld [smem:[#allocation5 + $0x1]]
    %v97 = vstv %s96
    %v98 = vmul.f32 %v97, %v71
    %v99 = vmul.f32 %v97, %v72
    %v100 = vadd.f32 %v92, %v98
    %v101 = vadd.f32 %v93, %v99
    %v102 = vmul.f32 %v97, %v81
    %v103 = vadd.f32 %v95, %v102
    %s104 = sld [smem:[#allocation5 + $0x2]]
    %v105 = vstv %s104
    %v106 = vmul.f32 %v105, %v74
    %v107 = vmul.f32 %v105, %v75
    %v108 = vadd.f32 %v100, %v106
    %v109 = vadd.f32 %v101, %v107
    %v110 = vmul.f32 %v105, %v83
    %v111 = vadd.f32 %v103, %v110
    %s112 = sld [smem:[#allocation5 + $0x3]]
    %v113 = vstv %s112
    %v114 = vmul.f32 %v113, %v77
    %v115 = vmul.f32 %v113, %v78
    %v116 = vadd.f32 %v108, %v114
    %v117 = vadd.f32 %v109, %v115
    %v118 = vmul.f32 %v113, %v85
    %v119 = vadd.f32 %v111, %v118
    %vm120 = vcmask 130048
    %121 = vst.msk [vmem:[#allocation2] sm:$0xff] %vm120, %v116
    %122 = vst.msk [vmem:[#allocation2 + $0x8] sm:$0xff] %vm120, %v117
    %v123 = vlaneseq
    %vm124 = vcmp.ge.s32.totalorder %v123, 0
    %vm125 = vcmp.lt.s32.totalorder %v123, 256
    %vm126 = vmand %vm124, %vm125
    %127 = vst.msk [vmem:[#allocation13] sm:$0x3] %vm126, %v119
    %s128 = sld [smem:[#allocation5 + $0x80]]
    %v129 = vstv %s128
    %v130 = vmul.f32 %v129, %v68
    %v131 = vmul.f32 %v129, %v69
    %s132 = sld [smem:[#allocation9 + $0x1]]
    %v133 = vstv %s132
    %v134 = vadd.f32 %v130, %v133
    %v135 = vadd.f32 %v131, %v133
    %v136 = vmul.f32 %v129, %v79
    %v137 = vadd.f32 %v136, %v133
    %s138 = sld [smem:[#allocation5 + $0x81]]
    %v139 = vstv %s138
    %v140 = vmul.f32 %v139, %v71
    %v141 = vmul.f32 %v139, %v72
    %v142 = vadd.f32 %v134, %v140
    %v143 = vadd.f32 %v135, %v141
    %v144 = vmul.f32 %v139, %v81
    %v145 = vadd.f32 %v137, %v144
    %s146 = sld [smem:[#allocation5 + $0x82]]
    %v147 = vstv %s146
    %v148 = vmul.f32 %v147, %v74
    %v149 = vmul.f32 %v147, %v75
    %v150 = vadd.f32 %v142, %v148
    %v151 = vadd.f32 %v143, %v149
    %v152 = vmul.f32 %v147, %v83
    %v153 = vadd.f32 %v145, %v152
    %s154 = sld [smem:[#allocation5 + $0x83]]
    %v155 = vstv %s154
    %v156 = vmul.f32 %v155, %v77
    %v157 = vmul.f32 %v155, %v78
    %v158 = vadd.f32 %v150, %v156
    %v159 = vadd.f32 %v151, %v157
    %v160 = vmul.f32 %v155, %v85
    %v161 = vadd.f32 %v153, %v160
    %162 = vst.msk [vmem:[#allocation2 + $0x10] sm:$0xff] %vm120, %v158
    %163 = vst.msk [vmem:[#allocation2 + $0x18] sm:$0xff] %vm120, %v159
    %s164 = scalar_lea.vmem [#allocation13], 2
    %165 = vst.msk [vmem:[%s164] sm:$0x3] %vm126, %v161
    %s166 = sld [smem:[#allocation5 + $0x100]]
    %v167 = vstv %s166
    %v168 = vmul.f32 %v167, %v68
    %v169 = vmul.f32 %v167, %v69
    %s170 = sld [smem:[#allocation9 + $0x2]]
    %v171 = vstv %s170
    %v172 = vadd.f32 %v168, %v171
    %v173 = vadd.f32 %v169, %v171
    %v174 = vmul.f32 %v167, %v79
    %v175 = vadd.f32 %v174, %v171
    %s176 = sld [smem:[#allocation5 + $0x101]]
    %v177 = vstv %s176
    %v178 = vmul.f32 %v177, %v71
    %v179 = vmul.f32 %v177, %v72
    %v180 = vadd.f32 %v172, %v178
    %v181 = vadd.f32 %v173, %v179
    %v182 = vmul.f32 %v177, %v81
    %v183 = vadd.f32 %v175, %v182
    %s184 = sld [smem:[#allocation5 + $0x102]]
    %v185 = vstv %s184
    %v186 = vmul.f32 %v185, %v74
    %v187 = vmul.f32 %v185, %v75
    %v188 = vadd.f32 %v180, %v186
    %v189 = vadd.f32 %v181, %v187
    %v190 = vmul.f32 %v185, %v83
    %v191 = vadd.f32 %v183, %v190
    %s192 = sld [smem:[#allocation5 + $0x103]]
    %v193 = vstv %s192
    %v194 = vmul.f32 %v193, %v77
    %v195 = vmul.f32 %v193, %v78
    %v196 = vadd.f32 %v188, %v194
    %v197 = vadd.f32 %v189, %v195
    %v198 = vmul.f32 %v193, %v85
    %v199 = vadd.f32 %v191, %v198
    %200 = vst.msk [vmem:[#allocation2 + $0x20] sm:$0xff] %vm120, %v196
    %201 = vst.msk [vmem:[#allocation2 + $0x28] sm:$0xff] %vm120, %v197
    %s202 = scalar_lea.vmem [#allocation13], 4
    %203 = vst.msk [vmem:[%s202] sm:$0x3] %vm126, %v199
    %s204 = sld [smem:[#allocation5 + $0x180]]
    %v205 = vstv %s204
    %v206 = vmul.f32 %v205, %v68
    %v207 = vmul.f32 %v205, %v69
    %s208 = sld [smem:[#allocation9 + $0x3]]
    %v209 = vstv %s208
    %v210 = vadd.f32 %v206, %v209
    %v211 = vadd.f32 %v207, %v209
    %v212 = vmul.f32 %v205, %v79
    %v213 = vadd.f32 %v212, %v209
    %s214 = sld [smem:[#allocation5 + $0x181]]
    %v215 = vstv %s214
    %v216 = vmul.f32 %v215, %v71
    %v217 = vmul.f32 %v215, %v72
    %v218 = vadd.f32 %v210, %v216
    %v219 = vadd.f32 %v211, %v217
    %v220 = vmul.f32 %v215, %v81
    %v221 = vadd.f32 %v213, %v220
    %s222 = sld [smem:[#allocation5 + $0x182]]
    %v223 = vstv %s222
    %v224 = vmul.f32 %v223, %v74
    %v225 = vmul.f32 %v223, %v75
    %v226 = vadd.f32 %v218, %v224
    %v227 = vadd.f32 %v219, %v225
    %v228 = vmul.f32 %v223, %v83
    %v229 = vadd.f32 %v221, %v228
    %s230 = sld [smem:[#allocation5 + $0x183]]
    %v231 = vstv %s230
    %v232 = vmul.f32 %v231, %v77
    %v233 = vmul.f32 %v231, %v78
    %v234 = vadd.f32 %v226, %v232
    %v235 = vadd.f32 %v227, %v233
    %v236 = vmul.f32 %v231, %v85
    %v237 = vadd.f32 %v229, %v236
    %238 = vst.msk [vmem:[#allocation2 + $0x30] sm:$0xff] %vm120, %v234
    %239 = vst.msk [vmem:[#allocation2 + $0x38] sm:$0xff] %vm120, %v235
    %s240 = scalar_lea.vmem [#allocation13], 6
    %241 = vst.msk [vmem:[%s240] sm:$0x3] %vm126, %v237
    %s242 = sld [smem:[#allocation5 + $0x200]]
    %v243 = vstv %s242
    %v244 = vmul.f32 %v243, %v68
    %v245 = vmul.f32 %v243, %v69
    %s246 = sld [smem:[#allocation9 + $0x4]]
    %v247 = vstv %s246
    %v248 = vadd.f32 %v244, %v247
    %v249 = vadd.f32 %v245, %v247
    %v250 = vmul.f32 %v243, %v79
    %v251 = vadd.f32 %v250, %v247
    %s252 = sld [smem:[#allocation5 + $0x201]]
    %v253 = vstv %s252
    %v254 = vmul.f32 %v253, %v71
    %v255 = vmul.f32 %v253, %v72
    %v256 = vadd.f32 %v248, %v254
    %v257 = vadd.f32 %v249, %v255
    %v258 = vmul.f32 %v253, %v81
    %v259 = vadd.f32 %v251, %v258
    %s260 = sld [smem:[#allocation5 + $0x202]]
    %v261 = vstv %s260
    %v262 = vmul.f32 %v261, %v74
    %v263 = vmul.f32 %v261, %v75
    %v264 = vadd.f32 %v256, %v262
    %v265 = vadd.f32 %v257, %v263
    %v266 = vmul.f32 %v261, %v83
    %v267 = vadd.f32 %v259, %v266
    %s268 = sld [smem:[#allocation5 + $0x203]]
    %v269 = vstv %s268
    %v270 = vmul.f32 %v269, %v77
    %v271 = vmul.f32 %v269, %v78
    %v272 = vadd.f32 %v264, %v270
    %v273 = vadd.f32 %v265, %v271
    %v274 = vmul.f32 %v269, %v85
    %v275 = vadd.f32 %v267, %v274
    %276 = vst.msk [vmem:[#allocation2 + $0x40] sm:$0xff] %vm120, %v272
    %277 = vst.msk [vmem:[#allocation2 + $0x48] sm:$0xff] %vm120, %v273
    %s278 = scalar_lea.vmem [#allocation13], 8
    %279 = vst.msk [vmem:[%s278] sm:$0x3] %vm126, %v275
    %s280 = scalar_lea.vmem %s0, 64
    %v281 = vld [vmem:[%s280] sm:$0xff]
    %v282 = vld [vmem:[%s280 + $0x8] sm:$0xff]
    %s283 = scalar_lea.vmem %s0, 80
    %v284 = vld [vmem:[%s283] sm:$0xff]
    %v285 = vld [vmem:[%s283 + $0x8] sm:$0xff]
    %s286 = scalar_lea.vmem %s0, 96
    %v287 = vld [vmem:[%s286] sm:$0xff]
    %v288 = vld [vmem:[%s286 + $0x8] sm:$0xff]
    %s289 = scalar_lea.vmem %s0, 112
    %v290 = vld [vmem:[%s289] sm:$0xff]
    %v291 = vld [vmem:[%s289 + $0x8] sm:$0xff]
    %s292 = scalar_lea.vmem %s1, 8
    %v293 = vld [vmem:[%s292] sm:$0x3]
    %s294 = scalar_lea.vmem %s1, 10
    %v295 = vld [vmem:[%s294] sm:$0x3]
    %s296 = scalar_lea.vmem %s1, 12
    %v297 = vld [vmem:[%s296] sm:$0x3]
    %s298 = scalar_lea.vmem %s1, 14
    %v299 = vld [vmem:[%s298] sm:$0x3]
    %s300 = sld [smem:[#allocation5]]
    %v301 = vstv %s300
    %v302 = vmul.f32 %v301, %v281
    %v303 = vmul.f32 %v301, %v282
    %s304 = sld [smem:[#allocation9]]
    %v305 = vstv %s304
    %v306 = vadd.f32 %v302, %v305
    %v307 = vadd.f32 %v303, %v305
    %v308 = vmul.f32 %v301, %v293
    %v309 = vadd.f32 %v308, %v305
    %s310 = sld [smem:[#allocation5 + $0x1]]
    %v311 = vstv %s310
    %v312 = vmul.f32 %v311, %v284
    %v313 = vmul.f32 %v311, %v285
    %v314 = vadd.f32 %v306, %v312
    %v315 = vadd.f32 %v307, %v313
    %v316 = vmul.f32 %v311, %v295
    %v317 = vadd.f32 %v309, %v316
    %s318 = sld [smem:[#allocation5 + $0x2]]
    %v319 = vstv %s318
    %v320 = vmul.f32 %v319, %v287
    %v321 = vmul.f32 %v319, %v288
    %v322 = vadd.f32 %v314, %v320
    %v323 = vadd.f32 %v315, %v321
    %v324 = vmul.f32 %v319, %v297
    %v325 = vadd.f32 %v317, %v324
    %s326 = sld [smem:[#allocation5 + $0x3]]
    %v327 = vstv %s326
    %v328 = vmul.f32 %v327, %v290
    %v329 = vmul.f32 %v327, %v291
    %v330 = vadd.f32 %v322, %v328
    %v331 = vadd.f32 %v323, %v329
    %v332 = vmul.f32 %v327, %v299
    %v333 = vadd.f32 %v325, %v332
    %334 = vst.msk [vmem:[#allocation2 + $0x50] sm:$0xff] %vm120, %v330
    %335 = vst.msk [vmem:[#allocation2 + $0x58] sm:$0xff] %vm120, %v331
    %s336 = scalar_lea.vmem [#allocation13], 10
    %337 = vst.msk [vmem:[%s336] sm:$0x3] %vm126, %v333
    %s338 = sld [smem:[#allocation5 + $0x80]]
    %v339 = vstv %s338
    %v340 = vmul.f32 %v339, %v281
    %v341 = vmul.f32 %v339, %v282
    %s342 = sld [smem:[#allocation9 + $0x1]]
    %v343 = vstv %s342
    %v344 = vadd.f32 %v340, %v343
    %v345 = vadd.f32 %v341, %v343
    %v346 = vmul.f32 %v339, %v293
    %v347 = vadd.f32 %v346, %v343
    %s348 = sld [smem:[#allocation5 + $0x81]]
    %v349 = vstv %s348
    %v350 = vmul.f32 %v349, %v284
    %v351 = vmul.f32 %v349, %v285
    %v352 = vadd.f32 %v344, %v350
    %v353 = vadd.f32 %v345, %v351
    %v354 = vmul.f32 %v349, %v295
    %v355 = vadd.f32 %v347, %v354
    %s356 = sld [smem:[#allocation5 + $0x82]]
    %v357 = vstv %s356
    %v358 = vmul.f32 %v357, %v287
    %v359 = vmul.f32 %v357, %v288
    %v360 = vadd.f32 %v352, %v358
    %v361 = vadd.f32 %v353, %v359
    %v362 = vmul.f32 %v357, %v297
    %v363 = vadd.f32 %v355, %v362
    %s364 = sld [smem:[#allocation5 + $0x83]]
    %v365 = vstv %s364
    %v366 = vmul.f32 %v365, %v290
    %v367 = vmul.f32 %v365, %v291
    %v368 = vadd.f32 %v360, %v366
    %v369 = vadd.f32 %v361, %v367
    %v370 = vmul.f32 %v365, %v299
    %v371 = vadd.f32 %v363, %v370
    %372 = vst.msk [vmem:[#allocation2 + $0x60] sm:$0xff] %vm120, %v368
    %373 = vst.msk [vmem:[#allocation2 + $0x68] sm:$0xff] %vm120, %v369
    %s374 = scalar_lea.vmem [#allocation13], 12
    %375 = vst.msk [vmem:[%s374] sm:$0x3] %vm126, %v371
    %s376 = sld [smem:[#allocation5 + $0x100]]
    %v377 = vstv %s376
    %v378 = vmul.f32 %v377, %v281
    %v379 = vmul.f32 %v377, %v282
    %s380 = sld [smem:[#allocation9 + $0x2]]
    %v381 = vstv %s380
    %v382 = vadd.f32 %v378, %v381
    %v383 = vadd.f32 %v379, %v381
    %v384 = vmul.f32 %v377, %v293
    %v385 = vadd.f32 %v384, %v381
    %s386 = sld [smem:[#allocation5 + $0x101]]
    %v387 = vstv %s386
    %v388 = vmul.f32 %v387, %v284
    %v389 = vmul.f32 %v387, %v285
    %v390 = vadd.f32 %v382, %v388
    %v391 = vadd.f32 %v383, %v389
    %v392 = vmul.f32 %v387, %v295
    %v393 = vadd.f32 %v385, %v392
    %s394 = sld [smem:[#allocation5 + $0x102]]
    %v395 = vstv %s394
    %v396 = vmul.f32 %v395, %v287
    %v397 = vmul.f32 %v395, %v288
    %v398 = vadd.f32 %v390, %v396
    %v399 = vadd.f32 %v391, %v397
    %v400 = vmul.f32 %v395, %v297
    %v401 = vadd.f32 %v393, %v400
    %s402 = sld [smem:[#allocation5 + $0x103]]
    %v403 = vstv %s402
    %v404 = vmul.f32 %v403, %v290
    %v405 = vmul.f32 %v403, %v291
    %v406 = vadd.f32 %v398, %v404
    %v407 = vadd.f32 %v399, %v405
    %v408 = vmul.f32 %v403, %v299
    %v409 = vadd.f32 %v401, %v408
    %410 = vst.msk [vmem:[#allocation2 + $0x70] sm:$0xff] %vm120, %v406
    %411 = vst.msk [vmem:[#allocation2 + $0x78] sm:$0xff] %vm120, %v407
    %s412 = scalar_lea.vmem [#allocation13], 14
    %413 = vst.msk [vmem:[%s412] sm:$0x3] %vm126, %v409
    %s414 = sld [smem:[#allocation5 + $0x180]]
    %v415 = vstv %s414
    %v416 = vmul.f32 %v415, %v281
    %v417 = vmul.f32 %v415, %v282
    %s418 = sld [smem:[#allocation9 + $0x3]]
    %v419 = vstv %s418
    %v420 = vadd.f32 %v416, %v419
    %v421 = vadd.f32 %v417, %v419
    %v422 = vmul.f32 %v415, %v293
    %v423 = vadd.f32 %v422, %v419
    %s424 = sld [smem:[#allocation5 + $0x181]]
    %v425 = vstv %s424
    %v426 = vmul.f32 %v425, %v284
    %v427 = vmul.f32 %v425, %v285
    %v428 = vadd.f32 %v420, %v426
    %v429 = vadd.f32 %v421, %v427
    %v430 = vmul.f32 %v425, %v295
    %v431 = vadd.f32 %v423, %v430
    %s432 = sld [smem:[#allocation5 + $0x182]]
    %v433 = vstv %s432
    %v434 = vmul.f32 %v433, %v287
    %v435 = vmul.f32 %v433, %v288
    %v436 = vadd.f32 %v428, %v434
    %v437 = vadd.f32 %v429, %v435
    %v438 = vmul.f32 %v433, %v297
    %v439 = vadd.f32 %v431, %v438
    %s440 = sld [smem:[#allocation5 + $0x183]]
    %v441 = vstv %s440
    %v442 = vmul.f32 %v441, %v290
    %v443 = vmul.f32 %v441, %v291
    %v444 = vadd.f32 %v436, %v442
    %v445 = vadd.f32 %v437, %v443
    %v446 = vmul.f32 %v441, %v299
    %v447 = vadd.f32 %v439, %v446
    %448 = vst.msk [vmem:[#allocation2 + $0x80] sm:$0xff] %vm120, %v444
    %449 = vst.msk [vmem:[#allocation2 + $0x88] sm:$0xff] %vm120, %v445
    %s450 = scalar_lea.vmem [#allocation13], 16
    %451 = vst.msk [vmem:[%s450] sm:$0x3] %vm126, %v447
    %s452 = sld [smem:[#allocation5 + $0x200]]
    %v453 = vstv %s452
    %v454 = vmul.f32 %v453, %v281
    %v455 = vmul.f32 %v453, %v282
    %s456 = sld [smem:[#allocation9 + $0x4]]
    %v457 = vstv %s456
    %v458 = vadd.f32 %v454, %v457
    %v459 = vadd.f32 %v455, %v457
    %v460 = vmul.f32 %v453, %v293
    %v461 = vadd.f32 %v460, %v457
    %s462 = sld [smem:[#allocation5 + $0x201]]
    %v463 = vstv %s462
    %v464 = vmul.f32 %v463, %v284
    %v465 = vmul.f32 %v463, %v285
    %v466 = vadd.f32 %v458, %v464
    %v467 = vadd.f32 %v459, %v465
    %v468 = vmul.f32 %v463, %v295
    %v469 = vadd.f32 %v461, %v468
    %s470 = sld [smem:[#allocation5 + $0x202]]
    %v471 = vstv %s470
    %v472 = vmul.f32 %v471, %v287
    %v473 = vmul.f32 %v471, %v288
    %v474 = vadd.f32 %v466, %v472
    %v475 = vadd.f32 %v467, %v473
    %v476 = vmul.f32 %v471, %v297
    %v477 = vadd.f32 %v469, %v476
    %s478 = sld [smem:[#allocation5 + $0x203]]
    %v479 = vstv %s478
    %v480 = vmul.f32 %v479, %v290
    %v481 = vmul.f32 %v479, %v291
    %v482 = vadd.f32 %v474, %v480
    %v483 = vadd.f32 %v475, %v481
    %v484 = vmul.f32 %v479, %v299
    %v485 = vadd.f32 %v477, %v484
    %486 = vst.msk [vmem:[#allocation2 + $0x90] sm:$0xff] %vm120, %v482
    %487 = vst.msk [vmem:[#allocation2 + $0x98] sm:$0xff] %vm120, %v483
    %s488 = scalar_lea.vmem [#allocation13], 18
    %489 = vst.msk [vmem:[%s488] sm:$0x3] %vm126, %v485
    %v490 = vld [vmem:[#allocation2] sm:$0xff]
    %v491 = vld [vmem:[#allocation2 + $0x8] sm:$0xff]
    %v492 = vld [vmem:[#allocation2 + $0x10] sm:$0xff]
    %v493 = vld [vmem:[#allocation2 + $0x18] sm:$0xff]
    %v494 = vld [vmem:[#allocation2 + $0x20] sm:$0xff]
    %v495 = vld [vmem:[#allocation2 + $0x28] sm:$0xff]
    %v496 = vld [vmem:[#allocation2 + $0x30] sm:$0xff]
    %v497 = vld [vmem:[#allocation2 + $0x38] sm:$0xff]
    %v498 = vld [vmem:[#allocation2 + $0x40] sm:$0xff]
    %v499 = vld [vmem:[#allocation2 + $0x48] sm:$0xff]
    %v500 = vld [vmem:[#allocation2 + $0x50] sm:$0xff]
    %v501 = vld [vmem:[#allocation2 + $0x58] sm:$0xff]
    %v502 = vld [vmem:[#allocation2 + $0x60] sm:$0xff]
    %v503 = vld [vmem:[#allocation2 + $0x68] sm:$0xff]
    %v504 = vld [vmem:[#allocation2 + $0x70] sm:$0xff]
    %v505 = vld [vmem:[#allocation2 + $0x78] sm:$0xff]
    %v506 = vld [vmem:[#allocation2 + $0x80] sm:$0xff]
    %v507 = vld [vmem:[#allocation2 + $0x88] sm:$0xff]
    %v508 = vld [vmem:[#allocation2 + $0x90] sm:$0xff]
    %v509 = vld [vmem:[#allocation2 + $0x98] sm:$0xff]
    %v510 = vld [vmem:[#allocation11] sm:$0xff]
    %v511 = vld [vmem:[#allocation11 + $0x8] sm:$0xff]
    %v513 = vsel %vm120, %v490, 0
    %v516 = vsel %vm120, %v491, 0
    %v519 = vsel %vm120, %v492, 0
    %v522 = vsel %vm120, %v493, 0
    %v525 = vsel %vm120, %v494, 0
    %v528 = vsel %vm120, %v495, 0
    %v531 = vsel %vm120, %v496, 0
    %v534 = vsel %vm120, %v497, 0
    %v537 = vsel %vm120, %v498, 0
    %v540 = vsel %vm120, %v499, 0
    %v543 = vsel %vm120, %v500, 0
    %v546 = vsel %vm120, %v501, 0
    %v549 = vsel %vm120, %v502, 0
    %v552 = vsel %vm120, %v503, 0
    %v555 = vsel %vm120, %v504, 0
    %v558 = vsel %vm120, %v505, 0
    %v561 = vsel %vm120, %v506, 0
    %v564 = vsel %vm120, %v507, 0
    %v567 = vsel %vm120, %v508, 0
    %v570 = vsel %vm120, %v509, 0
    %572 = vmatpush.msra.mxu0 0.0
    %573 = vmatpush.msra.mxu0 0.0
    %574 = vmatpush.msra.mxu0 0.0
    %575 = vmatpush.msra.mxu0 0.0
    %576 = vmatpush.msra.mxu0 0.0
    %577 = vmatpush.msra.mxu0 0.0
    %578 = vmatpush.msra.mxu0 0.0
    %579 = vmatpush.msra.mxu0 0.0
    %580 = vmatpush.msra.mxu0 0.0
    %581 = vmatpush.msra.mxu0 0.0
    %582 = vmatpush.msra.mxu0 0.0
    %583 = vmatpush.msra.mxu0 0.0
    %584 = vmatpush.msra.mxu0 0.0
    %585 = vmatpush.msra.mxu0 0.0
    %v586 = vand.u32 %v511, 4294901760
    %587 = vmatpush.msra.mxu0 %v586
    %v588 = vand.u32 %v510, 4294901760
    %589 = vmatpush.msra.mxu0 %v588
    %v590 = vand.u32 %v513, 4294901760
    %v591 = vsub.f32 %v513, %v590
    %v592 = vand.u32 %v591, 4294901760
    %v593 = vsub.f32 %v591, %v592
    %v594 = vand.u32 %v593, 4294901760
    %595 = vmatmul.f32.gmra.mxu0 %v594
    %v596 = vpop.f32.mrf.mxu0
    %v597 = vadd.f32 0.0, %v596
    %v598 = vand.u32 %v516, 4294901760
    %v599 = vsub.f32 %v516, %v598
    %v600 = vand.u32 %v599, 4294901760
    %v601 = vsub.f32 %v599, %v600
    %v602 = vand.u32 %v601, 4294901760
    %603 = vmatmul.f32.gmra.mxu0 %v602
    %v604 = vpop.f32.mrf.mxu0
    %v605 = vadd.f32 0.0, %v604
    %v606 = vand.u32 %v519, 4294901760
    %v607 = vsub.f32 %v519, %v606
    %v608 = vand.u32 %v607, 4294901760
    %v609 = vsub.f32 %v607, %v608
    %v610 = vand.u32 %v609, 4294901760
    %611 = vmatmul.f32.gmra.mxu0 %v610
    %v612 = vpop.f32.mrf.mxu0
    %v613 = vadd.f32 0.0, %v612
    %v614 = vand.u32 %v522, 4294901760
    %v615 = vsub.f32 %v522, %v614
    %v616 = vand.u32 %v615, 4294901760
    %v617 = vsub.f32 %v615, %v616
    %v618 = vand.u32 %v617, 4294901760
    %619 = vmatmul.f32.gmra.mxu0 %v618
    %v620 = vpop.f32.mrf.mxu0
    %v621 = vadd.f32 0.0, %v620
    %v622 = vand.u32 %v525, 4294901760
    %v623 = vsub.f32 %v525, %v622
    %v624 = vand.u32 %v623, 4294901760
    %v625 = vsub.f32 %v623, %v624
    %v626 = vand.u32 %v625, 4294901760
    %627 = vmatmul.f32.gmra.mxu0 %v626
    %v628 = vpop.f32.mrf.mxu0
    %v629 = vadd.f32 0.0, %v628
    %v630 = vand.u32 %v528, 4294901760
    %v631 = vsub.f32 %v528, %v630
    %v632 = vand.u32 %v631, 4294901760
    %v633 = vsub.f32 %v631, %v632
    %v634 = vand.u32 %v633, 4294901760
    %635 = vmatmul.f32.gmra.mxu0 %v634
    %v636 = vpop.f32.mrf.mxu0
    %v637 = vadd.f32 0.0, %v636
    %v638 = vand.u32 %v531, 4294901760
    %v639 = vsub.f32 %v531, %v638
    %v640 = vand.u32 %v639, 4294901760
    %v641 = vsub.f32 %v639, %v640
    %v642 = vand.u32 %v641, 4294901760
    %643 = vmatmul.f32.gmra.mxu0 %v642
    %v644 = vpop.f32.mrf.mxu0
    %v645 = vadd.f32 0.0, %v644
    %v646 = vand.u32 %v534, 4294901760
    %v647 = vsub.f32 %v534, %v646
    %v648 = vand.u32 %v647, 4294901760
    %v649 = vsub.f32 %v647, %v648
    %v650 = vand.u32 %v649, 4294901760
    %651 = vmatmul.f32.gmra.mxu0 %v650
    %v652 = vpop.f32.mrf.mxu0
    %v653 = vadd.f32 0.0, %v652
    %v654 = vand.u32 %v537, 4294901760
    %v655 = vsub.f32 %v537, %v654
    %v656 = vand.u32 %v655, 4294901760
    %v657 = vsub.f32 %v655, %v656
    %v658 = vand.u32 %v657, 4294901760
    %659 = vmatmul.f32.gmra.mxu0 %v658
    %v660 = vpop.f32.mrf.mxu0
    %v661 = vadd.f32 0.0, %v660
    %v662 = vand.u32 %v540, 4294901760
    %v663 = vsub.f32 %v540, %v662
    %v664 = vand.u32 %v663, 4294901760
    %v665 = vsub.f32 %v663, %v664
    %v666 = vand.u32 %v665, 4294901760
    %667 = vmatmul.f32.gmra.mxu0 %v666
    %v668 = vpop.f32.mrf.mxu0
    %v669 = vadd.f32 0.0, %v668
    %v670 = vand.u32 %v543, 4294901760
    %v671 = vsub.f32 %v543, %v670
    %v672 = vand.u32 %v671, 4294901760
    %v673 = vsub.f32 %v671, %v672
    %v674 = vand.u32 %v673, 4294901760
    %675 = vmatmul.f32.gmra.mxu0 %v674
    %v676 = vpop.f32.mrf.mxu0
    %v677 = vadd.f32 0.0, %v676
    %v678 = vand.u32 %v546, 4294901760
    %v679 = vsub.f32 %v546, %v678
    %v680 = vand.u32 %v679, 4294901760
    %v681 = vsub.f32 %v679, %v680
    %v682 = vand.u32 %v681, 4294901760
    %683 = vmatmul.f32.gmra.mxu0 %v682
    %v684 = vpop.f32.mrf.mxu0
    %v685 = vadd.f32 0.0, %v684
    %v686 = vand.u32 %v549, 4294901760
    %v687 = vsub.f32 %v549, %v686
    %v688 = vand.u32 %v687, 4294901760
    %v689 = vsub.f32 %v687, %v688
    %v690 = vand.u32 %v689, 4294901760
    %691 = vmatmul.f32.gmra.mxu0 %v690
    %v692 = vpop.f32.mrf.mxu0
    %v693 = vadd.f32 0.0, %v692
    %v694 = vand.u32 %v552, 4294901760
    %v695 = vsub.f32 %v552, %v694
    %v696 = vand.u32 %v695, 4294901760
    %v697 = vsub.f32 %v695, %v696
    %v698 = vand.u32 %v697, 4294901760
    %699 = vmatmul.f32.gmra.mxu0 %v698
    %v700 = vpop.f32.mrf.mxu0
    %v701 = vadd.f32 0.0, %v700
    %v702 = vand.u32 %v555, 4294901760
    %v703 = vsub.f32 %v555, %v702
    %v704 = vand.u32 %v703, 4294901760
    %v705 = vsub.f32 %v703, %v704
    %v706 = vand.u32 %v705, 4294901760
    %707 = vmatmul.f32.gmra.mxu0 %v706
    %v708 = vpop.f32.mrf.mxu0
    %v709 = vadd.f32 0.0, %v708
    %v710 = vand.u32 %v558, 4294901760
    %v711 = vsub.f32 %v558, %v710
    %v712 = vand.u32 %v711, 4294901760
    %v713 = vsub.f32 %v711, %v712
    %v714 = vand.u32 %v713, 4294901760
    %715 = vmatmul.f32.gmra.mxu0 %v714
    %v716 = vpop.f32.mrf.mxu0
    %v717 = vadd.f32 0.0, %v716
    %v718 = vand.u32 %v561, 4294901760
    %v719 = vsub.f32 %v561, %v718
    %v720 = vand.u32 %v719, 4294901760
    %v721 = vsub.f32 %v719, %v720
    %v722 = vand.u32 %v721, 4294901760
    %723 = vmatmul.f32.gmra.mxu0 %v722
    %v724 = vpop.f32.mrf.mxu0
    %v725 = vadd.f32 0.0, %v724
    %v726 = vand.u32 %v564, 4294901760
    %v727 = vsub.f32 %v564, %v726
    %v728 = vand.u32 %v727, 4294901760
    %v729 = vsub.f32 %v727, %v728
    %v730 = vand.u32 %v729, 4294901760
    %731 = vmatmul.f32.gmra.mxu0 %v730
    %v732 = vpop.f32.mrf.mxu0
    %v733 = vadd.f32 0.0, %v732
    %v734 = vand.u32 %v567, 4294901760
    %v735 = vsub.f32 %v567, %v734
    %v736 = vand.u32 %v735, 4294901760
    %v737 = vsub.f32 %v735, %v736
    %v738 = vand.u32 %v737, 4294901760
    %739 = vmatmul.f32.gmra.mxu0 %v738
    %v740 = vpop.f32.mrf.mxu0
    %v741 = vadd.f32 0.0, %v740
    %v742 = vand.u32 %v570, 4294901760
    %v743 = vsub.f32 %v570, %v742
    %v744 = vand.u32 %v743, 4294901760
    %v745 = vsub.f32 %v743, %v744
    %v746 = vand.u32 %v745, 4294901760
    %747 = vmatmul.f32.gmra.mxu0 %v746
    %v748 = vpop.f32.mrf.mxu0
    %v749 = vadd.f32 0.0, %v748
    %750 = vdwg.mxu0
    %751 = vmatpush.msra.mxu0 0.0
    %752 = vmatpush.msra.mxu0 0.0
    %753 = vmatpush.msra.mxu0 0.0
    %754 = vmatpush.msra.mxu0 0.0
    %755 = vmatpush.msra.mxu0 0.0
    %756 = vmatpush.msra.mxu0 0.0
    %757 = vmatpush.msra.mxu0 0.0
    %758 = vmatpush.msra.mxu0 0.0
    %759 = vmatpush.msra.mxu0 0.0
    %760 = vmatpush.msra.mxu0 0.0
    %761 = vmatpush.msra.mxu0 0.0
    %762 = vmatpush.msra.mxu0 0.0
    %763 = vmatpush.msra.mxu0 0.0
    %764 = vmatpush.msra.mxu0 0.0
    %v765 = vand.u32 %v511, 4294901760
    %v766 = vsub.f32 %v511, %v765
    %v767 = vand.u32 %v766, 4294901760
    %v768 = vsub.f32 %v766, %v767
    %v769 = vand.u32 %v768, 4294901760
    %770 = vmatpush.msra.mxu0 %v769
    %v771 = vand.u32 %v510, 4294901760
    %v772 = vsub.f32 %v510, %v771
    %v773 = vand.u32 %v772, 4294901760
    %v774 = vsub.f32 %v772, %v773
    %v775 = vand.u32 %v774, 4294901760
    %776 = vmatpush.msra.mxu0 %v775
    %v777 = vand.u32 %v513, 4294901760
    %778 = vmatmul.f32.gmra.mxu0 %v777
    %v779 = vpop.f32.mrf.mxu0
    %v780 = vadd.f32 %v597, %v779
    %v781 = vand.u32 %v516, 4294901760
    %782 = vmatmul.f32.gmra.mxu0 %v781
    %v783 = vpop.f32.mrf.mxu0
    %v784 = vadd.f32 %v605, %v783
    %v785 = vand.u32 %v519, 4294901760
    %786 = vmatmul.f32.gmra.mxu0 %v785
    %v787 = vpop.f32.mrf.mxu0
    %v788 = vadd.f32 %v613, %v787
    %v789 = vand.u32 %v522, 4294901760
    %790 = vmatmul.f32.gmra.mxu0 %v789
    %v791 = vpop.f32.mrf.mxu0
    %v792 = vadd.f32 %v621, %v791
    %v793 = vand.u32 %v525, 4294901760
    %794 = vmatmul.f32.gmra.mxu0 %v793
    %v795 = vpop.f32.mrf.mxu0
    %v796 = vadd.f32 %v629, %v795
    %v797 = vand.u32 %v528, 4294901760
    %798 = vmatmul.f32.gmra.mxu0 %v797
    %v799 = vpop.f32.mrf.mxu0
    %v800 = vadd.f32 %v637, %v799
    %v801 = vand.u32 %v531, 4294901760
    %802 = vmatmul.f32.gmra.mxu0 %v801
    %v803 = vpop.f32.mrf.mxu0
    %v804 = vadd.f32 %v645, %v803
    %v805 = vand.u32 %v534, 4294901760
    %806 = vmatmul.f32.gmra.mxu0 %v805
    %v807 = vpop.f32.mrf.mxu0
    %v808 = vadd.f32 %v653, %v807
    %v809 = vand.u32 %v537, 4294901760
    %810 = vmatmul.f32.gmra.mxu0 %v809
    %v811 = vpop.f32.mrf.mxu0
    %v812 = vadd.f32 %v661, %v811
    %v813 = vand.u32 %v540, 4294901760
    %814 = vmatmul.f32.gmra.mxu0 %v813
    %v815 = vpop.f32.mrf.mxu0
    %v816 = vadd.f32 %v669, %v815
    %v817 = vand.u32 %v543, 4294901760
    %818 = vmatmul.f32.gmra.mxu0 %v817
    %v819 = vpop.f32.mrf.mxu0
    %v820 = vadd.f32 %v677, %v819
    %v821 = vand.u32 %v546, 4294901760
    %822 = vmatmul.f32.gmra.mxu0 %v821
    %v823 = vpop.f32.mrf.mxu0
    %v824 = vadd.f32 %v685, %v823
    %v825 = vand.u32 %v549, 4294901760
    %826 = vmatmul.f32.gmra.mxu0 %v825
    %v827 = vpop.f32.mrf.mxu0
    %v828 = vadd.f32 %v693, %v827
    %v829 = vand.u32 %v552, 4294901760
    %830 = vmatmul.f32.gmra.mxu0 %v829
    %v831 = vpop.f32.mrf.mxu0
    %v832 = vadd.f32 %v701, %v831
    %v833 = vand.u32 %v555, 4294901760
    %834 = vmatmul.f32.gmra.mxu0 %v833
    %v835 = vpop.f32.mrf.mxu0
    %v836 = vadd.f32 %v709, %v835
    %v837 = vand.u32 %v558, 4294901760
    %838 = vmatmul.f32.gmra.mxu0 %v837
    %v839 = vpop.f32.mrf.mxu0
    %v840 = vadd.f32 %v717, %v839
    %v841 = vand.u32 %v561, 4294901760
    %842 = vmatmul.f32.gmra.mxu0 %v841
    %v843 = vpop.f32.mrf.mxu0
    %v844 = vadd.f32 %v725, %v843
    %v845 = vand.u32 %v564, 4294901760
    %846 = vmatmul.f32.gmra.mxu0 %v845
    %v847 = vpop.f32.mrf.mxu0
    %v848 = vadd.f32 %v733, %v847
    %v849 = vand.u32 %v567, 4294901760
    %850 = vmatmul.f32.gmra.mxu0 %v849
    %v851 = vpop.f32.mrf.mxu0
    %v852 = vadd.f32 %v741, %v851
    %v853 = vand.u32 %v570, 4294901760
    %854 = vmatmul.f32.gmra.mxu0 %v853
    %v855 = vpop.f32.mrf.mxu0
    %v856 = vadd.f32 %v749, %v855
    %857 = vdwg.mxu0
    %858 = vmatpush.msra.mxu0 0.0
    %859 = vmatpush.msra.mxu0 0.0
    %860 = vmatpush.msra.mxu0 0.0
    %861 = vmatpush.msra.mxu0 0.0
    %862 = vmatpush.msra.mxu0 0.0
    %863 = vmatpush.msra.mxu0 0.0
    %864 = vmatpush.msra.mxu0 0.0
    %865 = vmatpush.msra.mxu0 0.0
    %866 = vmatpush.msra.mxu0 0.0
    %867 = vmatpush.msra.mxu0 0.0
    %868 = vmatpush.msra.mxu0 0.0
    %869 = vmatpush.msra.mxu0 0.0
    %870 = vmatpush.msra.mxu0 0.0
    %871 = vmatpush.msra.mxu0 0.0
    %v872 = vand.u32 %v511, 4294901760
    %v873 = vsub.f32 %v511, %v872
    %874 = vmatpush.msra.mxu0 %v873
    %v875 = vand.u32 %v510, 4294901760
    %v876 = vsub.f32 %v510, %v875
    %877 = vmatpush.msra.mxu0 %v876
    %v878 = vand.u32 %v513, 4294901760
    %v879 = vsub.f32 %v513, %v878
    %880 = vmatmul.f32.gmra.mxu0 %v879
    %v881 = vpop.f32.mrf.mxu0
    %v882 = vadd.f32 %v780, %v881
    %v883 = vand.u32 %v516, 4294901760
    %v884 = vsub.f32 %v516, %v883
    %885 = vmatmul.f32.gmra.mxu0 %v884
    %v886 = vpop.f32.mrf.mxu0
    %v887 = vadd.f32 %v784, %v886
    %v888 = vand.u32 %v519, 4294901760
    %v889 = vsub.f32 %v519, %v888
    %890 = vmatmul.f32.gmra.mxu0 %v889
    %v891 = vpop.f32.mrf.mxu0
    %v892 = vadd.f32 %v788, %v891
    %v893 = vand.u32 %v522, 4294901760
    %v894 = vsub.f32 %v522, %v893
    %895 = vmatmul.f32.gmra.mxu0 %v894
    %v896 = vpop.f32.mrf.mxu0
    %v897 = vadd.f32 %v792, %v896
    %v898 = vand.u32 %v525, 4294901760
    %v899 = vsub.f32 %v525, %v898
    %900 = vmatmul.f32.gmra.mxu0 %v899
    %v901 = vpop.f32.mrf.mxu0
    %v902 = vadd.f32 %v796, %v901
    %v903 = vand.u32 %v528, 4294901760
    %v904 = vsub.f32 %v528, %v903
    %905 = vmatmul.f32.gmra.mxu0 %v904
    %v906 = vpop.f32.mrf.mxu0
    %v907 = vadd.f32 %v800, %v906
    %v908 = vand.u32 %v531, 4294901760
    %v909 = vsub.f32 %v531, %v908
    %910 = vmatmul.f32.gmra.mxu0 %v909
    %v911 = vpop.f32.mrf.mxu0
    %v912 = vadd.f32 %v804, %v911
    %v913 = vand.u32 %v534, 4294901760
    %v914 = vsub.f32 %v534, %v913
    %915 = vmatmul.f32.gmra.mxu0 %v914
    %v916 = vpop.f32.mrf.mxu0
    %v917 = vadd.f32 %v808, %v916
    %v918 = vand.u32 %v537, 4294901760
    %v919 = vsub.f32 %v537, %v918
    %920 = vmatmul.f32.gmra.mxu0 %v919
    %v921 = vpop.f32.mrf.mxu0
    %v922 = vadd.f32 %v812, %v921
    %v923 = vand.u32 %v540, 4294901760
    %v924 = vsub.f32 %v540, %v923
    %925 = vmatmul.f32.gmra.mxu0 %v924
    %v926 = vpop.f32.mrf.mxu0
    %v927 = vadd.f32 %v816, %v926
    %v928 = vand.u32 %v543, 4294901760
    %v929 = vsub.f32 %v543, %v928
    %930 = vmatmul.f32.gmra.mxu0 %v929
    %v931 = vpop.f32.mrf.mxu0
    %v932 = vadd.f32 %v820, %v931
    %v933 = vand.u32 %v546, 4294901760
    %v934 = vsub.f32 %v546, %v933
    %935 = vmatmul.f32.gmra.mxu0 %v934
    %v936 = vpop.f32.mrf.mxu0
    %v937 = vadd.f32 %v824, %v936
    %v938 = vand.u32 %v549, 4294901760
    %v939 = vsub.f32 %v549, %v938
    %940 = vmatmul.f32.gmra.mxu0 %v939
    %v941 = vpop.f32.mrf.mxu0
    %v942 = vadd.f32 %v828, %v941
    %v943 = vand.u32 %v552, 4294901760
    %v944 = vsub.f32 %v552, %v943
    %945 = vmatmul.f32.gmra.mxu0 %v944
    %v946 = vpop.f32.mrf.mxu0
    %v947 = vadd.f32 %v832, %v946
    %v948 = vand.u32 %v555, 4294901760
    %v949 = vsub.f32 %v555, %v948
    %950 = vmatmul.f32.gmra.mxu0 %v949
    %v951 = vpop.f32.mrf.mxu0
    %v952 = vadd.f32 %v836, %v951
    %v953 = vand.u32 %v558, 4294901760
    %v954 = vsub.f32 %v558, %v953
    %955 = vmatmul.f32.gmra.mxu0 %v954
    %v956 = vpop.f32.mrf.mxu0
    %v957 = vadd.f32 %v840, %v956
    %v958 = vand.u32 %v561, 4294901760
    %v959 = vsub.f32 %v561, %v958
    %960 = vmatmul.f32.gmra.mxu0 %v959
    %v961 = vpop.f32.mrf.mxu0
    %v962 = vadd.f32 %v844, %v961
    %v963 = vand.u32 %v564, 4294901760
    %v964 = vsub.f32 %v564, %v963
    %965 = vmatmul.f32.gmra.mxu0 %v964
    %v966 = vpop.f32.mrf.mxu0
    %v967 = vadd.f32 %v848, %v966
    %v968 = vand.u32 %v567, 4294901760
    %v969 = vsub.f32 %v567, %v968
    %970 = vmatmul.f32.gmra.mxu0 %v969
    %v971 = vpop.f32.mrf.mxu0
    %v972 = vadd.f32 %v852, %v971
    %v973 = vand.u32 %v570, 4294901760
    %v974 = vsub.f32 %v570, %v973
    %975 = vmatmul.f32.gmra.mxu0 %v974
    %v976 = vpop.f32.mrf.mxu0
    %v977 = vadd.f32 %v856, %v976
    %978 = vdwg.mxu0
    %979 = vmatpush.msra.mxu0 0.0
    %980 = vmatpush.msra.mxu0 0.0
    %981 = vmatpush.msra.mxu0 0.0
    %982 = vmatpush.msra.mxu0 0.0
    %983 = vmatpush.msra.mxu0 0.0
    %984 = vmatpush.msra.mxu0 0.0
    %985 = vmatpush.msra.mxu0 0.0
    %986 = vmatpush.msra.mxu0 0.0
    %987 = vmatpush.msra.mxu0 0.0
    %988 = vmatpush.msra.mxu0 0.0
    %989 = vmatpush.msra.mxu0 0.0
    %990 = vmatpush.msra.mxu0 0.0
    %991 = vmatpush.msra.mxu0 0.0
    %992 = vmatpush.msra.mxu0 0.0
    %v993 = vand.u32 %v511, 4294901760
    %994 = vmatpush.msra.mxu0 %v993
    %v995 = vand.u32 %v510, 4294901760
    %996 = vmatpush.msra.mxu0 %v995
    %v997 = vand.u32 %v513, 4294901760
    %v998 = vsub.f32 %v513, %v997
    %v999 = vand.u32 %v998, 4294901760
    %1000 = vmatmul.f32.gmra.mxu0 %v999
    %v1001 = vpop.f32.mrf.mxu0
    %v1002 = vadd.f32 %v882, %v1001
    %v1003 = vand.u32 %v516, 4294901760
    %v1004 = vsub.f32 %v516, %v1003
    %v1005 = vand.u32 %v1004, 4294901760
    %1006 = vmatmul.f32.gmra.mxu0 %v1005
    %v1007 = vpop.f32.mrf.mxu0
    %v1008 = vadd.f32 %v887, %v1007
    %v1009 = vand.u32 %v519, 4294901760
    %v1010 = vsub.f32 %v519, %v1009
    %v1011 = vand.u32 %v1010, 4294901760
    %1012 = vmatmul.f32.gmra.mxu0 %v1011
    %v1013 = vpop.f32.mrf.mxu0
    %v1014 = vadd.f32 %v892, %v1013
    %v1015 = vand.u32 %v522, 4294901760
    %v1016 = vsub.f32 %v522, %v1015
    %v1017 = vand.u32 %v1016, 4294901760
    %1018 = vmatmul.f32.gmra.mxu0 %v1017
    %v1019 = vpop.f32.mrf.mxu0
    %v1020 = vadd.f32 %v897, %v1019
    %v1021 = vand.u32 %v525, 4294901760
    %v1022 = vsub.f32 %v525, %v1021
    %v1023 = vand.u32 %v1022, 4294901760
    %1024 = vmatmul.f32.gmra.mxu0 %v1023
    %v1025 = vpop.f32.mrf.mxu0
    %v1026 = vadd.f32 %v902, %v1025
    %v1027 = vand.u32 %v528, 4294901760
    %v1028 = vsub.f32 %v528, %v1027
    %v1029 = vand.u32 %v1028, 4294901760
    %1030 = vmatmul.f32.gmra.mxu0 %v1029
    %v1031 = vpop.f32.mrf.mxu0
    %v1032 = vadd.f32 %v907, %v1031
    %v1033 = vand.u32 %v531, 4294901760
    %v1034 = vsub.f32 %v531, %v1033
    %v1035 = vand.u32 %v1034, 4294901760
    %1036 = vmatmul.f32.gmra.mxu0 %v1035
    %v1037 = vpop.f32.mrf.mxu0
    %v1038 = vadd.f32 %v912, %v1037
    %v1039 = vand.u32 %v534, 4294901760
    %v1040 = vsub.f32 %v534, %v1039
    %v1041 = vand.u32 %v1040, 4294901760
    %1042 = vmatmul.f32.gmra.mxu0 %v1041
    %v1043 = vpop.f32.mrf.mxu0
    %v1044 = vadd.f32 %v917, %v1043
    %v1045 = vand.u32 %v537, 4294901760
    %v1046 = vsub.f32 %v537, %v1045
    %v1047 = vand.u32 %v1046, 4294901760
    %1048 = vmatmul.f32.gmra.mxu0 %v1047
    %v1049 = vpop.f32.mrf.mxu0
    %v1050 = vadd.f32 %v922, %v1049
    %v1051 = vand.u32 %v540, 4294901760
    %v1052 = vsub.f32 %v540, %v1051
    %v1053 = vand.u32 %v1052, 4294901760
    %1054 = vmatmul.f32.gmra.mxu0 %v1053
    %v1055 = vpop.f32.mrf.mxu0
    %v1056 = vadd.f32 %v927, %v1055
    %v1057 = vand.u32 %v543, 4294901760
    %v1058 = vsub.f32 %v543, %v1057
    %v1059 = vand.u32 %v1058, 4294901760
    %1060 = vmatmul.f32.gmra.mxu0 %v1059
    %v1061 = vpop.f32.mrf.mxu0
    %v1062 = vadd.f32 %v932, %v1061
    %v1063 = vand.u32 %v546, 4294901760
    %v1064 = vsub.f32 %v546, %v1063
    %v1065 = vand.u32 %v1064, 4294901760
    %1066 = vmatmul.f32.gmra.mxu0 %v1065
    %v1067 = vpop.f32.mrf.mxu0
    %v1068 = vadd.f32 %v937, %v1067
    %v1069 = vand.u32 %v549, 4294901760
    %v1070 = vsub.f32 %v549, %v1069
    %v1071 = vand.u32 %v1070, 4294901760
    %1072 = vmatmul.f32.gmra.mxu0 %v1071
    %v1073 = vpop.f32.mrf.mxu0
    %v1074 = vadd.f32 %v942, %v1073
    %v1075 = vand.u32 %v552, 4294901760
    %v1076 = vsub.f32 %v552, %v1075
    %v1077 = vand.u32 %v1076, 4294901760
    %1078 = vmatmul.f32.gmra.mxu0 %v1077
    %v1079 = vpop.f32.mrf.mxu0
    %v1080 = vadd.f32 %v947, %v1079
    %v1081 = vand.u32 %v555, 4294901760
    %v1082 = vsub.f32 %v555, %v1081
    %v1083 = vand.u32 %v1082, 4294901760
    %1084 = vmatmul.f32.gmra.mxu0 %v1083
    %v1085 = vpop.f32.mrf.mxu0
    %v1086 = vadd.f32 %v952, %v1085
    %v1087 = vand.u32 %v558, 4294901760
    %v1088 = vsub.f32 %v558, %v1087
    %v1089 = vand.u32 %v1088, 4294901760
    %1090 = vmatmul.f32.gmra.mxu0 %v1089
    %v1091 = vpop.f32.mrf.mxu0
    %v1092 = vadd.f32 %v957, %v1091
    %v1093 = vand.u32 %v561, 4294901760
    %v1094 = vsub.f32 %v561, %v1093
    %v1095 = vand.u32 %v1094, 4294901760
    %1096 = vmatmul.f32.gmra.mxu0 %v1095
    %v1097 = vpop.f32.mrf.mxu0
    %v1098 = vadd.f32 %v962, %v1097
    %v1099 = vand.u32 %v564, 4294901760
    %v1100 = vsub.f32 %v564, %v1099
    %v1101 = vand.u32 %v1100, 4294901760
    %1102 = vmatmul.f32.gmra.mxu0 %v1101
    %v1103 = vpop.f32.mrf.mxu0
    %v1104 = vadd.f32 %v967, %v1103
    %v1105 = vand.u32 %v567, 4294901760
    %v1106 = vsub.f32 %v567, %v1105
    %v1107 = vand.u32 %v1106, 4294901760
    %1108 = vmatmul.f32.gmra.mxu0 %v1107
    %v1109 = vpop.f32.mrf.mxu0
    %v1110 = vadd.f32 %v972, %v1109
    %v1111 = vand.u32 %v570, 4294901760
    %v1112 = vsub.f32 %v570, %v1111
    %v1113 = vand.u32 %v1112, 4294901760
    %1114 = vmatmul.f32.gmra.mxu0 %v1113
    %v1115 = vpop.f32.mrf.mxu0
    %v1116 = vadd.f32 %v977, %v1115
    %1117 = vdwg.mxu0
    %1118 = vmatpush.msra.mxu0 0.0
    %1119 = vmatpush.msra.mxu0 0.0
    %1120 = vmatpush.msra.mxu0 0.0
    %1121 = vmatpush.msra.mxu0 0.0
    %1122 = vmatpush.msra.mxu0 0.0
    %1123 = vmatpush.msra.mxu0 0.0
    %1124 = vmatpush.msra.mxu0 0.0
    %1125 = vmatpush.msra.mxu0 0.0
    %1126 = vmatpush.msra.mxu0 0.0
    %1127 = vmatpush.msra.mxu0 0.0
    %1128 = vmatpush.msra.mxu0 0.0
    %1129 = vmatpush.msra.mxu0 0.0
    %1130 = vmatpush.msra.mxu0 0.0
    %1131 = vmatpush.msra.mxu0 0.0
    %v1132 = vand.u32 %v511, 4294901760
    %v1133 = vsub.f32 %v511, %v1132
    %v1134 = vand.u32 %v1133, 4294901760
    %1135 = vmatpush.msra.mxu0 %v1134
    %v1136 = vand.u32 %v510, 4294901760
    %v1137 = vsub.f32 %v510, %v1136
    %v1138 = vand.u32 %v1137, 4294901760
    %1139 = vmatpush.msra.mxu0 %v1138
    %v1140 = vand.u32 %v513, 4294901760
    %1141 = vmatmul.f32.gmra.mxu0 %v1140
    %v1142 = vpop.f32.mrf.mxu0
    %v1143 = vadd.f32 %v1002, %v1142
    %v1144 = vand.u32 %v516, 4294901760
    %1145 = vmatmul.f32.gmra.mxu0 %v1144
    %v1146 = vpop.f32.mrf.mxu0
    %v1147 = vadd.f32 %v1008, %v1146
    %v1148 = vand.u32 %v519, 4294901760
    %1149 = vmatmul.f32.gmra.mxu0 %v1148
    %v1150 = vpop.f32.mrf.mxu0
    %v1151 = vadd.f32 %v1014, %v1150
    %v1152 = vand.u32 %v522, 4294901760
    %1153 = vmatmul.f32.gmra.mxu0 %v1152
    %v1154 = vpop.f32.mrf.mxu0
    %v1155 = vadd.f32 %v1020, %v1154
    %v1156 = vand.u32 %v525, 4294901760
    %1157 = vmatmul.f32.gmra.mxu0 %v1156
    %v1158 = vpop.f32.mrf.mxu0
    %v1159 = vadd.f32 %v1026, %v1158
    %v1160 = vand.u32 %v528, 4294901760
    %1161 = vmatmul.f32.gmra.mxu0 %v1160
    %v1162 = vpop.f32.mrf.mxu0
    %v1163 = vadd.f32 %v1032, %v1162
    %v1164 = vand.u32 %v531, 4294901760
    %1165 = vmatmul.f32.gmra.mxu0 %v1164
    %v1166 = vpop.f32.mrf.mxu0
    %v1167 = vadd.f32 %v1038, %v1166
    %v1168 = vand.u32 %v534, 4294901760
    %1169 = vmatmul.f32.gmra.mxu0 %v1168
    %v1170 = vpop.f32.mrf.mxu0
    %v1171 = vadd.f32 %v1044, %v1170
    %v1172 = vand.u32 %v537, 4294901760
    %1173 = vmatmul.f32.gmra.mxu0 %v1172
    %v1174 = vpop.f32.mrf.mxu0
    %v1175 = vadd.f32 %v1050, %v1174
    %v1176 = vand.u32 %v540, 4294901760
    %1177 = vmatmul.f32.gmra.mxu0 %v1176
    %v1178 = vpop.f32.mrf.mxu0
    %v1179 = vadd.f32 %v1056, %v1178
    %v1180 = vand.u32 %v543, 4294901760
    %1181 = vmatmul.f32.gmra.mxu0 %v1180
    %v1182 = vpop.f32.mrf.mxu0
    %v1183 = vadd.f32 %v1062, %v1182
    %v1184 = vand.u32 %v546, 4294901760
    %1185 = vmatmul.f32.gmra.mxu0 %v1184
    %v1186 = vpop.f32.mrf.mxu0
    %v1187 = vadd.f32 %v1068, %v1186
    %v1188 = vand.u32 %v549, 4294901760
    %1189 = vmatmul.f32.gmra.mxu0 %v1188
    %v1190 = vpop.f32.mrf.mxu0
    %v1191 = vadd.f32 %v1074, %v1190
    %v1192 = vand.u32 %v552, 4294901760
    %1193 = vmatmul.f32.gmra.mxu0 %v1192
    %v1194 = vpop.f32.mrf.mxu0
    %v1195 = vadd.f32 %v1080, %v1194
    %v1196 = vand.u32 %v555, 4294901760
    %1197 = vmatmul.f32.gmra.mxu0 %v1196
    %v1198 = vpop.f32.mrf.mxu0
    %v1199 = vadd.f32 %v1086, %v1198
    %v1200 = vand.u32 %v558, 4294901760
    %1201 = vmatmul.f32.gmra.mxu0 %v1200
    %v1202 = vpop.f32.mrf.mxu0
    %v1203 = vadd.f32 %v1092, %v1202
    %v1204 = vand.u32 %v561, 4294901760
    %1205 = vmatmul.f32.gmra.mxu0 %v1204
    %v1206 = vpop.f32.mrf.mxu0
    %v1207 = vadd.f32 %v1098, %v1206
    %v1208 = vand.u32 %v564, 4294901760
    %1209 = vmatmul.f32.gmra.mxu0 %v1208
    %v1210 = vpop.f32.mrf.mxu0
    %v1211 = vadd.f32 %v1104, %v1210
    %v1212 = vand.u32 %v567, 4294901760
    %1213 = vmatmul.f32.gmra.mxu0 %v1212
    %v1214 = vpop.f32.mrf.mxu0
    %v1215 = vadd.f32 %v1110, %v1214
    %v1216 = vand.u32 %v570, 4294901760
    %1217 = vmatmul.f32.gmra.mxu0 %v1216
    %v1218 = vpop.f32.mrf.mxu0
    %v1219 = vadd.f32 %v1116, %v1218
    %1220 = vdwg.mxu0
    %1221 = vmatpush.msra.mxu0 0.0
    %1222 = vmatpush.msra.mxu0 0.0
    %1223 = vmatpush.msra.mxu0 0.0
    %1224 = vmatpush.msra.mxu0 0.0
    %1225 = vmatpush.msra.mxu0 0.0
    %1226 = vmatpush.msra.mxu0 0.0
    %1227 = vmatpush.msra.mxu0 0.0
    %1228 = vmatpush.msra.mxu0 0.0
    %1229 = vmatpush.msra.mxu0 0.0
    %1230 = vmatpush.msra.mxu0 0.0
    %1231 = vmatpush.msra.mxu0 0.0
    %1232 = vmatpush.msra.mxu0 0.0
    %1233 = vmatpush.msra.mxu0 0.0
    %1234 = vmatpush.msra.mxu0 0.0
    %v1235 = vand.u32 %v511, 4294901760
    %1236 = vmatpush.msra.mxu0 %v1235
    %v1237 = vand.u32 %v510, 4294901760
    %1238 = vmatpush.msra.mxu0 %v1237
    %v1239 = vand.u32 %v513, 4294901760
    %1240 = vmatmul.f32.gmra.mxu0 %v1239
    %v1241 = vpop.f32.mrf.mxu0
    %v1242 = vadd.f32 %v1143, %v1241
    %v1243 = vand.u32 %v516, 4294901760
    %1244 = vmatmul.f32.gmra.mxu0 %v1243
    %v1245 = vpop.f32.mrf.mxu0
    %v1246 = vadd.f32 %v1147, %v1245
    %v1247 = vand.u32 %v519, 4294901760
    %1248 = vmatmul.f32.gmra.mxu0 %v1247
    %v1249 = vpop.f32.mrf.mxu0
    %v1250 = vadd.f32 %v1151, %v1249
    %v1251 = vand.u32 %v522, 4294901760
    %1252 = vmatmul.f32.gmra.mxu0 %v1251
    %v1253 = vpop.f32.mrf.mxu0
    %v1254 = vadd.f32 %v1155, %v1253
    %v1255 = vand.u32 %v525, 4294901760
    %1256 = vmatmul.f32.gmra.mxu0 %v1255
    %v1257 = vpop.f32.mrf.mxu0
    %v1258 = vadd.f32 %v1159, %v1257
    %v1259 = vand.u32 %v528, 4294901760
    %1260 = vmatmul.f32.gmra.mxu0 %v1259
    %v1261 = vpop.f32.mrf.mxu0
    %v1262 = vadd.f32 %v1163, %v1261
    %v1263 = vand.u32 %v531, 4294901760
    %1264 = vmatmul.f32.gmra.mxu0 %v1263
    %v1265 = vpop.f32.mrf.mxu0
    %v1266 = vadd.f32 %v1167, %v1265
    %v1267 = vand.u32 %v534, 4294901760
    %1268 = vmatmul.f32.gmra.mxu0 %v1267
    %v1269 = vpop.f32.mrf.mxu0
    %v1270 = vadd.f32 %v1171, %v1269
    %v1271 = vand.u32 %v537, 4294901760
    %1272 = vmatmul.f32.gmra.mxu0 %v1271
    %v1273 = vpop.f32.mrf.mxu0
    %v1274 = vadd.f32 %v1175, %v1273
    %v1275 = vand.u32 %v540, 4294901760
    %1276 = vmatmul.f32.gmra.mxu0 %v1275
    %v1277 = vpop.f32.mrf.mxu0
    %v1278 = vadd.f32 %v1179, %v1277
    %v1279 = vand.u32 %v543, 4294901760
    %1280 = vmatmul.f32.gmra.mxu0 %v1279
    %v1281 = vpop.f32.mrf.mxu0
    %v1282 = vadd.f32 %v1183, %v1281
    %v1283 = vand.u32 %v546, 4294901760
    %1284 = vmatmul.f32.gmra.mxu0 %v1283
    %v1285 = vpop.f32.mrf.mxu0
    %v1286 = vadd.f32 %v1187, %v1285
    %v1287 = vand.u32 %v549, 4294901760
    %1288 = vmatmul.f32.gmra.mxu0 %v1287
    %v1289 = vpop.f32.mrf.mxu0
    %v1290 = vadd.f32 %v1191, %v1289
    %v1291 = vand.u32 %v552, 4294901760
    %1292 = vmatmul.f32.gmra.mxu0 %v1291
    %v1293 = vpop.f32.mrf.mxu0
    %v1294 = vadd.f32 %v1195, %v1293
    %v1295 = vand.u32 %v555, 4294901760
    %1296 = vmatmul.f32.gmra.mxu0 %v1295
    %v1297 = vpop.f32.mrf.mxu0
    %v1298 = vadd.f32 %v1199, %v1297
    %v1299 = vand.u32 %v558, 4294901760
    %1300 = vmatmul.f32.gmra.mxu0 %v1299
    %v1301 = vpop.f32.mrf.mxu0
    %v1302 = vadd.f32 %v1203, %v1301
    %v1303 = vand.u32 %v561, 4294901760
    %1304 = vmatmul.f32.gmra.mxu0 %v1303
    %v1305 = vpop.f32.mrf.mxu0
    %v1306 = vadd.f32 %v1207, %v1305
    %v1307 = vand.u32 %v564, 4294901760
    %1308 = vmatmul.f32.gmra.mxu0 %v1307
    %v1309 = vpop.f32.mrf.mxu0
    %v1310 = vadd.f32 %v1211, %v1309
    %v1311 = vand.u32 %v567, 4294901760
    %1312 = vmatmul.f32.gmra.mxu0 %v1311
    %v1313 = vpop.f32.mrf.mxu0
    %v1314 = vadd.f32 %v1215, %v1313
    %v1315 = vand.u32 %v570, 4294901760
    %1316 = vmatmul.f32.gmra.mxu0 %v1315
    %v1317 = vpop.f32.mrf.mxu0
    %v1318 = vadd.f32 %v1219, %v1317
    %1319 = vdwg.mxu0
    %1320 = vst [vmem:[#allocation3] sm:$0xff] %v1242
    %1321 = vst [vmem:[#allocation3 + $0x50] sm:$0xff] %v1246
    %1322 = vst [vmem:[#allocation3 + $0x8] sm:$0xff] %v1250
    %1323 = vst [vmem:[#allocation3 + $0x58] sm:$0xff] %v1254
    %1324 = vst [vmem:[#allocation3 + $0x10] sm:$0xff] %v1258
    %1325 = vst [vmem:[#allocation3 + $0x60] sm:$0xff] %v1262
    %1326 = vst [vmem:[#allocation3 + $0x18] sm:$0xff] %v1266
    %1327 = vst [vmem:[#allocation3 + $0x68] sm:$0xff] %v1270
    %1328 = vst [vmem:[#allocation3 + $0x20] sm:$0xff] %v1274
    %1329 = vst [vmem:[#allocation3 + $0x70] sm:$0xff] %v1278
    %1330 = vst [vmem:[#allocation3 + $0x28] sm:$0xff] %v1282
    %1331 = vst [vmem:[#allocation3 + $0x78] sm:$0xff] %v1286
    %1332 = vst [vmem:[#allocation3 + $0x30] sm:$0xff] %v1290
    %1333 = vst [vmem:[#allocation3 + $0x80] sm:$0xff] %v1294
    %1334 = vst [vmem:[#allocation3 + $0x38] sm:$0xff] %v1298
    %1335 = vst [vmem:[#allocation3 + $0x88] sm:$0xff] %v1302
    %1336 = vst [vmem:[#allocation3 + $0x40] sm:$0xff] %v1306
    %1337 = vst [vmem:[#allocation3 + $0x90] sm:$0xff] %v1310
    %1338 = vst [vmem:[#allocation3 + $0x48] sm:$0xff] %v1314
    %1339 = vst [vmem:[#allocation3 + $0x98] sm:$0xff] %v1318
    %v1340 = vld [vmem:[%s4] sm:$0xff]
    %v1341 = vld [vmem:[%s4 + $0x8] sm:$0xff]
    %v1342 = vld [vmem:[%s4 + $0x10] sm:$0xff]
    %v1343 = vld [vmem:[%s4 + $0x18] sm:$0xff]
    %v1344 = vld [vmem:[%s4 + $0x20] sm:$0xff]
    %v1345 = vld [vmem:[%s4 + $0x28] sm:$0xff]
    %v1346 = vld [vmem:[%s4 + $0x30] sm:$0xff]
    %v1347 = vld [vmem:[%s4 + $0x38] sm:$0xff]
    %v1348 = vld [vmem:[%s4 + $0x40] sm:$0xff]
    %v1349 = vld [vmem:[%s4 + $0x48] sm:$0xff]
    %v1350 = vld [vmem:[%s4 + $0x50] sm:$0xff]
    %v1351 = vld [vmem:[%s4 + $0x58] sm:$0xff]
    %v1352 = vld [vmem:[%s4 + $0x60] sm:$0xff]
    %v1353 = vld [vmem:[%s4 + $0x68] sm:$0xff]
    %v1354 = vld [vmem:[%s4 + $0x70] sm:$0xff]
    %v1355 = vld [vmem:[%s4 + $0x78] sm:$0xff]
    %v1356 = vld [vmem:[#allocation3] sm:$0xff]
    %v1357 = vld [vmem:[#allocation3 + $0x8] sm:$0xff]
    %v1358 = vld [vmem:[#allocation3 + $0x10] sm:$0xff]
    %v1359 = vld [vmem:[#allocation3 + $0x18] sm:$0xff]
    %v1360 = vld [vmem:[#allocation3 + $0x20] sm:$0xff]
    %v1361 = vld [vmem:[#allocation3 + $0x28] sm:$0xff]
    %v1362 = vld [vmem:[#allocation3 + $0x30] sm:$0xff]
    %v1363 = vld [vmem:[#allocation3 + $0x38] sm:$0xff]
    %v1364 = vld [vmem:[#allocation3 + $0x40] sm:$0xff]
    %v1365 = vld [vmem:[#allocation3 + $0x48] sm:$0xff]
    %v1366 = vld [vmem:[#allocation3 + $0x50] sm:$0xff]
    %v1367 = vld [vmem:[#allocation3 + $0x58] sm:$0xff]
    %v1368 = vld [vmem:[#allocation3 + $0x60] sm:$0xff]
    %v1369 = vld [vmem:[#allocation3 + $0x68] sm:$0xff]
    %v1370 = vld [vmem:[#allocation3 + $0x70] sm:$0xff]
    %v1371 = vld [vmem:[#allocation3 + $0x78] sm:$0xff]
    %v1372 = vld [vmem:[#allocation3 + $0x80] sm:$0xff]
    %v1373 = vld [vmem:[#allocation3 + $0x88] sm:$0xff]
    %v1374 = vld [vmem:[#allocation3 + $0x90] sm:$0xff]
    %v1375 = vld [vmem:[#allocation3 + $0x98] sm:$0xff]
    %v1377 = vsel %vm120, %v1340, 0
    %v1380 = vsel %vm120, %v1341, 0
    %v1383 = vsel %vm120, %v1342, 0
    %v1386 = vsel %vm120, %v1343, 0
    %v1389 = vsel %vm120, %v1344, 0
    %v1392 = vsel %vm120, %v1345, 0
    %v1395 = vsel %vm120, %v1346, 0
    %v1398 = vsel %vm120, %v1347, 0
    %v1401 = vsel %vm120, %v1348, 0
    %v1404 = vsel %vm120, %v1349, 0
    %v1407 = vsel %vm120, %v1350, 0
    %v1410 = vsel %vm120, %v1351, 0
    %v1413 = vsel %vm120, %v1352, 0
    %v1416 = vsel %vm120, %v1353, 0
    %v1419 = vsel %vm120, %v1354, 0
    %v1422 = vsel %vm120, %v1355, 0
    %1424 = vmatpush.msra.mxu0 0.0
    %1425 = vmatpush.msra.mxu0 0.0
    %1426 = vmatpush.msra.mxu0 0.0
    %1427 = vmatpush.msra.mxu0 0.0
    %1428 = vmatpush.msra.mxu0 0.0
    %1429 = vmatpush.msra.mxu0 0.0
    %1430 = vmatpush.msra.mxu0 0.0
    %1431 = vmatpush.msra.mxu0 0.0
    %1432 = vmatpush.msra.mxu0 0.0
    %1433 = vmatpush.msra.mxu0 0.0
    %1434 = vmatpush.msra.mxu0 0.0
    %1435 = vmatpush.msra.mxu0 0.0
    %1436 = vmatpush.msra.mxu0 0.0
    %1437 = vmatpush.msra.mxu0 0.0
    %v1438 = vand.u32 %v1366, 4294901760
    %1439 = vmatpush.msra.mxu0 %v1438
    %v1440 = vand.u32 %v1356, 4294901760
    %1441 = vmatpush.msra.mxu0 %v1440
    %v1442 = vand.u32 %v1377, 4294901760
    %v1443 = vsub.f32 %v1377, %v1442
    %v1444 = vand.u32 %v1443, 4294901760
    %v1445 = vsub.f32 %v1443, %v1444
    %v1446 = vand.u32 %v1445, 4294901760
    %1447 = vmatmul.f32.gmra.mxu0 %v1446
    %v1448 = vpop.f32.mrf.mxu0
    %v1449 = vadd.f32 0.0, %v1448
    %v1450 = vand.u32 %v1380, 4294901760
    %v1451 = vsub.f32 %v1380, %v1450
    %v1452 = vand.u32 %v1451, 4294901760
    %v1453 = vsub.f32 %v1451, %v1452
    %v1454 = vand.u32 %v1453, 4294901760
    %1455 = vmatmul.f32.gmra.mxu0 %v1454
    %v1456 = vpop.f32.mrf.mxu0
    %v1457 = vadd.f32 0.0, %v1456
    %v1458 = vand.u32 %v1383, 4294901760
    %v1459 = vsub.f32 %v1383, %v1458
    %v1460 = vand.u32 %v1459, 4294901760
    %v1461 = vsub.f32 %v1459, %v1460
    %v1462 = vand.u32 %v1461, 4294901760
    %1463 = vmatmul.f32.gmra.mxu0 %v1462
    %v1464 = vpop.f32.mrf.mxu0
    %v1465 = vadd.f32 0.0, %v1464
    %v1466 = vand.u32 %v1386, 4294901760
    %v1467 = vsub.f32 %v1386, %v1466
    %v1468 = vand.u32 %v1467, 4294901760
    %v1469 = vsub.f32 %v1467, %v1468
    %v1470 = vand.u32 %v1469, 4294901760
    %1471 = vmatmul.f32.gmra.mxu0 %v1470
    %v1472 = vpop.f32.mrf.mxu0
    %v1473 = vadd.f32 0.0, %v1472
    %v1474 = vand.u32 %v1389, 4294901760
    %v1475 = vsub.f32 %v1389, %v1474
    %v1476 = vand.u32 %v1475, 4294901760
    %v1477 = vsub.f32 %v1475, %v1476
    %v1478 = vand.u32 %v1477, 4294901760
    %1479 = vmatmul.f32.gmra.mxu0 %v1478
    %v1480 = vpop.f32.mrf.mxu0
    %v1481 = vadd.f32 0.0, %v1480
    %v1482 = vand.u32 %v1392, 4294901760
    %v1483 = vsub.f32 %v1392, %v1482
    %v1484 = vand.u32 %v1483, 4294901760
    %v1485 = vsub.f32 %v1483, %v1484
    %v1486 = vand.u32 %v1485, 4294901760
    %1487 = vmatmul.f32.gmra.mxu0 %v1486
    %v1488 = vpop.f32.mrf.mxu0
    %v1489 = vadd.f32 0.0, %v1488
    %v1490 = vand.u32 %v1395, 4294901760
    %v1491 = vsub.f32 %v1395, %v1490
    %v1492 = vand.u32 %v1491, 4294901760
    %v1493 = vsub.f32 %v1491, %v1492
    %v1494 = vand.u32 %v1493, 4294901760
    %1495 = vmatmul.f32.gmra.mxu0 %v1494
    %v1496 = vpop.f32.mrf.mxu0
    %v1497 = vadd.f32 0.0, %v1496
    %v1498 = vand.u32 %v1398, 4294901760
    %v1499 = vsub.f32 %v1398, %v1498
    %v1500 = vand.u32 %v1499, 4294901760
    %v1501 = vsub.f32 %v1499, %v1500
    %v1502 = vand.u32 %v1501, 4294901760
    %1503 = vmatmul.f32.gmra.mxu0 %v1502
    %v1504 = vpop.f32.mrf.mxu0
    %v1505 = vadd.f32 0.0, %v1504
    %v1506 = vand.u32 %v1401, 4294901760
    %v1507 = vsub.f32 %v1401, %v1506
    %v1508 = vand.u32 %v1507, 4294901760
    %v1509 = vsub.f32 %v1507, %v1508
    %v1510 = vand.u32 %v1509, 4294901760
    %1511 = vmatmul.f32.gmra.mxu0 %v1510
    %v1512 = vpop.f32.mrf.mxu0
    %v1513 = vadd.f32 0.0, %v1512
    %v1514 = vand.u32 %v1404, 4294901760
    %v1515 = vsub.f32 %v1404, %v1514
    %v1516 = vand.u32 %v1515, 4294901760
    %v1517 = vsub.f32 %v1515, %v1516
    %v1518 = vand.u32 %v1517, 4294901760
    %1519 = vmatmul.f32.gmra.mxu0 %v1518
    %v1520 = vpop.f32.mrf.mxu0
    %v1521 = vadd.f32 0.0, %v1520
    %v1522 = vand.u32 %v1407, 4294901760
    %v1523 = vsub.f32 %v1407, %v1522
    %v1524 = vand.u32 %v1523, 4294901760
    %v1525 = vsub.f32 %v1523, %v1524
    %v1526 = vand.u32 %v1525, 4294901760
    %1527 = vmatmul.f32.gmra.mxu0 %v1526
    %v1528 = vpop.f32.mrf.mxu0
    %v1529 = vadd.f32 0.0, %v1528
    %v1530 = vand.u32 %v1410, 4294901760
    %v1531 = vsub.f32 %v1410, %v1530
    %v1532 = vand.u32 %v1531, 4294901760
    %v1533 = vsub.f32 %v1531, %v1532
    %v1534 = vand.u32 %v1533, 4294901760
    %1535 = vmatmul.f32.gmra.mxu0 %v1534
    %v1536 = vpop.f32.mrf.mxu0
    %v1537 = vadd.f32 0.0, %v1536
    %v1538 = vand.u32 %v1413, 4294901760
    %v1539 = vsub.f32 %v1413, %v1538
    %v1540 = vand.u32 %v1539, 4294901760
    %v1541 = vsub.f32 %v1539, %v1540
    %v1542 = vand.u32 %v1541, 4294901760
    %1543 = vmatmul.f32.gmra.mxu0 %v1542
    %v1544 = vpop.f32.mrf.mxu0
    %v1545 = vadd.f32 0.0, %v1544
    %v1546 = vand.u32 %v1416, 4294901760
    %v1547 = vsub.f32 %v1416, %v1546
    %v1548 = vand.u32 %v1547, 4294901760
    %v1549 = vsub.f32 %v1547, %v1548
    %v1550 = vand.u32 %v1549, 4294901760
    %1551 = vmatmul.f32.gmra.mxu0 %v1550
    %v1552 = vpop.f32.mrf.mxu0
    %v1553 = vadd.f32 0.0, %v1552
    %v1554 = vand.u32 %v1419, 4294901760
    %v1555 = vsub.f32 %v1419, %v1554
    %v1556 = vand.u32 %v1555, 4294901760
    %v1557 = vsub.f32 %v1555, %v1556
    %v1558 = vand.u32 %v1557, 4294901760
    %1559 = vmatmul.f32.gmra.mxu0 %v1558
    %v1560 = vpop.f32.mrf.mxu0
    %v1561 = vadd.f32 0.0, %v1560
    %v1562 = vand.u32 %v1422, 4294901760
    %v1563 = vsub.f32 %v1422, %v1562
    %v1564 = vand.u32 %v1563, 4294901760
    %v1565 = vsub.f32 %v1563, %v1564
    %v1566 = vand.u32 %v1565, 4294901760
    %1567 = vmatmul.f32.gmra.mxu0 %v1566
    %v1568 = vpop.f32.mrf.mxu0
    %v1569 = vadd.f32 0.0, %v1568
    %1570 = vdwg.mxu0
    %1571 = vmatpush.msra.mxu0 0.0
    %1572 = vmatpush.msra.mxu0 0.0
    %1573 = vmatpush.msra.mxu0 0.0
    %1574 = vmatpush.msra.mxu0 0.0
    %1575 = vmatpush.msra.mxu0 0.0
    %1576 = vmatpush.msra.mxu0 0.0
    %1577 = vmatpush.msra.mxu0 0.0
    %1578 = vmatpush.msra.mxu0 0.0
    %1579 = vmatpush.msra.mxu0 0.0
    %1580 = vmatpush.msra.mxu0 0.0
    %1581 = vmatpush.msra.mxu0 0.0
    %1582 = vmatpush.msra.mxu0 0.0
    %1583 = vmatpush.msra.mxu0 0.0
    %1584 = vmatpush.msra.mxu0 0.0
    %v1585 = vand.u32 %v1366, 4294901760
    %v1586 = vsub.f32 %v1366, %v1585
    %v1587 = vand.u32 %v1586, 4294901760
    %v1588 = vsub.f32 %v1586, %v1587
    %v1589 = vand.u32 %v1588, 4294901760
    %1590 = vmatpush.msra.mxu0 %v1589
    %v1591 = vand.u32 %v1356, 4294901760
    %v1592 = vsub.f32 %v1356, %v1591
    %v1593 = vand.u32 %v1592, 4294901760
    %v1594 = vsub.f32 %v1592, %v1593
    %v1595 = vand.u32 %v1594, 4294901760
    %1596 = vmatpush.msra.mxu0 %v1595
    %v1597 = vand.u32 %v1377, 4294901760
    %1598 = vmatmul.f32.gmra.mxu0 %v1597
    %v1599 = vpop.f32.mrf.mxu0
    %v1600 = vadd.f32 %v1449, %v1599
    %v1601 = vand.u32 %v1380, 4294901760
    %1602 = vmatmul.f32.gmra.mxu0 %v1601
    %v1603 = vpop.f32.mrf.mxu0
    %v1604 = vadd.f32 %v1457, %v1603
    %v1605 = vand.u32 %v1383, 4294901760
    %1606 = vmatmul.f32.gmra.mxu0 %v1605
    %v1607 = vpop.f32.mrf.mxu0
    %v1608 = vadd.f32 %v1465, %v1607
    %v1609 = vand.u32 %v1386, 4294901760
    %1610 = vmatmul.f32.gmra.mxu0 %v1609
    %v1611 = vpop.f32.mrf.mxu0
    %v1612 = vadd.f32 %v1473, %v1611
    %v1613 = vand.u32 %v1389, 4294901760
    %1614 = vmatmul.f32.gmra.mxu0 %v1613
    %v1615 = vpop.f32.mrf.mxu0
    %v1616 = vadd.f32 %v1481, %v1615
    %v1617 = vand.u32 %v1392, 4294901760
    %1618 = vmatmul.f32.gmra.mxu0 %v1617
    %v1619 = vpop.f32.mrf.mxu0
    %v1620 = vadd.f32 %v1489, %v1619
    %v1621 = vand.u32 %v1395, 4294901760
    %1622 = vmatmul.f32.gmra.mxu0 %v1621
    %v1623 = vpop.f32.mrf.mxu0
    %v1624 = vadd.f32 %v1497, %v1623
    %v1625 = vand.u32 %v1398, 4294901760
    %1626 = vmatmul.f32.gmra.mxu0 %v1625
    %v1627 = vpop.f32.mrf.mxu0
    %v1628 = vadd.f32 %v1505, %v1627
    %v1629 = vand.u32 %v1401, 4294901760
    %1630 = vmatmul.f32.gmra.mxu0 %v1629
    %v1631 = vpop.f32.mrf.mxu0
    %v1632 = vadd.f32 %v1513, %v1631
    %v1633 = vand.u32 %v1404, 4294901760
    %1634 = vmatmul.f32.gmra.mxu0 %v1633
    %v1635 = vpop.f32.mrf.mxu0
    %v1636 = vadd.f32 %v1521, %v1635
    %v1637 = vand.u32 %v1407, 4294901760
    %1638 = vmatmul.f32.gmra.mxu0 %v1637
    %v1639 = vpop.f32.mrf.mxu0
    %v1640 = vadd.f32 %v1529, %v1639
    %v1641 = vand.u32 %v1410, 4294901760
    %1642 = vmatmul.f32.gmra.mxu0 %v1641
    %v1643 = vpop.f32.mrf.mxu0
    %v1644 = vadd.f32 %v1537, %v1643
    %v1645 = vand.u32 %v1413, 4294901760
    %1646 = vmatmul.f32.gmra.mxu0 %v1645
    %v1647 = vpop.f32.mrf.mxu0
    %v1648 = vadd.f32 %v1545, %v1647
    %v1649 = vand.u32 %v1416, 4294901760
    %1650 = vmatmul.f32.gmra.mxu0 %v1649
    %v1651 = vpop.f32.mrf.mxu0
    %v1652 = vadd.f32 %v1553, %v1651
    %v1653 = vand.u32 %v1419, 4294901760
    %1654 = vmatmul.f32.gmra.mxu0 %v1653
    %v1655 = vpop.f32.mrf.mxu0
    %v1656 = vadd.f32 %v1561, %v1655
    %v1657 = vand.u32 %v1422, 4294901760
    %1658 = vmatmul.f32.gmra.mxu0 %v1657
    %v1659 = vpop.f32.mrf.mxu0
    %v1660 = vadd.f32 %v1569, %v1659
    %1661 = vdwg.mxu0
    %1662 = vmatpush.msra.mxu0 0.0
    %1663 = vmatpush.msra.mxu0 0.0
    %1664 = vmatpush.msra.mxu0 0.0
    %1665 = vmatpush.msra.mxu0 0.0
    %1666 = vmatpush.msra.mxu0 0.0
    %1667 = vmatpush.msra.mxu0 0.0
    %1668 = vmatpush.msra.mxu0 0.0
    %1669 = vmatpush.msra.mxu0 0.0
    %1670 = vmatpush.msra.mxu0 0.0
    %1671 = vmatpush.msra.mxu0 0.0
    %1672 = vmatpush.msra.mxu0 0.0
    %1673 = vmatpush.msra.mxu0 0.0
    %1674 = vmatpush.msra.mxu0 0.0
    %1675 = vmatpush.msra.mxu0 0.0
    %v1676 = vand.u32 %v1366, 4294901760
    %v1677 = vsub.f32 %v1366, %v1676
    %1678 = vmatpush.msra.mxu0 %v1677
    %v1679 = vand.u32 %v1356, 4294901760
    %v1680 = vsub.f32 %v1356, %v1679
    %1681 = vmatpush.msra.mxu0 %v1680
    %v1682 = vand.u32 %v1377, 4294901760
    %v1683 = vsub.f32 %v1377, %v1682
    %1684 = vmatmul.f32.gmra.mxu0 %v1683
    %v1685 = vpop.f32.mrf.mxu0
    %v1686 = vadd.f32 %v1600, %v1685
    %v1687 = vand.u32 %v1380, 4294901760
    %v1688 = vsub.f32 %v1380, %v1687
    %1689 = vmatmul.f32.gmra.mxu0 %v1688
    %v1690 = vpop.f32.mrf.mxu0
    %v1691 = vadd.f32 %v1604, %v1690
    %v1692 = vand.u32 %v1383, 4294901760
    %v1693 = vsub.f32 %v1383, %v1692
    %1694 = vmatmul.f32.gmra.mxu0 %v1693
    %v1695 = vpop.f32.mrf.mxu0
    %v1696 = vadd.f32 %v1608, %v1695
    %v1697 = vand.u32 %v1386, 4294901760
    %v1698 = vsub.f32 %v1386, %v1697
    %1699 = vmatmul.f32.gmra.mxu0 %v1698
    %v1700 = vpop.f32.mrf.mxu0
    %v1701 = vadd.f32 %v1612, %v1700
    %v1702 = vand.u32 %v1389, 4294901760
    %v1703 = vsub.f32 %v1389, %v1702
    %1704 = vmatmul.f32.gmra.mxu0 %v1703
    %v1705 = vpop.f32.mrf.mxu0
    %v1706 = vadd.f32 %v1616, %v1705
    %v1707 = vand.u32 %v1392, 4294901760
    %v1708 = vsub.f32 %v1392, %v1707
    %1709 = vmatmul.f32.gmra.mxu0 %v1708
    %v1710 = vpop.f32.mrf.mxu0
    %v1711 = vadd.f32 %v1620, %v1710
    %v1712 = vand.u32 %v1395, 4294901760
    %v1713 = vsub.f32 %v1395, %v1712
    %1714 = vmatmul.f32.gmra.mxu0 %v1713
    %v1715 = vpop.f32.mrf.mxu0
    %v1716 = vadd.f32 %v1624, %v1715
    %v1717 = vand.u32 %v1398, 4294901760
    %v1718 = vsub.f32 %v1398, %v1717
    %1719 = vmatmul.f32.gmra.mxu0 %v1718
    %v1720 = vpop.f32.mrf.mxu0
    %v1721 = vadd.f32 %v1628, %v1720
    %v1722 = vand.u32 %v1401, 4294901760
    %v1723 = vsub.f32 %v1401, %v1722
    %1724 = vmatmul.f32.gmra.mxu0 %v1723
    %v1725 = vpop.f32.mrf.mxu0
    %v1726 = vadd.f32 %v1632, %v1725
    %v1727 = vand.u32 %v1404, 4294901760
    %v1728 = vsub.f32 %v1404, %v1727
    %1729 = vmatmul.f32.gmra.mxu0 %v1728
    %v1730 = vpop.f32.mrf.mxu0
    %v1731 = vadd.f32 %v1636, %v1730
    %v1732 = vand.u32 %v1407, 4294901760
    %v1733 = vsub.f32 %v1407, %v1732
    %1734 = vmatmul.f32.gmra.mxu0 %v1733
    %v1735 = vpop.f32.mrf.mxu0
    %v1736 = vadd.f32 %v1640, %v1735
    %v1737 = vand.u32 %v1410, 4294901760
    %v1738 = vsub.f32 %v1410, %v1737
    %1739 = vmatmul.f32.gmra.mxu0 %v1738
    %v1740 = vpop.f32.mrf.mxu0
    %v1741 = vadd.f32 %v1644, %v1740
    %v1742 = vand.u32 %v1413, 4294901760
    %v1743 = vsub.f32 %v1413, %v1742
    %1744 = vmatmul.f32.gmra.mxu0 %v1743
    %v1745 = vpop.f32.mrf.mxu0
    %v1746 = vadd.f32 %v1648, %v1745
    %v1747 = vand.u32 %v1416, 4294901760
    %v1748 = vsub.f32 %v1416, %v1747
    %1749 = vmatmul.f32.gmra.mxu0 %v1748
    %v1750 = vpop.f32.mrf.mxu0
    %v1751 = vadd.f32 %v1652, %v1750
    %v1752 = vand.u32 %v1419, 4294901760
    %v1753 = vsub.f32 %v1419, %v1752
    %1754 = vmatmul.f32.gmra.mxu0 %v1753
    %v1755 = vpop.f32.mrf.mxu0
    %v1756 = vadd.f32 %v1656, %v1755
    %v1757 = vand.u32 %v1422, 4294901760
    %v1758 = vsub.f32 %v1422, %v1757
    %1759 = vmatmul.f32.gmra.mxu0 %v1758
    %v1760 = vpop.f32.mrf.mxu0
    %v1761 = vadd.f32 %v1660, %v1760
    %1762 = vdwg.mxu0
    %1763 = vmatpush.msra.mxu0 0.0
    %1764 = vmatpush.msra.mxu0 0.0
    %1765 = vmatpush.msra.mxu0 0.0
    %1766 = vmatpush.msra.mxu0 0.0
    %1767 = vmatpush.msra.mxu0 0.0
    %1768 = vmatpush.msra.mxu0 0.0
    %1769 = vmatpush.msra.mxu0 0.0
    %1770 = vmatpush.msra.mxu0 0.0
    %1771 = vmatpush.msra.mxu0 0.0
    %1772 = vmatpush.msra.mxu0 0.0
    %1773 = vmatpush.msra.mxu0 0.0
    %1774 = vmatpush.msra.mxu0 0.0
    %1775 = vmatpush.msra.mxu0 0.0
    %1776 = vmatpush.msra.mxu0 0.0
    %v1777 = vand.u32 %v1366, 4294901760
    %1778 = vmatpush.msra.mxu0 %v1777
    %v1779 = vand.u32 %v1356, 4294901760
    %1780 = vmatpush.msra.mxu0 %v1779
    %v1781 = vand.u32 %v1377, 4294901760
    %v1782 = vsub.f32 %v1377, %v1781
    %v1783 = vand.u32 %v1782, 4294901760
    %1784 = vmatmul.f32.gmra.mxu0 %v1783
    %v1785 = vpop.f32.mrf.mxu0
    %v1786 = vadd.f32 %v1686, %v1785
    %v1787 = vand.u32 %v1380, 4294901760
    %v1788 = vsub.f32 %v1380, %v1787
    %v1789 = vand.u32 %v1788, 4294901760
    %1790 = vmatmul.f32.gmra.mxu0 %v1789
    %v1791 = vpop.f32.mrf.mxu0
    %v1792 = vadd.f32 %v1691, %v1791
    %v1793 = vand.u32 %v1383, 4294901760
    %v1794 = vsub.f32 %v1383, %v1793
    %v1795 = vand.u32 %v1794, 4294901760
    %1796 = vmatmul.f32.gmra.mxu0 %v1795
    %v1797 = vpop.f32.mrf.mxu0
    %v1798 = vadd.f32 %v1696, %v1797
    %v1799 = vand.u32 %v1386, 4294901760
    %v1800 = vsub.f32 %v1386, %v1799
    %v1801 = vand.u32 %v1800, 4294901760
    %1802 = vmatmul.f32.gmra.mxu0 %v1801
    %v1803 = vpop.f32.mrf.mxu0
    %v1804 = vadd.f32 %v1701, %v1803
    %v1805 = vand.u32 %v1389, 4294901760
    %v1806 = vsub.f32 %v1389, %v1805
    %v1807 = vand.u32 %v1806, 4294901760
    %1808 = vmatmul.f32.gmra.mxu0 %v1807
    %v1809 = vpop.f32.mrf.mxu0
    %v1810 = vadd.f32 %v1706, %v1809
    %v1811 = vand.u32 %v1392, 4294901760
    %v1812 = vsub.f32 %v1392, %v1811
    %v1813 = vand.u32 %v1812, 4294901760
    %1814 = vmatmul.f32.gmra.mxu0 %v1813
    %v1815 = vpop.f32.mrf.mxu0
    %v1816 = vadd.f32 %v1711, %v1815
    %v1817 = vand.u32 %v1395, 4294901760
    %v1818 = vsub.f32 %v1395, %v1817
    %v1819 = vand.u32 %v1818, 4294901760
    %1820 = vmatmul.f32.gmra.mxu0 %v1819
    %v1821 = vpop.f32.mrf.mxu0
    %v1822 = vadd.f32 %v1716, %v1821
    %v1823 = vand.u32 %v1398, 4294901760
    %v1824 = vsub.f32 %v1398, %v1823
    %v1825 = vand.u32 %v1824, 4294901760
    %1826 = vmatmul.f32.gmra.mxu0 %v1825
    %v1827 = vpop.f32.mrf.mxu0
    %v1828 = vadd.f32 %v1721, %v1827
    %v1829 = vand.u32 %v1401, 4294901760
    %v1830 = vsub.f32 %v1401, %v1829
    %v1831 = vand.u32 %v1830, 4294901760
    %1832 = vmatmul.f32.gmra.mxu0 %v1831
    %v1833 = vpop.f32.mrf.mxu0
    %v1834 = vadd.f32 %v1726, %v1833
    %v1835 = vand.u32 %v1404, 4294901760
    %v1836 = vsub.f32 %v1404, %v1835
    %v1837 = vand.u32 %v1836, 4294901760
    %1838 = vmatmul.f32.gmra.mxu0 %v1837
    %v1839 = vpop.f32.mrf.mxu0
    %v1840 = vadd.f32 %v1731, %v1839
    %v1841 = vand.u32 %v1407, 4294901760
    %v1842 = vsub.f32 %v1407, %v1841
    %v1843 = vand.u32 %v1842, 4294901760
    %1844 = vmatmul.f32.gmra.mxu0 %v1843
    %v1845 = vpop.f32.mrf.mxu0
    %v1846 = vadd.f32 %v1736, %v1845
    %v1847 = vand.u32 %v1410, 4294901760
    %v1848 = vsub.f32 %v1410, %v1847
    %v1849 = vand.u32 %v1848, 4294901760
    %1850 = vmatmul.f32.gmra.mxu0 %v1849
    %v1851 = vpop.f32.mrf.mxu0
    %v1852 = vadd.f32 %v1741, %v1851
    %v1853 = vand.u32 %v1413, 4294901760
    %v1854 = vsub.f32 %v1413, %v1853
    %v1855 = vand.u32 %v1854, 4294901760
    %1856 = vmatmul.f32.gmra.mxu0 %v1855
    %v1857 = vpop.f32.mrf.mxu0
    %v1858 = vadd.f32 %v1746, %v1857
    %v1859 = vand.u32 %v1416, 4294901760
    %v1860 = vsub.f32 %v1416, %v1859
    %v1861 = vand.u32 %v1860, 4294901760
    %1862 = vmatmul.f32.gmra.mxu0 %v1861
    %v1863 = vpop.f32.mrf.mxu0
    %v1864 = vadd.f32 %v1751, %v1863
    %v1865 = vand.u32 %v1419, 4294901760
    %v1866 = vsub.f32 %v1419, %v1865
    %v1867 = vand.u32 %v1866, 4294901760
    %1868 = vmatmul.f32.gmra.mxu0 %v1867
    %v1869 = vpop.f32.mrf.mxu0
    %v1870 = vadd.f32 %v1756, %v1869
    %v1871 = vand.u32 %v1422, 4294901760
    %v1872 = vsub.f32 %v1422, %v1871
    %v1873 = vand.u32 %v1872, 4294901760
    %1874 = vmatmul.f32.gmra.mxu0 %v1873
    %v1875 = vpop.f32.mrf.mxu0
    %v1876 = vadd.f32 %v1761, %v1875
    %1877 = vdwg.mxu0
    %1878 = vmatpush.msra.mxu0 0.0
    %1879 = vmatpush.msra.mxu0 0.0
    %1880 = vmatpush.msra.mxu0 0.0
    %1881 = vmatpush.msra.mxu0 0.0
    %1882 = vmatpush.msra.mxu0 0.0
    %1883 = vmatpush.msra.mxu0 0.0
    %1884 = vmatpush.msra.mxu0 0.0
    %1885 = vmatpush.msra.mxu0 0.0
    %1886 = vmatpush.msra.mxu0 0.0
    %1887 = vmatpush.msra.mxu0 0.0
    %1888 = vmatpush.msra.mxu0 0.0
    %1889 = vmatpush.msra.mxu0 0.0
    %1890 = vmatpush.msra.mxu0 0.0
    %1891 = vmatpush.msra.mxu0 0.0
    %v1892 = vand.u32 %v1366, 4294901760
    %v1893 = vsub.f32 %v1366, %v1892
    %v1894 = vand.u32 %v1893, 4294901760
    %1895 = vmatpush.msra.mxu0 %v1894
    %v1896 = vand.u32 %v1356, 4294901760
    %v1897 = vsub.f32 %v1356, %v1896
    %v1898 = vand.u32 %v1897, 4294901760
    %1899 = vmatpush.msra.mxu0 %v1898
    %v1900 = vand.u32 %v1377, 4294901760
    %1901 = vmatmul.f32.gmra.mxu0 %v1900
    %v1902 = vpop.f32.mrf.mxu0
    %v1903 = vadd.f32 %v1786, %v1902
    %v1904 = vand.u32 %v1380, 4294901760
    %1905 = vmatmul.f32.gmra.mxu0 %v1904
    %v1906 = vpop.f32.mrf.mxu0
    %v1907 = vadd.f32 %v1792, %v1906
    %v1908 = vand.u32 %v1383, 4294901760
    %1909 = vmatmul.f32.gmra.mxu0 %v1908
    %v1910 = vpop.f32.mrf.mxu0
    %v1911 = vadd.f32 %v1798, %v1910
    %v1912 = vand.u32 %v1386, 4294901760
    %1913 = vmatmul.f32.gmra.mxu0 %v1912
    %v1914 = vpop.f32.mrf.mxu0
    %v1915 = vadd.f32 %v1804, %v1914
    %v1916 = vand.u32 %v1389, 4294901760
    %1917 = vmatmul.f32.gmra.mxu0 %v1916
    %v1918 = vpop.f32.mrf.mxu0
    %v1919 = vadd.f32 %v1810, %v1918
    %v1920 = vand.u32 %v1392, 4294901760
    %1921 = vmatmul.f32.gmra.mxu0 %v1920
    %v1922 = vpop.f32.mrf.mxu0
    %v1923 = vadd.f32 %v1816, %v1922
    %v1924 = vand.u32 %v1395, 4294901760
    %1925 = vmatmul.f32.gmra.mxu0 %v1924
    %v1926 = vpop.f32.mrf.mxu0
    %v1927 = vadd.f32 %v1822, %v1926
    %v1928 = vand.u32 %v1398, 4294901760
    %1929 = vmatmul.f32.gmra.mxu0 %v1928
    %v1930 = vpop.f32.mrf.mxu0
    %v1931 = vadd.f32 %v1828, %v1930
    %v1932 = vand.u32 %v1401, 4294901760
    %1933 = vmatmul.f32.gmra.mxu0 %v1932
    %v1934 = vpop.f32.mrf.mxu0
    %v1935 = vadd.f32 %v1834, %v1934
    %v1936 = vand.u32 %v1404, 4294901760
    %1937 = vmatmul.f32.gmra.mxu0 %v1936
    %v1938 = vpop.f32.mrf.mxu0
    %v1939 = vadd.f32 %v1840, %v1938
    %v1940 = vand.u32 %v1407, 4294901760
    %1941 = vmatmul.f32.gmra.mxu0 %v1940
    %v1942 = vpop.f32.mrf.mxu0
    %v1943 = vadd.f32 %v1846, %v1942
    %v1944 = vand.u32 %v1410, 4294901760
    %1945 = vmatmul.f32.gmra.mxu0 %v1944
    %v1946 = vpop.f32.mrf.mxu0
    %v1947 = vadd.f32 %v1852, %v1946
    %v1948 = vand.u32 %v1413, 4294901760
    %1949 = vmatmul.f32.gmra.mxu0 %v1948
    %v1950 = vpop.f32.mrf.mxu0
    %v1951 = vadd.f32 %v1858, %v1950
    %v1952 = vand.u32 %v1416, 4294901760
    %1953 = vmatmul.f32.gmra.mxu0 %v1952
    %v1954 = vpop.f32.mrf.mxu0
    %v1955 = vadd.f32 %v1864, %v1954
    %v1956 = vand.u32 %v1419, 4294901760
    %1957 = vmatmul.f32.gmra.mxu0 %v1956
    %v1958 = vpop.f32.mrf.mxu0
    %v1959 = vadd.f32 %v1870, %v1958
    %v1960 = vand.u32 %v1422, 4294901760
    %1961 = vmatmul.f32.gmra.mxu0 %v1960
    %v1962 = vpop.f32.mrf.mxu0
    %v1963 = vadd.f32 %v1876, %v1962
    %1964 = vdwg.mxu0
    %1965 = vmatpush.msra.mxu0 0.0
    %1966 = vmatpush.msra.mxu0 0.0
    %1967 = vmatpush.msra.mxu0 0.0
    %1968 = vmatpush.msra.mxu0 0.0
    %1969 = vmatpush.msra.mxu0 0.0
    %1970 = vmatpush.msra.mxu0 0.0
    %1971 = vmatpush.msra.mxu0 0.0
    %1972 = vmatpush.msra.mxu0 0.0
    %1973 = vmatpush.msra.mxu0 0.0
    %1974 = vmatpush.msra.mxu0 0.0
    %1975 = vmatpush.msra.mxu0 0.0
    %1976 = vmatpush.msra.mxu0 0.0
    %1977 = vmatpush.msra.mxu0 0.0
    %1978 = vmatpush.msra.mxu0 0.0
    %v1979 = vand.u32 %v1366, 4294901760
    %1980 = vmatpush.msra.mxu0 %v1979
    %v1981 = vand.u32 %v1356, 4294901760
    %1982 = vmatpush.msra.mxu0 %v1981
    %v1983 = vand.u32 %v1377, 4294901760
    %1984 = vmatmul.f32.gmra.mxu0 %v1983
    %v1985 = vpop.f32.mrf.mxu0
    %v1986 = vadd.f32 %v1903, %v1985
    %v1987 = vand.u32 %v1380, 4294901760
    %1988 = vmatmul.f32.gmra.mxu0 %v1987
    %v1989 = vpop.f32.mrf.mxu0
    %v1990 = vadd.f32 %v1907, %v1989
    %v1991 = vand.u32 %v1383, 4294901760
    %1992 = vmatmul.f32.gmra.mxu0 %v1991
    %v1993 = vpop.f32.mrf.mxu0
    %v1994 = vadd.f32 %v1911, %v1993
    %v1995 = vand.u32 %v1386, 4294901760
    %1996 = vmatmul.f32.gmra.mxu0 %v1995
    %v1997 = vpop.f32.mrf.mxu0
    %v1998 = vadd.f32 %v1915, %v1997
    %v1999 = vand.u32 %v1389, 4294901760
    %2000 = vmatmul.f32.gmra.mxu0 %v1999
    %v2001 = vpop.f32.mrf.mxu0
    %v2002 = vadd.f32 %v1919, %v2001
    %v2003 = vand.u32 %v1392, 4294901760
    %2004 = vmatmul.f32.gmra.mxu0 %v2003
    %v2005 = vpop.f32.mrf.mxu0
    %v2006 = vadd.f32 %v1923, %v2005
    %v2007 = vand.u32 %v1395, 4294901760
    %2008 = vmatmul.f32.gmra.mxu0 %v2007
    %v2009 = vpop.f32.mrf.mxu0
    %v2010 = vadd.f32 %v1927, %v2009
    %v2011 = vand.u32 %v1398, 4294901760
    %2012 = vmatmul.f32.gmra.mxu0 %v2011
    %v2013 = vpop.f32.mrf.mxu0
    %v2014 = vadd.f32 %v1931, %v2013
    %v2015 = vand.u32 %v1401, 4294901760
    %2016 = vmatmul.f32.gmra.mxu0 %v2015
    %v2017 = vpop.f32.mrf.mxu0
    %v2018 = vadd.f32 %v1935, %v2017
    %v2019 = vand.u32 %v1404, 4294901760
    %2020 = vmatmul.f32.gmra.mxu0 %v2019
    %v2021 = vpop.f32.mrf.mxu0
    %v2022 = vadd.f32 %v1939, %v2021
    %v2023 = vand.u32 %v1407, 4294901760
    %2024 = vmatmul.f32.gmra.mxu0 %v2023
    %v2025 = vpop.f32.mrf.mxu0
    %v2026 = vadd.f32 %v1943, %v2025
    %v2027 = vand.u32 %v1410, 4294901760
    %2028 = vmatmul.f32.gmra.mxu0 %v2027
    %v2029 = vpop.f32.mrf.mxu0
    %v2030 = vadd.f32 %v1947, %v2029
    %v2031 = vand.u32 %v1413, 4294901760
    %2032 = vmatmul.f32.gmra.mxu0 %v2031
    %v2033 = vpop.f32.mrf.mxu0
    %v2034 = vadd.f32 %v1951, %v2033
    %v2035 = vand.u32 %v1416, 4294901760
    %2036 = vmatmul.f32.gmra.mxu0 %v2035
    %v2037 = vpop.f32.mrf.mxu0
    %v2038 = vadd.f32 %v1955, %v2037
    %v2039 = vand.u32 %v1419, 4294901760
    %2040 = vmatmul.f32.gmra.mxu0 %v2039
    %v2041 = vpop.f32.mrf.mxu0
    %v2042 = vadd.f32 %v1959, %v2041
    %v2043 = vand.u32 %v1422, 4294901760
    %2044 = vmatmul.f32.gmra.mxu0 %v2043
    %v2045 = vpop.f32.mrf.mxu0
    %v2046 = vadd.f32 %v1963, %v2045
    %2047 = vdwg.mxu0
    %2048 = vmatpush.msra.mxu0 0.0
    %2049 = vmatpush.msra.mxu0 0.0
    %2050 = vmatpush.msra.mxu0 0.0
    %2051 = vmatpush.msra.mxu0 0.0
    %2052 = vmatpush.msra.mxu0 0.0
    %2053 = vmatpush.msra.mxu0 0.0
    %2054 = vmatpush.msra.mxu0 0.0
    %2055 = vmatpush.msra.mxu0 0.0
    %2056 = vmatpush.msra.mxu0 0.0
    %2057 = vmatpush.msra.mxu0 0.0
    %2058 = vmatpush.msra.mxu0 0.0
    %2059 = vmatpush.msra.mxu0 0.0
    %2060 = vmatpush.msra.mxu0 0.0
    %2061 = vmatpush.msra.mxu0 0.0
    %v2062 = vand.u32 %v1367, 4294901760
    %2063 = vmatpush.msra.mxu0 %v2062
    %v2064 = vand.u32 %v1357, 4294901760
    %2065 = vmatpush.msra.mxu0 %v2064
    %v2066 = vand.u32 %v1377, 4294901760
    %v2067 = vsub.f32 %v1377, %v2066
    %v2068 = vand.u32 %v2067, 4294901760
    %v2069 = vsub.f32 %v2067, %v2068
    %v2070 = vand.u32 %v2069, 4294901760
    %2071 = vmatmul.f32.gmra.mxu0 %v2070
    %v2072 = vpop.f32.mrf.mxu0
    %v2073 = vadd.f32 0.0, %v2072
    %v2074 = vand.u32 %v1380, 4294901760
    %v2075 = vsub.f32 %v1380, %v2074
    %v2076 = vand.u32 %v2075, 4294901760
    %v2077 = vsub.f32 %v2075, %v2076
    %v2078 = vand.u32 %v2077, 4294901760
    %2079 = vmatmul.f32.gmra.mxu0 %v2078
    %v2080 = vpop.f32.mrf.mxu0
    %v2081 = vadd.f32 0.0, %v2080
    %v2082 = vand.u32 %v1383, 4294901760
    %v2083 = vsub.f32 %v1383, %v2082
    %v2084 = vand.u32 %v2083, 4294901760
    %v2085 = vsub.f32 %v2083, %v2084
    %v2086 = vand.u32 %v2085, 4294901760
    %2087 = vmatmul.f32.gmra.mxu0 %v2086
    %v2088 = vpop.f32.mrf.mxu0
    %v2089 = vadd.f32 0.0, %v2088
    %v2090 = vand.u32 %v1386, 4294901760
    %v2091 = vsub.f32 %v1386, %v2090
    %v2092 = vand.u32 %v2091, 4294901760
    %v2093 = vsub.f32 %v2091, %v2092
    %v2094 = vand.u32 %v2093, 4294901760
    %2095 = vmatmul.f32.gmra.mxu0 %v2094
    %v2096 = vpop.f32.mrf.mxu0
    %v2097 = vadd.f32 0.0, %v2096
    %v2098 = vand.u32 %v1389, 4294901760
    %v2099 = vsub.f32 %v1389, %v2098
    %v2100 = vand.u32 %v2099, 4294901760
    %v2101 = vsub.f32 %v2099, %v2100
    %v2102 = vand.u32 %v2101, 4294901760
    %2103 = vmatmul.f32.gmra.mxu0 %v2102
    %v2104 = vpop.f32.mrf.mxu0
    %v2105 = vadd.f32 0.0, %v2104
    %v2106 = vand.u32 %v1392, 4294901760
    %v2107 = vsub.f32 %v1392, %v2106
    %v2108 = vand.u32 %v2107, 4294901760
    %v2109 = vsub.f32 %v2107, %v2108
    %v2110 = vand.u32 %v2109, 4294901760
    %2111 = vmatmul.f32.gmra.mxu0 %v2110
    %v2112 = vpop.f32.mrf.mxu0
    %v2113 = vadd.f32 0.0, %v2112
    %v2114 = vand.u32 %v1395, 4294901760
    %v2115 = vsub.f32 %v1395, %v2114
    %v2116 = vand.u32 %v2115, 4294901760
    %v2117 = vsub.f32 %v2115, %v2116
    %v2118 = vand.u32 %v2117, 4294901760
    %2119 = vmatmul.f32.gmra.mxu0 %v2118
    %v2120 = vpop.f32.mrf.mxu0
    %v2121 = vadd.f32 0.0, %v2120
    %v2122 = vand.u32 %v1398, 4294901760
    %v2123 = vsub.f32 %v1398, %v2122
    %v2124 = vand.u32 %v2123, 4294901760
    %v2125 = vsub.f32 %v2123, %v2124
    %v2126 = vand.u32 %v2125, 4294901760
    %2127 = vmatmul.f32.gmra.mxu0 %v2126
    %v2128 = vpop.f32.mrf.mxu0
    %v2129 = vadd.f32 0.0, %v2128
    %v2130 = vand.u32 %v1401, 4294901760
    %v2131 = vsub.f32 %v1401, %v2130
    %v2132 = vand.u32 %v2131, 4294901760
    %v2133 = vsub.f32 %v2131, %v2132
    %v2134 = vand.u32 %v2133, 4294901760
    %2135 = vmatmul.f32.gmra.mxu0 %v2134
    %v2136 = vpop.f32.mrf.mxu0
    %v2137 = vadd.f32 0.0, %v2136
    %v2138 = vand.u32 %v1404, 4294901760
    %v2139 = vsub.f32 %v1404, %v2138
    %v2140 = vand.u32 %v2139, 4294901760
    %v2141 = vsub.f32 %v2139, %v2140
    %v2142 = vand.u32 %v2141, 4294901760
    %2143 = vmatmul.f32.gmra.mxu0 %v2142
    %v2144 = vpop.f32.mrf.mxu0
    %v2145 = vadd.f32 0.0, %v2144
    %v2146 = vand.u32 %v1407, 4294901760
    %v2147 = vsub.f32 %v1407, %v2146
    %v2148 = vand.u32 %v2147, 4294901760
    %v2149 = vsub.f32 %v2147, %v2148
    %v2150 = vand.u32 %v2149, 4294901760
    %2151 = vmatmul.f32.gmra.mxu0 %v2150
    %v2152 = vpop.f32.mrf.mxu0
    %v2153 = vadd.f32 0.0, %v2152
    %v2154 = vand.u32 %v1410, 4294901760
    %v2155 = vsub.f32 %v1410, %v2154
    %v2156 = vand.u32 %v2155, 4294901760
    %v2157 = vsub.f32 %v2155, %v2156
    %v2158 = vand.u32 %v2157, 4294901760
    %2159 = vmatmul.f32.gmra.mxu0 %v2158
    %v2160 = vpop.f32.mrf.mxu0
    %v2161 = vadd.f32 0.0, %v2160
    %v2162 = vand.u32 %v1413, 4294901760
    %v2163 = vsub.f32 %v1413, %v2162
    %v2164 = vand.u32 %v2163, 4294901760
    %v2165 = vsub.f32 %v2163, %v2164
    %v2166 = vand.u32 %v2165, 4294901760
    %2167 = vmatmul.f32.gmra.mxu0 %v2166
    %v2168 = vpop.f32.mrf.mxu0
    %v2169 = vadd.f32 0.0, %v2168
    %v2170 = vand.u32 %v1416, 4294901760
    %v2171 = vsub.f32 %v1416, %v2170
    %v2172 = vand.u32 %v2171, 4294901760
    %v2173 = vsub.f32 %v2171, %v2172
    %v2174 = vand.u32 %v2173, 4294901760
    %2175 = vmatmul.f32.gmra.mxu0 %v2174
    %v2176 = vpop.f32.mrf.mxu0
    %v2177 = vadd.f32 0.0, %v2176
    %v2178 = vand.u32 %v1419, 4294901760
    %v2179 = vsub.f32 %v1419, %v2178
    %v2180 = vand.u32 %v2179, 4294901760
    %v2181 = vsub.f32 %v2179, %v2180
    %v2182 = vand.u32 %v2181, 4294901760
    %2183 = vmatmul.f32.gmra.mxu0 %v2182
    %v2184 = vpop.f32.mrf.mxu0
    %v2185 = vadd.f32 0.0, %v2184
    %v2186 = vand.u32 %v1422, 4294901760
    %v2187 = vsub.f32 %v1422, %v2186
    %v2188 = vand.u32 %v2187, 4294901760
    %v2189 = vsub.f32 %v2187, %v2188
    %v2190 = vand.u32 %v2189, 4294901760
    %2191 = vmatmul.f32.gmra.mxu0 %v2190
    %v2192 = vpop.f32.mrf.mxu0
    %v2193 = vadd.f32 0.0, %v2192
    %2194 = vdwg.mxu0
    %2195 = vmatpush.msra.mxu0 0.0
    %2196 = vmatpush.msra.mxu0 0.0
    %2197 = vmatpush.msra.mxu0 0.0
    %2198 = vmatpush.msra.mxu0 0.0
    %2199 = vmatpush.msra.mxu0 0.0
    %2200 = vmatpush.msra.mxu0 0.0
    %2201 = vmatpush.msra.mxu0 0.0
    %2202 = vmatpush.msra.mxu0 0.0
    %2203 = vmatpush.msra.mxu0 0.0
    %2204 = vmatpush.msra.mxu0 0.0
    %2205 = vmatpush.msra.mxu0 0.0
    %2206 = vmatpush.msra.mxu0 0.0
    %2207 = vmatpush.msra.mxu0 0.0
    %2208 = vmatpush.msra.mxu0 0.0
    %v2209 = vand.u32 %v1367, 4294901760
    %v2210 = vsub.f32 %v1367, %v2209
    %v2211 = vand.u32 %v2210, 4294901760
    %v2212 = vsub.f32 %v2210, %v2211
    %v2213 = vand.u32 %v2212, 4294901760
    %2214 = vmatpush.msra.mxu0 %v2213
    %v2215 = vand.u32 %v1357, 4294901760
    %v2216 = vsub.f32 %v1357, %v2215
    %v2217 = vand.u32 %v2216, 4294901760
    %v2218 = vsub.f32 %v2216, %v2217
    %v2219 = vand.u32 %v2218, 4294901760
    %2220 = vmatpush.msra.mxu0 %v2219
    %v2221 = vand.u32 %v1377, 4294901760
    %2222 = vmatmul.f32.gmra.mxu0 %v2221
    %v2223 = vpop.f32.mrf.mxu0
    %v2224 = vadd.f32 %v2073, %v2223
    %v2225 = vand.u32 %v1380, 4294901760
    %2226 = vmatmul.f32.gmra.mxu0 %v2225
    %v2227 = vpop.f32.mrf.mxu0
    %v2228 = vadd.f32 %v2081, %v2227
    %v2229 = vand.u32 %v1383, 4294901760
    %2230 = vmatmul.f32.gmra.mxu0 %v2229
    %v2231 = vpop.f32.mrf.mxu0
    %v2232 = vadd.f32 %v2089, %v2231
    %v2233 = vand.u32 %v1386, 4294901760
    %2234 = vmatmul.f32.gmra.mxu0 %v2233
    %v2235 = vpop.f32.mrf.mxu0
    %v2236 = vadd.f32 %v2097, %v2235
    %v2237 = vand.u32 %v1389, 4294901760
    %2238 = vmatmul.f32.gmra.mxu0 %v2237
    %v2239 = vpop.f32.mrf.mxu0
    %v2240 = vadd.f32 %v2105, %v2239
    %v2241 = vand.u32 %v1392, 4294901760
    %2242 = vmatmul.f32.gmra.mxu0 %v2241
    %v2243 = vpop.f32.mrf.mxu0
    %v2244 = vadd.f32 %v2113, %v2243
    %v2245 = vand.u32 %v1395, 4294901760
    %2246 = vmatmul.f32.gmra.mxu0 %v2245
    %v2247 = vpop.f32.mrf.mxu0
    %v2248 = vadd.f32 %v2121, %v2247
    %v2249 = vand.u32 %v1398, 4294901760
    %2250 = vmatmul.f32.gmra.mxu0 %v2249
    %v2251 = vpop.f32.mrf.mxu0
    %v2252 = vadd.f32 %v2129, %v2251
    %v2253 = vand.u32 %v1401, 4294901760
    %2254 = vmatmul.f32.gmra.mxu0 %v2253
    %v2255 = vpop.f32.mrf.mxu0
    %v2256 = vadd.f32 %v2137, %v2255
    %v2257 = vand.u32 %v1404, 4294901760
    %2258 = vmatmul.f32.gmra.mxu0 %v2257
    %v2259 = vpop.f32.mrf.mxu0
    %v2260 = vadd.f32 %v2145, %v2259
    %v2261 = vand.u32 %v1407, 4294901760
    %2262 = vmatmul.f32.gmra.mxu0 %v2261
    %v2263 = vpop.f32.mrf.mxu0
    %v2264 = vadd.f32 %v2153, %v2263
    %v2265 = vand.u32 %v1410, 4294901760
    %2266 = vmatmul.f32.gmra.mxu0 %v2265
    %v2267 = vpop.f32.mrf.mxu0
    %v2268 = vadd.f32 %v2161, %v2267
    %v2269 = vand.u32 %v1413, 4294901760
    %2270 = vmatmul.f32.gmra.mxu0 %v2269
    %v2271 = vpop.f32.mrf.mxu0
    %v2272 = vadd.f32 %v2169, %v2271
    %v2273 = vand.u32 %v1416, 4294901760
    %2274 = vmatmul.f32.gmra.mxu0 %v2273
    %v2275 = vpop.f32.mrf.mxu0
    %v2276 = vadd.f32 %v2177, %v2275
    %v2277 = vand.u32 %v1419, 4294901760
    %2278 = vmatmul.f32.gmra.mxu0 %v2277
    %v2279 = vpop.f32.mrf.mxu0
    %v2280 = vadd.f32 %v2185, %v2279
    %v2281 = vand.u32 %v1422, 4294901760
    %2282 = vmatmul.f32.gmra.mxu0 %v2281
    %v2283 = vpop.f32.mrf.mxu0
    %v2284 = vadd.f32 %v2193, %v2283
    %2285 = vdwg.mxu0
    %2286 = vmatpush.msra.mxu0 0.0
    %2287 = vmatpush.msra.mxu0 0.0
    %2288 = vmatpush.msra.mxu0 0.0
    %2289 = vmatpush.msra.mxu0 0.0
    %2290 = vmatpush.msra.mxu0 0.0
    %2291 = vmatpush.msra.mxu0 0.0
    %2292 = vmatpush.msra.mxu0 0.0
    %2293 = vmatpush.msra.mxu0 0.0
    %2294 = vmatpush.msra.mxu0 0.0
    %2295 = vmatpush.msra.mxu0 0.0
    %2296 = vmatpush.msra.mxu0 0.0
    %2297 = vmatpush.msra.mxu0 0.0
    %2298 = vmatpush.msra.mxu0 0.0
    %2299 = vmatpush.msra.mxu0 0.0
    %v2300 = vand.u32 %v1367, 4294901760
    %v2301 = vsub.f32 %v1367, %v2300
    %2302 = vmatpush.msra.mxu0 %v2301
    %v2303 = vand.u32 %v1357, 4294901760
    %v2304 = vsub.f32 %v1357, %v2303
    %2305 = vmatpush.msra.mxu0 %v2304
    %v2306 = vand.u32 %v1377, 4294901760
    %v2307 = vsub.f32 %v1377, %v2306
    %2308 = vmatmul.f32.gmra.mxu0 %v2307
    %v2309 = vpop.f32.mrf.mxu0
    %v2310 = vadd.f32 %v2224, %v2309
    %v2311 = vand.u32 %v1380, 4294901760
    %v2312 = vsub.f32 %v1380, %v2311
    %2313 = vmatmul.f32.gmra.mxu0 %v2312
    %v2314 = vpop.f32.mrf.mxu0
    %v2315 = vadd.f32 %v2228, %v2314
    %v2316 = vand.u32 %v1383, 4294901760
    %v2317 = vsub.f32 %v1383, %v2316
    %2318 = vmatmul.f32.gmra.mxu0 %v2317
    %v2319 = vpop.f32.mrf.mxu0
    %v2320 = vadd.f32 %v2232, %v2319
    %v2321 = vand.u32 %v1386, 4294901760
    %v2322 = vsub.f32 %v1386, %v2321
    %2323 = vmatmul.f32.gmra.mxu0 %v2322
    %v2324 = vpop.f32.mrf.mxu0
    %v2325 = vadd.f32 %v2236, %v2324
    %v2326 = vand.u32 %v1389, 4294901760
    %v2327 = vsub.f32 %v1389, %v2326
    %2328 = vmatmul.f32.gmra.mxu0 %v2327
    %v2329 = vpop.f32.mrf.mxu0
    %v2330 = vadd.f32 %v2240, %v2329
    %v2331 = vand.u32 %v1392, 4294901760
    %v2332 = vsub.f32 %v1392, %v2331
    %2333 = vmatmul.f32.gmra.mxu0 %v2332
    %v2334 = vpop.f32.mrf.mxu0
    %v2335 = vadd.f32 %v2244, %v2334
    %v2336 = vand.u32 %v1395, 4294901760
    %v2337 = vsub.f32 %v1395, %v2336
    %2338 = vmatmul.f32.gmra.mxu0 %v2337
    %v2339 = vpop.f32.mrf.mxu0
    %v2340 = vadd.f32 %v2248, %v2339
    %v2341 = vand.u32 %v1398, 4294901760
    %v2342 = vsub.f32 %v1398, %v2341
    %2343 = vmatmul.f32.gmra.mxu0 %v2342
    %v2344 = vpop.f32.mrf.mxu0
    %v2345 = vadd.f32 %v2252, %v2344
    %v2346 = vand.u32 %v1401, 4294901760
    %v2347 = vsub.f32 %v1401, %v2346
    %2348 = vmatmul.f32.gmra.mxu0 %v2347
    %v2349 = vpop.f32.mrf.mxu0
    %v2350 = vadd.f32 %v2256, %v2349
    %v2351 = vand.u32 %v1404, 4294901760
    %v2352 = vsub.f32 %v1404, %v2351
    %2353 = vmatmul.f32.gmra.mxu0 %v2352
    %v2354 = vpop.f32.mrf.mxu0
    %v2355 = vadd.f32 %v2260, %v2354
    %v2356 = vand.u32 %v1407, 4294901760
    %v2357 = vsub.f32 %v1407, %v2356
    %2358 = vmatmul.f32.gmra.mxu0 %v2357
    %v2359 = vpop.f32.mrf.mxu0
    %v2360 = vadd.f32 %v2264, %v2359
    %v2361 = vand.u32 %v1410, 4294901760
    %v2362 = vsub.f32 %v1410, %v2361
    %2363 = vmatmul.f32.gmra.mxu0 %v2362
    %v2364 = vpop.f32.mrf.mxu0
    %v2365 = vadd.f32 %v2268, %v2364
    %v2366 = vand.u32 %v1413, 4294901760
    %v2367 = vsub.f32 %v1413, %v2366
    %2368 = vmatmul.f32.gmra.mxu0 %v2367
    %v2369 = vpop.f32.mrf.mxu0
    %v2370 = vadd.f32 %v2272, %v2369
    %v2371 = vand.u32 %v1416, 4294901760
    %v2372 = vsub.f32 %v1416, %v2371
    %2373 = vmatmul.f32.gmra.mxu0 %v2372
    %v2374 = vpop.f32.mrf.mxu0
    %v2375 = vadd.f32 %v2276, %v2374
    %v2376 = vand.u32 %v1419, 4294901760
    %v2377 = vsub.f32 %v1419, %v2376
    %2378 = vmatmul.f32.gmra.mxu0 %v2377
    %v2379 = vpop.f32.mrf.mxu0
    %v2380 = vadd.f32 %v2280, %v2379
    %v2381 = vand.u32 %v1422, 4294901760
    %v2382 = vsub.f32 %v1422, %v2381
    %2383 = vmatmul.f32.gmra.mxu0 %v2382
    %v2384 = vpop.f32.mrf.mxu0
    %v2385 = vadd.f32 %v2284, %v2384
    %2386 = vdwg.mxu0
    %2387 = vmatpush.msra.mxu0 0.0
    %2388 = vmatpush.msra.mxu0 0.0
    %2389 = vmatpush.msra.mxu0 0.0
    %2390 = vmatpush.msra.mxu0 0.0
    %2391 = vmatpush.msra.mxu0 0.0
    %2392 = vmatpush.msra.mxu0 0.0
    %2393 = vmatpush.msra.mxu0 0.0
    %2394 = vmatpush.msra.mxu0 0.0
    %2395 = vmatpush.msra.mxu0 0.0
    %2396 = vmatpush.msra.mxu0 0.0
    %2397 = vmatpush.msra.mxu0 0.0
    %2398 = vmatpush.msra.mxu0 0.0
    %2399 = vmatpush.msra.mxu0 0.0
    %2400 = vmatpush.msra.mxu0 0.0
    %v2401 = vand.u32 %v1367, 4294901760
    %2402 = vmatpush.msra.mxu0 %v2401
    %v2403 = vand.u32 %v1357, 4294901760
    %2404 = vmatpush.msra.mxu0 %v2403
    %v2405 = vand.u32 %v1377, 4294901760
    %v2406 = vsub.f32 %v1377, %v2405
    %v2407 = vand.u32 %v2406, 4294901760
    %2408 = vmatmul.f32.gmra.mxu0 %v2407
    %v2409 = vpop.f32.mrf.mxu0
    %v2410 = vadd.f32 %v2310, %v2409
    %v2411 = vand.u32 %v1380, 4294901760
    %v2412 = vsub.f32 %v1380, %v2411
    %v2413 = vand.u32 %v2412, 4294901760
    %2414 = vmatmul.f32.gmra.mxu0 %v2413
    %v2415 = vpop.f32.mrf.mxu0
    %v2416 = vadd.f32 %v2315, %v2415
    %v2417 = vand.u32 %v1383, 4294901760
    %v2418 = vsub.f32 %v1383, %v2417
    %v2419 = vand.u32 %v2418, 4294901760
    %2420 = vmatmul.f32.gmra.mxu0 %v2419
    %v2421 = vpop.f32.mrf.mxu0
    %v2422 = vadd.f32 %v2320, %v2421
    %v2423 = vand.u32 %v1386, 4294901760
    %v2424 = vsub.f32 %v1386, %v2423
    %v2425 = vand.u32 %v2424, 4294901760
    %2426 = vmatmul.f32.gmra.mxu0 %v2425
    %v2427 = vpop.f32.mrf.mxu0
    %v2428 = vadd.f32 %v2325, %v2427
    %v2429 = vand.u32 %v1389, 4294901760
    %v2430 = vsub.f32 %v1389, %v2429
    %v2431 = vand.u32 %v2430, 4294901760
    %2432 = vmatmul.f32.gmra.mxu0 %v2431
    %v2433 = vpop.f32.mrf.mxu0
    %v2434 = vadd.f32 %v2330, %v2433
    %v2435 = vand.u32 %v1392, 4294901760
    %v2436 = vsub.f32 %v1392, %v2435
    %v2437 = vand.u32 %v2436, 4294901760
    %2438 = vmatmul.f32.gmra.mxu0 %v2437
    %v2439 = vpop.f32.mrf.mxu0
    %v2440 = vadd.f32 %v2335, %v2439
    %v2441 = vand.u32 %v1395, 4294901760
    %v2442 = vsub.f32 %v1395, %v2441
    %v2443 = vand.u32 %v2442, 4294901760
    %2444 = vmatmul.f32.gmra.mxu0 %v2443
    %v2445 = vpop.f32.mrf.mxu0
    %v2446 = vadd.f32 %v2340, %v2445
    %v2447 = vand.u32 %v1398, 4294901760
    %v2448 = vsub.f32 %v1398, %v2447
    %v2449 = vand.u32 %v2448, 4294901760
    %2450 = vmatmul.f32.gmra.mxu0 %v2449
    %v2451 = vpop.f32.mrf.mxu0
    %v2452 = vadd.f32 %v2345, %v2451
    %v2453 = vand.u32 %v1401, 4294901760
    %v2454 = vsub.f32 %v1401, %v2453
    %v2455 = vand.u32 %v2454, 4294901760
    %2456 = vmatmul.f32.gmra.mxu0 %v2455
    %v2457 = vpop.f32.mrf.mxu0
    %v2458 = vadd.f32 %v2350, %v2457
    %v2459 = vand.u32 %v1404, 4294901760
    %v2460 = vsub.f32 %v1404, %v2459
    %v2461 = vand.u32 %v2460, 4294901760
    %2462 = vmatmul.f32.gmra.mxu0 %v2461
    %v2463 = vpop.f32.mrf.mxu0
    %v2464 = vadd.f32 %v2355, %v2463
    %v2465 = vand.u32 %v1407, 4294901760
    %v2466 = vsub.f32 %v1407, %v2465
    %v2467 = vand.u32 %v2466, 4294901760
    %2468 = vmatmul.f32.gmra.mxu0 %v2467
    %v2469 = vpop.f32.mrf.mxu0
    %v2470 = vadd.f32 %v2360, %v2469
    %v2471 = vand.u32 %v1410, 4294901760
    %v2472 = vsub.f32 %v1410, %v2471
    %v2473 = vand.u32 %v2472, 4294901760
    %2474 = vmatmul.f32.gmra.mxu0 %v2473
    %v2475 = vpop.f32.mrf.mxu0
    %v2476 = vadd.f32 %v2365, %v2475
    %v2477 = vand.u32 %v1413, 4294901760
    %v2478 = vsub.f32 %v1413, %v2477
    %v2479 = vand.u32 %v2478, 4294901760
    %2480 = vmatmul.f32.gmra.mxu0 %v2479
    %v2481 = vpop.f32.mrf.mxu0
    %v2482 = vadd.f32 %v2370, %v2481
    %v2483 = vand.u32 %v1416, 4294901760
    %v2484 = vsub.f32 %v1416, %v2483
    %v2485 = vand.u32 %v2484, 4294901760
    %2486 = vmatmul.f32.gmra.mxu0 %v2485
    %v2487 = vpop.f32.mrf.mxu0
    %v2488 = vadd.f32 %v2375, %v2487
    %v2489 = vand.u32 %v1419, 4294901760
    %v2490 = vsub.f32 %v1419, %v2489
    %v2491 = vand.u32 %v2490, 4294901760
    %2492 = vmatmul.f32.gmra.mxu0 %v2491
    %v2493 = vpop.f32.mrf.mxu0
    %v2494 = vadd.f32 %v2380, %v2493
    %v2495 = vand.u32 %v1422, 4294901760
    %v2496 = vsub.f32 %v1422, %v2495
    %v2497 = vand.u32 %v2496, 4294901760
    %2498 = vmatmul.f32.gmra.mxu0 %v2497
    %v2499 = vpop.f32.mrf.mxu0
    %v2500 = vadd.f32 %v2385, %v2499
    %2501 = vdwg.mxu0
    %2502 = vmatpush.msra.mxu0 0.0
    %2503 = vmatpush.msra.mxu0 0.0
    %2504 = vmatpush.msra.mxu0 0.0
    %2505 = vmatpush.msra.mxu0 0.0
    %2506 = vmatpush.msra.mxu0 0.0
    %2507 = vmatpush.msra.mxu0 0.0
    %2508 = vmatpush.msra.mxu0 0.0
    %2509 = vmatpush.msra.mxu0 0.0
    %2510 = vmatpush.msra.mxu0 0.0
    %2511 = vmatpush.msra.mxu0 0.0
    %2512 = vmatpush.msra.mxu0 0.0
    %2513 = vmatpush.msra.mxu0 0.0
    %2514 = vmatpush.msra.mxu0 0.0
    %2515 = vmatpush.msra.mxu0 0.0
    %v2516 = vand.u32 %v1367, 4294901760
    %v2517 = vsub.f32 %v1367, %v2516
    %v2518 = vand.u32 %v2517, 4294901760
    %2519 = vmatpush.msra.mxu0 %v2518
    %v2520 = vand.u32 %v1357, 4294901760
    %v2521 = vsub.f32 %v1357, %v2520
    %v2522 = vand.u32 %v2521, 4294901760
    %2523 = vmatpush.msra.mxu0 %v2522
    %v2524 = vand.u32 %v1377, 4294901760
    %2525 = vmatmul.f32.gmra.mxu0 %v2524
    %v2526 = vpop.f32.mrf.mxu0
    %v2527 = vadd.f32 %v2410, %v2526
    %v2528 = vand.u32 %v1380, 4294901760
    %2529 = vmatmul.f32.gmra.mxu0 %v2528
    %v2530 = vpop.f32.mrf.mxu0
    %v2531 = vadd.f32 %v2416, %v2530
    %v2532 = vand.u32 %v1383, 4294901760
    %2533 = vmatmul.f32.gmra.mxu0 %v2532
    %v2534 = vpop.f32.mrf.mxu0
    %v2535 = vadd.f32 %v2422, %v2534
    %v2536 = vand.u32 %v1386, 4294901760
    %2537 = vmatmul.f32.gmra.mxu0 %v2536
    %v2538 = vpop.f32.mrf.mxu0
    %v2539 = vadd.f32 %v2428, %v2538
    %v2540 = vand.u32 %v1389, 4294901760
    %2541 = vmatmul.f32.gmra.mxu0 %v2540
    %v2542 = vpop.f32.mrf.mxu0
    %v2543 = vadd.f32 %v2434, %v2542
    %v2544 = vand.u32 %v1392, 4294901760
    %2545 = vmatmul.f32.gmra.mxu0 %v2544
    %v2546 = vpop.f32.mrf.mxu0
    %v2547 = vadd.f32 %v2440, %v2546
    %v2548 = vand.u32 %v1395, 4294901760
    %2549 = vmatmul.f32.gmra.mxu0 %v2548
    %v2550 = vpop.f32.mrf.mxu0
    %v2551 = vadd.f32 %v2446, %v2550
    %v2552 = vand.u32 %v1398, 4294901760
    %2553 = vmatmul.f32.gmra.mxu0 %v2552
    %v2554 = vpop.f32.mrf.mxu0
    %v2555 = vadd.f32 %v2452, %v2554
    %v2556 = vand.u32 %v1401, 4294901760
    %2557 = vmatmul.f32.gmra.mxu0 %v2556
    %v2558 = vpop.f32.mrf.mxu0
    %v2559 = vadd.f32 %v2458, %v2558
    %v2560 = vand.u32 %v1404, 4294901760
    %2561 = vmatmul.f32.gmra.mxu0 %v2560
    %v2562 = vpop.f32.mrf.mxu0
    %v2563 = vadd.f32 %v2464, %v2562
    %v2564 = vand.u32 %v1407, 4294901760
    %2565 = vmatmul.f32.gmra.mxu0 %v2564
    %v2566 = vpop.f32.mrf.mxu0
    %v2567 = vadd.f32 %v2470, %v2566
    %v2568 = vand.u32 %v1410, 4294901760
    %2569 = vmatmul.f32.gmra.mxu0 %v2568
    %v2570 = vpop.f32.mrf.mxu0
    %v2571 = vadd.f32 %v2476, %v2570
    %v2572 = vand.u32 %v1413, 4294901760
    %2573 = vmatmul.f32.gmra.mxu0 %v2572
    %v2574 = vpop.f32.mrf.mxu0
    %v2575 = vadd.f32 %v2482, %v2574
    %v2576 = vand.u32 %v1416, 4294901760
    %2577 = vmatmul.f32.gmra.mxu0 %v2576
    %v2578 = vpop.f32.mrf.mxu0
    %v2579 = vadd.f32 %v2488, %v2578
    %v2580 = vand.u32 %v1419, 4294901760
    %2581 = vmatmul.f32.gmra.mxu0 %v2580
    %v2582 = vpop.f32.mrf.mxu0
    %v2583 = vadd.f32 %v2494, %v2582
    %v2584 = vand.u32 %v1422, 4294901760
    %2585 = vmatmul.f32.gmra.mxu0 %v2584
    %v2586 = vpop.f32.mrf.mxu0
    %v2587 = vadd.f32 %v2500, %v2586
    %2588 = vdwg.mxu0
    %2589 = vmatpush.msra.mxu0 0.0
    %2590 = vmatpush.msra.mxu0 0.0
    %2591 = vmatpush.msra.mxu0 0.0
    %2592 = vmatpush.msra.mxu0 0.0
    %2593 = vmatpush.msra.mxu0 0.0
    %2594 = vmatpush.msra.mxu0 0.0
    %2595 = vmatpush.msra.mxu0 0.0
    %2596 = vmatpush.msra.mxu0 0.0
    %2597 = vmatpush.msra.mxu0 0.0
    %2598 = vmatpush.msra.mxu0 0.0
    %2599 = vmatpush.msra.mxu0 0.0
    %2600 = vmatpush.msra.mxu0 0.0
    %2601 = vmatpush.msra.mxu0 0.0
    %2602 = vmatpush.msra.mxu0 0.0
    %v2603 = vand.u32 %v1367, 4294901760
    %2604 = vmatpush.msra.mxu0 %v2603
    %v2605 = vand.u32 %v1357, 4294901760
    %2606 = vmatpush.msra.mxu0 %v2605
    %v2607 = vand.u32 %v1377, 4294901760
    %2608 = vmatmul.f32.gmra.mxu0 %v2607
    %v2609 = vpop.f32.mrf.mxu0
    %v2610 = vadd.f32 %v2527, %v2609
    %v2611 = vand.u32 %v1380, 4294901760
    %2612 = vmatmul.f32.gmra.mxu0 %v2611
    %v2613 = vpop.f32.mrf.mxu0
    %v2614 = vadd.f32 %v2531, %v2613
    %v2615 = vand.u32 %v1383, 4294901760
    %2616 = vmatmul.f32.gmra.mxu0 %v2615
    %v2617 = vpop.f32.mrf.mxu0
    %v2618 = vadd.f32 %v2535, %v2617
    %v2619 = vand.u32 %v1386, 4294901760
    %2620 = vmatmul.f32.gmra.mxu0 %v2619
    %v2621 = vpop.f32.mrf.mxu0
    %v2622 = vadd.f32 %v2539, %v2621
    %v2623 = vand.u32 %v1389, 4294901760
    %2624 = vmatmul.f32.gmra.mxu0 %v2623
    %v2625 = vpop.f32.mrf.mxu0
    %v2626 = vadd.f32 %v2543, %v2625
    %v2627 = vand.u32 %v1392, 4294901760
    %2628 = vmatmul.f32.gmra.mxu0 %v2627
    %v2629 = vpop.f32.mrf.mxu0
    %v2630 = vadd.f32 %v2547, %v2629
    %v2631 = vand.u32 %v1395, 4294901760
    %2632 = vmatmul.f32.gmra.mxu0 %v2631
    %v2633 = vpop.f32.mrf.mxu0
    %v2634 = vadd.f32 %v2551, %v2633
    %v2635 = vand.u32 %v1398, 4294901760
    %2636 = vmatmul.f32.gmra.mxu0 %v2635
    %v2637 = vpop.f32.mrf.mxu0
    %v2638 = vadd.f32 %v2555, %v2637
    %v2639 = vand.u32 %v1401, 4294901760
    %2640 = vmatmul.f32.gmra.mxu0 %v2639
    %v2641 = vpop.f32.mrf.mxu0
    %v2642 = vadd.f32 %v2559, %v2641
    %v2643 = vand.u32 %v1404, 4294901760
    %2644 = vmatmul.f32.gmra.mxu0 %v2643
    %v2645 = vpop.f32.mrf.mxu0
    %v2646 = vadd.f32 %v2563, %v2645
    %v2647 = vand.u32 %v1407, 4294901760
    %2648 = vmatmul.f32.gmra.mxu0 %v2647
    %v2649 = vpop.f32.mrf.mxu0
    %v2650 = vadd.f32 %v2567, %v2649
    %v2651 = vand.u32 %v1410, 4294901760
    %2652 = vmatmul.f32.gmra.mxu0 %v2651
    %v2653 = vpop.f32.mrf.mxu0
    %v2654 = vadd.f32 %v2571, %v2653
    %v2655 = vand.u32 %v1413, 4294901760
    %2656 = vmatmul.f32.gmra.mxu0 %v2655
    %v2657 = vpop.f32.mrf.mxu0
    %v2658 = vadd.f32 %v2575, %v2657
    %v2659 = vand.u32 %v1416, 4294901760
    %2660 = vmatmul.f32.gmra.mxu0 %v2659
    %v2661 = vpop.f32.mrf.mxu0
    %v2662 = vadd.f32 %v2579, %v2661
    %v2663 = vand.u32 %v1419, 4294901760
    %2664 = vmatmul.f32.gmra.mxu0 %v2663
    %v2665 = vpop.f32.mrf.mxu0
    %v2666 = vadd.f32 %v2583, %v2665
    %v2667 = vand.u32 %v1422, 4294901760
    %2668 = vmatmul.f32.gmra.mxu0 %v2667
    %v2669 = vpop.f32.mrf.mxu0
    %v2670 = vadd.f32 %v2587, %v2669
    %2671 = vdwg.mxu0
    %2672 = vmatpush.msra.mxu0 0.0
    %2673 = vmatpush.msra.mxu0 0.0
    %2674 = vmatpush.msra.mxu0 0.0
    %2675 = vmatpush.msra.mxu0 0.0
    %2676 = vmatpush.msra.mxu0 0.0
    %2677 = vmatpush.msra.mxu0 0.0
    %2678 = vmatpush.msra.mxu0 0.0
    %2679 = vmatpush.msra.mxu0 0.0
    %2680 = vmatpush.msra.mxu0 0.0
    %2681 = vmatpush.msra.mxu0 0.0
    %2682 = vmatpush.msra.mxu0 0.0
    %2683 = vmatpush.msra.mxu0 0.0
    %2684 = vmatpush.msra.mxu0 0.0
    %2685 = vmatpush.msra.mxu0 0.0
    %v2686 = vand.u32 %v1368, 4294901760
    %2687 = vmatpush.msra.mxu0 %v2686
    %v2688 = vand.u32 %v1358, 4294901760
    %2689 = vmatpush.msra.mxu0 %v2688
    %v2690 = vand.u32 %v1377, 4294901760
    %v2691 = vsub.f32 %v1377, %v2690
    %v2692 = vand.u32 %v2691, 4294901760
    %v2693 = vsub.f32 %v2691, %v2692
    %v2694 = vand.u32 %v2693, 4294901760
    %2695 = vmatmul.f32.gmra.mxu0 %v2694
    %v2696 = vpop.f32.mrf.mxu0
    %v2697 = vadd.f32 0.0, %v2696
    %v2698 = vand.u32 %v1380, 4294901760
    %v2699 = vsub.f32 %v1380, %v2698
    %v2700 = vand.u32 %v2699, 4294901760
    %v2701 = vsub.f32 %v2699, %v2700
    %v2702 = vand.u32 %v2701, 4294901760
    %2703 = vmatmul.f32.gmra.mxu0 %v2702
    %v2704 = vpop.f32.mrf.mxu0
    %v2705 = vadd.f32 0.0, %v2704
    %v2706 = vand.u32 %v1383, 4294901760
    %v2707 = vsub.f32 %v1383, %v2706
    %v2708 = vand.u32 %v2707, 4294901760
    %v2709 = vsub.f32 %v2707, %v2708
    %v2710 = vand.u32 %v2709, 4294901760
    %2711 = vmatmul.f32.gmra.mxu0 %v2710
    %v2712 = vpop.f32.mrf.mxu0
    %v2713 = vadd.f32 0.0, %v2712
    %v2714 = vand.u32 %v1386, 4294901760
    %v2715 = vsub.f32 %v1386, %v2714
    %v2716 = vand.u32 %v2715, 4294901760
    %v2717 = vsub.f32 %v2715, %v2716
    %v2718 = vand.u32 %v2717, 4294901760
    %2719 = vmatmul.f32.gmra.mxu0 %v2718
    %v2720 = vpop.f32.mrf.mxu0
    %v2721 = vadd.f32 0.0, %v2720
    %v2722 = vand.u32 %v1389, 4294901760
    %v2723 = vsub.f32 %v1389, %v2722
    %v2724 = vand.u32 %v2723, 4294901760
    %v2725 = vsub.f32 %v2723, %v2724
    %v2726 = vand.u32 %v2725, 4294901760
    %2727 = vmatmul.f32.gmra.mxu0 %v2726
    %v2728 = vpop.f32.mrf.mxu0
    %v2729 = vadd.f32 0.0, %v2728
    %v2730 = vand.u32 %v1392, 4294901760
    %v2731 = vsub.f32 %v1392, %v2730
    %v2732 = vand.u32 %v2731, 4294901760
    %v2733 = vsub.f32 %v2731, %v2732
    %v2734 = vand.u32 %v2733, 4294901760
    %2735 = vmatmul.f32.gmra.mxu0 %v2734
    %v2736 = vpop.f32.mrf.mxu0
    %v2737 = vadd.f32 0.0, %v2736
    %v2738 = vand.u32 %v1395, 4294901760
    %v2739 = vsub.f32 %v1395, %v2738
    %v2740 = vand.u32 %v2739, 4294901760
    %v2741 = vsub.f32 %v2739, %v2740
    %v2742 = vand.u32 %v2741, 4294901760
    %2743 = vmatmul.f32.gmra.mxu0 %v2742
    %v2744 = vpop.f32.mrf.mxu0
    %v2745 = vadd.f32 0.0, %v2744
    %v2746 = vand.u32 %v1398, 4294901760
    %v2747 = vsub.f32 %v1398, %v2746
    %v2748 = vand.u32 %v2747, 4294901760
    %v2749 = vsub.f32 %v2747, %v2748
    %v2750 = vand.u32 %v2749, 4294901760
    %2751 = vmatmul.f32.gmra.mxu0 %v2750
    %v2752 = vpop.f32.mrf.mxu0
    %v2753 = vadd.f32 0.0, %v2752
    %v2754 = vand.u32 %v1401, 4294901760
    %v2755 = vsub.f32 %v1401, %v2754
    %v2756 = vand.u32 %v2755, 4294901760
    %v2757 = vsub.f32 %v2755, %v2756
    %v2758 = vand.u32 %v2757, 4294901760
    %2759 = vmatmul.f32.gmra.mxu0 %v2758
    %v2760 = vpop.f32.mrf.mxu0
    %v2761 = vadd.f32 0.0, %v2760
    %v2762 = vand.u32 %v1404, 4294901760
    %v2763 = vsub.f32 %v1404, %v2762
    %v2764 = vand.u32 %v2763, 4294901760
    %v2765 = vsub.f32 %v2763, %v2764
    %v2766 = vand.u32 %v2765, 4294901760
    %2767 = vmatmul.f32.gmra.mxu0 %v2766
    %v2768 = vpop.f32.mrf.mxu0
    %v2769 = vadd.f32 0.0, %v2768
    %v2770 = vand.u32 %v1407, 4294901760
    %v2771 = vsub.f32 %v1407, %v2770
    %v2772 = vand.u32 %v2771, 4294901760
    %v2773 = vsub.f32 %v2771, %v2772
    %v2774 = vand.u32 %v2773, 4294901760
    %2775 = vmatmul.f32.gmra.mxu0 %v2774
    %v2776 = vpop.f32.mrf.mxu0
    %v2777 = vadd.f32 0.0, %v2776
    %v2778 = vand.u32 %v1410, 4294901760
    %v2779 = vsub.f32 %v1410, %v2778
    %v2780 = vand.u32 %v2779, 4294901760
    %v2781 = vsub.f32 %v2779, %v2780
    %v2782 = vand.u32 %v2781, 4294901760
    %2783 = vmatmul.f32.gmra.mxu0 %v2782
    %v2784 = vpop.f32.mrf.mxu0
    %v2785 = vadd.f32 0.0, %v2784
    %v2786 = vand.u32 %v1413, 4294901760
    %v2787 = vsub.f32 %v1413, %v2786
    %v2788 = vand.u32 %v2787, 4294901760
    %v2789 = vsub.f32 %v2787, %v2788
    %v2790 = vand.u32 %v2789, 4294901760
    %2791 = vmatmul.f32.gmra.mxu0 %v2790
    %v2792 = vpop.f32.mrf.mxu0
    %v2793 = vadd.f32 0.0, %v2792
    %v2794 = vand.u32 %v1416, 4294901760
    %v2795 = vsub.f32 %v1416, %v2794
    %v2796 = vand.u32 %v2795, 4294901760
    %v2797 = vsub.f32 %v2795, %v2796
    %v2798 = vand.u32 %v2797, 4294901760
    %2799 = vmatmul.f32.gmra.mxu0 %v2798
    %v2800 = vpop.f32.mrf.mxu0
    %v2801 = vadd.f32 0.0, %v2800
    %v2802 = vand.u32 %v1419, 4294901760
    %v2803 = vsub.f32 %v1419, %v2802
    %v2804 = vand.u32 %v2803, 4294901760
    %v2805 = vsub.f32 %v2803, %v2804
    %v2806 = vand.u32 %v2805, 4294901760
    %2807 = vmatmul.f32.gmra.mxu0 %v2806
    %v2808 = vpop.f32.mrf.mxu0
    %v2809 = vadd.f32 0.0, %v2808
    %v2810 = vand.u32 %v1422, 4294901760
    %v2811 = vsub.f32 %v1422, %v2810
    %v2812 = vand.u32 %v2811, 4294901760
    %v2813 = vsub.f32 %v2811, %v2812
    %v2814 = vand.u32 %v2813, 4294901760
    %2815 = vmatmul.f32.gmra.mxu0 %v2814
    %v2816 = vpop.f32.mrf.mxu0
    %v2817 = vadd.f32 0.0, %v2816
    %2818 = vdwg.mxu0
    %2819 = vmatpush.msra.mxu0 0.0
    %2820 = vmatpush.msra.mxu0 0.0
    %2821 = vmatpush.msra.mxu0 0.0
    %2822 = vmatpush.msra.mxu0 0.0
    %2823 = vmatpush.msra.mxu0 0.0
    %2824 = vmatpush.msra.mxu0 0.0
    %2825 = vmatpush.msra.mxu0 0.0
    %2826 = vmatpush.msra.mxu0 0.0
    %2827 = vmatpush.msra.mxu0 0.0
    %2828 = vmatpush.msra.mxu0 0.0
    %2829 = vmatpush.msra.mxu0 0.0
    %2830 = vmatpush.msra.mxu0 0.0
    %2831 = vmatpush.msra.mxu0 0.0
    %2832 = vmatpush.msra.mxu0 0.0
    %v2833 = vand.u32 %v1368, 4294901760
    %v2834 = vsub.f32 %v1368, %v2833
    %v2835 = vand.u32 %v2834, 4294901760
    %v2836 = vsub.f32 %v2834, %v2835
    %v2837 = vand.u32 %v2836, 4294901760
    %2838 = vmatpush.msra.mxu0 %v2837
    %v2839 = vand.u32 %v1358, 4294901760
    %v2840 = vsub.f32 %v1358, %v2839
    %v2841 = vand.u32 %v2840, 4294901760
    %v2842 = vsub.f32 %v2840, %v2841
    %v2843 = vand.u32 %v2842, 4294901760
    %2844 = vmatpush.msra.mxu0 %v2843
    %v2845 = vand.u32 %v1377, 4294901760
    %2846 = vmatmul.f32.gmra.mxu0 %v2845
    %v2847 = vpop.f32.mrf.mxu0
    %v2848 = vadd.f32 %v2697, %v2847
    %v2849 = vand.u32 %v1380, 4294901760
    %2850 = vmatmul.f32.gmra.mxu0 %v2849
    %v2851 = vpop.f32.mrf.mxu0
    %v2852 = vadd.f32 %v2705, %v2851
    %v2853 = vand.u32 %v1383, 4294901760
    %2854 = vmatmul.f32.gmra.mxu0 %v2853
    %v2855 = vpop.f32.mrf.mxu0
    %v2856 = vadd.f32 %v2713, %v2855
    %v2857 = vand.u32 %v1386, 4294901760
    %2858 = vmatmul.f32.gmra.mxu0 %v2857
    %v2859 = vpop.f32.mrf.mxu0
    %v2860 = vadd.f32 %v2721, %v2859
    %v2861 = vand.u32 %v1389, 4294901760
    %2862 = vmatmul.f32.gmra.mxu0 %v2861
    %v2863 = vpop.f32.mrf.mxu0
    %v2864 = vadd.f32 %v2729, %v2863
    %v2865 = vand.u32 %v1392, 4294901760
    %2866 = vmatmul.f32.gmra.mxu0 %v2865
    %v2867 = vpop.f32.mrf.mxu0
    %v2868 = vadd.f32 %v2737, %v2867
    %v2869 = vand.u32 %v1395, 4294901760
    %2870 = vmatmul.f32.gmra.mxu0 %v2869
    %v2871 = vpop.f32.mrf.mxu0
    %v2872 = vadd.f32 %v2745, %v2871
    %v2873 = vand.u32 %v1398, 4294901760
    %2874 = vmatmul.f32.gmra.mxu0 %v2873
    %v2875 = vpop.f32.mrf.mxu0
    %v2876 = vadd.f32 %v2753, %v2875
    %v2877 = vand.u32 %v1401, 4294901760
    %2878 = vmatmul.f32.gmra.mxu0 %v2877
    %v2879 = vpop.f32.mrf.mxu0
    %v2880 = vadd.f32 %v2761, %v2879
    %v2881 = vand.u32 %v1404, 4294901760
    %2882 = vmatmul.f32.gmra.mxu0 %v2881
    %v2883 = vpop.f32.mrf.mxu0
    %v2884 = vadd.f32 %v2769, %v2883
    %v2885 = vand.u32 %v1407, 4294901760
    %2886 = vmatmul.f32.gmra.mxu0 %v2885
    %v2887 = vpop.f32.mrf.mxu0
    %v2888 = vadd.f32 %v2777, %v2887
    %v2889 = vand.u32 %v1410, 4294901760
    %2890 = vmatmul.f32.gmra.mxu0 %v2889
    %v2891 = vpop.f32.mrf.mxu0
    %v2892 = vadd.f32 %v2785, %v2891
    %v2893 = vand.u32 %v1413, 4294901760
    %2894 = vmatmul.f32.gmra.mxu0 %v2893
    %v2895 = vpop.f32.mrf.mxu0
    %v2896 = vadd.f32 %v2793, %v2895
    %v2897 = vand.u32 %v1416, 4294901760
    %2898 = vmatmul.f32.gmra.mxu0 %v2897
    %v2899 = vpop.f32.mrf.mxu0
    %v2900 = vadd.f32 %v2801, %v2899
    %v2901 = vand.u32 %v1419, 4294901760
    %2902 = vmatmul.f32.gmra.mxu0 %v2901
    %v2903 = vpop.f32.mrf.mxu0
    %v2904 = vadd.f32 %v2809, %v2903
    %v2905 = vand.u32 %v1422, 4294901760
    %2906 = vmatmul.f32.gmra.mxu0 %v2905
    %v2907 = vpop.f32.mrf.mxu0
    %v2908 = vadd.f32 %v2817, %v2907
    %2909 = vdwg.mxu0
    %2910 = vmatpush.msra.mxu0 0.0
    %2911 = vmatpush.msra.mxu0 0.0
    %2912 = vmatpush.msra.mxu0 0.0
    %2913 = vmatpush.msra.mxu0 0.0
    %2914 = vmatpush.msra.mxu0 0.0
    %2915 = vmatpush.msra.mxu0 0.0
    %2916 = vmatpush.msra.mxu0 0.0
    %2917 = vmatpush.msra.mxu0 0.0
    %2918 = vmatpush.msra.mxu0 0.0
    %2919 = vmatpush.msra.mxu0 0.0
    %2920 = vmatpush.msra.mxu0 0.0
    %2921 = vmatpush.msra.mxu0 0.0
    %2922 = vmatpush.msra.mxu0 0.0
    %2923 = vmatpush.msra.mxu0 0.0
    %v2924 = vand.u32 %v1368, 4294901760
    %v2925 = vsub.f32 %v1368, %v2924
    %2926 = vmatpush.msra.mxu0 %v2925
    %v2927 = vand.u32 %v1358, 4294901760
    %v2928 = vsub.f32 %v1358, %v2927
    %2929 = vmatpush.msra.mxu0 %v2928
    %v2930 = vand.u32 %v1377, 4294901760
    %v2931 = vsub.f32 %v1377, %v2930
    %2932 = vmatmul.f32.gmra.mxu0 %v2931
    %v2933 = vpop.f32.mrf.mxu0
    %v2934 = vadd.f32 %v2848, %v2933
    %v2935 = vand.u32 %v1380, 4294901760
    %v2936 = vsub.f32 %v1380, %v2935
    %2937 = vmatmul.f32.gmra.mxu0 %v2936
    %v2938 = vpop.f32.mrf.mxu0
    %v2939 = vadd.f32 %v2852, %v2938
    %v2940 = vand.u32 %v1383, 4294901760
    %v2941 = vsub.f32 %v1383, %v2940
    %2942 = vmatmul.f32.gmra.mxu0 %v2941
    %v2943 = vpop.f32.mrf.mxu0
    %v2944 = vadd.f32 %v2856, %v2943
    %v2945 = vand.u32 %v1386, 4294901760
    %v2946 = vsub.f32 %v1386, %v2945
    %2947 = vmatmul.f32.gmra.mxu0 %v2946
    %v2948 = vpop.f32.mrf.mxu0
    %v2949 = vadd.f32 %v2860, %v2948
    %v2950 = vand.u32 %v1389, 4294901760
    %v2951 = vsub.f32 %v1389, %v2950
    %2952 = vmatmul.f32.gmra.mxu0 %v2951
    %v2953 = vpop.f32.mrf.mxu0
    %v2954 = vadd.f32 %v2864, %v2953
    %v2955 = vand.u32 %v1392, 4294901760
    %v2956 = vsub.f32 %v1392, %v2955
    %2957 = vmatmul.f32.gmra.mxu0 %v2956
    %v2958 = vpop.f32.mrf.mxu0
    %v2959 = vadd.f32 %v2868, %v2958
    %v2960 = vand.u32 %v1395, 4294901760
    %v2961 = vsub.f32 %v1395, %v2960
    %2962 = vmatmul.f32.gmra.mxu0 %v2961
    %v2963 = vpop.f32.mrf.mxu0
    %v2964 = vadd.f32 %v2872, %v2963
    %v2965 = vand.u32 %v1398, 4294901760
    %v2966 = vsub.f32 %v1398, %v2965
    %2967 = vmatmul.f32.gmra.mxu0 %v2966
    %v2968 = vpop.f32.mrf.mxu0
    %v2969 = vadd.f32 %v2876, %v2968
    %v2970 = vand.u32 %v1401, 4294901760
    %v2971 = vsub.f32 %v1401, %v2970
    %2972 = vmatmul.f32.gmra.mxu0 %v2971
    %v2973 = vpop.f32.mrf.mxu0
    %v2974 = vadd.f32 %v2880, %v2973
    %v2975 = vand.u32 %v1404, 4294901760
    %v2976 = vsub.f32 %v1404, %v2975
    %2977 = vmatmul.f32.gmra.mxu0 %v2976
    %v2978 = vpop.f32.mrf.mxu0
    %v2979 = vadd.f32 %v2884, %v2978
    %v2980 = vand.u32 %v1407, 4294901760
    %v2981 = vsub.f32 %v1407, %v2980
    %2982 = vmatmul.f32.gmra.mxu0 %v2981
    %v2983 = vpop.f32.mrf.mxu0
    %v2984 = vadd.f32 %v2888, %v2983
    %v2985 = vand.u32 %v1410, 4294901760
    %v2986 = vsub.f32 %v1410, %v2985
    %2987 = vmatmul.f32.gmra.mxu0 %v2986
    %v2988 = vpop.f32.mrf.mxu0
    %v2989 = vadd.f32 %v2892, %v2988
    %v2990 = vand.u32 %v1413, 4294901760
    %v2991 = vsub.f32 %v1413, %v2990
    %2992 = vmatmul.f32.gmra.mxu0 %v2991
    %v2993 = vpop.f32.mrf.mxu0
    %v2994 = vadd.f32 %v2896, %v2993
    %v2995 = vand.u32 %v1416, 4294901760
    %v2996 = vsub.f32 %v1416, %v2995
    %2997 = vmatmul.f32.gmra.mxu0 %v2996
    %v2998 = vpop.f32.mrf.mxu0
    %v2999 = vadd.f32 %v2900, %v2998
    %v3000 = vand.u32 %v1419, 4294901760
    %v3001 = vsub.f32 %v1419, %v3000
    %3002 = vmatmul.f32.gmra.mxu0 %v3001
    %v3003 = vpop.f32.mrf.mxu0
    %v3004 = vadd.f32 %v2904, %v3003
    %v3005 = vand.u32 %v1422, 4294901760
    %v3006 = vsub.f32 %v1422, %v3005
    %3007 = vmatmul.f32.gmra.mxu0 %v3006
    %v3008 = vpop.f32.mrf.mxu0
    %v3009 = vadd.f32 %v2908, %v3008
    %3010 = vdwg.mxu0
    %3011 = vmatpush.msra.mxu0 0.0
    %3012 = vmatpush.msra.mxu0 0.0
    %3013 = vmatpush.msra.mxu0 0.0
    %3014 = vmatpush.msra.mxu0 0.0
    %3015 = vmatpush.msra.mxu0 0.0
    %3016 = vmatpush.msra.mxu0 0.0
    %3017 = vmatpush.msra.mxu0 0.0
    %3018 = vmatpush.msra.mxu0 0.0
    %3019 = vmatpush.msra.mxu0 0.0
    %3020 = vmatpush.msra.mxu0 0.0
    %3021 = vmatpush.msra.mxu0 0.0
    %3022 = vmatpush.msra.mxu0 0.0
    %3023 = vmatpush.msra.mxu0 0.0
    %3024 = vmatpush.msra.mxu0 0.0
    %v3025 = vand.u32 %v1368, 4294901760
    %3026 = vmatpush.msra.mxu0 %v3025
    %v3027 = vand.u32 %v1358, 4294901760
    %3028 = vmatpush.msra.mxu0 %v3027
    %v3029 = vand.u32 %v1377, 4294901760
    %v3030 = vsub.f32 %v1377, %v3029
    %v3031 = vand.u32 %v3030, 4294901760
    %3032 = vmatmul.f32.gmra.mxu0 %v3031
    %v3033 = vpop.f32.mrf.mxu0
    %v3034 = vadd.f32 %v2934, %v3033
    %v3035 = vand.u32 %v1380, 4294901760
    %v3036 = vsub.f32 %v1380, %v3035
    %v3037 = vand.u32 %v3036, 4294901760
    %3038 = vmatmul.f32.gmra.mxu0 %v3037
    %v3039 = vpop.f32.mrf.mxu0
    %v3040 = vadd.f32 %v2939, %v3039
    %v3041 = vand.u32 %v1383, 4294901760
    %v3042 = vsub.f32 %v1383, %v3041
    %v3043 = vand.u32 %v3042, 4294901760
    %3044 = vmatmul.f32.gmra.mxu0 %v3043
    %v3045 = vpop.f32.mrf.mxu0
    %v3046 = vadd.f32 %v2944, %v3045
    %v3047 = vand.u32 %v1386, 4294901760
    %v3048 = vsub.f32 %v1386, %v3047
    %v3049 = vand.u32 %v3048, 4294901760
    %3050 = vmatmul.f32.gmra.mxu0 %v3049
    %v3051 = vpop.f32.mrf.mxu0
    %v3052 = vadd.f32 %v2949, %v3051
    %v3053 = vand.u32 %v1389, 4294901760
    %v3054 = vsub.f32 %v1389, %v3053
    %v3055 = vand.u32 %v3054, 4294901760
    %3056 = vmatmul.f32.gmra.mxu0 %v3055
    %v3057 = vpop.f32.mrf.mxu0
    %v3058 = vadd.f32 %v2954, %v3057
    %v3059 = vand.u32 %v1392, 4294901760
    %v3060 = vsub.f32 %v1392, %v3059
    %v3061 = vand.u32 %v3060, 4294901760
    %3062 = vmatmul.f32.gmra.mxu0 %v3061
    %v3063 = vpop.f32.mrf.mxu0
    %v3064 = vadd.f32 %v2959, %v3063
    %v3065 = vand.u32 %v1395, 4294901760
    %v3066 = vsub.f32 %v1395, %v3065
    %v3067 = vand.u32 %v3066, 4294901760
    %3068 = vmatmul.f32.gmra.mxu0 %v3067
    %v3069 = vpop.f32.mrf.mxu0
    %v3070 = vadd.f32 %v2964, %v3069
    %v3071 = vand.u32 %v1398, 4294901760
    %v3072 = vsub.f32 %v1398, %v3071
    %v3073 = vand.u32 %v3072, 4294901760
    %3074 = vmatmul.f32.gmra.mxu0 %v3073
    %v3075 = vpop.f32.mrf.mxu0
    %v3076 = vadd.f32 %v2969, %v3075
    %v3077 = vand.u32 %v1401, 4294901760
    %v3078 = vsub.f32 %v1401, %v3077
    %v3079 = vand.u32 %v3078, 4294901760
    %3080 = vmatmul.f32.gmra.mxu0 %v3079
    %v3081 = vpop.f32.mrf.mxu0
    %v3082 = vadd.f32 %v2974, %v3081
    %v3083 = vand.u32 %v1404, 4294901760
    %v3084 = vsub.f32 %v1404, %v3083
    %v3085 = vand.u32 %v3084, 4294901760
    %3086 = vmatmul.f32.gmra.mxu0 %v3085
    %v3087 = vpop.f32.mrf.mxu0
    %v3088 = vadd.f32 %v2979, %v3087
    %v3089 = vand.u32 %v1407, 4294901760
    %v3090 = vsub.f32 %v1407, %v3089
    %v3091 = vand.u32 %v3090, 4294901760
    %3092 = vmatmul.f32.gmra.mxu0 %v3091
    %v3093 = vpop.f32.mrf.mxu0
    %v3094 = vadd.f32 %v2984, %v3093
    %v3095 = vand.u32 %v1410, 4294901760
    %v3096 = vsub.f32 %v1410, %v3095
    %v3097 = vand.u32 %v3096, 4294901760
    %3098 = vmatmul.f32.gmra.mxu0 %v3097
    %v3099 = vpop.f32.mrf.mxu0
    %v3100 = vadd.f32 %v2989, %v3099
    %v3101 = vand.u32 %v1413, 4294901760
    %v3102 = vsub.f32 %v1413, %v3101
    %v3103 = vand.u32 %v3102, 4294901760
    %3104 = vmatmul.f32.gmra.mxu0 %v3103
    %v3105 = vpop.f32.mrf.mxu0
    %v3106 = vadd.f32 %v2994, %v3105
    %v3107 = vand.u32 %v1416, 4294901760
    %v3108 = vsub.f32 %v1416, %v3107
    %v3109 = vand.u32 %v3108, 4294901760
    %3110 = vmatmul.f32.gmra.mxu0 %v3109
    %v3111 = vpop.f32.mrf.mxu0
    %v3112 = vadd.f32 %v2999, %v3111
    %v3113 = vand.u32 %v1419, 4294901760
    %v3114 = vsub.f32 %v1419, %v3113
    %v3115 = vand.u32 %v3114, 4294901760
    %3116 = vmatmul.f32.gmra.mxu0 %v3115
    %v3117 = vpop.f32.mrf.mxu0
    %v3118 = vadd.f32 %v3004, %v3117
    %v3119 = vand.u32 %v1422, 4294901760
    %v3120 = vsub.f32 %v1422, %v3119
    %v3121 = vand.u32 %v3120, 4294901760
    %3122 = vmatmul.f32.gmra.mxu0 %v3121
    %v3123 = vpop.f32.mrf.mxu0
    %v3124 = vadd.f32 %v3009, %v3123
    %3125 = vdwg.mxu0
    %3126 = vmatpush.msra.mxu0 0.0
    %3127 = vmatpush.msra.mxu0 0.0
    %3128 = vmatpush.msra.mxu0 0.0
    %3129 = vmatpush.msra.mxu0 0.0
    %3130 = vmatpush.msra.mxu0 0.0
    %3131 = vmatpush.msra.mxu0 0.0
    %3132 = vmatpush.msra.mxu0 0.0
    %3133 = vmatpush.msra.mxu0 0.0
    %3134 = vmatpush.msra.mxu0 0.0
    %3135 = vmatpush.msra.mxu0 0.0
    %3136 = vmatpush.msra.mxu0 0.0
    %3137 = vmatpush.msra.mxu0 0.0
    %3138 = vmatpush.msra.mxu0 0.0
    %3139 = vmatpush.msra.mxu0 0.0
    %v3140 = vand.u32 %v1368, 4294901760
    %v3141 = vsub.f32 %v1368, %v3140
    %v3142 = vand.u32 %v3141, 4294901760
    %3143 = vmatpush.msra.mxu0 %v3142
    %v3144 = vand.u32 %v1358, 4294901760
    %v3145 = vsub.f32 %v1358, %v3144
    %v3146 = vand.u32 %v3145, 4294901760
    %3147 = vmatpush.msra.mxu0 %v3146
    %v3148 = vand.u32 %v1377, 4294901760
    %3149 = vmatmul.f32.gmra.mxu0 %v3148
    %v3150 = vpop.f32.mrf.mxu0
    %v3151 = vadd.f32 %v3034, %v3150
    %v3152 = vand.u32 %v1380, 4294901760
    %3153 = vmatmul.f32.gmra.mxu0 %v3152
    %v3154 = vpop.f32.mrf.mxu0
    %v3155 = vadd.f32 %v3040, %v3154
    %v3156 = vand.u32 %v1383, 4294901760
    %3157 = vmatmul.f32.gmra.mxu0 %v3156
    %v3158 = vpop.f32.mrf.mxu0
    %v3159 = vadd.f32 %v3046, %v3158
    %v3160 = vand.u32 %v1386, 4294901760
    %3161 = vmatmul.f32.gmra.mxu0 %v3160
    %v3162 = vpop.f32.mrf.mxu0
    %v3163 = vadd.f32 %v3052, %v3162
    %v3164 = vand.u32 %v1389, 4294901760
    %3165 = vmatmul.f32.gmra.mxu0 %v3164
    %v3166 = vpop.f32.mrf.mxu0
    %v3167 = vadd.f32 %v3058, %v3166
    %v3168 = vand.u32 %v1392, 4294901760
    %3169 = vmatmul.f32.gmra.mxu0 %v3168
    %v3170 = vpop.f32.mrf.mxu0
    %v3171 = vadd.f32 %v3064, %v3170
    %v3172 = vand.u32 %v1395, 4294901760
    %3173 = vmatmul.f32.gmra.mxu0 %v3172
    %v3174 = vpop.f32.mrf.mxu0
    %v3175 = vadd.f32 %v3070, %v3174
    %v3176 = vand.u32 %v1398, 4294901760
    %3177 = vmatmul.f32.gmra.mxu0 %v3176
    %v3178 = vpop.f32.mrf.mxu0
    %v3179 = vadd.f32 %v3076, %v3178
    %v3180 = vand.u32 %v1401, 4294901760
    %3181 = vmatmul.f32.gmra.mxu0 %v3180
    %v3182 = vpop.f32.mrf.mxu0
    %v3183 = vadd.f32 %v3082, %v3182
    %v3184 = vand.u32 %v1404, 4294901760
    %3185 = vmatmul.f32.gmra.mxu0 %v3184
    %v3186 = vpop.f32.mrf.mxu0
    %v3187 = vadd.f32 %v3088, %v3186
    %v3188 = vand.u32 %v1407, 4294901760
    %3189 = vmatmul.f32.gmra.mxu0 %v3188
    %v3190 = vpop.f32.mrf.mxu0
    %v3191 = vadd.f32 %v3094, %v3190
    %v3192 = vand.u32 %v1410, 4294901760
    %3193 = vmatmul.f32.gmra.mxu0 %v3192
    %v3194 = vpop.f32.mrf.mxu0
    %v3195 = vadd.f32 %v3100, %v3194
    %v3196 = vand.u32 %v1413, 4294901760
    %3197 = vmatmul.f32.gmra.mxu0 %v3196
    %v3198 = vpop.f32.mrf.mxu0
    %v3199 = vadd.f32 %v3106, %v3198
    %v3200 = vand.u32 %v1416, 4294901760
    %3201 = vmatmul.f32.gmra.mxu0 %v3200
    %v3202 = vpop.f32.mrf.mxu0
    %v3203 = vadd.f32 %v3112, %v3202
    %v3204 = vand.u32 %v1419, 4294901760
    %3205 = vmatmul.f32.gmra.mxu0 %v3204
    %v3206 = vpop.f32.mrf.mxu0
    %v3207 = vadd.f32 %v3118, %v3206
    %v3208 = vand.u32 %v1422, 4294901760
    %3209 = vmatmul.f32.gmra.mxu0 %v3208
    %v3210 = vpop.f32.mrf.mxu0
    %v3211 = vadd.f32 %v3124, %v3210
    %3212 = vdwg.mxu0
    %3213 = vmatpush.msra.mxu0 0.0
    %3214 = vmatpush.msra.mxu0 0.0
    %3215 = vmatpush.msra.mxu0 0.0
    %3216 = vmatpush.msra.mxu0 0.0
    %3217 = vmatpush.msra.mxu0 0.0
    %3218 = vmatpush.msra.mxu0 0.0
    %3219 = vmatpush.msra.mxu0 0.0
    %3220 = vmatpush.msra.mxu0 0.0
    %3221 = vmatpush.msra.mxu0 0.0
    %3222 = vmatpush.msra.mxu0 0.0
    %3223 = vmatpush.msra.mxu0 0.0
    %3224 = vmatpush.msra.mxu0 0.0
    %3225 = vmatpush.msra.mxu0 0.0
    %3226 = vmatpush.msra.mxu0 0.0
    %v3227 = vand.u32 %v1368, 4294901760
    %3228 = vmatpush.msra.mxu0 %v3227
    %v3229 = vand.u32 %v1358, 4294901760
    %3230 = vmatpush.msra.mxu0 %v3229
    %v3231 = vand.u32 %v1377, 4294901760
    %3232 = vmatmul.f32.gmra.mxu0 %v3231
    %v3233 = vpop.f32.mrf.mxu0
    %v3234 = vadd.f32 %v3151, %v3233
    %v3235 = vand.u32 %v1380, 4294901760
    %3236 = vmatmul.f32.gmra.mxu0 %v3235
    %v3237 = vpop.f32.mrf.mxu0
    %v3238 = vadd.f32 %v3155, %v3237
    %v3239 = vand.u32 %v1383, 4294901760
    %3240 = vmatmul.f32.gmra.mxu0 %v3239
    %v3241 = vpop.f32.mrf.mxu0
    %v3242 = vadd.f32 %v3159, %v3241
    %v3243 = vand.u32 %v1386, 4294901760
    %3244 = vmatmul.f32.gmra.mxu0 %v3243
    %v3245 = vpop.f32.mrf.mxu0
    %v3246 = vadd.f32 %v3163, %v3245
    %v3247 = vand.u32 %v1389, 4294901760
    %3248 = vmatmul.f32.gmra.mxu0 %v3247
    %v3249 = vpop.f32.mrf.mxu0
    %v3250 = vadd.f32 %v3167, %v3249
    %v3251 = vand.u32 %v1392, 4294901760
    %3252 = vmatmul.f32.gmra.mxu0 %v3251
    %v3253 = vpop.f32.mrf.mxu0
    %v3254 = vadd.f32 %v3171, %v3253
    %v3255 = vand.u32 %v1395, 4294901760
    %3256 = vmatmul.f32.gmra.mxu0 %v3255
    %v3257 = vpop.f32.mrf.mxu0
    %v3258 = vadd.f32 %v3175, %v3257
    %v3259 = vand.u32 %v1398, 4294901760
    %3260 = vmatmul.f32.gmra.mxu0 %v3259
    %v3261 = vpop.f32.mrf.mxu0
    %v3262 = vadd.f32 %v3179, %v3261
    %v3263 = vand.u32 %v1401, 4294901760
    %3264 = vmatmul.f32.gmra.mxu0 %v3263
    %v3265 = vpop.f32.mrf.mxu0
    %v3266 = vadd.f32 %v3183, %v3265
    %v3267 = vand.u32 %v1404, 4294901760
    %3268 = vmatmul.f32.gmra.mxu0 %v3267
    %v3269 = vpop.f32.mrf.mxu0
    %v3270 = vadd.f32 %v3187, %v3269
    %v3271 = vand.u32 %v1407, 4294901760
    %3272 = vmatmul.f32.gmra.mxu0 %v3271
    %v3273 = vpop.f32.mrf.mxu0
    %v3274 = vadd.f32 %v3191, %v3273
    %v3275 = vand.u32 %v1410, 4294901760
    %3276 = vmatmul.f32.gmra.mxu0 %v3275
    %v3277 = vpop.f32.mrf.mxu0
    %v3278 = vadd.f32 %v3195, %v3277
    %v3279 = vand.u32 %v1413, 4294901760
    %3280 = vmatmul.f32.gmra.mxu0 %v3279
    %v3281 = vpop.f32.mrf.mxu0
    %v3282 = vadd.f32 %v3199, %v3281
    %v3283 = vand.u32 %v1416, 4294901760
    %3284 = vmatmul.f32.gmra.mxu0 %v3283
    %v3285 = vpop.f32.mrf.mxu0
    %v3286 = vadd.f32 %v3203, %v3285
    %v3287 = vand.u32 %v1419, 4294901760
    %3288 = vmatmul.f32.gmra.mxu0 %v3287
    %v3289 = vpop.f32.mrf.mxu0
    %v3290 = vadd.f32 %v3207, %v3289
    %v3291 = vand.u32 %v1422, 4294901760
    %3292 = vmatmul.f32.gmra.mxu0 %v3291
    %v3293 = vpop.f32.mrf.mxu0
    %v3294 = vadd.f32 %v3211, %v3293
    %3295 = vdwg.mxu0
    %3296 = vmatpush.msra.mxu0 0.0
    %3297 = vmatpush.msra.mxu0 0.0
    %3298 = vmatpush.msra.mxu0 0.0
    %3299 = vmatpush.msra.mxu0 0.0
    %3300 = vmatpush.msra.mxu0 0.0
    %3301 = vmatpush.msra.mxu0 0.0
    %3302 = vmatpush.msra.mxu0 0.0
    %3303 = vmatpush.msra.mxu0 0.0
    %3304 = vmatpush.msra.mxu0 0.0
    %3305 = vmatpush.msra.mxu0 0.0
    %3306 = vmatpush.msra.mxu0 0.0
    %3307 = vmatpush.msra.mxu0 0.0
    %3308 = vmatpush.msra.mxu0 0.0
    %3309 = vmatpush.msra.mxu0 0.0
    %v3310 = vand.u32 %v1369, 4294901760
    %3311 = vmatpush.msra.mxu0 %v3310
    %v3312 = vand.u32 %v1359, 4294901760
    %3313 = vmatpush.msra.mxu0 %v3312
    %v3314 = vand.u32 %v1377, 4294901760
    %v3315 = vsub.f32 %v1377, %v3314
    %v3316 = vand.u32 %v3315, 4294901760
    %v3317 = vsub.f32 %v3315, %v3316
    %v3318 = vand.u32 %v3317, 4294901760
    %3319 = vmatmul.f32.gmra.mxu0 %v3318
    %v3320 = vpop.f32.mrf.mxu0
    %v3321 = vadd.f32 0.0, %v3320
    %v3322 = vand.u32 %v1380, 4294901760
    %v3323 = vsub.f32 %v1380, %v3322
    %v3324 = vand.u32 %v3323, 4294901760
    %v3325 = vsub.f32 %v3323, %v3324
    %v3326 = vand.u32 %v3325, 4294901760
    %3327 = vmatmul.f32.gmra.mxu0 %v3326
    %v3328 = vpop.f32.mrf.mxu0
    %v3329 = vadd.f32 0.0, %v3328
    %v3330 = vand.u32 %v1383, 4294901760
    %v3331 = vsub.f32 %v1383, %v3330
    %v3332 = vand.u32 %v3331, 4294901760
    %v3333 = vsub.f32 %v3331, %v3332
    %v3334 = vand.u32 %v3333, 4294901760
    %3335 = vmatmul.f32.gmra.mxu0 %v3334
    %v3336 = vpop.f32.mrf.mxu0
    %v3337 = vadd.f32 0.0, %v3336
    %v3338 = vand.u32 %v1386, 4294901760
    %v3339 = vsub.f32 %v1386, %v3338
    %v3340 = vand.u32 %v3339, 4294901760
    %v3341 = vsub.f32 %v3339, %v3340
    %v3342 = vand.u32 %v3341, 4294901760
    %3343 = vmatmul.f32.gmra.mxu0 %v3342
    %v3344 = vpop.f32.mrf.mxu0
    %v3345 = vadd.f32 0.0, %v3344
    %v3346 = vand.u32 %v1389, 4294901760
    %v3347 = vsub.f32 %v1389, %v3346
    %v3348 = vand.u32 %v3347, 4294901760
    %v3349 = vsub.f32 %v3347, %v3348
    %v3350 = vand.u32 %v3349, 4294901760
    %3351 = vmatmul.f32.gmra.mxu0 %v3350
    %v3352 = vpop.f32.mrf.mxu0
    %v3353 = vadd.f32 0.0, %v3352
    %v3354 = vand.u32 %v1392, 4294901760
    %v3355 = vsub.f32 %v1392, %v3354
    %v3356 = vand.u32 %v3355, 4294901760
    %v3357 = vsub.f32 %v3355, %v3356
    %v3358 = vand.u32 %v3357, 4294901760
    %3359 = vmatmul.f32.gmra.mxu0 %v3358
    %v3360 = vpop.f32.mrf.mxu0
    %v3361 = vadd.f32 0.0, %v3360
    %v3362 = vand.u32 %v1395, 4294901760
    %v3363 = vsub.f32 %v1395, %v3362
    %v3364 = vand.u32 %v3363, 4294901760
    %v3365 = vsub.f32 %v3363, %v3364
    %v3366 = vand.u32 %v3365, 4294901760
    %3367 = vmatmul.f32.gmra.mxu0 %v3366
    %v3368 = vpop.f32.mrf.mxu0
    %v3369 = vadd.f32 0.0, %v3368
    %v3370 = vand.u32 %v1398, 4294901760
    %v3371 = vsub.f32 %v1398, %v3370
    %v3372 = vand.u32 %v3371, 4294901760
    %v3373 = vsub.f32 %v3371, %v3372
    %v3374 = vand.u32 %v3373, 4294901760
    %3375 = vmatmul.f32.gmra.mxu0 %v3374
    %v3376 = vpop.f32.mrf.mxu0
    %v3377 = vadd.f32 0.0, %v3376
    %v3378 = vand.u32 %v1401, 4294901760
    %v3379 = vsub.f32 %v1401, %v3378
    %v3380 = vand.u32 %v3379, 4294901760
    %v3381 = vsub.f32 %v3379, %v3380
    %v3382 = vand.u32 %v3381, 4294901760
    %3383 = vmatmul.f32.gmra.mxu0 %v3382
    %v3384 = vpop.f32.mrf.mxu0
    %v3385 = vadd.f32 0.0, %v3384
    %v3386 = vand.u32 %v1404, 4294901760
    %v3387 = vsub.f32 %v1404, %v3386
    %v3388 = vand.u32 %v3387, 4294901760
    %v3389 = vsub.f32 %v3387, %v3388
    %v3390 = vand.u32 %v3389, 4294901760
    %3391 = vmatmul.f32.gmra.mxu0 %v3390
    %v3392 = vpop.f32.mrf.mxu0
    %v3393 = vadd.f32 0.0, %v3392
    %v3394 = vand.u32 %v1407, 4294901760
    %v3395 = vsub.f32 %v1407, %v3394
    %v3396 = vand.u32 %v3395, 4294901760
    %v3397 = vsub.f32 %v3395, %v3396
    %v3398 = vand.u32 %v3397, 4294901760
    %3399 = vmatmul.f32.gmra.mxu0 %v3398
    %v3400 = vpop.f32.mrf.mxu0
    %v3401 = vadd.f32 0.0, %v3400
    %v3402 = vand.u32 %v1410, 4294901760
    %v3403 = vsub.f32 %v1410, %v3402
    %v3404 = vand.u32 %v3403, 4294901760
    %v3405 = vsub.f32 %v3403, %v3404
    %v3406 = vand.u32 %v3405, 4294901760
    %3407 = vmatmul.f32.gmra.mxu0 %v3406
    %v3408 = vpop.f32.mrf.mxu0
    %v3409 = vadd.f32 0.0, %v3408
    %v3410 = vand.u32 %v1413, 4294901760
    %v3411 = vsub.f32 %v1413, %v3410
    %v3412 = vand.u32 %v3411, 4294901760
    %v3413 = vsub.f32 %v3411, %v3412
    %v3414 = vand.u32 %v3413, 4294901760
    %3415 = vmatmul.f32.gmra.mxu0 %v3414
    %v3416 = vpop.f32.mrf.mxu0
    %v3417 = vadd.f32 0.0, %v3416
    %v3418 = vand.u32 %v1416, 4294901760
    %v3419 = vsub.f32 %v1416, %v3418
    %v3420 = vand.u32 %v3419, 4294901760
    %v3421 = vsub.f32 %v3419, %v3420
    %v3422 = vand.u32 %v3421, 4294901760
    %3423 = vmatmul.f32.gmra.mxu0 %v3422
    %v3424 = vpop.f32.mrf.mxu0
    %v3425 = vadd.f32 0.0, %v3424
    %v3426 = vand.u32 %v1419, 4294901760
    %v3427 = vsub.f32 %v1419, %v3426
    %v3428 = vand.u32 %v3427, 4294901760
    %v3429 = vsub.f32 %v3427, %v3428
    %v3430 = vand.u32 %v3429, 4294901760
    %3431 = vmatmul.f32.gmra.mxu0 %v3430
    %v3432 = vpop.f32.mrf.mxu0
    %v3433 = vadd.f32 0.0, %v3432
    %v3434 = vand.u32 %v1422, 4294901760
    %v3435 = vsub.f32 %v1422, %v3434
    %v3436 = vand.u32 %v3435, 4294901760
    %v3437 = vsub.f32 %v3435, %v3436
    %v3438 = vand.u32 %v3437, 4294901760
    %3439 = vmatmul.f32.gmra.mxu0 %v3438
    %v3440 = vpop.f32.mrf.mxu0
    %v3441 = vadd.f32 0.0, %v3440
    %3442 = vdwg.mxu0
    %3443 = vmatpush.msra.mxu0 0.0
    %3444 = vmatpush.msra.mxu0 0.0
    %3445 = vmatpush.msra.mxu0 0.0
    %3446 = vmatpush.msra.mxu0 0.0
    %3447 = vmatpush.msra.mxu0 0.0
    %3448 = vmatpush.msra.mxu0 0.0
    %3449 = vmatpush.msra.mxu0 0.0
    %3450 = vmatpush.msra.mxu0 0.0
    %3451 = vmatpush.msra.mxu0 0.0
    %3452 = vmatpush.msra.mxu0 0.0
    %3453 = vmatpush.msra.mxu0 0.0
    %3454 = vmatpush.msra.mxu0 0.0
    %3455 = vmatpush.msra.mxu0 0.0
    %3456 = vmatpush.msra.mxu0 0.0
    %v3457 = vand.u32 %v1369, 4294901760
    %v3458 = vsub.f32 %v1369, %v3457
    %v3459 = vand.u32 %v3458, 4294901760
    %v3460 = vsub.f32 %v3458, %v3459
    %v3461 = vand.u32 %v3460, 4294901760
    %3462 = vmatpush.msra.mxu0 %v3461
    %v3463 = vand.u32 %v1359, 4294901760
    %v3464 = vsub.f32 %v1359, %v3463
    %v3465 = vand.u32 %v3464, 4294901760
    %v3466 = vsub.f32 %v3464, %v3465
    %v3467 = vand.u32 %v3466, 4294901760
    %3468 = vmatpush.msra.mxu0 %v3467
    %v3469 = vand.u32 %v1377, 4294901760
    %3470 = vmatmul.f32.gmra.mxu0 %v3469
    %v3471 = vpop.f32.mrf.mxu0
    %v3472 = vadd.f32 %v3321, %v3471
    %v3473 = vand.u32 %v1380, 4294901760
    %3474 = vmatmul.f32.gmra.mxu0 %v3473
    %v3475 = vpop.f32.mrf.mxu0
    %v3476 = vadd.f32 %v3329, %v3475
    %v3477 = vand.u32 %v1383, 4294901760
    %3478 = vmatmul.f32.gmra.mxu0 %v3477
    %v3479 = vpop.f32.mrf.mxu0
    %v3480 = vadd.f32 %v3337, %v3479
    %v3481 = vand.u32 %v1386, 4294901760
    %3482 = vmatmul.f32.gmra.mxu0 %v3481
    %v3483 = vpop.f32.mrf.mxu0
    %v3484 = vadd.f32 %v3345, %v3483
    %v3485 = vand.u32 %v1389, 4294901760
    %3486 = vmatmul.f32.gmra.mxu0 %v3485
    %v3487 = vpop.f32.mrf.mxu0
    %v3488 = vadd.f32 %v3353, %v3487
    %v3489 = vand.u32 %v1392, 4294901760
    %3490 = vmatmul.f32.gmra.mxu0 %v3489
    %v3491 = vpop.f32.mrf.mxu0
    %v3492 = vadd.f32 %v3361, %v3491
    %v3493 = vand.u32 %v1395, 4294901760
    %3494 = vmatmul.f32.gmra.mxu0 %v3493
    %v3495 = vpop.f32.mrf.mxu0
    %v3496 = vadd.f32 %v3369, %v3495
    %v3497 = vand.u32 %v1398, 4294901760
    %3498 = vmatmul.f32.gmra.mxu0 %v3497
    %v3499 = vpop.f32.mrf.mxu0
    %v3500 = vadd.f32 %v3377, %v3499
    %v3501 = vand.u32 %v1401, 4294901760
    %3502 = vmatmul.f32.gmra.mxu0 %v3501
    %v3503 = vpop.f32.mrf.mxu0
    %v3504 = vadd.f32 %v3385, %v3503
    %v3505 = vand.u32 %v1404, 4294901760
    %3506 = vmatmul.f32.gmra.mxu0 %v3505
    %v3507 = vpop.f32.mrf.mxu0
    %v3508 = vadd.f32 %v3393, %v3507
    %v3509 = vand.u32 %v1407, 4294901760
    %3510 = vmatmul.f32.gmra.mxu0 %v3509
    %v3511 = vpop.f32.mrf.mxu0
    %v3512 = vadd.f32 %v3401, %v3511
    %v3513 = vand.u32 %v1410, 4294901760
    %3514 = vmatmul.f32.gmra.mxu0 %v3513
    %v3515 = vpop.f32.mrf.mxu0
    %v3516 = vadd.f32 %v3409, %v3515
    %v3517 = vand.u32 %v1413, 4294901760
    %3518 = vmatmul.f32.gmra.mxu0 %v3517
    %v3519 = vpop.f32.mrf.mxu0
    %v3520 = vadd.f32 %v3417, %v3519
    %v3521 = vand.u32 %v1416, 4294901760
    %3522 = vmatmul.f32.gmra.mxu0 %v3521
    %v3523 = vpop.f32.mrf.mxu0
    %v3524 = vadd.f32 %v3425, %v3523
    %v3525 = vand.u32 %v1419, 4294901760
    %3526 = vmatmul.f32.gmra.mxu0 %v3525
    %v3527 = vpop.f32.mrf.mxu0
    %v3528 = vadd.f32 %v3433, %v3527
    %v3529 = vand.u32 %v1422, 4294901760
    %3530 = vmatmul.f32.gmra.mxu0 %v3529
    %v3531 = vpop.f32.mrf.mxu0
    %v3532 = vadd.f32 %v3441, %v3531
    %3533 = vdwg.mxu0
    %3534 = vmatpush.msra.mxu0 0.0
    %3535 = vmatpush.msra.mxu0 0.0
    %3536 = vmatpush.msra.mxu0 0.0
    %3537 = vmatpush.msra.mxu0 0.0
    %3538 = vmatpush.msra.mxu0 0.0
    %3539 = vmatpush.msra.mxu0 0.0
    %3540 = vmatpush.msra.mxu0 0.0
    %3541 = vmatpush.msra.mxu0 0.0
    %3542 = vmatpush.msra.mxu0 0.0
    %3543 = vmatpush.msra.mxu0 0.0
    %3544 = vmatpush.msra.mxu0 0.0
    %3545 = vmatpush.msra.mxu0 0.0
    %3546 = vmatpush.msra.mxu0 0.0
    %3547 = vmatpush.msra.mxu0 0.0
    %v3548 = vand.u32 %v1369, 4294901760
    %v3549 = vsub.f32 %v1369, %v3548
    %3550 = vmatpush.msra.mxu0 %v3549
    %v3551 = vand.u32 %v1359, 4294901760
    %v3552 = vsub.f32 %v1359, %v3551
    %3553 = vmatpush.msra.mxu0 %v3552
    %v3554 = vand.u32 %v1377, 4294901760
    %v3555 = vsub.f32 %v1377, %v3554
    %3556 = vmatmul.f32.gmra.mxu0 %v3555
    %v3557 = vpop.f32.mrf.mxu0
    %v3558 = vadd.f32 %v3472, %v3557
    %v3559 = vand.u32 %v1380, 4294901760
    %v3560 = vsub.f32 %v1380, %v3559
    %3561 = vmatmul.f32.gmra.mxu0 %v3560
    %v3562 = vpop.f32.mrf.mxu0
    %v3563 = vadd.f32 %v3476, %v3562
    %v3564 = vand.u32 %v1383, 4294901760
    %v3565 = vsub.f32 %v1383, %v3564
    %3566 = vmatmul.f32.gmra.mxu0 %v3565
    %v3567 = vpop.f32.mrf.mxu0
    %v3568 = vadd.f32 %v3480, %v3567
    %v3569 = vand.u32 %v1386, 4294901760
    %v3570 = vsub.f32 %v1386, %v3569
    %3571 = vmatmul.f32.gmra.mxu0 %v3570
    %v3572 = vpop.f32.mrf.mxu0
    %v3573 = vadd.f32 %v3484, %v3572
    %v3574 = vand.u32 %v1389, 4294901760
    %v3575 = vsub.f32 %v1389, %v3574
    %3576 = vmatmul.f32.gmra.mxu0 %v3575
    %v3577 = vpop.f32.mrf.mxu0
    %v3578 = vadd.f32 %v3488, %v3577
    %v3579 = vand.u32 %v1392, 4294901760
    %v3580 = vsub.f32 %v1392, %v3579
    %3581 = vmatmul.f32.gmra.mxu0 %v3580
    %v3582 = vpop.f32.mrf.mxu0
    %v3583 = vadd.f32 %v3492, %v3582
    %v3584 = vand.u32 %v1395, 4294901760
    %v3585 = vsub.f32 %v1395, %v3584
    %3586 = vmatmul.f32.gmra.mxu0 %v3585
    %v3587 = vpop.f32.mrf.mxu0
    %v3588 = vadd.f32 %v3496, %v3587
    %v3589 = vand.u32 %v1398, 4294901760
    %v3590 = vsub.f32 %v1398, %v3589
    %3591 = vmatmul.f32.gmra.mxu0 %v3590
    %v3592 = vpop.f32.mrf.mxu0
    %v3593 = vadd.f32 %v3500, %v3592
    %v3594 = vand.u32 %v1401, 4294901760
    %v3595 = vsub.f32 %v1401, %v3594
    %3596 = vmatmul.f32.gmra.mxu0 %v3595
    %v3597 = vpop.f32.mrf.mxu0
    %v3598 = vadd.f32 %v3504, %v3597
    %v3599 = vand.u32 %v1404, 4294901760
    %v3600 = vsub.f32 %v1404, %v3599
    %3601 = vmatmul.f32.gmra.mxu0 %v3600
    %v3602 = vpop.f32.mrf.mxu0
    %v3603 = vadd.f32 %v3508, %v3602
    %v3604 = vand.u32 %v1407, 4294901760
    %v3605 = vsub.f32 %v1407, %v3604
    %3606 = vmatmul.f32.gmra.mxu0 %v3605
    %v3607 = vpop.f32.mrf.mxu0
    %v3608 = vadd.f32 %v3512, %v3607
    %v3609 = vand.u32 %v1410, 4294901760
    %v3610 = vsub.f32 %v1410, %v3609
    %3611 = vmatmul.f32.gmra.mxu0 %v3610
    %v3612 = vpop.f32.mrf.mxu0
    %v3613 = vadd.f32 %v3516, %v3612
    %v3614 = vand.u32 %v1413, 4294901760
    %v3615 = vsub.f32 %v1413, %v3614
    %3616 = vmatmul.f32.gmra.mxu0 %v3615
    %v3617 = vpop.f32.mrf.mxu0
    %v3618 = vadd.f32 %v3520, %v3617
    %v3619 = vand.u32 %v1416, 4294901760
    %v3620 = vsub.f32 %v1416, %v3619
    %3621 = vmatmul.f32.gmra.mxu0 %v3620
    %v3622 = vpop.f32.mrf.mxu0
    %v3623 = vadd.f32 %v3524, %v3622
    %v3624 = vand.u32 %v1419, 4294901760
    %v3625 = vsub.f32 %v1419, %v3624
    %3626 = vmatmul.f32.gmra.mxu0 %v3625
    %v3627 = vpop.f32.mrf.mxu0
    %v3628 = vadd.f32 %v3528, %v3627
    %v3629 = vand.u32 %v1422, 4294901760
    %v3630 = vsub.f32 %v1422, %v3629
    %3631 = vmatmul.f32.gmra.mxu0 %v3630
    %v3632 = vpop.f32.mrf.mxu0
    %v3633 = vadd.f32 %v3532, %v3632
    %3634 = vdwg.mxu0
    %3635 = vmatpush.msra.mxu0 0.0
    %3636 = vmatpush.msra.mxu0 0.0
    %3637 = vmatpush.msra.mxu0 0.0
    %3638 = vmatpush.msra.mxu0 0.0
    %3639 = vmatpush.msra.mxu0 0.0
    %3640 = vmatpush.msra.mxu0 0.0
    %3641 = vmatpush.msra.mxu0 0.0
    %3642 = vmatpush.msra.mxu0 0.0
    %3643 = vmatpush.msra.mxu0 0.0
    %3644 = vmatpush.msra.mxu0 0.0
    %3645 = vmatpush.msra.mxu0 0.0
    %3646 = vmatpush.msra.mxu0 0.0
    %3647 = vmatpush.msra.mxu0 0.0
    %3648 = vmatpush.msra.mxu0 0.0
    %v3649 = vand.u32 %v1369, 4294901760
    %3650 = vmatpush.msra.mxu0 %v3649
    %v3651 = vand.u32 %v1359, 4294901760
    %3652 = vmatpush.msra.mxu0 %v3651
    %v3653 = vand.u32 %v1377, 4294901760
    %v3654 = vsub.f32 %v1377, %v3653
    %v3655 = vand.u32 %v3654, 4294901760
    %3656 = vmatmul.f32.gmra.mxu0 %v3655
    %v3657 = vpop.f32.mrf.mxu0
    %v3658 = vadd.f32 %v3558, %v3657
    %v3659 = vand.u32 %v1380, 4294901760
    %v3660 = vsub.f32 %v1380, %v3659
    %v3661 = vand.u32 %v3660, 4294901760
    %3662 = vmatmul.f32.gmra.mxu0 %v3661
    %v3663 = vpop.f32.mrf.mxu0
    %v3664 = vadd.f32 %v3563, %v3663
    %v3665 = vand.u32 %v1383, 4294901760
    %v3666 = vsub.f32 %v1383, %v3665
    %v3667 = vand.u32 %v3666, 4294901760
    %3668 = vmatmul.f32.gmra.mxu0 %v3667
    %v3669 = vpop.f32.mrf.mxu0
    %v3670 = vadd.f32 %v3568, %v3669
    %v3671 = vand.u32 %v1386, 4294901760
    %v3672 = vsub.f32 %v1386, %v3671
    %v3673 = vand.u32 %v3672, 4294901760
    %3674 = vmatmul.f32.gmra.mxu0 %v3673
    %v3675 = vpop.f32.mrf.mxu0
    %v3676 = vadd.f32 %v3573, %v3675
    %v3677 = vand.u32 %v1389, 4294901760
    %v3678 = vsub.f32 %v1389, %v3677
    %v3679 = vand.u32 %v3678, 4294901760
    %3680 = vmatmul.f32.gmra.mxu0 %v3679
    %v3681 = vpop.f32.mrf.mxu0
    %v3682 = vadd.f32 %v3578, %v3681
    %v3683 = vand.u32 %v1392, 4294901760
    %v3684 = vsub.f32 %v1392, %v3683
    %v3685 = vand.u32 %v3684, 4294901760
    %3686 = vmatmul.f32.gmra.mxu0 %v3685
    %v3687 = vpop.f32.mrf.mxu0
    %v3688 = vadd.f32 %v3583, %v3687
    %v3689 = vand.u32 %v1395, 4294901760
    %v3690 = vsub.f32 %v1395, %v3689
    %v3691 = vand.u32 %v3690, 4294901760
    %3692 = vmatmul.f32.gmra.mxu0 %v3691
    %v3693 = vpop.f32.mrf.mxu0
    %v3694 = vadd.f32 %v3588, %v3693
    %v3695 = vand.u32 %v1398, 4294901760
    %v3696 = vsub.f32 %v1398, %v3695
    %v3697 = vand.u32 %v3696, 4294901760
    %3698 = vmatmul.f32.gmra.mxu0 %v3697
    %v3699 = vpop.f32.mrf.mxu0
    %v3700 = vadd.f32 %v3593, %v3699
    %v3701 = vand.u32 %v1401, 4294901760
    %v3702 = vsub.f32 %v1401, %v3701
    %v3703 = vand.u32 %v3702, 4294901760
    %3704 = vmatmul.f32.gmra.mxu0 %v3703
    %v3705 = vpop.f32.mrf.mxu0
    %v3706 = vadd.f32 %v3598, %v3705
    %v3707 = vand.u32 %v1404, 4294901760
    %v3708 = vsub.f32 %v1404, %v3707
    %v3709 = vand.u32 %v3708, 4294901760
    %3710 = vmatmul.f32.gmra.mxu0 %v3709
    %v3711 = vpop.f32.mrf.mxu0
    %v3712 = vadd.f32 %v3603, %v3711
    %v3713 = vand.u32 %v1407, 4294901760
    %v3714 = vsub.f32 %v1407, %v3713
    %v3715 = vand.u32 %v3714, 4294901760
    %3716 = vmatmul.f32.gmra.mxu0 %v3715
    %v3717 = vpop.f32.mrf.mxu0
    %v3718 = vadd.f32 %v3608, %v3717
    %v3719 = vand.u32 %v1410, 4294901760
    %v3720 = vsub.f32 %v1410, %v3719
    %v3721 = vand.u32 %v3720, 4294901760
    %3722 = vmatmul.f32.gmra.mxu0 %v3721
    %v3723 = vpop.f32.mrf.mxu0
    %v3724 = vadd.f32 %v3613, %v3723
    %v3725 = vand.u32 %v1413, 4294901760
    %v3726 = vsub.f32 %v1413, %v3725
    %v3727 = vand.u32 %v3726, 4294901760
    %3728 = vmatmul.f32.gmra.mxu0 %v3727
    %v3729 = vpop.f32.mrf.mxu0
    %v3730 = vadd.f32 %v3618, %v3729
    %v3731 = vand.u32 %v1416, 4294901760
    %v3732 = vsub.f32 %v1416, %v3731
    %v3733 = vand.u32 %v3732, 4294901760
    %3734 = vmatmul.f32.gmra.mxu0 %v3733
    %v3735 = vpop.f32.mrf.mxu0
    %v3736 = vadd.f32 %v3623, %v3735
    %v3737 = vand.u32 %v1419, 4294901760
    %v3738 = vsub.f32 %v1419, %v3737
    %v3739 = vand.u32 %v3738, 4294901760
    %3740 = vmatmul.f32.gmra.mxu0 %v3739
    %v3741 = vpop.f32.mrf.mxu0
    %v3742 = vadd.f32 %v3628, %v3741
    %v3743 = vand.u32 %v1422, 4294901760
    %v3744 = vsub.f32 %v1422, %v3743
    %v3745 = vand.u32 %v3744, 4294901760
    %3746 = vmatmul.f32.gmra.mxu0 %v3745
    %v3747 = vpop.f32.mrf.mxu0
    %v3748 = vadd.f32 %v3633, %v3747
    %3749 = vdwg.mxu0
    %3750 = vmatpush.msra.mxu0 0.0
    %3751 = vmatpush.msra.mxu0 0.0
    %3752 = vmatpush.msra.mxu0 0.0
    %3753 = vmatpush.msra.mxu0 0.0
    %3754 = vmatpush.msra.mxu0 0.0
    %3755 = vmatpush.msra.mxu0 0.0
    %3756 = vmatpush.msra.mxu0 0.0
    %3757 = vmatpush.msra.mxu0 0.0
    %3758 = vmatpush.msra.mxu0 0.0
    %3759 = vmatpush.msra.mxu0 0.0
    %3760 = vmatpush.msra.mxu0 0.0
    %3761 = vmatpush.msra.mxu0 0.0
    %3762 = vmatpush.msra.mxu0 0.0
    %3763 = vmatpush.msra.mxu0 0.0
    %v3764 = vand.u32 %v1369, 4294901760
    %v3765 = vsub.f32 %v1369, %v3764
    %v3766 = vand.u32 %v3765, 4294901760
    %3767 = vmatpush.msra.mxu0 %v3766
    %v3768 = vand.u32 %v1359, 4294901760
    %v3769 = vsub.f32 %v1359, %v3768
    %v3770 = vand.u32 %v3769, 4294901760
    %3771 = vmatpush.msra.mxu0 %v3770
    %v3772 = vand.u32 %v1377, 4294901760
    %3773 = vmatmul.f32.gmra.mxu0 %v3772
    %v3774 = vpop.f32.mrf.mxu0
    %v3775 = vadd.f32 %v3658, %v3774
    %v3776 = vand.u32 %v1380, 4294901760
    %3777 = vmatmul.f32.gmra.mxu0 %v3776
    %v3778 = vpop.f32.mrf.mxu0
    %v3779 = vadd.f32 %v3664, %v3778
    %v3780 = vand.u32 %v1383, 4294901760
    %3781 = vmatmul.f32.gmra.mxu0 %v3780
    %v3782 = vpop.f32.mrf.mxu0
    %v3783 = vadd.f32 %v3670, %v3782
    %v3784 = vand.u32 %v1386, 4294901760
    %3785 = vmatmul.f32.gmra.mxu0 %v3784
    %v3786 = vpop.f32.mrf.mxu0
    %v3787 = vadd.f32 %v3676, %v3786
    %v3788 = vand.u32 %v1389, 4294901760
    %3789 = vmatmul.f32.gmra.mxu0 %v3788
    %v3790 = vpop.f32.mrf.mxu0
    %v3791 = vadd.f32 %v3682, %v3790
    %v3792 = vand.u32 %v1392, 4294901760
    %3793 = vmatmul.f32.gmra.mxu0 %v3792
    %v3794 = vpop.f32.mrf.mxu0
    %v3795 = vadd.f32 %v3688, %v3794
    %v3796 = vand.u32 %v1395, 4294901760
    %3797 = vmatmul.f32.gmra.mxu0 %v3796
    %v3798 = vpop.f32.mrf.mxu0
    %v3799 = vadd.f32 %v3694, %v3798
    %v3800 = vand.u32 %v1398, 4294901760
    %3801 = vmatmul.f32.gmra.mxu0 %v3800
    %v3802 = vpop.f32.mrf.mxu0
    %v3803 = vadd.f32 %v3700, %v3802
    %v3804 = vand.u32 %v1401, 4294901760
    %3805 = vmatmul.f32.gmra.mxu0 %v3804
    %v3806 = vpop.f32.mrf.mxu0
    %v3807 = vadd.f32 %v3706, %v3806
    %v3808 = vand.u32 %v1404, 4294901760
    %3809 = vmatmul.f32.gmra.mxu0 %v3808
    %v3810 = vpop.f32.mrf.mxu0
    %v3811 = vadd.f32 %v3712, %v3810
    %v3812 = vand.u32 %v1407, 4294901760
    %3813 = vmatmul.f32.gmra.mxu0 %v3812
    %v3814 = vpop.f32.mrf.mxu0
    %v3815 = vadd.f32 %v3718, %v3814
    %v3816 = vand.u32 %v1410, 4294901760
    %3817 = vmatmul.f32.gmra.mxu0 %v3816
    %v3818 = vpop.f32.mrf.mxu0
    %v3819 = vadd.f32 %v3724, %v3818
    %v3820 = vand.u32 %v1413, 4294901760
    %3821 = vmatmul.f32.gmra.mxu0 %v3820
    %v3822 = vpop.f32.mrf.mxu0
    %v3823 = vadd.f32 %v3730, %v3822
    %v3824 = vand.u32 %v1416, 4294901760
    %3825 = vmatmul.f32.gmra.mxu0 %v3824
    %v3826 = vpop.f32.mrf.mxu0
    %v3827 = vadd.f32 %v3736, %v3826
    %v3828 = vand.u32 %v1419, 4294901760
    %3829 = vmatmul.f32.gmra.mxu0 %v3828
    %v3830 = vpop.f32.mrf.mxu0
    %v3831 = vadd.f32 %v3742, %v3830
    %v3832 = vand.u32 %v1422, 4294901760
    %3833 = vmatmul.f32.gmra.mxu0 %v3832
    %v3834 = vpop.f32.mrf.mxu0
    %v3835 = vadd.f32 %v3748, %v3834
    %3836 = vdwg.mxu0
    %3837 = vmatpush.msra.mxu0 0.0
    %3838 = vmatpush.msra.mxu0 0.0
    %3839 = vmatpush.msra.mxu0 0.0
    %3840 = vmatpush.msra.mxu0 0.0
    %3841 = vmatpush.msra.mxu0 0.0
    %3842 = vmatpush.msra.mxu0 0.0
    %3843 = vmatpush.msra.mxu0 0.0
    %3844 = vmatpush.msra.mxu0 0.0
    %3845 = vmatpush.msra.mxu0 0.0
    %3846 = vmatpush.msra.mxu0 0.0
    %3847 = vmatpush.msra.mxu0 0.0
    %3848 = vmatpush.msra.mxu0 0.0
    %3849 = vmatpush.msra.mxu0 0.0
    %3850 = vmatpush.msra.mxu0 0.0
    %v3851 = vand.u32 %v1369, 4294901760
    %3852 = vmatpush.msra.mxu0 %v3851
    %v3853 = vand.u32 %v1359, 4294901760
    %3854 = vmatpush.msra.mxu0 %v3853
    %v3855 = vand.u32 %v1377, 4294901760
    %3856 = vmatmul.f32.gmra.mxu0 %v3855
    %v3857 = vpop.f32.mrf.mxu0
    %v3858 = vadd.f32 %v3775, %v3857
    %v3859 = vand.u32 %v1380, 4294901760
    %3860 = vmatmul.f32.gmra.mxu0 %v3859
    %v3861 = vpop.f32.mrf.mxu0
    %v3862 = vadd.f32 %v3779, %v3861
    %v3863 = vand.u32 %v1383, 4294901760
    %3864 = vmatmul.f32.gmra.mxu0 %v3863
    %v3865 = vpop.f32.mrf.mxu0
    %v3866 = vadd.f32 %v3783, %v3865
    %v3867 = vand.u32 %v1386, 4294901760
    %3868 = vmatmul.f32.gmra.mxu0 %v3867
    %v3869 = vpop.f32.mrf.mxu0
    %v3870 = vadd.f32 %v3787, %v3869
    %v3871 = vand.u32 %v1389, 4294901760
    %3872 = vmatmul.f32.gmra.mxu0 %v3871
    %v3873 = vpop.f32.mrf.mxu0
    %v3874 = vadd.f32 %v3791, %v3873
    %v3875 = vand.u32 %v1392, 4294901760
    %3876 = vmatmul.f32.gmra.mxu0 %v3875
    %v3877 = vpop.f32.mrf.mxu0
    %v3878 = vadd.f32 %v3795, %v3877
    %v3879 = vand.u32 %v1395, 4294901760
    %3880 = vmatmul.f32.gmra.mxu0 %v3879
    %v3881 = vpop.f32.mrf.mxu0
    %v3882 = vadd.f32 %v3799, %v3881
    %v3883 = vand.u32 %v1398, 4294901760
    %3884 = vmatmul.f32.gmra.mxu0 %v3883
    %v3885 = vpop.f32.mrf.mxu0
    %v3886 = vadd.f32 %v3803, %v3885
    %v3887 = vand.u32 %v1401, 4294901760
    %3888 = vmatmul.f32.gmra.mxu0 %v3887
    %v3889 = vpop.f32.mrf.mxu0
    %v3890 = vadd.f32 %v3807, %v3889
    %v3891 = vand.u32 %v1404, 4294901760
    %3892 = vmatmul.f32.gmra.mxu0 %v3891
    %v3893 = vpop.f32.mrf.mxu0
    %v3894 = vadd.f32 %v3811, %v3893
    %v3895 = vand.u32 %v1407, 4294901760
    %3896 = vmatmul.f32.gmra.mxu0 %v3895
    %v3897 = vpop.f32.mrf.mxu0
    %v3898 = vadd.f32 %v3815, %v3897
    %v3899 = vand.u32 %v1410, 4294901760
    %3900 = vmatmul.f32.gmra.mxu0 %v3899
    %v3901 = vpop.f32.mrf.mxu0
    %v3902 = vadd.f32 %v3819, %v3901
    %v3903 = vand.u32 %v1413, 4294901760
    %3904 = vmatmul.f32.gmra.mxu0 %v3903
    %v3905 = vpop.f32.mrf.mxu0
    %v3906 = vadd.f32 %v3823, %v3905
    %v3907 = vand.u32 %v1416, 4294901760
    %3908 = vmatmul.f32.gmra.mxu0 %v3907
    %v3909 = vpop.f32.mrf.mxu0
    %v3910 = vadd.f32 %v3827, %v3909
    %v3911 = vand.u32 %v1419, 4294901760
    %3912 = vmatmul.f32.gmra.mxu0 %v3911
    %v3913 = vpop.f32.mrf.mxu0
    %v3914 = vadd.f32 %v3831, %v3913
    %v3915 = vand.u32 %v1422, 4294901760
    %3916 = vmatmul.f32.gmra.mxu0 %v3915
    %v3917 = vpop.f32.mrf.mxu0
    %v3918 = vadd.f32 %v3835, %v3917
    %3919 = vdwg.mxu0
    %3920 = vmatpush.msra.mxu0 0.0
    %3921 = vmatpush.msra.mxu0 0.0
    %3922 = vmatpush.msra.mxu0 0.0
    %3923 = vmatpush.msra.mxu0 0.0
    %3924 = vmatpush.msra.mxu0 0.0
    %3925 = vmatpush.msra.mxu0 0.0
    %3926 = vmatpush.msra.mxu0 0.0
    %3927 = vmatpush.msra.mxu0 0.0
    %3928 = vmatpush.msra.mxu0 0.0
    %3929 = vmatpush.msra.mxu0 0.0
    %3930 = vmatpush.msra.mxu0 0.0
    %3931 = vmatpush.msra.mxu0 0.0
    %3932 = vmatpush.msra.mxu0 0.0
    %3933 = vmatpush.msra.mxu0 0.0
    %v3934 = vand.u32 %v1370, 4294901760
    %3935 = vmatpush.msra.mxu0 %v3934
    %v3936 = vand.u32 %v1360, 4294901760
    %3937 = vmatpush.msra.mxu0 %v3936
    %v3938 = vand.u32 %v1377, 4294901760
    %v3939 = vsub.f32 %v1377, %v3938
    %v3940 = vand.u32 %v3939, 4294901760
    %v3941 = vsub.f32 %v3939, %v3940
    %v3942 = vand.u32 %v3941, 4294901760
    %3943 = vmatmul.f32.gmra.mxu0 %v3942
    %v3944 = vpop.f32.mrf.mxu0
    %v3945 = vadd.f32 0.0, %v3944
    %v3946 = vand.u32 %v1380, 4294901760
    %v3947 = vsub.f32 %v1380, %v3946
    %v3948 = vand.u32 %v3947, 4294901760
    %v3949 = vsub.f32 %v3947, %v3948
    %v3950 = vand.u32 %v3949, 4294901760
    %3951 = vmatmul.f32.gmra.mxu0 %v3950
    %v3952 = vpop.f32.mrf.mxu0
    %v3953 = vadd.f32 0.0, %v3952
    %v3954 = vand.u32 %v1383, 4294901760
    %v3955 = vsub.f32 %v1383, %v3954
    %v3956 = vand.u32 %v3955, 4294901760
    %v3957 = vsub.f32 %v3955, %v3956
    %v3958 = vand.u32 %v3957, 4294901760
    %3959 = vmatmul.f32.gmra.mxu0 %v3958
    %v3960 = vpop.f32.mrf.mxu0
    %v3961 = vadd.f32 0.0, %v3960
    %v3962 = vand.u32 %v1386, 4294901760
    %v3963 = vsub.f32 %v1386, %v3962
    %v3964 = vand.u32 %v3963, 4294901760
    %v3965 = vsub.f32 %v3963, %v3964
    %v3966 = vand.u32 %v3965, 4294901760
    %3967 = vmatmul.f32.gmra.mxu0 %v3966
    %v3968 = vpop.f32.mrf.mxu0
    %v3969 = vadd.f32 0.0, %v3968
    %v3970 = vand.u32 %v1389, 4294901760
    %v3971 = vsub.f32 %v1389, %v3970
    %v3972 = vand.u32 %v3971, 4294901760
    %v3973 = vsub.f32 %v3971, %v3972
    %v3974 = vand.u32 %v3973, 4294901760
    %3975 = vmatmul.f32.gmra.mxu0 %v3974
    %v3976 = vpop.f32.mrf.mxu0
    %v3977 = vadd.f32 0.0, %v3976
    %v3978 = vand.u32 %v1392, 4294901760
    %v3979 = vsub.f32 %v1392, %v3978
    %v3980 = vand.u32 %v3979, 4294901760
    %v3981 = vsub.f32 %v3979, %v3980
    %v3982 = vand.u32 %v3981, 4294901760
    %3983 = vmatmul.f32.gmra.mxu0 %v3982
    %v3984 = vpop.f32.mrf.mxu0
    %v3985 = vadd.f32 0.0, %v3984
    %v3986 = vand.u32 %v1395, 4294901760
    %v3987 = vsub.f32 %v1395, %v3986
    %v3988 = vand.u32 %v3987, 4294901760
    %v3989 = vsub.f32 %v3987, %v3988
    %v3990 = vand.u32 %v3989, 4294901760
    %3991 = vmatmul.f32.gmra.mxu0 %v3990
    %v3992 = vpop.f32.mrf.mxu0
    %v3993 = vadd.f32 0.0, %v3992
    %v3994 = vand.u32 %v1398, 4294901760
    %v3995 = vsub.f32 %v1398, %v3994
    %v3996 = vand.u32 %v3995, 4294901760
    %v3997 = vsub.f32 %v3995, %v3996
    %v3998 = vand.u32 %v3997, 4294901760
    %3999 = vmatmul.f32.gmra.mxu0 %v3998
    %v4000 = vpop.f32.mrf.mxu0
    %v4001 = vadd.f32 0.0, %v4000
    %v4002 = vand.u32 %v1401, 4294901760
    %v4003 = vsub.f32 %v1401, %v4002
    %v4004 = vand.u32 %v4003, 4294901760
    %v4005 = vsub.f32 %v4003, %v4004
    %v4006 = vand.u32 %v4005, 4294901760
    %4007 = vmatmul.f32.gmra.mxu0 %v4006
    %v4008 = vpop.f32.mrf.mxu0
    %v4009 = vadd.f32 0.0, %v4008
    %v4010 = vand.u32 %v1404, 4294901760
    %v4011 = vsub.f32 %v1404, %v4010
    %v4012 = vand.u32 %v4011, 4294901760
    %v4013 = vsub.f32 %v4011, %v4012
    %v4014 = vand.u32 %v4013, 4294901760
    %4015 = vmatmul.f32.gmra.mxu0 %v4014
    %v4016 = vpop.f32.mrf.mxu0
    %v4017 = vadd.f32 0.0, %v4016
    %v4018 = vand.u32 %v1407, 4294901760
    %v4019 = vsub.f32 %v1407, %v4018
    %v4020 = vand.u32 %v4019, 4294901760
    %v4021 = vsub.f32 %v4019, %v4020
    %v4022 = vand.u32 %v4021, 4294901760
    %4023 = vmatmul.f32.gmra.mxu0 %v4022
    %v4024 = vpop.f32.mrf.mxu0
    %v4025 = vadd.f32 0.0, %v4024
    %v4026 = vand.u32 %v1410, 4294901760
    %v4027 = vsub.f32 %v1410, %v4026
    %v4028 = vand.u32 %v4027, 4294901760
    %v4029 = vsub.f32 %v4027, %v4028
    %v4030 = vand.u32 %v4029, 4294901760
    %4031 = vmatmul.f32.gmra.mxu0 %v4030
    %v4032 = vpop.f32.mrf.mxu0
    %v4033 = vadd.f32 0.0, %v4032
    %v4034 = vand.u32 %v1413, 4294901760
    %v4035 = vsub.f32 %v1413, %v4034
    %v4036 = vand.u32 %v4035, 4294901760
    %v4037 = vsub.f32 %v4035, %v4036
    %v4038 = vand.u32 %v4037, 4294901760
    %4039 = vmatmul.f32.gmra.mxu0 %v4038
    %v4040 = vpop.f32.mrf.mxu0
    %v4041 = vadd.f32 0.0, %v4040
    %v4042 = vand.u32 %v1416, 4294901760
    %v4043 = vsub.f32 %v1416, %v4042
    %v4044 = vand.u32 %v4043, 4294901760
    %v4045 = vsub.f32 %v4043, %v4044
    %v4046 = vand.u32 %v4045, 4294901760
    %4047 = vmatmul.f32.gmra.mxu0 %v4046
    %v4048 = vpop.f32.mrf.mxu0
    %v4049 = vadd.f32 0.0, %v4048
    %v4050 = vand.u32 %v1419, 4294901760
    %v4051 = vsub.f32 %v1419, %v4050
    %v4052 = vand.u32 %v4051, 4294901760
    %v4053 = vsub.f32 %v4051, %v4052
    %v4054 = vand.u32 %v4053, 4294901760
    %4055 = vmatmul.f32.gmra.mxu0 %v4054
    %v4056 = vpop.f32.mrf.mxu0
    %v4057 = vadd.f32 0.0, %v4056
    %v4058 = vand.u32 %v1422, 4294901760
    %v4059 = vsub.f32 %v1422, %v4058
    %v4060 = vand.u32 %v4059, 4294901760
    %v4061 = vsub.f32 %v4059, %v4060
    %v4062 = vand.u32 %v4061, 4294901760
    %4063 = vmatmul.f32.gmra.mxu0 %v4062
    %v4064 = vpop.f32.mrf.mxu0
    %v4065 = vadd.f32 0.0, %v4064
    %4066 = vdwg.mxu0
    %4067 = vmatpush.msra.mxu0 0.0
    %4068 = vmatpush.msra.mxu0 0.0
    %4069 = vmatpush.msra.mxu0 0.0
    %4070 = vmatpush.msra.mxu0 0.0
    %4071 = vmatpush.msra.mxu0 0.0
    %4072 = vmatpush.msra.mxu0 0.0
    %4073 = vmatpush.msra.mxu0 0.0
    %4074 = vmatpush.msra.mxu0 0.0
    %4075 = vmatpush.msra.mxu0 0.0
    %4076 = vmatpush.msra.mxu0 0.0
    %4077 = vmatpush.msra.mxu0 0.0
    %4078 = vmatpush.msra.mxu0 0.0
    %4079 = vmatpush.msra.mxu0 0.0
    %4080 = vmatpush.msra.mxu0 0.0
    %v4081 = vand.u32 %v1370, 4294901760
    %v4082 = vsub.f32 %v1370, %v4081
    %v4083 = vand.u32 %v4082, 4294901760
    %v4084 = vsub.f32 %v4082, %v4083
    %v4085 = vand.u32 %v4084, 4294901760
    %4086 = vmatpush.msra.mxu0 %v4085
    %v4087 = vand.u32 %v1360, 4294901760
    %v4088 = vsub.f32 %v1360, %v4087
    %v4089 = vand.u32 %v4088, 4294901760
    %v4090 = vsub.f32 %v4088, %v4089
    %v4091 = vand.u32 %v4090, 4294901760
    %4092 = vmatpush.msra.mxu0 %v4091
    %v4093 = vand.u32 %v1377, 4294901760
    %4094 = vmatmul.f32.gmra.mxu0 %v4093
    %v4095 = vpop.f32.mrf.mxu0
    %v4096 = vadd.f32 %v3945, %v4095
    %v4097 = vand.u32 %v1380, 4294901760
    %4098 = vmatmul.f32.gmra.mxu0 %v4097
    %v4099 = vpop.f32.mrf.mxu0
    %v4100 = vadd.f32 %v3953, %v4099
    %v4101 = vand.u32 %v1383, 4294901760
    %4102 = vmatmul.f32.gmra.mxu0 %v4101
    %v4103 = vpop.f32.mrf.mxu0
    %v4104 = vadd.f32 %v3961, %v4103
    %v4105 = vand.u32 %v1386, 4294901760
    %4106 = vmatmul.f32.gmra.mxu0 %v4105
    %v4107 = vpop.f32.mrf.mxu0
    %v4108 = vadd.f32 %v3969, %v4107
    %v4109 = vand.u32 %v1389, 4294901760
    %4110 = vmatmul.f32.gmra.mxu0 %v4109
    %v4111 = vpop.f32.mrf.mxu0
    %v4112 = vadd.f32 %v3977, %v4111
    %v4113 = vand.u32 %v1392, 4294901760
    %4114 = vmatmul.f32.gmra.mxu0 %v4113
    %v4115 = vpop.f32.mrf.mxu0
    %v4116 = vadd.f32 %v3985, %v4115
    %v4117 = vand.u32 %v1395, 4294901760
    %4118 = vmatmul.f32.gmra.mxu0 %v4117
    %v4119 = vpop.f32.mrf.mxu0
    %v4120 = vadd.f32 %v3993, %v4119
    %v4121 = vand.u32 %v1398, 4294901760
    %4122 = vmatmul.f32.gmra.mxu0 %v4121
    %v4123 = vpop.f32.mrf.mxu0
    %v4124 = vadd.f32 %v4001, %v4123
    %v4125 = vand.u32 %v1401, 4294901760
    %4126 = vmatmul.f32.gmra.mxu0 %v4125
    %v4127 = vpop.f32.mrf.mxu0
    %v4128 = vadd.f32 %v4009, %v4127
    %v4129 = vand.u32 %v1404, 4294901760
    %4130 = vmatmul.f32.gmra.mxu0 %v4129
    %v4131 = vpop.f32.mrf.mxu0
    %v4132 = vadd.f32 %v4017, %v4131
    %v4133 = vand.u32 %v1407, 4294901760
    %4134 = vmatmul.f32.gmra.mxu0 %v4133
    %v4135 = vpop.f32.mrf.mxu0
    %v4136 = vadd.f32 %v4025, %v4135
    %v4137 = vand.u32 %v1410, 4294901760
    %4138 = vmatmul.f32.gmra.mxu0 %v4137
    %v4139 = vpop.f32.mrf.mxu0
    %v4140 = vadd.f32 %v4033, %v4139
    %v4141 = vand.u32 %v1413, 4294901760
    %4142 = vmatmul.f32.gmra.mxu0 %v4141
    %v4143 = vpop.f32.mrf.mxu0
    %v4144 = vadd.f32 %v4041, %v4143
    %v4145 = vand.u32 %v1416, 4294901760
    %4146 = vmatmul.f32.gmra.mxu0 %v4145
    %v4147 = vpop.f32.mrf.mxu0
    %v4148 = vadd.f32 %v4049, %v4147
    %v4149 = vand.u32 %v1419, 4294901760
    %4150 = vmatmul.f32.gmra.mxu0 %v4149
    %v4151 = vpop.f32.mrf.mxu0
    %v4152 = vadd.f32 %v4057, %v4151
    %v4153 = vand.u32 %v1422, 4294901760
    %4154 = vmatmul.f32.gmra.mxu0 %v4153
    %v4155 = vpop.f32.mrf.mxu0
    %v4156 = vadd.f32 %v4065, %v4155
    %4157 = vdwg.mxu0
    %4158 = vmatpush.msra.mxu0 0.0
    %4159 = vmatpush.msra.mxu0 0.0
    %4160 = vmatpush.msra.mxu0 0.0
    %4161 = vmatpush.msra.mxu0 0.0
    %4162 = vmatpush.msra.mxu0 0.0
    %4163 = vmatpush.msra.mxu0 0.0
    %4164 = vmatpush.msra.mxu0 0.0
    %4165 = vmatpush.msra.mxu0 0.0
    %4166 = vmatpush.msra.mxu0 0.0
    %4167 = vmatpush.msra.mxu0 0.0
    %4168 = vmatpush.msra.mxu0 0.0
    %4169 = vmatpush.msra.mxu0 0.0
    %4170 = vmatpush.msra.mxu0 0.0
    %4171 = vmatpush.msra.mxu0 0.0
    %v4172 = vand.u32 %v1370, 4294901760
    %v4173 = vsub.f32 %v1370, %v4172
    %4174 = vmatpush.msra.mxu0 %v4173
    %v4175 = vand.u32 %v1360, 4294901760
    %v4176 = vsub.f32 %v1360, %v4175
    %4177 = vmatpush.msra.mxu0 %v4176
    %v4178 = vand.u32 %v1377, 4294901760
    %v4179 = vsub.f32 %v1377, %v4178
    %4180 = vmatmul.f32.gmra.mxu0 %v4179
    %v4181 = vpop.f32.mrf.mxu0
    %v4182 = vadd.f32 %v4096, %v4181
    %v4183 = vand.u32 %v1380, 4294901760
    %v4184 = vsub.f32 %v1380, %v4183
    %4185 = vmatmul.f32.gmra.mxu0 %v4184
    %v4186 = vpop.f32.mrf.mxu0
    %v4187 = vadd.f32 %v4100, %v4186
    %v4188 = vand.u32 %v1383, 4294901760
    %v4189 = vsub.f32 %v1383, %v4188
    %4190 = vmatmul.f32.gmra.mxu0 %v4189
    %v4191 = vpop.f32.mrf.mxu0
    %v4192 = vadd.f32 %v4104, %v4191
    %v4193 = vand.u32 %v1386, 4294901760
    %v4194 = vsub.f32 %v1386, %v4193
    %4195 = vmatmul.f32.gmra.mxu0 %v4194
    %v4196 = vpop.f32.mrf.mxu0
    %v4197 = vadd.f32 %v4108, %v4196
    %v4198 = vand.u32 %v1389, 4294901760
    %v4199 = vsub.f32 %v1389, %v4198
    %4200 = vmatmul.f32.gmra.mxu0 %v4199
    %v4201 = vpop.f32.mrf.mxu0
    %v4202 = vadd.f32 %v4112, %v4201
    %v4203 = vand.u32 %v1392, 4294901760
    %v4204 = vsub.f32 %v1392, %v4203
    %4205 = vmatmul.f32.gmra.mxu0 %v4204
    %v4206 = vpop.f32.mrf.mxu0
    %v4207 = vadd.f32 %v4116, %v4206
    %v4208 = vand.u32 %v1395, 4294901760
    %v4209 = vsub.f32 %v1395, %v4208
    %4210 = vmatmul.f32.gmra.mxu0 %v4209
    %v4211 = vpop.f32.mrf.mxu0
    %v4212 = vadd.f32 %v4120, %v4211
    %v4213 = vand.u32 %v1398, 4294901760
    %v4214 = vsub.f32 %v1398, %v4213
    %4215 = vmatmul.f32.gmra.mxu0 %v4214
    %v4216 = vpop.f32.mrf.mxu0
    %v4217 = vadd.f32 %v4124, %v4216
    %v4218 = vand.u32 %v1401, 4294901760
    %v4219 = vsub.f32 %v1401, %v4218
    %4220 = vmatmul.f32.gmra.mxu0 %v4219
    %v4221 = vpop.f32.mrf.mxu0
    %v4222 = vadd.f32 %v4128, %v4221
    %v4223 = vand.u32 %v1404, 4294901760
    %v4224 = vsub.f32 %v1404, %v4223
    %4225 = vmatmul.f32.gmra.mxu0 %v4224
    %v4226 = vpop.f32.mrf.mxu0
    %v4227 = vadd.f32 %v4132, %v4226
    %v4228 = vand.u32 %v1407, 4294901760
    %v4229 = vsub.f32 %v1407, %v4228
    %4230 = vmatmul.f32.gmra.mxu0 %v4229
    %v4231 = vpop.f32.mrf.mxu0
    %v4232 = vadd.f32 %v4136, %v4231
    %v4233 = vand.u32 %v1410, 4294901760
    %v4234 = vsub.f32 %v1410, %v4233
    %4235 = vmatmul.f32.gmra.mxu0 %v4234
    %v4236 = vpop.f32.mrf.mxu0
    %v4237 = vadd.f32 %v4140, %v4236
    %v4238 = vand.u32 %v1413, 4294901760
    %v4239 = vsub.f32 %v1413, %v4238
    %4240 = vmatmul.f32.gmra.mxu0 %v4239
    %v4241 = vpop.f32.mrf.mxu0
    %v4242 = vadd.f32 %v4144, %v4241
    %v4243 = vand.u32 %v1416, 4294901760
    %v4244 = vsub.f32 %v1416, %v4243
    %4245 = vmatmul.f32.gmra.mxu0 %v4244
    %v4246 = vpop.f32.mrf.mxu0
    %v4247 = vadd.f32 %v4148, %v4246
    %v4248 = vand.u32 %v1419, 4294901760
    %v4249 = vsub.f32 %v1419, %v4248
    %4250 = vmatmul.f32.gmra.mxu0 %v4249
    %v4251 = vpop.f32.mrf.mxu0
    %v4252 = vadd.f32 %v4152, %v4251
    %v4253 = vand.u32 %v1422, 4294901760
    %v4254 = vsub.f32 %v1422, %v4253
    %4255 = vmatmul.f32.gmra.mxu0 %v4254
    %v4256 = vpop.f32.mrf.mxu0
    %v4257 = vadd.f32 %v4156, %v4256
    %4258 = vdwg.mxu0
    %4259 = vmatpush.msra.mxu0 0.0
    %4260 = vmatpush.msra.mxu0 0.0
    %4261 = vmatpush.msra.mxu0 0.0
    %4262 = vmatpush.msra.mxu0 0.0
    %4263 = vmatpush.msra.mxu0 0.0
    %4264 = vmatpush.msra.mxu0 0.0
    %4265 = vmatpush.msra.mxu0 0.0
    %4266 = vmatpush.msra.mxu0 0.0
    %4267 = vmatpush.msra.mxu0 0.0
    %4268 = vmatpush.msra.mxu0 0.0
    %4269 = vmatpush.msra.mxu0 0.0
    %4270 = vmatpush.msra.mxu0 0.0
    %4271 = vmatpush.msra.mxu0 0.0
    %4272 = vmatpush.msra.mxu0 0.0
    %v4273 = vand.u32 %v1370, 4294901760
    %4274 = vmatpush.msra.mxu0 %v4273
    %v4275 = vand.u32 %v1360, 4294901760
    %4276 = vmatpush.msra.mxu0 %v4275
    %v4277 = vand.u32 %v1377, 4294901760
    %v4278 = vsub.f32 %v1377, %v4277
    %v4279 = vand.u32 %v4278, 4294901760
    %4280 = vmatmul.f32.gmra.mxu0 %v4279
    %v4281 = vpop.f32.mrf.mxu0
    %v4282 = vadd.f32 %v4182, %v4281
    %v4283 = vand.u32 %v1380, 4294901760
    %v4284 = vsub.f32 %v1380, %v4283
    %v4285 = vand.u32 %v4284, 4294901760
    %4286 = vmatmul.f32.gmra.mxu0 %v4285
    %v4287 = vpop.f32.mrf.mxu0
    %v4288 = vadd.f32 %v4187, %v4287
    %v4289 = vand.u32 %v1383, 4294901760
    %v4290 = vsub.f32 %v1383, %v4289
    %v4291 = vand.u32 %v4290, 4294901760
    %4292 = vmatmul.f32.gmra.mxu0 %v4291
    %v4293 = vpop.f32.mrf.mxu0
    %v4294 = vadd.f32 %v4192, %v4293
    %v4295 = vand.u32 %v1386, 4294901760
    %v4296 = vsub.f32 %v1386, %v4295
    %v4297 = vand.u32 %v4296, 4294901760
    %4298 = vmatmul.f32.gmra.mxu0 %v4297
    %v4299 = vpop.f32.mrf.mxu0
    %v4300 = vadd.f32 %v4197, %v4299
    %v4301 = vand.u32 %v1389, 4294901760
    %v4302 = vsub.f32 %v1389, %v4301
    %v4303 = vand.u32 %v4302, 4294901760
    %4304 = vmatmul.f32.gmra.mxu0 %v4303
    %v4305 = vpop.f32.mrf.mxu0
    %v4306 = vadd.f32 %v4202, %v4305
    %v4307 = vand.u32 %v1392, 4294901760
    %v4308 = vsub.f32 %v1392, %v4307
    %v4309 = vand.u32 %v4308, 4294901760
    %4310 = vmatmul.f32.gmra.mxu0 %v4309
    %v4311 = vpop.f32.mrf.mxu0
    %v4312 = vadd.f32 %v4207, %v4311
    %v4313 = vand.u32 %v1395, 4294901760
    %v4314 = vsub.f32 %v1395, %v4313
    %v4315 = vand.u32 %v4314, 4294901760
    %4316 = vmatmul.f32.gmra.mxu0 %v4315
    %v4317 = vpop.f32.mrf.mxu0
    %v4318 = vadd.f32 %v4212, %v4317
    %v4319 = vand.u32 %v1398, 4294901760
    %v4320 = vsub.f32 %v1398, %v4319
    %v4321 = vand.u32 %v4320, 4294901760
    %4322 = vmatmul.f32.gmra.mxu0 %v4321
    %v4323 = vpop.f32.mrf.mxu0
    %v4324 = vadd.f32 %v4217, %v4323
    %v4325 = vand.u32 %v1401, 4294901760
    %v4326 = vsub.f32 %v1401, %v4325
    %v4327 = vand.u32 %v4326, 4294901760
    %4328 = vmatmul.f32.gmra.mxu0 %v4327
    %v4329 = vpop.f32.mrf.mxu0
    %v4330 = vadd.f32 %v4222, %v4329
    %v4331 = vand.u32 %v1404, 4294901760
    %v4332 = vsub.f32 %v1404, %v4331
    %v4333 = vand.u32 %v4332, 4294901760
    %4334 = vmatmul.f32.gmra.mxu0 %v4333
    %v4335 = vpop.f32.mrf.mxu0
    %v4336 = vadd.f32 %v4227, %v4335
    %v4337 = vand.u32 %v1407, 4294901760
    %v4338 = vsub.f32 %v1407, %v4337
    %v4339 = vand.u32 %v4338, 4294901760
    %4340 = vmatmul.f32.gmra.mxu0 %v4339
    %v4341 = vpop.f32.mrf.mxu0
    %v4342 = vadd.f32 %v4232, %v4341
    %v4343 = vand.u32 %v1410, 4294901760
    %v4344 = vsub.f32 %v1410, %v4343
    %v4345 = vand.u32 %v4344, 4294901760
    %4346 = vmatmul.f32.gmra.mxu0 %v4345
    %v4347 = vpop.f32.mrf.mxu0
    %v4348 = vadd.f32 %v4237, %v4347
    %v4349 = vand.u32 %v1413, 4294901760
    %v4350 = vsub.f32 %v1413, %v4349
    %v4351 = vand.u32 %v4350, 4294901760
    %4352 = vmatmul.f32.gmra.mxu0 %v4351
    %v4353 = vpop.f32.mrf.mxu0
    %v4354 = vadd.f32 %v4242, %v4353
    %v4355 = vand.u32 %v1416, 4294901760
    %v4356 = vsub.f32 %v1416, %v4355
    %v4357 = vand.u32 %v4356, 4294901760
    %4358 = vmatmul.f32.gmra.mxu0 %v4357
    %v4359 = vpop.f32.mrf.mxu0
    %v4360 = vadd.f32 %v4247, %v4359
    %v4361 = vand.u32 %v1419, 4294901760
    %v4362 = vsub.f32 %v1419, %v4361
    %v4363 = vand.u32 %v4362, 4294901760
    %4364 = vmatmul.f32.gmra.mxu0 %v4363
    %v4365 = vpop.f32.mrf.mxu0
    %v4366 = vadd.f32 %v4252, %v4365
    %v4367 = vand.u32 %v1422, 4294901760
    %v4368 = vsub.f32 %v1422, %v4367
    %v4369 = vand.u32 %v4368, 4294901760
    %4370 = vmatmul.f32.gmra.mxu0 %v4369
    %v4371 = vpop.f32.mrf.mxu0
    %v4372 = vadd.f32 %v4257, %v4371
    %4373 = vdwg.mxu0
    %4374 = vmatpush.msra.mxu0 0.0
    %4375 = vmatpush.msra.mxu0 0.0
    %4376 = vmatpush.msra.mxu0 0.0
    %4377 = vmatpush.msra.mxu0 0.0
    %4378 = vmatpush.msra.mxu0 0.0
    %4379 = vmatpush.msra.mxu0 0.0
    %4380 = vmatpush.msra.mxu0 0.0
    %4381 = vmatpush.msra.mxu0 0.0
    %4382 = vmatpush.msra.mxu0 0.0
    %4383 = vmatpush.msra.mxu0 0.0
    %4384 = vmatpush.msra.mxu0 0.0
    %4385 = vmatpush.msra.mxu0 0.0
    %4386 = vmatpush.msra.mxu0 0.0
    %4387 = vmatpush.msra.mxu0 0.0
    %v4388 = vand.u32 %v1370, 4294901760
    %v4389 = vsub.f32 %v1370, %v4388
    %v4390 = vand.u32 %v4389, 4294901760
    %4391 = vmatpush.msra.mxu0 %v4390
    %v4392 = vand.u32 %v1360, 4294901760
    %v4393 = vsub.f32 %v1360, %v4392
    %v4394 = vand.u32 %v4393, 4294901760
    %4395 = vmatpush.msra.mxu0 %v4394
    %v4396 = vand.u32 %v1377, 4294901760
    %4397 = vmatmul.f32.gmra.mxu0 %v4396
    %v4398 = vpop.f32.mrf.mxu0
    %v4399 = vadd.f32 %v4282, %v4398
    %v4400 = vand.u32 %v1380, 4294901760
    %4401 = vmatmul.f32.gmra.mxu0 %v4400
    %v4402 = vpop.f32.mrf.mxu0
    %v4403 = vadd.f32 %v4288, %v4402
    %v4404 = vand.u32 %v1383, 4294901760
    %4405 = vmatmul.f32.gmra.mxu0 %v4404
    %v4406 = vpop.f32.mrf.mxu0
    %v4407 = vadd.f32 %v4294, %v4406
    %v4408 = vand.u32 %v1386, 4294901760
    %4409 = vmatmul.f32.gmra.mxu0 %v4408
    %v4410 = vpop.f32.mrf.mxu0
    %v4411 = vadd.f32 %v4300, %v4410
    %v4412 = vand.u32 %v1389, 4294901760
    %4413 = vmatmul.f32.gmra.mxu0 %v4412
    %v4414 = vpop.f32.mrf.mxu0
    %v4415 = vadd.f32 %v4306, %v4414
    %v4416 = vand.u32 %v1392, 4294901760
    %4417 = vmatmul.f32.gmra.mxu0 %v4416
    %v4418 = vpop.f32.mrf.mxu0
    %v4419 = vadd.f32 %v4312, %v4418
    %v4420 = vand.u32 %v1395, 4294901760
    %4421 = vmatmul.f32.gmra.mxu0 %v4420
    %v4422 = vpop.f32.mrf.mxu0
    %v4423 = vadd.f32 %v4318, %v4422
    %v4424 = vand.u32 %v1398, 4294901760
    %4425 = vmatmul.f32.gmra.mxu0 %v4424
    %v4426 = vpop.f32.mrf.mxu0
    %v4427 = vadd.f32 %v4324, %v4426
    %v4428 = vand.u32 %v1401, 4294901760
    %4429 = vmatmul.f32.gmra.mxu0 %v4428
    %v4430 = vpop.f32.mrf.mxu0
    %v4431 = vadd.f32 %v4330, %v4430
    %v4432 = vand.u32 %v1404, 4294901760
    %4433 = vmatmul.f32.gmra.mxu0 %v4432
    %v4434 = vpop.f32.mrf.mxu0
    %v4435 = vadd.f32 %v4336, %v4434
    %v4436 = vand.u32 %v1407, 4294901760
    %4437 = vmatmul.f32.gmra.mxu0 %v4436
    %v4438 = vpop.f32.mrf.mxu0
    %v4439 = vadd.f32 %v4342, %v4438
    %v4440 = vand.u32 %v1410, 4294901760
    %4441 = vmatmul.f32.gmra.mxu0 %v4440
    %v4442 = vpop.f32.mrf.mxu0
    %v4443 = vadd.f32 %v4348, %v4442
    %v4444 = vand.u32 %v1413, 4294901760
    %4445 = vmatmul.f32.gmra.mxu0 %v4444
    %v4446 = vpop.f32.mrf.mxu0
    %v4447 = vadd.f32 %v4354, %v4446
    %v4448 = vand.u32 %v1416, 4294901760
    %4449 = vmatmul.f32.gmra.mxu0 %v4448
    %v4450 = vpop.f32.mrf.mxu0
    %v4451 = vadd.f32 %v4360, %v4450
    %v4452 = vand.u32 %v1419, 4294901760
    %4453 = vmatmul.f32.gmra.mxu0 %v4452
    %v4454 = vpop.f32.mrf.mxu0
    %v4455 = vadd.f32 %v4366, %v4454
    %v4456 = vand.u32 %v1422, 4294901760
    %4457 = vmatmul.f32.gmra.mxu0 %v4456
    %v4458 = vpop.f32.mrf.mxu0
    %v4459 = vadd.f32 %v4372, %v4458
    %4460 = vdwg.mxu0
    %4461 = vmatpush.msra.mxu0 0.0
    %4462 = vmatpush.msra.mxu0 0.0
    %4463 = vmatpush.msra.mxu0 0.0
    %4464 = vmatpush.msra.mxu0 0.0
    %4465 = vmatpush.msra.mxu0 0.0
    %4466 = vmatpush.msra.mxu0 0.0
    %4467 = vmatpush.msra.mxu0 0.0
    %4468 = vmatpush.msra.mxu0 0.0
    %4469 = vmatpush.msra.mxu0 0.0
    %4470 = vmatpush.msra.mxu0 0.0
    %4471 = vmatpush.msra.mxu0 0.0
    %4472 = vmatpush.msra.mxu0 0.0
    %4473 = vmatpush.msra.mxu0 0.0
    %4474 = vmatpush.msra.mxu0 0.0
    %v4475 = vand.u32 %v1370, 4294901760
    %4476 = vmatpush.msra.mxu0 %v4475
    %v4477 = vand.u32 %v1360, 4294901760
    %4478 = vmatpush.msra.mxu0 %v4477
    %v4479 = vand.u32 %v1377, 4294901760
    %4480 = vmatmul.f32.gmra.mxu0 %v4479
    %v4481 = vpop.f32.mrf.mxu0
    %v4482 = vadd.f32 %v4399, %v4481
    %v4483 = vand.u32 %v1380, 4294901760
    %4484 = vmatmul.f32.gmra.mxu0 %v4483
    %v4485 = vpop.f32.mrf.mxu0
    %v4486 = vadd.f32 %v4403, %v4485
    %v4487 = vand.u32 %v1383, 4294901760
    %4488 = vmatmul.f32.gmra.mxu0 %v4487
    %v4489 = vpop.f32.mrf.mxu0
    %v4490 = vadd.f32 %v4407, %v4489
    %v4491 = vand.u32 %v1386, 4294901760
    %4492 = vmatmul.f32.gmra.mxu0 %v4491
    %v4493 = vpop.f32.mrf.mxu0
    %v4494 = vadd.f32 %v4411, %v4493
    %v4495 = vand.u32 %v1389, 4294901760
    %4496 = vmatmul.f32.gmra.mxu0 %v4495
    %v4497 = vpop.f32.mrf.mxu0
    %v4498 = vadd.f32 %v4415, %v4497
    %v4499 = vand.u32 %v1392, 4294901760
    %4500 = vmatmul.f32.gmra.mxu0 %v4499
    %v4501 = vpop.f32.mrf.mxu0
    %v4502 = vadd.f32 %v4419, %v4501
    %v4503 = vand.u32 %v1395, 4294901760
    %4504 = vmatmul.f32.gmra.mxu0 %v4503
    %v4505 = vpop.f32.mrf.mxu0
    %v4506 = vadd.f32 %v4423, %v4505
    %v4507 = vand.u32 %v1398, 4294901760
    %4508 = vmatmul.f32.gmra.mxu0 %v4507
    %v4509 = vpop.f32.mrf.mxu0
    %v4510 = vadd.f32 %v4427, %v4509
    %v4511 = vand.u32 %v1401, 4294901760
    %4512 = vmatmul.f32.gmra.mxu0 %v4511
    %v4513 = vpop.f32.mrf.mxu0
    %v4514 = vadd.f32 %v4431, %v4513
    %v4515 = vand.u32 %v1404, 4294901760
    %4516 = vmatmul.f32.gmra.mxu0 %v4515
    %v4517 = vpop.f32.mrf.mxu0
    %v4518 = vadd.f32 %v4435, %v4517
    %v4519 = vand.u32 %v1407, 4294901760
    %4520 = vmatmul.f32.gmra.mxu0 %v4519
    %v4521 = vpop.f32.mrf.mxu0
    %v4522 = vadd.f32 %v4439, %v4521
    %v4523 = vand.u32 %v1410, 4294901760
    %4524 = vmatmul.f32.gmra.mxu0 %v4523
    %v4525 = vpop.f32.mrf.mxu0
    %v4526 = vadd.f32 %v4443, %v4525
    %v4527 = vand.u32 %v1413, 4294901760
    %4528 = vmatmul.f32.gmra.mxu0 %v4527
    %v4529 = vpop.f32.mrf.mxu0
    %v4530 = vadd.f32 %v4447, %v4529
    %v4531 = vand.u32 %v1416, 4294901760
    %4532 = vmatmul.f32.gmra.mxu0 %v4531
    %v4533 = vpop.f32.mrf.mxu0
    %v4534 = vadd.f32 %v4451, %v4533
    %v4535 = vand.u32 %v1419, 4294901760
    %4536 = vmatmul.f32.gmra.mxu0 %v4535
    %v4537 = vpop.f32.mrf.mxu0
    %v4538 = vadd.f32 %v4455, %v4537
    %v4539 = vand.u32 %v1422, 4294901760
    %4540 = vmatmul.f32.gmra.mxu0 %v4539
    %v4541 = vpop.f32.mrf.mxu0
    %v4542 = vadd.f32 %v4459, %v4541
    %4543 = vdwg.mxu0
    %4544 = vmatpush.msra.mxu0 0.0
    %4545 = vmatpush.msra.mxu0 0.0
    %4546 = vmatpush.msra.mxu0 0.0
    %4547 = vmatpush.msra.mxu0 0.0
    %4548 = vmatpush.msra.mxu0 0.0
    %4549 = vmatpush.msra.mxu0 0.0
    %4550 = vmatpush.msra.mxu0 0.0
    %4551 = vmatpush.msra.mxu0 0.0
    %4552 = vmatpush.msra.mxu0 0.0
    %4553 = vmatpush.msra.mxu0 0.0
    %4554 = vmatpush.msra.mxu0 0.0
    %4555 = vmatpush.msra.mxu0 0.0
    %4556 = vmatpush.msra.mxu0 0.0
    %4557 = vmatpush.msra.mxu0 0.0
    %v4558 = vand.u32 %v1371, 4294901760
    %4559 = vmatpush.msra.mxu0 %v4558
    %v4560 = vand.u32 %v1361, 4294901760
    %4561 = vmatpush.msra.mxu0 %v4560
    %v4562 = vand.u32 %v1377, 4294901760
    %v4563 = vsub.f32 %v1377, %v4562
    %v4564 = vand.u32 %v4563, 4294901760
    %v4565 = vsub.f32 %v4563, %v4564
    %v4566 = vand.u32 %v4565, 4294901760
    %4567 = vmatmul.f32.gmra.mxu0 %v4566
    %v4568 = vpop.f32.mrf.mxu0
    %v4569 = vadd.f32 0.0, %v4568
    %v4570 = vand.u32 %v1380, 4294901760
    %v4571 = vsub.f32 %v1380, %v4570
    %v4572 = vand.u32 %v4571, 4294901760
    %v4573 = vsub.f32 %v4571, %v4572
    %v4574 = vand.u32 %v4573, 4294901760
    %4575 = vmatmul.f32.gmra.mxu0 %v4574
    %v4576 = vpop.f32.mrf.mxu0
    %v4577 = vadd.f32 0.0, %v4576
    %v4578 = vand.u32 %v1383, 4294901760
    %v4579 = vsub.f32 %v1383, %v4578
    %v4580 = vand.u32 %v4579, 4294901760
    %v4581 = vsub.f32 %v4579, %v4580
    %v4582 = vand.u32 %v4581, 4294901760
    %4583 = vmatmul.f32.gmra.mxu0 %v4582
    %v4584 = vpop.f32.mrf.mxu0
    %v4585 = vadd.f32 0.0, %v4584
    %v4586 = vand.u32 %v1386, 4294901760
    %v4587 = vsub.f32 %v1386, %v4586
    %v4588 = vand.u32 %v4587, 4294901760
    %v4589 = vsub.f32 %v4587, %v4588
    %v4590 = vand.u32 %v4589, 4294901760
    %4591 = vmatmul.f32.gmra.mxu0 %v4590
    %v4592 = vpop.f32.mrf.mxu0
    %v4593 = vadd.f32 0.0, %v4592
    %v4594 = vand.u32 %v1389, 4294901760
    %v4595 = vsub.f32 %v1389, %v4594
    %v4596 = vand.u32 %v4595, 4294901760
    %v4597 = vsub.f32 %v4595, %v4596
    %v4598 = vand.u32 %v4597, 4294901760
    %4599 = vmatmul.f32.gmra.mxu0 %v4598
    %v4600 = vpop.f32.mrf.mxu0
    %v4601 = vadd.f32 0.0, %v4600
    %v4602 = vand.u32 %v1392, 4294901760
    %v4603 = vsub.f32 %v1392, %v4602
    %v4604 = vand.u32 %v4603, 4294901760
    %v4605 = vsub.f32 %v4603, %v4604
    %v4606 = vand.u32 %v4605, 4294901760
    %4607 = vmatmul.f32.gmra.mxu0 %v4606
    %v4608 = vpop.f32.mrf.mxu0
    %v4609 = vadd.f32 0.0, %v4608
    %v4610 = vand.u32 %v1395, 4294901760
    %v4611 = vsub.f32 %v1395, %v4610
    %v4612 = vand.u32 %v4611, 4294901760
    %v4613 = vsub.f32 %v4611, %v4612
    %v4614 = vand.u32 %v4613, 4294901760
    %4615 = vmatmul.f32.gmra.mxu0 %v4614
    %v4616 = vpop.f32.mrf.mxu0
    %v4617 = vadd.f32 0.0, %v4616
    %v4618 = vand.u32 %v1398, 4294901760
    %v4619 = vsub.f32 %v1398, %v4618
    %v4620 = vand.u32 %v4619, 4294901760
    %v4621 = vsub.f32 %v4619, %v4620
    %v4622 = vand.u32 %v4621, 4294901760
    %4623 = vmatmul.f32.gmra.mxu0 %v4622
    %v4624 = vpop.f32.mrf.mxu0
    %v4625 = vadd.f32 0.0, %v4624
    %v4626 = vand.u32 %v1401, 4294901760
    %v4627 = vsub.f32 %v1401, %v4626
    %v4628 = vand.u32 %v4627, 4294901760
    %v4629 = vsub.f32 %v4627, %v4628
    %v4630 = vand.u32 %v4629, 4294901760
    %4631 = vmatmul.f32.gmra.mxu0 %v4630
    %v4632 = vpop.f32.mrf.mxu0
    %v4633 = vadd.f32 0.0, %v4632
    %v4634 = vand.u32 %v1404, 4294901760
    %v4635 = vsub.f32 %v1404, %v4634
    %v4636 = vand.u32 %v4635, 4294901760
    %v4637 = vsub.f32 %v4635, %v4636
    %v4638 = vand.u32 %v4637, 4294901760
    %4639 = vmatmul.f32.gmra.mxu0 %v4638
    %v4640 = vpop.f32.mrf.mxu0
    %v4641 = vadd.f32 0.0, %v4640
    %v4642 = vand.u32 %v1407, 4294901760
    %v4643 = vsub.f32 %v1407, %v4642
    %v4644 = vand.u32 %v4643, 4294901760
    %v4645 = vsub.f32 %v4643, %v4644
    %v4646 = vand.u32 %v4645, 4294901760
    %4647 = vmatmul.f32.gmra.mxu0 %v4646
    %v4648 = vpop.f32.mrf.mxu0
    %v4649 = vadd.f32 0.0, %v4648
    %v4650 = vand.u32 %v1410, 4294901760
    %v4651 = vsub.f32 %v1410, %v4650
    %v4652 = vand.u32 %v4651, 4294901760
    %v4653 = vsub.f32 %v4651, %v4652
    %v4654 = vand.u32 %v4653, 4294901760
    %4655 = vmatmul.f32.gmra.mxu0 %v4654
    %v4656 = vpop.f32.mrf.mxu0
    %v4657 = vadd.f32 0.0, %v4656
    %v4658 = vand.u32 %v1413, 4294901760
    %v4659 = vsub.f32 %v1413, %v4658
    %v4660 = vand.u32 %v4659, 4294901760
    %v4661 = vsub.f32 %v4659, %v4660
    %v4662 = vand.u32 %v4661, 4294901760
    %4663 = vmatmul.f32.gmra.mxu0 %v4662
    %v4664 = vpop.f32.mrf.mxu0
    %v4665 = vadd.f32 0.0, %v4664
    %v4666 = vand.u32 %v1416, 4294901760
    %v4667 = vsub.f32 %v1416, %v4666
    %v4668 = vand.u32 %v4667, 4294901760
    %v4669 = vsub.f32 %v4667, %v4668
    %v4670 = vand.u32 %v4669, 4294901760
    %4671 = vmatmul.f32.gmra.mxu0 %v4670
    %v4672 = vpop.f32.mrf.mxu0
    %v4673 = vadd.f32 0.0, %v4672
    %v4674 = vand.u32 %v1419, 4294901760
    %v4675 = vsub.f32 %v1419, %v4674
    %v4676 = vand.u32 %v4675, 4294901760
    %v4677 = vsub.f32 %v4675, %v4676
    %v4678 = vand.u32 %v4677, 4294901760
    %4679 = vmatmul.f32.gmra.mxu0 %v4678
    %v4680 = vpop.f32.mrf.mxu0
    %v4681 = vadd.f32 0.0, %v4680
    %v4682 = vand.u32 %v1422, 4294901760
    %v4683 = vsub.f32 %v1422, %v4682
    %v4684 = vand.u32 %v4683, 4294901760
    %v4685 = vsub.f32 %v4683, %v4684
    %v4686 = vand.u32 %v4685, 4294901760
    %4687 = vmatmul.f32.gmra.mxu0 %v4686
    %v4688 = vpop.f32.mrf.mxu0
    %v4689 = vadd.f32 0.0, %v4688
    %4690 = vdwg.mxu0
    %4691 = vmatpush.msra.mxu0 0.0
    %4692 = vmatpush.msra.mxu0 0.0
    %4693 = vmatpush.msra.mxu0 0.0
    %4694 = vmatpush.msra.mxu0 0.0
    %4695 = vmatpush.msra.mxu0 0.0
    %4696 = vmatpush.msra.mxu0 0.0
    %4697 = vmatpush.msra.mxu0 0.0
    %4698 = vmatpush.msra.mxu0 0.0
    %4699 = vmatpush.msra.mxu0 0.0
    %4700 = vmatpush.msra.mxu0 0.0
    %4701 = vmatpush.msra.mxu0 0.0
    %4702 = vmatpush.msra.mxu0 0.0
    %4703 = vmatpush.msra.mxu0 0.0
    %4704 = vmatpush.msra.mxu0 0.0
    %v4705 = vand.u32 %v1371, 4294901760
    %v4706 = vsub.f32 %v1371, %v4705
    %v4707 = vand.u32 %v4706, 4294901760
    %v4708 = vsub.f32 %v4706, %v4707
    %v4709 = vand.u32 %v4708, 4294901760
    %4710 = vmatpush.msra.mxu0 %v4709
    %v4711 = vand.u32 %v1361, 4294901760
    %v4712 = vsub.f32 %v1361, %v4711
    %v4713 = vand.u32 %v4712, 4294901760
    %v4714 = vsub.f32 %v4712, %v4713
    %v4715 = vand.u32 %v4714, 4294901760
    %4716 = vmatpush.msra.mxu0 %v4715
    %v4717 = vand.u32 %v1377, 4294901760
    %4718 = vmatmul.f32.gmra.mxu0 %v4717
    %v4719 = vpop.f32.mrf.mxu0
    %v4720 = vadd.f32 %v4569, %v4719
    %v4721 = vand.u32 %v1380, 4294901760
    %4722 = vmatmul.f32.gmra.mxu0 %v4721
    %v4723 = vpop.f32.mrf.mxu0
    %v4724 = vadd.f32 %v4577, %v4723
    %v4725 = vand.u32 %v1383, 4294901760
    %4726 = vmatmul.f32.gmra.mxu0 %v4725
    %v4727 = vpop.f32.mrf.mxu0
    %v4728 = vadd.f32 %v4585, %v4727
    %v4729 = vand.u32 %v1386, 4294901760
    %4730 = vmatmul.f32.gmra.mxu0 %v4729
    %v4731 = vpop.f32.mrf.mxu0
    %v4732 = vadd.f32 %v4593, %v4731
    %v4733 = vand.u32 %v1389, 4294901760
    %4734 = vmatmul.f32.gmra.mxu0 %v4733
    %v4735 = vpop.f32.mrf.mxu0
    %v4736 = vadd.f32 %v4601, %v4735
    %v4737 = vand.u32 %v1392, 4294901760
    %4738 = vmatmul.f32.gmra.mxu0 %v4737
    %v4739 = vpop.f32.mrf.mxu0
    %v4740 = vadd.f32 %v4609, %v4739
    %v4741 = vand.u32 %v1395, 4294901760
    %4742 = vmatmul.f32.gmra.mxu0 %v4741
    %v4743 = vpop.f32.mrf.mxu0
    %v4744 = vadd.f32 %v4617, %v4743
    %v4745 = vand.u32 %v1398, 4294901760
    %4746 = vmatmul.f32.gmra.mxu0 %v4745
    %v4747 = vpop.f32.mrf.mxu0
    %v4748 = vadd.f32 %v4625, %v4747
    %v4749 = vand.u32 %v1401, 4294901760
    %4750 = vmatmul.f32.gmra.mxu0 %v4749
    %v4751 = vpop.f32.mrf.mxu0
    %v4752 = vadd.f32 %v4633, %v4751
    %v4753 = vand.u32 %v1404, 4294901760
    %4754 = vmatmul.f32.gmra.mxu0 %v4753
    %v4755 = vpop.f32.mrf.mxu0
    %v4756 = vadd.f32 %v4641, %v4755
    %v4757 = vand.u32 %v1407, 4294901760
    %4758 = vmatmul.f32.gmra.mxu0 %v4757
    %v4759 = vpop.f32.mrf.mxu0
    %v4760 = vadd.f32 %v4649, %v4759
    %v4761 = vand.u32 %v1410, 4294901760
    %4762 = vmatmul.f32.gmra.mxu0 %v4761
    %v4763 = vpop.f32.mrf.mxu0
    %v4764 = vadd.f32 %v4657, %v4763
    %v4765 = vand.u32 %v1413, 4294901760
    %4766 = vmatmul.f32.gmra.mxu0 %v4765
    %v4767 = vpop.f32.mrf.mxu0
    %v4768 = vadd.f32 %v4665, %v4767
    %v4769 = vand.u32 %v1416, 4294901760
    %4770 = vmatmul.f32.gmra.mxu0 %v4769
    %v4771 = vpop.f32.mrf.mxu0
    %v4772 = vadd.f32 %v4673, %v4771
    %v4773 = vand.u32 %v1419, 4294901760
    %4774 = vmatmul.f32.gmra.mxu0 %v4773
    %v4775 = vpop.f32.mrf.mxu0
    %v4776 = vadd.f32 %v4681, %v4775
    %v4777 = vand.u32 %v1422, 4294901760
    %4778 = vmatmul.f32.gmra.mxu0 %v4777
    %v4779 = vpop.f32.mrf.mxu0
    %v4780 = vadd.f32 %v4689, %v4779
    %4781 = vdwg.mxu0
    %4782 = vmatpush.msra.mxu0 0.0
    %4783 = vmatpush.msra.mxu0 0.0
    %4784 = vmatpush.msra.mxu0 0.0
    %4785 = vmatpush.msra.mxu0 0.0
    %4786 = vmatpush.msra.mxu0 0.0
    %4787 = vmatpush.msra.mxu0 0.0
    %4788 = vmatpush.msra.mxu0 0.0
    %4789 = vmatpush.msra.mxu0 0.0
    %4790 = vmatpush.msra.mxu0 0.0
    %4791 = vmatpush.msra.mxu0 0.0
    %4792 = vmatpush.msra.mxu0 0.0
    %4793 = vmatpush.msra.mxu0 0.0
    %4794 = vmatpush.msra.mxu0 0.0
    %4795 = vmatpush.msra.mxu0 0.0
    %v4796 = vand.u32 %v1371, 4294901760
    %v4797 = vsub.f32 %v1371, %v4796
    %4798 = vmatpush.msra.mxu0 %v4797
    %v4799 = vand.u32 %v1361, 4294901760
    %v4800 = vsub.f32 %v1361, %v4799
    %4801 = vmatpush.msra.mxu0 %v4800
    %v4802 = vand.u32 %v1377, 4294901760
    %v4803 = vsub.f32 %v1377, %v4802
    %4804 = vmatmul.f32.gmra.mxu0 %v4803
    %v4805 = vpop.f32.mrf.mxu0
    %v4806 = vadd.f32 %v4720, %v4805
    %v4807 = vand.u32 %v1380, 4294901760
    %v4808 = vsub.f32 %v1380, %v4807
    %4809 = vmatmul.f32.gmra.mxu0 %v4808
    %v4810 = vpop.f32.mrf.mxu0
    %v4811 = vadd.f32 %v4724, %v4810
    %v4812 = vand.u32 %v1383, 4294901760
    %v4813 = vsub.f32 %v1383, %v4812
    %4814 = vmatmul.f32.gmra.mxu0 %v4813
    %v4815 = vpop.f32.mrf.mxu0
    %v4816 = vadd.f32 %v4728, %v4815
    %v4817 = vand.u32 %v1386, 4294901760
    %v4818 = vsub.f32 %v1386, %v4817
    %4819 = vmatmul.f32.gmra.mxu0 %v4818
    %v4820 = vpop.f32.mrf.mxu0
    %v4821 = vadd.f32 %v4732, %v4820
    %v4822 = vand.u32 %v1389, 4294901760
    %v4823 = vsub.f32 %v1389, %v4822
    %4824 = vmatmul.f32.gmra.mxu0 %v4823
    %v4825 = vpop.f32.mrf.mxu0
    %v4826 = vadd.f32 %v4736, %v4825
    %v4827 = vand.u32 %v1392, 4294901760
    %v4828 = vsub.f32 %v1392, %v4827
    %4829 = vmatmul.f32.gmra.mxu0 %v4828
    %v4830 = vpop.f32.mrf.mxu0
    %v4831 = vadd.f32 %v4740, %v4830
    %v4832 = vand.u32 %v1395, 4294901760
    %v4833 = vsub.f32 %v1395, %v4832
    %4834 = vmatmul.f32.gmra.mxu0 %v4833
    %v4835 = vpop.f32.mrf.mxu0
    %v4836 = vadd.f32 %v4744, %v4835
    %v4837 = vand.u32 %v1398, 4294901760
    %v4838 = vsub.f32 %v1398, %v4837
    %4839 = vmatmul.f32.gmra.mxu0 %v4838
    %v4840 = vpop.f32.mrf.mxu0
    %v4841 = vadd.f32 %v4748, %v4840
    %v4842 = vand.u32 %v1401, 4294901760
    %v4843 = vsub.f32 %v1401, %v4842
    %4844 = vmatmul.f32.gmra.mxu0 %v4843
    %v4845 = vpop.f32.mrf.mxu0
    %v4846 = vadd.f32 %v4752, %v4845
    %v4847 = vand.u32 %v1404, 4294901760
    %v4848 = vsub.f32 %v1404, %v4847
    %4849 = vmatmul.f32.gmra.mxu0 %v4848
    %v4850 = vpop.f32.mrf.mxu0
    %v4851 = vadd.f32 %v4756, %v4850
    %v4852 = vand.u32 %v1407, 4294901760
    %v4853 = vsub.f32 %v1407, %v4852
    %4854 = vmatmul.f32.gmra.mxu0 %v4853
    %v4855 = vpop.f32.mrf.mxu0
    %v4856 = vadd.f32 %v4760, %v4855
    %v4857 = vand.u32 %v1410, 4294901760
    %v4858 = vsub.f32 %v1410, %v4857
    %4859 = vmatmul.f32.gmra.mxu0 %v4858
    %v4860 = vpop.f32.mrf.mxu0
    %v4861 = vadd.f32 %v4764, %v4860
    %v4862 = vand.u32 %v1413, 4294901760
    %v4863 = vsub.f32 %v1413, %v4862
    %4864 = vmatmul.f32.gmra.mxu0 %v4863
    %v4865 = vpop.f32.mrf.mxu0
    %v4866 = vadd.f32 %v4768, %v4865
    %v4867 = vand.u32 %v1416, 4294901760
    %v4868 = vsub.f32 %v1416, %v4867
    %4869 = vmatmul.f32.gmra.mxu0 %v4868
    %v4870 = vpop.f32.mrf.mxu0
    %v4871 = vadd.f32 %v4772, %v4870
    %v4872 = vand.u32 %v1419, 4294901760
    %v4873 = vsub.f32 %v1419, %v4872
    %4874 = vmatmul.f32.gmra.mxu0 %v4873
    %v4875 = vpop.f32.mrf.mxu0
    %v4876 = vadd.f32 %v4776, %v4875
    %v4877 = vand.u32 %v1422, 4294901760
    %v4878 = vsub.f32 %v1422, %v4877
    %4879 = vmatmul.f32.gmra.mxu0 %v4878
    %v4880 = vpop.f32.mrf.mxu0
    %v4881 = vadd.f32 %v4780, %v4880
    %4882 = vdwg.mxu0
    %4883 = vmatpush.msra.mxu0 0.0
    %4884 = vmatpush.msra.mxu0 0.0
    %4885 = vmatpush.msra.mxu0 0.0
    %4886 = vmatpush.msra.mxu0 0.0
    %4887 = vmatpush.msra.mxu0 0.0
    %4888 = vmatpush.msra.mxu0 0.0
    %4889 = vmatpush.msra.mxu0 0.0
    %4890 = vmatpush.msra.mxu0 0.0
    %4891 = vmatpush.msra.mxu0 0.0
    %4892 = vmatpush.msra.mxu0 0.0
    %4893 = vmatpush.msra.mxu0 0.0
    %4894 = vmatpush.msra.mxu0 0.0
    %4895 = vmatpush.msra.mxu0 0.0
    %4896 = vmatpush.msra.mxu0 0.0
    %v4897 = vand.u32 %v1371, 4294901760
    %4898 = vmatpush.msra.mxu0 %v4897
    %v4899 = vand.u32 %v1361, 4294901760
    %4900 = vmatpush.msra.mxu0 %v4899
    %v4901 = vand.u32 %v1377, 4294901760
    %v4902 = vsub.f32 %v1377, %v4901
    %v4903 = vand.u32 %v4902, 4294901760
    %4904 = vmatmul.f32.gmra.mxu0 %v4903
    %v4905 = vpop.f32.mrf.mxu0
    %v4906 = vadd.f32 %v4806, %v4905
    %v4907 = vand.u32 %v1380, 4294901760
    %v4908 = vsub.f32 %v1380, %v4907
    %v4909 = vand.u32 %v4908, 4294901760
    %4910 = vmatmul.f32.gmra.mxu0 %v4909
    %v4911 = vpop.f32.mrf.mxu0
    %v4912 = vadd.f32 %v4811, %v4911
    %v4913 = vand.u32 %v1383, 4294901760
    %v4914 = vsub.f32 %v1383, %v4913
    %v4915 = vand.u32 %v4914, 4294901760
    %4916 = vmatmul.f32.gmra.mxu0 %v4915
    %v4917 = vpop.f32.mrf.mxu0
    %v4918 = vadd.f32 %v4816, %v4917
    %v4919 = vand.u32 %v1386, 4294901760
    %v4920 = vsub.f32 %v1386, %v4919
    %v4921 = vand.u32 %v4920, 4294901760
    %4922 = vmatmul.f32.gmra.mxu0 %v4921
    %v4923 = vpop.f32.mrf.mxu0
    %v4924 = vadd.f32 %v4821, %v4923
    %v4925 = vand.u32 %v1389, 4294901760
    %v4926 = vsub.f32 %v1389, %v4925
    %v4927 = vand.u32 %v4926, 4294901760
    %4928 = vmatmul.f32.gmra.mxu0 %v4927
    %v4929 = vpop.f32.mrf.mxu0
    %v4930 = vadd.f32 %v4826, %v4929
    %v4931 = vand.u32 %v1392, 4294901760
    %v4932 = vsub.f32 %v1392, %v4931
    %v4933 = vand.u32 %v4932, 4294901760
    %4934 = vmatmul.f32.gmra.mxu0 %v4933
    %v4935 = vpop.f32.mrf.mxu0
    %v4936 = vadd.f32 %v4831, %v4935
    %v4937 = vand.u32 %v1395, 4294901760
    %v4938 = vsub.f32 %v1395, %v4937
    %v4939 = vand.u32 %v4938, 4294901760
    %4940 = vmatmul.f32.gmra.mxu0 %v4939
    %v4941 = vpop.f32.mrf.mxu0
    %v4942 = vadd.f32 %v4836, %v4941
    %v4943 = vand.u32 %v1398, 4294901760
    %v4944 = vsub.f32 %v1398, %v4943
    %v4945 = vand.u32 %v4944, 4294901760
    %4946 = vmatmul.f32.gmra.mxu0 %v4945
    %v4947 = vpop.f32.mrf.mxu0
    %v4948 = vadd.f32 %v4841, %v4947
    %v4949 = vand.u32 %v1401, 4294901760
    %v4950 = vsub.f32 %v1401, %v4949
    %v4951 = vand.u32 %v4950, 4294901760
    %4952 = vmatmul.f32.gmra.mxu0 %v4951
    %v4953 = vpop.f32.mrf.mxu0
    %v4954 = vadd.f32 %v4846, %v4953
    %v4955 = vand.u32 %v1404, 4294901760
    %v4956 = vsub.f32 %v1404, %v4955
    %v4957 = vand.u32 %v4956, 4294901760
    %4958 = vmatmul.f32.gmra.mxu0 %v4957
    %v4959 = vpop.f32.mrf.mxu0
    %v4960 = vadd.f32 %v4851, %v4959
    %v4961 = vand.u32 %v1407, 4294901760
    %v4962 = vsub.f32 %v1407, %v4961
    %v4963 = vand.u32 %v4962, 4294901760
    %4964 = vmatmul.f32.gmra.mxu0 %v4963
    %v4965 = vpop.f32.mrf.mxu0
    %v4966 = vadd.f32 %v4856, %v4965
    %v4967 = vand.u32 %v1410, 4294901760
    %v4968 = vsub.f32 %v1410, %v4967
    %v4969 = vand.u32 %v4968, 4294901760
    %4970 = vmatmul.f32.gmra.mxu0 %v4969
    %v4971 = vpop.f32.mrf.mxu0
    %v4972 = vadd.f32 %v4861, %v4971
    %v4973 = vand.u32 %v1413, 4294901760
    %v4974 = vsub.f32 %v1413, %v4973
    %v4975 = vand.u32 %v4974, 4294901760
    %4976 = vmatmul.f32.gmra.mxu0 %v4975
    %v4977 = vpop.f32.mrf.mxu0
    %v4978 = vadd.f32 %v4866, %v4977
    %v4979 = vand.u32 %v1416, 4294901760
    %v4980 = vsub.f32 %v1416, %v4979
    %v4981 = vand.u32 %v4980, 4294901760
    %4982 = vmatmul.f32.gmra.mxu0 %v4981
    %v4983 = vpop.f32.mrf.mxu0
    %v4984 = vadd.f32 %v4871, %v4983
    %v4985 = vand.u32 %v1419, 4294901760
    %v4986 = vsub.f32 %v1419, %v4985
    %v4987 = vand.u32 %v4986, 4294901760
    %4988 = vmatmul.f32.gmra.mxu0 %v4987
    %v4989 = vpop.f32.mrf.mxu0
    %v4990 = vadd.f32 %v4876, %v4989
    %v4991 = vand.u32 %v1422, 4294901760
    %v4992 = vsub.f32 %v1422, %v4991
    %v4993 = vand.u32 %v4992, 4294901760
    %4994 = vmatmul.f32.gmra.mxu0 %v4993
    %v4995 = vpop.f32.mrf.mxu0
    %v4996 = vadd.f32 %v4881, %v4995
    %4997 = vdwg.mxu0
    %4998 = vmatpush.msra.mxu0 0.0
    %4999 = vmatpush.msra.mxu0 0.0
    %5000 = vmatpush.msra.mxu0 0.0
    %5001 = vmatpush.msra.mxu0 0.0
    %5002 = vmatpush.msra.mxu0 0.0
    %5003 = vmatpush.msra.mxu0 0.0
    %5004 = vmatpush.msra.mxu0 0.0
    %5005 = vmatpush.msra.mxu0 0.0
    %5006 = vmatpush.msra.mxu0 0.0
    %5007 = vmatpush.msra.mxu0 0.0
    %5008 = vmatpush.msra.mxu0 0.0
    %5009 = vmatpush.msra.mxu0 0.0
    %5010 = vmatpush.msra.mxu0 0.0
    %5011 = vmatpush.msra.mxu0 0.0
    %v5012 = vand.u32 %v1371, 4294901760
    %v5013 = vsub.f32 %v1371, %v5012
    %v5014 = vand.u32 %v5013, 4294901760
    %5015 = vmatpush.msra.mxu0 %v5014
    %v5016 = vand.u32 %v1361, 4294901760
    %v5017 = vsub.f32 %v1361, %v5016
    %v5018 = vand.u32 %v5017, 4294901760
    %5019 = vmatpush.msra.mxu0 %v5018
    %v5020 = vand.u32 %v1377, 4294901760
    %5021 = vmatmul.f32.gmra.mxu0 %v5020
    %v5022 = vpop.f32.mrf.mxu0
    %v5023 = vadd.f32 %v4906, %v5022
    %v5024 = vand.u32 %v1380, 4294901760
    %5025 = vmatmul.f32.gmra.mxu0 %v5024
    %v5026 = vpop.f32.mrf.mxu0
    %v5027 = vadd.f32 %v4912, %v5026
    %v5028 = vand.u32 %v1383, 4294901760
    %5029 = vmatmul.f32.gmra.mxu0 %v5028
    %v5030 = vpop.f32.mrf.mxu0
    %v5031 = vadd.f32 %v4918, %v5030
    %v5032 = vand.u32 %v1386, 4294901760
    %5033 = vmatmul.f32.gmra.mxu0 %v5032
    %v5034 = vpop.f32.mrf.mxu0
    %v5035 = vadd.f32 %v4924, %v5034
    %v5036 = vand.u32 %v1389, 4294901760
    %5037 = vmatmul.f32.gmra.mxu0 %v5036
    %v5038 = vpop.f32.mrf.mxu0
    %v5039 = vadd.f32 %v4930, %v5038
    %v5040 = vand.u32 %v1392, 4294901760
    %5041 = vmatmul.f32.gmra.mxu0 %v5040
    %v5042 = vpop.f32.mrf.mxu0
    %v5043 = vadd.f32 %v4936, %v5042
    %v5044 = vand.u32 %v1395, 4294901760
    %5045 = vmatmul.f32.gmra.mxu0 %v5044
    %v5046 = vpop.f32.mrf.mxu0
    %v5047 = vadd.f32 %v4942, %v5046
    %v5048 = vand.u32 %v1398, 4294901760
    %5049 = vmatmul.f32.gmra.mxu0 %v5048
    %v5050 = vpop.f32.mrf.mxu0
    %v5051 = vadd.f32 %v4948, %v5050
    %v5052 = vand.u32 %v1401, 4294901760
    %5053 = vmatmul.f32.gmra.mxu0 %v5052
    %v5054 = vpop.f32.mrf.mxu0
    %v5055 = vadd.f32 %v4954, %v5054
    %v5056 = vand.u32 %v1404, 4294901760
    %5057 = vmatmul.f32.gmra.mxu0 %v5056
    %v5058 = vpop.f32.mrf.mxu0
    %v5059 = vadd.f32 %v4960, %v5058
    %v5060 = vand.u32 %v1407, 4294901760
    %5061 = vmatmul.f32.gmra.mxu0 %v5060
    %v5062 = vpop.f32.mrf.mxu0
    %v5063 = vadd.f32 %v4966, %v5062
    %v5064 = vand.u32 %v1410, 4294901760
    %5065 = vmatmul.f32.gmra.mxu0 %v5064
    %v5066 = vpop.f32.mrf.mxu0
    %v5067 = vadd.f32 %v4972, %v5066
    %v5068 = vand.u32 %v1413, 4294901760
    %5069 = vmatmul.f32.gmra.mxu0 %v5068
    %v5070 = vpop.f32.mrf.mxu0
    %v5071 = vadd.f32 %v4978, %v5070
    %v5072 = vand.u32 %v1416, 4294901760
    %5073 = vmatmul.f32.gmra.mxu0 %v5072
    %v5074 = vpop.f32.mrf.mxu0
    %v5075 = vadd.f32 %v4984, %v5074
    %v5076 = vand.u32 %v1419, 4294901760
    %5077 = vmatmul.f32.gmra.mxu0 %v5076
    %v5078 = vpop.f32.mrf.mxu0
    %v5079 = vadd.f32 %v4990, %v5078
    %v5080 = vand.u32 %v1422, 4294901760
    %5081 = vmatmul.f32.gmra.mxu0 %v5080
    %v5082 = vpop.f32.mrf.mxu0
    %v5083 = vadd.f32 %v4996, %v5082
    %5084 = vdwg.mxu0
    %5085 = vmatpush.msra.mxu0 0.0
    %5086 = vmatpush.msra.mxu0 0.0
    %5087 = vmatpush.msra.mxu0 0.0
    %5088 = vmatpush.msra.mxu0 0.0
    %5089 = vmatpush.msra.mxu0 0.0
    %5090 = vmatpush.msra.mxu0 0.0
    %5091 = vmatpush.msra.mxu0 0.0
    %5092 = vmatpush.msra.mxu0 0.0
    %5093 = vmatpush.msra.mxu0 0.0
    %5094 = vmatpush.msra.mxu0 0.0
    %5095 = vmatpush.msra.mxu0 0.0
    %5096 = vmatpush.msra.mxu0 0.0
    %5097 = vmatpush.msra.mxu0 0.0
    %5098 = vmatpush.msra.mxu0 0.0
    %v5099 = vand.u32 %v1371, 4294901760
    %5100 = vmatpush.msra.mxu0 %v5099
    %v5101 = vand.u32 %v1361, 4294901760
    %5102 = vmatpush.msra.mxu0 %v5101
    %v5103 = vand.u32 %v1377, 4294901760
    %5104 = vmatmul.f32.gmra.mxu0 %v5103
    %v5105 = vpop.f32.mrf.mxu0
    %v5106 = vadd.f32 %v5023, %v5105
    %v5107 = vand.u32 %v1380, 4294901760
    %5108 = vmatmul.f32.gmra.mxu0 %v5107
    %v5109 = vpop.f32.mrf.mxu0
    %v5110 = vadd.f32 %v5027, %v5109
    %v5111 = vand.u32 %v1383, 4294901760
    %5112 = vmatmul.f32.gmra.mxu0 %v5111
    %v5113 = vpop.f32.mrf.mxu0
    %v5114 = vadd.f32 %v5031, %v5113
    %v5115 = vand.u32 %v1386, 4294901760
    %5116 = vmatmul.f32.gmra.mxu0 %v5115
    %v5117 = vpop.f32.mrf.mxu0
    %v5118 = vadd.f32 %v5035, %v5117
    %v5119 = vand.u32 %v1389, 4294901760
    %5120 = vmatmul.f32.gmra.mxu0 %v5119
    %v5121 = vpop.f32.mrf.mxu0
    %v5122 = vadd.f32 %v5039, %v5121
    %v5123 = vand.u32 %v1392, 4294901760
    %5124 = vmatmul.f32.gmra.mxu0 %v5123
    %v5125 = vpop.f32.mrf.mxu0
    %v5126 = vadd.f32 %v5043, %v5125
    %v5127 = vand.u32 %v1395, 4294901760
    %5128 = vmatmul.f32.gmra.mxu0 %v5127
    %v5129 = vpop.f32.mrf.mxu0
    %v5130 = vadd.f32 %v5047, %v5129
    %v5131 = vand.u32 %v1398, 4294901760
    %5132 = vmatmul.f32.gmra.mxu0 %v5131
    %v5133 = vpop.f32.mrf.mxu0
    %v5134 = vadd.f32 %v5051, %v5133
    %v5135 = vand.u32 %v1401, 4294901760
    %5136 = vmatmul.f32.gmra.mxu0 %v5135
    %v5137 = vpop.f32.mrf.mxu0
    %v5138 = vadd.f32 %v5055, %v5137
    %v5139 = vand.u32 %v1404, 4294901760
    %5140 = vmatmul.f32.gmra.mxu0 %v5139
    %v5141 = vpop.f32.mrf.mxu0
    %v5142 = vadd.f32 %v5059, %v5141
    %v5143 = vand.u32 %v1407, 4294901760
    %5144 = vmatmul.f32.gmra.mxu0 %v5143
    %v5145 = vpop.f32.mrf.mxu0
    %v5146 = vadd.f32 %v5063, %v5145
    %v5147 = vand.u32 %v1410, 4294901760
    %5148 = vmatmul.f32.gmra.mxu0 %v5147
    %v5149 = vpop.f32.mrf.mxu0
    %v5150 = vadd.f32 %v5067, %v5149
    %v5151 = vand.u32 %v1413, 4294901760
    %5152 = vmatmul.f32.gmra.mxu0 %v5151
    %v5153 = vpop.f32.mrf.mxu0
    %v5154 = vadd.f32 %v5071, %v5153
    %v5155 = vand.u32 %v1416, 4294901760
    %5156 = vmatmul.f32.gmra.mxu0 %v5155
    %v5157 = vpop.f32.mrf.mxu0
    %v5158 = vadd.f32 %v5075, %v5157
    %v5159 = vand.u32 %v1419, 4294901760
    %5160 = vmatmul.f32.gmra.mxu0 %v5159
    %v5161 = vpop.f32.mrf.mxu0
    %v5162 = vadd.f32 %v5079, %v5161
    %v5163 = vand.u32 %v1422, 4294901760
    %5164 = vmatmul.f32.gmra.mxu0 %v5163
    %v5165 = vpop.f32.mrf.mxu0
    %v5166 = vadd.f32 %v5083, %v5165
    %5167 = vdwg.mxu0
    %5168 = vmatpush.msra.mxu0 0.0
    %5169 = vmatpush.msra.mxu0 0.0
    %5170 = vmatpush.msra.mxu0 0.0
    %5171 = vmatpush.msra.mxu0 0.0
    %5172 = vmatpush.msra.mxu0 0.0
    %5173 = vmatpush.msra.mxu0 0.0
    %5174 = vmatpush.msra.mxu0 0.0
    %5175 = vmatpush.msra.mxu0 0.0
    %5176 = vmatpush.msra.mxu0 0.0
    %5177 = vmatpush.msra.mxu0 0.0
    %5178 = vmatpush.msra.mxu0 0.0
    %5179 = vmatpush.msra.mxu0 0.0
    %5180 = vmatpush.msra.mxu0 0.0
    %5181 = vmatpush.msra.mxu0 0.0
    %v5182 = vand.u32 %v1372, 4294901760
    %5183 = vmatpush.msra.mxu0 %v5182
    %v5184 = vand.u32 %v1362, 4294901760
    %5185 = vmatpush.msra.mxu0 %v5184
    %v5186 = vand.u32 %v1377, 4294901760
    %v5187 = vsub.f32 %v1377, %v5186
    %v5188 = vand.u32 %v5187, 4294901760
    %v5189 = vsub.f32 %v5187, %v5188
    %v5190 = vand.u32 %v5189, 4294901760
    %5191 = vmatmul.f32.gmra.mxu0 %v5190
    %v5192 = vpop.f32.mrf.mxu0
    %v5193 = vadd.f32 0.0, %v5192
    %v5194 = vand.u32 %v1380, 4294901760
    %v5195 = vsub.f32 %v1380, %v5194
    %v5196 = vand.u32 %v5195, 4294901760
    %v5197 = vsub.f32 %v5195, %v5196
    %v5198 = vand.u32 %v5197, 4294901760
    %5199 = vmatmul.f32.gmra.mxu0 %v5198
    %v5200 = vpop.f32.mrf.mxu0
    %v5201 = vadd.f32 0.0, %v5200
    %v5202 = vand.u32 %v1383, 4294901760
    %v5203 = vsub.f32 %v1383, %v5202
    %v5204 = vand.u32 %v5203, 4294901760
    %v5205 = vsub.f32 %v5203, %v5204
    %v5206 = vand.u32 %v5205, 4294901760
    %5207 = vmatmul.f32.gmra.mxu0 %v5206
    %v5208 = vpop.f32.mrf.mxu0
    %v5209 = vadd.f32 0.0, %v5208
    %v5210 = vand.u32 %v1386, 4294901760
    %v5211 = vsub.f32 %v1386, %v5210
    %v5212 = vand.u32 %v5211, 4294901760
    %v5213 = vsub.f32 %v5211, %v5212
    %v5214 = vand.u32 %v5213, 4294901760
    %5215 = vmatmul.f32.gmra.mxu0 %v5214
    %v5216 = vpop.f32.mrf.mxu0
    %v5217 = vadd.f32 0.0, %v5216
    %v5218 = vand.u32 %v1389, 4294901760
    %v5219 = vsub.f32 %v1389, %v5218
    %v5220 = vand.u32 %v5219, 4294901760
    %v5221 = vsub.f32 %v5219, %v5220
    %v5222 = vand.u32 %v5221, 4294901760
    %5223 = vmatmul.f32.gmra.mxu0 %v5222
    %v5224 = vpop.f32.mrf.mxu0
    %v5225 = vadd.f32 0.0, %v5224
    %v5226 = vand.u32 %v1392, 4294901760
    %v5227 = vsub.f32 %v1392, %v5226
    %v5228 = vand.u32 %v5227, 4294901760
    %v5229 = vsub.f32 %v5227, %v5228
    %v5230 = vand.u32 %v5229, 4294901760
    %5231 = vmatmul.f32.gmra.mxu0 %v5230
    %v5232 = vpop.f32.mrf.mxu0
    %v5233 = vadd.f32 0.0, %v5232
    %v5234 = vand.u32 %v1395, 4294901760
    %v5235 = vsub.f32 %v1395, %v5234
    %v5236 = vand.u32 %v5235, 4294901760
    %v5237 = vsub.f32 %v5235, %v5236
    %v5238 = vand.u32 %v5237, 4294901760
    %5239 = vmatmul.f32.gmra.mxu0 %v5238
    %v5240 = vpop.f32.mrf.mxu0
    %v5241 = vadd.f32 0.0, %v5240
    %v5242 = vand.u32 %v1398, 4294901760
    %v5243 = vsub.f32 %v1398, %v5242
    %v5244 = vand.u32 %v5243, 4294901760
    %v5245 = vsub.f32 %v5243, %v5244
    %v5246 = vand.u32 %v5245, 4294901760
    %5247 = vmatmul.f32.gmra.mxu0 %v5246
    %v5248 = vpop.f32.mrf.mxu0
    %v5249 = vadd.f32 0.0, %v5248
    %v5250 = vand.u32 %v1401, 4294901760
    %v5251 = vsub.f32 %v1401, %v5250
    %v5252 = vand.u32 %v5251, 4294901760
    %v5253 = vsub.f32 %v5251, %v5252
    %v5254 = vand.u32 %v5253, 4294901760
    %5255 = vmatmul.f32.gmra.mxu0 %v5254
    %v5256 = vpop.f32.mrf.mxu0
    %v5257 = vadd.f32 0.0, %v5256
    %v5258 = vand.u32 %v1404, 4294901760
    %v5259 = vsub.f32 %v1404, %v5258
    %v5260 = vand.u32 %v5259, 4294901760
    %v5261 = vsub.f32 %v5259, %v5260
    %v5262 = vand.u32 %v5261, 4294901760
    %5263 = vmatmul.f32.gmra.mxu0 %v5262
    %v5264 = vpop.f32.mrf.mxu0
    %v5265 = vadd.f32 0.0, %v5264
    %v5266 = vand.u32 %v1407, 4294901760
    %v5267 = vsub.f32 %v1407, %v5266
    %v5268 = vand.u32 %v5267, 4294901760
    %v5269 = vsub.f32 %v5267, %v5268
    %v5270 = vand.u32 %v5269, 4294901760
    %5271 = vmatmul.f32.gmra.mxu0 %v5270
    %v5272 = vpop.f32.mrf.mxu0
    %v5273 = vadd.f32 0.0, %v5272
    %v5274 = vand.u32 %v1410, 4294901760
    %v5275 = vsub.f32 %v1410, %v5274
    %v5276 = vand.u32 %v5275, 4294901760
    %v5277 = vsub.f32 %v5275, %v5276
    %v5278 = vand.u32 %v5277, 4294901760
    %5279 = vmatmul.f32.gmra.mxu0 %v5278
    %v5280 = vpop.f32.mrf.mxu0
    %v5281 = vadd.f32 0.0, %v5280
    %v5282 = vand.u32 %v1413, 4294901760
    %v5283 = vsub.f32 %v1413, %v5282
    %v5284 = vand.u32 %v5283, 4294901760
    %v5285 = vsub.f32 %v5283, %v5284
    %v5286 = vand.u32 %v5285, 4294901760
    %5287 = vmatmul.f32.gmra.mxu0 %v5286
    %v5288 = vpop.f32.mrf.mxu0
    %v5289 = vadd.f32 0.0, %v5288
    %v5290 = vand.u32 %v1416, 4294901760
    %v5291 = vsub.f32 %v1416, %v5290
    %v5292 = vand.u32 %v5291, 4294901760
    %v5293 = vsub.f32 %v5291, %v5292
    %v5294 = vand.u32 %v5293, 4294901760
    %5295 = vmatmul.f32.gmra.mxu0 %v5294
    %v5296 = vpop.f32.mrf.mxu0
    %v5297 = vadd.f32 0.0, %v5296
    %v5298 = vand.u32 %v1419, 4294901760
    %v5299 = vsub.f32 %v1419, %v5298
    %v5300 = vand.u32 %v5299, 4294901760
    %v5301 = vsub.f32 %v5299, %v5300
    %v5302 = vand.u32 %v5301, 4294901760
    %5303 = vmatmul.f32.gmra.mxu0 %v5302
    %v5304 = vpop.f32.mrf.mxu0
    %v5305 = vadd.f32 0.0, %v5304
    %v5306 = vand.u32 %v1422, 4294901760
    %v5307 = vsub.f32 %v1422, %v5306
    %v5308 = vand.u32 %v5307, 4294901760
    %v5309 = vsub.f32 %v5307, %v5308
    %v5310 = vand.u32 %v5309, 4294901760
    %5311 = vmatmul.f32.gmra.mxu0 %v5310
    %v5312 = vpop.f32.mrf.mxu0
    %v5313 = vadd.f32 0.0, %v5312
    %5314 = vdwg.mxu0
    %5315 = vmatpush.msra.mxu0 0.0
    %5316 = vmatpush.msra.mxu0 0.0
    %5317 = vmatpush.msra.mxu0 0.0
    %5318 = vmatpush.msra.mxu0 0.0
    %5319 = vmatpush.msra.mxu0 0.0
    %5320 = vmatpush.msra.mxu0 0.0
    %5321 = vmatpush.msra.mxu0 0.0
    %5322 = vmatpush.msra.mxu0 0.0
    %5323 = vmatpush.msra.mxu0 0.0
    %5324 = vmatpush.msra.mxu0 0.0
    %5325 = vmatpush.msra.mxu0 0.0
    %5326 = vmatpush.msra.mxu0 0.0
    %5327 = vmatpush.msra.mxu0 0.0
    %5328 = vmatpush.msra.mxu0 0.0
    %v5329 = vand.u32 %v1372, 4294901760
    %v5330 = vsub.f32 %v1372, %v5329
    %v5331 = vand.u32 %v5330, 4294901760
    %v5332 = vsub.f32 %v5330, %v5331
    %v5333 = vand.u32 %v5332, 4294901760
    %5334 = vmatpush.msra.mxu0 %v5333
    %v5335 = vand.u32 %v1362, 4294901760
    %v5336 = vsub.f32 %v1362, %v5335
    %v5337 = vand.u32 %v5336, 4294901760
    %v5338 = vsub.f32 %v5336, %v5337
    %v5339 = vand.u32 %v5338, 4294901760
    %5340 = vmatpush.msra.mxu0 %v5339
    %v5341 = vand.u32 %v1377, 4294901760
    %5342 = vmatmul.f32.gmra.mxu0 %v5341
    %v5343 = vpop.f32.mrf.mxu0
    %v5344 = vadd.f32 %v5193, %v5343
    %v5345 = vand.u32 %v1380, 4294901760
    %5346 = vmatmul.f32.gmra.mxu0 %v5345
    %v5347 = vpop.f32.mrf.mxu0
    %v5348 = vadd.f32 %v5201, %v5347
    %v5349 = vand.u32 %v1383, 4294901760
    %5350 = vmatmul.f32.gmra.mxu0 %v5349
    %v5351 = vpop.f32.mrf.mxu0
    %v5352 = vadd.f32 %v5209, %v5351
    %v5353 = vand.u32 %v1386, 4294901760
    %5354 = vmatmul.f32.gmra.mxu0 %v5353
    %v5355 = vpop.f32.mrf.mxu0
    %v5356 = vadd.f32 %v5217, %v5355
    %v5357 = vand.u32 %v1389, 4294901760
    %5358 = vmatmul.f32.gmra.mxu0 %v5357
    %v5359 = vpop.f32.mrf.mxu0
    %v5360 = vadd.f32 %v5225, %v5359
    %v5361 = vand.u32 %v1392, 4294901760
    %5362 = vmatmul.f32.gmra.mxu0 %v5361
    %v5363 = vpop.f32.mrf.mxu0
    %v5364 = vadd.f32 %v5233, %v5363
    %v5365 = vand.u32 %v1395, 4294901760
    %5366 = vmatmul.f32.gmra.mxu0 %v5365
    %v5367 = vpop.f32.mrf.mxu0
    %v5368 = vadd.f32 %v5241, %v5367
    %v5369 = vand.u32 %v1398, 4294901760
    %5370 = vmatmul.f32.gmra.mxu0 %v5369
    %v5371 = vpop.f32.mrf.mxu0
    %v5372 = vadd.f32 %v5249, %v5371
    %v5373 = vand.u32 %v1401, 4294901760
    %5374 = vmatmul.f32.gmra.mxu0 %v5373
    %v5375 = vpop.f32.mrf.mxu0
    %v5376 = vadd.f32 %v5257, %v5375
    %v5377 = vand.u32 %v1404, 4294901760
    %5378 = vmatmul.f32.gmra.mxu0 %v5377
    %v5379 = vpop.f32.mrf.mxu0
    %v5380 = vadd.f32 %v5265, %v5379
    %v5381 = vand.u32 %v1407, 4294901760
    %5382 = vmatmul.f32.gmra.mxu0 %v5381
    %v5383 = vpop.f32.mrf.mxu0
    %v5384 = vadd.f32 %v5273, %v5383
    %v5385 = vand.u32 %v1410, 4294901760
    %5386 = vmatmul.f32.gmra.mxu0 %v5385
    %v5387 = vpop.f32.mrf.mxu0
    %v5388 = vadd.f32 %v5281, %v5387
    %v5389 = vand.u32 %v1413, 4294901760
    %5390 = vmatmul.f32.gmra.mxu0 %v5389
    %v5391 = vpop.f32.mrf.mxu0
    %v5392 = vadd.f32 %v5289, %v5391
    %v5393 = vand.u32 %v1416, 4294901760
    %5394 = vmatmul.f32.gmra.mxu0 %v5393
    %v5395 = vpop.f32.mrf.mxu0
    %v5396 = vadd.f32 %v5297, %v5395
    %v5397 = vand.u32 %v1419, 4294901760
    %5398 = vmatmul.f32.gmra.mxu0 %v5397
    %v5399 = vpop.f32.mrf.mxu0
    %v5400 = vadd.f32 %v5305, %v5399
    %v5401 = vand.u32 %v1422, 4294901760
    %5402 = vmatmul.f32.gmra.mxu0 %v5401
    %v5403 = vpop.f32.mrf.mxu0
    %v5404 = vadd.f32 %v5313, %v5403
    %5405 = vdwg.mxu0
    %5406 = vmatpush.msra.mxu0 0.0
    %5407 = vmatpush.msra.mxu0 0.0
    %5408 = vmatpush.msra.mxu0 0.0
    %5409 = vmatpush.msra.mxu0 0.0
    %5410 = vmatpush.msra.mxu0 0.0
    %5411 = vmatpush.msra.mxu0 0.0
    %5412 = vmatpush.msra.mxu0 0.0
    %5413 = vmatpush.msra.mxu0 0.0
    %5414 = vmatpush.msra.mxu0 0.0
    %5415 = vmatpush.msra.mxu0 0.0
    %5416 = vmatpush.msra.mxu0 0.0
    %5417 = vmatpush.msra.mxu0 0.0
    %5418 = vmatpush.msra.mxu0 0.0
    %5419 = vmatpush.msra.mxu0 0.0
    %v5420 = vand.u32 %v1372, 4294901760
    %v5421 = vsub.f32 %v1372, %v5420
    %5422 = vmatpush.msra.mxu0 %v5421
    %v5423 = vand.u32 %v1362, 4294901760
    %v5424 = vsub.f32 %v1362, %v5423
    %5425 = vmatpush.msra.mxu0 %v5424
    %v5426 = vand.u32 %v1377, 4294901760
    %v5427 = vsub.f32 %v1377, %v5426
    %5428 = vmatmul.f32.gmra.mxu0 %v5427
    %v5429 = vpop.f32.mrf.mxu0
    %v5430 = vadd.f32 %v5344, %v5429
    %v5431 = vand.u32 %v1380, 4294901760
    %v5432 = vsub.f32 %v1380, %v5431
    %5433 = vmatmul.f32.gmra.mxu0 %v5432
    %v5434 = vpop.f32.mrf.mxu0
    %v5435 = vadd.f32 %v5348, %v5434
    %v5436 = vand.u32 %v1383, 4294901760
    %v5437 = vsub.f32 %v1383, %v5436
    %5438 = vmatmul.f32.gmra.mxu0 %v5437
    %v5439 = vpop.f32.mrf.mxu0
    %v5440 = vadd.f32 %v5352, %v5439
    %v5441 = vand.u32 %v1386, 4294901760
    %v5442 = vsub.f32 %v1386, %v5441
    %5443 = vmatmul.f32.gmra.mxu0 %v5442
    %v5444 = vpop.f32.mrf.mxu0
    %v5445 = vadd.f32 %v5356, %v5444
    %v5446 = vand.u32 %v1389, 4294901760
    %v5447 = vsub.f32 %v1389, %v5446
    %5448 = vmatmul.f32.gmra.mxu0 %v5447
    %v5449 = vpop.f32.mrf.mxu0
    %v5450 = vadd.f32 %v5360, %v5449
    %v5451 = vand.u32 %v1392, 4294901760
    %v5452 = vsub.f32 %v1392, %v5451
    %5453 = vmatmul.f32.gmra.mxu0 %v5452
    %v5454 = vpop.f32.mrf.mxu0
    %v5455 = vadd.f32 %v5364, %v5454
    %v5456 = vand.u32 %v1395, 4294901760
    %v5457 = vsub.f32 %v1395, %v5456
    %5458 = vmatmul.f32.gmra.mxu0 %v5457
    %v5459 = vpop.f32.mrf.mxu0
    %v5460 = vadd.f32 %v5368, %v5459
    %v5461 = vand.u32 %v1398, 4294901760
    %v5462 = vsub.f32 %v1398, %v5461
    %5463 = vmatmul.f32.gmra.mxu0 %v5462
    %v5464 = vpop.f32.mrf.mxu0
    %v5465 = vadd.f32 %v5372, %v5464
    %v5466 = vand.u32 %v1401, 4294901760
    %v5467 = vsub.f32 %v1401, %v5466
    %5468 = vmatmul.f32.gmra.mxu0 %v5467
    %v5469 = vpop.f32.mrf.mxu0
    %v5470 = vadd.f32 %v5376, %v5469
    %v5471 = vand.u32 %v1404, 4294901760
    %v5472 = vsub.f32 %v1404, %v5471
    %5473 = vmatmul.f32.gmra.mxu0 %v5472
    %v5474 = vpop.f32.mrf.mxu0
    %v5475 = vadd.f32 %v5380, %v5474
    %v5476 = vand.u32 %v1407, 4294901760
    %v5477 = vsub.f32 %v1407, %v5476
    %5478 = vmatmul.f32.gmra.mxu0 %v5477
    %v5479 = vpop.f32.mrf.mxu0
    %v5480 = vadd.f32 %v5384, %v5479
    %v5481 = vand.u32 %v1410, 4294901760
    %v5482 = vsub.f32 %v1410, %v5481
    %5483 = vmatmul.f32.gmra.mxu0 %v5482
    %v5484 = vpop.f32.mrf.mxu0
    %v5485 = vadd.f32 %v5388, %v5484
    %v5486 = vand.u32 %v1413, 4294901760
    %v5487 = vsub.f32 %v1413, %v5486
    %5488 = vmatmul.f32.gmra.mxu0 %v5487
    %v5489 = vpop.f32.mrf.mxu0
    %v5490 = vadd.f32 %v5392, %v5489
    %v5491 = vand.u32 %v1416, 4294901760
    %v5492 = vsub.f32 %v1416, %v5491
    %5493 = vmatmul.f32.gmra.mxu0 %v5492
    %v5494 = vpop.f32.mrf.mxu0
    %v5495 = vadd.f32 %v5396, %v5494
    %v5496 = vand.u32 %v1419, 4294901760
    %v5497 = vsub.f32 %v1419, %v5496
    %5498 = vmatmul.f32.gmra.mxu0 %v5497
    %v5499 = vpop.f32.mrf.mxu0
    %v5500 = vadd.f32 %v5400, %v5499
    %v5501 = vand.u32 %v1422, 4294901760
    %v5502 = vsub.f32 %v1422, %v5501
    %5503 = vmatmul.f32.gmra.mxu0 %v5502
    %v5504 = vpop.f32.mrf.mxu0
    %v5505 = vadd.f32 %v5404, %v5504
    %5506 = vdwg.mxu0
    %5507 = vmatpush.msra.mxu0 0.0
    %5508 = vmatpush.msra.mxu0 0.0
    %5509 = vmatpush.msra.mxu0 0.0
    %5510 = vmatpush.msra.mxu0 0.0
    %5511 = vmatpush.msra.mxu0 0.0
    %5512 = vmatpush.msra.mxu0 0.0
    %5513 = vmatpush.msra.mxu0 0.0
    %5514 = vmatpush.msra.mxu0 0.0
    %5515 = vmatpush.msra.mxu0 0.0
    %5516 = vmatpush.msra.mxu0 0.0
    %5517 = vmatpush.msra.mxu0 0.0
    %5518 = vmatpush.msra.mxu0 0.0
    %5519 = vmatpush.msra.mxu0 0.0
    %5520 = vmatpush.msra.mxu0 0.0
    %v5521 = vand.u32 %v1372, 4294901760
    %5522 = vmatpush.msra.mxu0 %v5521
    %v5523 = vand.u32 %v1362, 4294901760
    %5524 = vmatpush.msra.mxu0 %v5523
    %v5525 = vand.u32 %v1377, 4294901760
    %v5526 = vsub.f32 %v1377, %v5525
    %v5527 = vand.u32 %v5526, 4294901760
    %5528 = vmatmul.f32.gmra.mxu0 %v5527
    %v5529 = vpop.f32.mrf.mxu0
    %v5530 = vadd.f32 %v5430, %v5529
    %v5531 = vand.u32 %v1380, 4294901760
    %v5532 = vsub.f32 %v1380, %v5531
    %v5533 = vand.u32 %v5532, 4294901760
    %5534 = vmatmul.f32.gmra.mxu0 %v5533
    %v5535 = vpop.f32.mrf.mxu0
    %v5536 = vadd.f32 %v5435, %v5535
    %v5537 = vand.u32 %v1383, 4294901760
    %v5538 = vsub.f32 %v1383, %v5537
    %v5539 = vand.u32 %v5538, 4294901760
    %5540 = vmatmul.f32.gmra.mxu0 %v5539
    %v5541 = vpop.f32.mrf.mxu0
    %v5542 = vadd.f32 %v5440, %v5541
    %v5543 = vand.u32 %v1386, 4294901760
    %v5544 = vsub.f32 %v1386, %v5543
    %v5545 = vand.u32 %v5544, 4294901760
    %5546 = vmatmul.f32.gmra.mxu0 %v5545
    %v5547 = vpop.f32.mrf.mxu0
    %v5548 = vadd.f32 %v5445, %v5547
    %v5549 = vand.u32 %v1389, 4294901760
    %v5550 = vsub.f32 %v1389, %v5549
    %v5551 = vand.u32 %v5550, 4294901760
    %5552 = vmatmul.f32.gmra.mxu0 %v5551
    %v5553 = vpop.f32.mrf.mxu0
    %v5554 = vadd.f32 %v5450, %v5553
    %v5555 = vand.u32 %v1392, 4294901760
    %v5556 = vsub.f32 %v1392, %v5555
    %v5557 = vand.u32 %v5556, 4294901760
    %5558 = vmatmul.f32.gmra.mxu0 %v5557
    %v5559 = vpop.f32.mrf.mxu0
    %v5560 = vadd.f32 %v5455, %v5559
    %v5561 = vand.u32 %v1395, 4294901760
    %v5562 = vsub.f32 %v1395, %v5561
    %v5563 = vand.u32 %v5562, 4294901760
    %5564 = vmatmul.f32.gmra.mxu0 %v5563
    %v5565 = vpop.f32.mrf.mxu0
    %v5566 = vadd.f32 %v5460, %v5565
    %v5567 = vand.u32 %v1398, 4294901760
    %v5568 = vsub.f32 %v1398, %v5567
    %v5569 = vand.u32 %v5568, 4294901760
    %5570 = vmatmul.f32.gmra.mxu0 %v5569
    %v5571 = vpop.f32.mrf.mxu0
    %v5572 = vadd.f32 %v5465, %v5571
    %v5573 = vand.u32 %v1401, 4294901760
    %v5574 = vsub.f32 %v1401, %v5573
    %v5575 = vand.u32 %v5574, 4294901760
    %5576 = vmatmul.f32.gmra.mxu0 %v5575
    %v5577 = vpop.f32.mrf.mxu0
    %v5578 = vadd.f32 %v5470, %v5577
    %v5579 = vand.u32 %v1404, 4294901760
    %v5580 = vsub.f32 %v1404, %v5579
    %v5581 = vand.u32 %v5580, 4294901760
    %5582 = vmatmul.f32.gmra.mxu0 %v5581
    %v5583 = vpop.f32.mrf.mxu0
    %v5584 = vadd.f32 %v5475, %v5583
    %v5585 = vand.u32 %v1407, 4294901760
    %v5586 = vsub.f32 %v1407, %v5585
    %v5587 = vand.u32 %v5586, 4294901760
    %5588 = vmatmul.f32.gmra.mxu0 %v5587
    %v5589 = vpop.f32.mrf.mxu0
    %v5590 = vadd.f32 %v5480, %v5589
    %v5591 = vand.u32 %v1410, 4294901760
    %v5592 = vsub.f32 %v1410, %v5591
    %v5593 = vand.u32 %v5592, 4294901760
    %5594 = vmatmul.f32.gmra.mxu0 %v5593
    %v5595 = vpop.f32.mrf.mxu0
    %v5596 = vadd.f32 %v5485, %v5595
    %v5597 = vand.u32 %v1413, 4294901760
    %v5598 = vsub.f32 %v1413, %v5597
    %v5599 = vand.u32 %v5598, 4294901760
    %5600 = vmatmul.f32.gmra.mxu0 %v5599
    %v5601 = vpop.f32.mrf.mxu0
    %v5602 = vadd.f32 %v5490, %v5601
    %v5603 = vand.u32 %v1416, 4294901760
    %v5604 = vsub.f32 %v1416, %v5603
    %v5605 = vand.u32 %v5604, 4294901760
    %5606 = vmatmul.f32.gmra.mxu0 %v5605
    %v5607 = vpop.f32.mrf.mxu0
    %v5608 = vadd.f32 %v5495, %v5607
    %v5609 = vand.u32 %v1419, 4294901760
    %v5610 = vsub.f32 %v1419, %v5609
    %v5611 = vand.u32 %v5610, 4294901760
    %5612 = vmatmul.f32.gmra.mxu0 %v5611
    %v5613 = vpop.f32.mrf.mxu0
    %v5614 = vadd.f32 %v5500, %v5613
    %v5615 = vand.u32 %v1422, 4294901760
    %v5616 = vsub.f32 %v1422, %v5615
    %v5617 = vand.u32 %v5616, 4294901760
    %5618 = vmatmul.f32.gmra.mxu0 %v5617
    %v5619 = vpop.f32.mrf.mxu0
    %v5620 = vadd.f32 %v5505, %v5619
    %5621 = vdwg.mxu0
    %5622 = vmatpush.msra.mxu0 0.0
    %5623 = vmatpush.msra.mxu0 0.0
    %5624 = vmatpush.msra.mxu0 0.0
    %5625 = vmatpush.msra.mxu0 0.0
    %5626 = vmatpush.msra.mxu0 0.0
    %5627 = vmatpush.msra.mxu0 0.0
    %5628 = vmatpush.msra.mxu0 0.0
    %5629 = vmatpush.msra.mxu0 0.0
    %5630 = vmatpush.msra.mxu0 0.0
    %5631 = vmatpush.msra.mxu0 0.0
    %5632 = vmatpush.msra.mxu0 0.0
    %5633 = vmatpush.msra.mxu0 0.0
    %5634 = vmatpush.msra.mxu0 0.0
    %5635 = vmatpush.msra.mxu0 0.0
    %v5636 = vand.u32 %v1372, 4294901760
    %v5637 = vsub.f32 %v1372, %v5636
    %v5638 = vand.u32 %v5637, 4294901760
    %5639 = vmatpush.msra.mxu0 %v5638
    %v5640 = vand.u32 %v1362, 4294901760
    %v5641 = vsub.f32 %v1362, %v5640
    %v5642 = vand.u32 %v5641, 4294901760
    %5643 = vmatpush.msra.mxu0 %v5642
    %v5644 = vand.u32 %v1377, 4294901760
    %5645 = vmatmul.f32.gmra.mxu0 %v5644
    %v5646 = vpop.f32.mrf.mxu0
    %v5647 = vadd.f32 %v5530, %v5646
    %v5648 = vand.u32 %v1380, 4294901760
    %5649 = vmatmul.f32.gmra.mxu0 %v5648
    %v5650 = vpop.f32.mrf.mxu0
    %v5651 = vadd.f32 %v5536, %v5650
    %v5652 = vand.u32 %v1383, 4294901760
    %5653 = vmatmul.f32.gmra.mxu0 %v5652
    %v5654 = vpop.f32.mrf.mxu0
    %v5655 = vadd.f32 %v5542, %v5654
    %v5656 = vand.u32 %v1386, 4294901760
    %5657 = vmatmul.f32.gmra.mxu0 %v5656
    %v5658 = vpop.f32.mrf.mxu0
    %v5659 = vadd.f32 %v5548, %v5658
    %v5660 = vand.u32 %v1389, 4294901760
    %5661 = vmatmul.f32.gmra.mxu0 %v5660
    %v5662 = vpop.f32.mrf.mxu0
    %v5663 = vadd.f32 %v5554, %v5662
    %v5664 = vand.u32 %v1392, 4294901760
    %5665 = vmatmul.f32.gmra.mxu0 %v5664
    %v5666 = vpop.f32.mrf.mxu0
    %v5667 = vadd.f32 %v5560, %v5666
    %v5668 = vand.u32 %v1395, 4294901760
    %5669 = vmatmul.f32.gmra.mxu0 %v5668
    %v5670 = vpop.f32.mrf.mxu0
    %v5671 = vadd.f32 %v5566, %v5670
    %v5672 = vand.u32 %v1398, 4294901760
    %5673 = vmatmul.f32.gmra.mxu0 %v5672
    %v5674 = vpop.f32.mrf.mxu0
    %v5675 = vadd.f32 %v5572, %v5674
    %v5676 = vand.u32 %v1401, 4294901760
    %5677 = vmatmul.f32.gmra.mxu0 %v5676
    %v5678 = vpop.f32.mrf.mxu0
    %v5679 = vadd.f32 %v5578, %v5678
    %v5680 = vand.u32 %v1404, 4294901760
    %5681 = vmatmul.f32.gmra.mxu0 %v5680
    %v5682 = vpop.f32.mrf.mxu0
    %v5683 = vadd.f32 %v5584, %v5682
    %v5684 = vand.u32 %v1407, 4294901760
    %5685 = vmatmul.f32.gmra.mxu0 %v5684
    %v5686 = vpop.f32.mrf.mxu0
    %v5687 = vadd.f32 %v5590, %v5686
    %v5688 = vand.u32 %v1410, 4294901760
    %5689 = vmatmul.f32.gmra.mxu0 %v5688
    %v5690 = vpop.f32.mrf.mxu0
    %v5691 = vadd.f32 %v5596, %v5690
    %v5692 = vand.u32 %v1413, 4294901760
    %5693 = vmatmul.f32.gmra.mxu0 %v5692
    %v5694 = vpop.f32.mrf.mxu0
    %v5695 = vadd.f32 %v5602, %v5694
    %v5696 = vand.u32 %v1416, 4294901760
    %5697 = vmatmul.f32.gmra.mxu0 %v5696
    %v5698 = vpop.f32.mrf.mxu0
    %v5699 = vadd.f32 %v5608, %v5698
    %v5700 = vand.u32 %v1419, 4294901760
    %5701 = vmatmul.f32.gmra.mxu0 %v5700
    %v5702 = vpop.f32.mrf.mxu0
    %v5703 = vadd.f32 %v5614, %v5702
    %v5704 = vand.u32 %v1422, 4294901760
    %5705 = vmatmul.f32.gmra.mxu0 %v5704
    %v5706 = vpop.f32.mrf.mxu0
    %v5707 = vadd.f32 %v5620, %v5706
    %5708 = vdwg.mxu0
    %5709 = vmatpush.msra.mxu0 0.0
    %5710 = vmatpush.msra.mxu0 0.0
    %5711 = vmatpush.msra.mxu0 0.0
    %5712 = vmatpush.msra.mxu0 0.0
    %5713 = vmatpush.msra.mxu0 0.0
    %5714 = vmatpush.msra.mxu0 0.0
    %5715 = vmatpush.msra.mxu0 0.0
    %5716 = vmatpush.msra.mxu0 0.0
    %5717 = vmatpush.msra.mxu0 0.0
    %5718 = vmatpush.msra.mxu0 0.0
    %5719 = vmatpush.msra.mxu0 0.0
    %5720 = vmatpush.msra.mxu0 0.0
    %5721 = vmatpush.msra.mxu0 0.0
    %5722 = vmatpush.msra.mxu0 0.0
    %v5723 = vand.u32 %v1372, 4294901760
    %5724 = vmatpush.msra.mxu0 %v5723
    %v5725 = vand.u32 %v1362, 4294901760
    %5726 = vmatpush.msra.mxu0 %v5725
    %v5727 = vand.u32 %v1377, 4294901760
    %5728 = vmatmul.f32.gmra.mxu0 %v5727
    %v5729 = vpop.f32.mrf.mxu0
    %v5730 = vadd.f32 %v5647, %v5729
    %v5731 = vand.u32 %v1380, 4294901760
    %5732 = vmatmul.f32.gmra.mxu0 %v5731
    %v5733 = vpop.f32.mrf.mxu0
    %v5734 = vadd.f32 %v5651, %v5733
    %v5735 = vand.u32 %v1383, 4294901760
    %5736 = vmatmul.f32.gmra.mxu0 %v5735
    %v5737 = vpop.f32.mrf.mxu0
    %v5738 = vadd.f32 %v5655, %v5737
    %v5739 = vand.u32 %v1386, 4294901760
    %5740 = vmatmul.f32.gmra.mxu0 %v5739
    %v5741 = vpop.f32.mrf.mxu0
    %v5742 = vadd.f32 %v5659, %v5741
    %v5743 = vand.u32 %v1389, 4294901760
    %5744 = vmatmul.f32.gmra.mxu0 %v5743
    %v5745 = vpop.f32.mrf.mxu0
    %v5746 = vadd.f32 %v5663, %v5745
    %v5747 = vand.u32 %v1392, 4294901760
    %5748 = vmatmul.f32.gmra.mxu0 %v5747
    %v5749 = vpop.f32.mrf.mxu0
    %v5750 = vadd.f32 %v5667, %v5749
    %v5751 = vand.u32 %v1395, 4294901760
    %5752 = vmatmul.f32.gmra.mxu0 %v5751
    %v5753 = vpop.f32.mrf.mxu0
    %v5754 = vadd.f32 %v5671, %v5753
    %v5755 = vand.u32 %v1398, 4294901760
    %5756 = vmatmul.f32.gmra.mxu0 %v5755
    %v5757 = vpop.f32.mrf.mxu0
    %v5758 = vadd.f32 %v5675, %v5757
    %v5759 = vand.u32 %v1401, 4294901760
    %5760 = vmatmul.f32.gmra.mxu0 %v5759
    %v5761 = vpop.f32.mrf.mxu0
    %v5762 = vadd.f32 %v5679, %v5761
    %v5763 = vand.u32 %v1404, 4294901760
    %5764 = vmatmul.f32.gmra.mxu0 %v5763
    %v5765 = vpop.f32.mrf.mxu0
    %v5766 = vadd.f32 %v5683, %v5765
    %v5767 = vand.u32 %v1407, 4294901760
    %5768 = vmatmul.f32.gmra.mxu0 %v5767
    %v5769 = vpop.f32.mrf.mxu0
    %v5770 = vadd.f32 %v5687, %v5769
    %v5771 = vand.u32 %v1410, 4294901760
    %5772 = vmatmul.f32.gmra.mxu0 %v5771
    %v5773 = vpop.f32.mrf.mxu0
    %v5774 = vadd.f32 %v5691, %v5773
    %v5775 = vand.u32 %v1413, 4294901760
    %5776 = vmatmul.f32.gmra.mxu0 %v5775
    %v5777 = vpop.f32.mrf.mxu0
    %v5778 = vadd.f32 %v5695, %v5777
    %v5779 = vand.u32 %v1416, 4294901760
    %5780 = vmatmul.f32.gmra.mxu0 %v5779
    %v5781 = vpop.f32.mrf.mxu0
    %v5782 = vadd.f32 %v5699, %v5781
    %v5783 = vand.u32 %v1419, 4294901760
    %5784 = vmatmul.f32.gmra.mxu0 %v5783
    %v5785 = vpop.f32.mrf.mxu0
    %v5786 = vadd.f32 %v5703, %v5785
    %v5787 = vand.u32 %v1422, 4294901760
    %5788 = vmatmul.f32.gmra.mxu0 %v5787
    %v5789 = vpop.f32.mrf.mxu0
    %v5790 = vadd.f32 %v5707, %v5789
    %5791 = vdwg.mxu0
    %5792 = vmatpush.msra.mxu0 0.0
    %5793 = vmatpush.msra.mxu0 0.0
    %5794 = vmatpush.msra.mxu0 0.0
    %5795 = vmatpush.msra.mxu0 0.0
    %5796 = vmatpush.msra.mxu0 0.0
    %5797 = vmatpush.msra.mxu0 0.0
    %5798 = vmatpush.msra.mxu0 0.0
    %5799 = vmatpush.msra.mxu0 0.0
    %5800 = vmatpush.msra.mxu0 0.0
    %5801 = vmatpush.msra.mxu0 0.0
    %5802 = vmatpush.msra.mxu0 0.0
    %5803 = vmatpush.msra.mxu0 0.0
    %5804 = vmatpush.msra.mxu0 0.0
    %5805 = vmatpush.msra.mxu0 0.0
    %v5806 = vand.u32 %v1373, 4294901760
    %5807 = vmatpush.msra.mxu0 %v5806
    %v5808 = vand.u32 %v1363, 4294901760
    %5809 = vmatpush.msra.mxu0 %v5808
    %v5810 = vand.u32 %v1377, 4294901760
    %v5811 = vsub.f32 %v1377, %v5810
    %v5812 = vand.u32 %v5811, 4294901760
    %v5813 = vsub.f32 %v5811, %v5812
    %v5814 = vand.u32 %v5813, 4294901760
    %5815 = vmatmul.f32.gmra.mxu0 %v5814
    %v5816 = vpop.f32.mrf.mxu0
    %v5817 = vadd.f32 0.0, %v5816
    %v5818 = vand.u32 %v1380, 4294901760
    %v5819 = vsub.f32 %v1380, %v5818
    %v5820 = vand.u32 %v5819, 4294901760
    %v5821 = vsub.f32 %v5819, %v5820
    %v5822 = vand.u32 %v5821, 4294901760
    %5823 = vmatmul.f32.gmra.mxu0 %v5822
    %v5824 = vpop.f32.mrf.mxu0
    %v5825 = vadd.f32 0.0, %v5824
    %v5826 = vand.u32 %v1383, 4294901760
    %v5827 = vsub.f32 %v1383, %v5826
    %v5828 = vand.u32 %v5827, 4294901760
    %v5829 = vsub.f32 %v5827, %v5828
    %v5830 = vand.u32 %v5829, 4294901760
    %5831 = vmatmul.f32.gmra.mxu0 %v5830
    %v5832 = vpop.f32.mrf.mxu0
    %v5833 = vadd.f32 0.0, %v5832
    %v5834 = vand.u32 %v1386, 4294901760
    %v5835 = vsub.f32 %v1386, %v5834
    %v5836 = vand.u32 %v5835, 4294901760
    %v5837 = vsub.f32 %v5835, %v5836
    %v5838 = vand.u32 %v5837, 4294901760
    %5839 = vmatmul.f32.gmra.mxu0 %v5838
    %v5840 = vpop.f32.mrf.mxu0
    %v5841 = vadd.f32 0.0, %v5840
    %v5842 = vand.u32 %v1389, 4294901760
    %v5843 = vsub.f32 %v1389, %v5842
    %v5844 = vand.u32 %v5843, 4294901760
    %v5845 = vsub.f32 %v5843, %v5844
    %v5846 = vand.u32 %v5845, 4294901760
    %5847 = vmatmul.f32.gmra.mxu0 %v5846
    %v5848 = vpop.f32.mrf.mxu0
    %v5849 = vadd.f32 0.0, %v5848
    %v5850 = vand.u32 %v1392, 4294901760
    %v5851 = vsub.f32 %v1392, %v5850
    %v5852 = vand.u32 %v5851, 4294901760
    %v5853 = vsub.f32 %v5851, %v5852
    %v5854 = vand.u32 %v5853, 4294901760
    %5855 = vmatmul.f32.gmra.mxu0 %v5854
    %v5856 = vpop.f32.mrf.mxu0
    %v5857 = vadd.f32 0.0, %v5856
    %v5858 = vand.u32 %v1395, 4294901760
    %v5859 = vsub.f32 %v1395, %v5858
    %v5860 = vand.u32 %v5859, 4294901760
    %v5861 = vsub.f32 %v5859, %v5860
    %v5862 = vand.u32 %v5861, 4294901760
    %5863 = vmatmul.f32.gmra.mxu0 %v5862
    %v5864 = vpop.f32.mrf.mxu0
    %v5865 = vadd.f32 0.0, %v5864
    %v5866 = vand.u32 %v1398, 4294901760
    %v5867 = vsub.f32 %v1398, %v5866
    %v5868 = vand.u32 %v5867, 4294901760
    %v5869 = vsub.f32 %v5867, %v5868
    %v5870 = vand.u32 %v5869, 4294901760
    %5871 = vmatmul.f32.gmra.mxu0 %v5870
    %v5872 = vpop.f32.mrf.mxu0
    %v5873 = vadd.f32 0.0, %v5872
    %v5874 = vand.u32 %v1401, 4294901760
    %v5875 = vsub.f32 %v1401, %v5874
    %v5876 = vand.u32 %v5875, 4294901760
    %v5877 = vsub.f32 %v5875, %v5876
    %v5878 = vand.u32 %v5877, 4294901760
    %5879 = vmatmul.f32.gmra.mxu0 %v5878
    %v5880 = vpop.f32.mrf.mxu0
    %v5881 = vadd.f32 0.0, %v5880
    %v5882 = vand.u32 %v1404, 4294901760
    %v5883 = vsub.f32 %v1404, %v5882
    %v5884 = vand.u32 %v5883, 4294901760
    %v5885 = vsub.f32 %v5883, %v5884
    %v5886 = vand.u32 %v5885, 4294901760
    %5887 = vmatmul.f32.gmra.mxu0 %v5886
    %v5888 = vpop.f32.mrf.mxu0
    %v5889 = vadd.f32 0.0, %v5888
    %v5890 = vand.u32 %v1407, 4294901760
    %v5891 = vsub.f32 %v1407, %v5890
    %v5892 = vand.u32 %v5891, 4294901760
    %v5893 = vsub.f32 %v5891, %v5892
    %v5894 = vand.u32 %v5893, 4294901760
    %5895 = vmatmul.f32.gmra.mxu0 %v5894
    %v5896 = vpop.f32.mrf.mxu0
    %v5897 = vadd.f32 0.0, %v5896
    %v5898 = vand.u32 %v1410, 4294901760
    %v5899 = vsub.f32 %v1410, %v5898
    %v5900 = vand.u32 %v5899, 4294901760
    %v5901 = vsub.f32 %v5899, %v5900
    %v5902 = vand.u32 %v5901, 4294901760
    %5903 = vmatmul.f32.gmra.mxu0 %v5902
    %v5904 = vpop.f32.mrf.mxu0
    %v5905 = vadd.f32 0.0, %v5904
    %v5906 = vand.u32 %v1413, 4294901760
    %v5907 = vsub.f32 %v1413, %v5906
    %v5908 = vand.u32 %v5907, 4294901760
    %v5909 = vsub.f32 %v5907, %v5908
    %v5910 = vand.u32 %v5909, 4294901760
    %5911 = vmatmul.f32.gmra.mxu0 %v5910
    %v5912 = vpop.f32.mrf.mxu0
    %v5913 = vadd.f32 0.0, %v5912
    %v5914 = vand.u32 %v1416, 4294901760
    %v5915 = vsub.f32 %v1416, %v5914
    %v5916 = vand.u32 %v5915, 4294901760
    %v5917 = vsub.f32 %v5915, %v5916
    %v5918 = vand.u32 %v5917, 4294901760
    %5919 = vmatmul.f32.gmra.mxu0 %v5918
    %v5920 = vpop.f32.mrf.mxu0
    %v5921 = vadd.f32 0.0, %v5920
    %v5922 = vand.u32 %v1419, 4294901760
    %v5923 = vsub.f32 %v1419, %v5922
    %v5924 = vand.u32 %v5923, 4294901760
    %v5925 = vsub.f32 %v5923, %v5924
    %v5926 = vand.u32 %v5925, 4294901760
    %5927 = vmatmul.f32.gmra.mxu0 %v5926
    %v5928 = vpop.f32.mrf.mxu0
    %v5929 = vadd.f32 0.0, %v5928
    %v5930 = vand.u32 %v1422, 4294901760
    %v5931 = vsub.f32 %v1422, %v5930
    %v5932 = vand.u32 %v5931, 4294901760
    %v5933 = vsub.f32 %v5931, %v5932
    %v5934 = vand.u32 %v5933, 4294901760
    %5935 = vmatmul.f32.gmra.mxu0 %v5934
    %v5936 = vpop.f32.mrf.mxu0
    %v5937 = vadd.f32 0.0, %v5936
    %5938 = vdwg.mxu0
    %5939 = vmatpush.msra.mxu0 0.0
    %5940 = vmatpush.msra.mxu0 0.0
    %5941 = vmatpush.msra.mxu0 0.0
    %5942 = vmatpush.msra.mxu0 0.0
    %5943 = vmatpush.msra.mxu0 0.0
    %5944 = vmatpush.msra.mxu0 0.0
    %5945 = vmatpush.msra.mxu0 0.0
    %5946 = vmatpush.msra.mxu0 0.0
    %5947 = vmatpush.msra.mxu0 0.0
    %5948 = vmatpush.msra.mxu0 0.0
    %5949 = vmatpush.msra.mxu0 0.0
    %5950 = vmatpush.msra.mxu0 0.0
    %5951 = vmatpush.msra.mxu0 0.0
    %5952 = vmatpush.msra.mxu0 0.0
    %v5953 = vand.u32 %v1373, 4294901760
    %v5954 = vsub.f32 %v1373, %v5953
    %v5955 = vand.u32 %v5954, 4294901760
    %v5956 = vsub.f32 %v5954, %v5955
    %v5957 = vand.u32 %v5956, 4294901760
    %5958 = vmatpush.msra.mxu0 %v5957
    %v5959 = vand.u32 %v1363, 4294901760
    %v5960 = vsub.f32 %v1363, %v5959
    %v5961 = vand.u32 %v5960, 4294901760
    %v5962 = vsub.f32 %v5960, %v5961
    %v5963 = vand.u32 %v5962, 4294901760
    %5964 = vmatpush.msra.mxu0 %v5963
    %v5965 = vand.u32 %v1377, 4294901760
    %5966 = vmatmul.f32.gmra.mxu0 %v5965
    %v5967 = vpop.f32.mrf.mxu0
    %v5968 = vadd.f32 %v5817, %v5967
    %v5969 = vand.u32 %v1380, 4294901760
    %5970 = vmatmul.f32.gmra.mxu0 %v5969
    %v5971 = vpop.f32.mrf.mxu0
    %v5972 = vadd.f32 %v5825, %v5971
    %v5973 = vand.u32 %v1383, 4294901760
    %5974 = vmatmul.f32.gmra.mxu0 %v5973
    %v5975 = vpop.f32.mrf.mxu0
    %v5976 = vadd.f32 %v5833, %v5975
    %v5977 = vand.u32 %v1386, 4294901760
    %5978 = vmatmul.f32.gmra.mxu0 %v5977
    %v5979 = vpop.f32.mrf.mxu0
    %v5980 = vadd.f32 %v5841, %v5979
    %v5981 = vand.u32 %v1389, 4294901760
    %5982 = vmatmul.f32.gmra.mxu0 %v5981
    %v5983 = vpop.f32.mrf.mxu0
    %v5984 = vadd.f32 %v5849, %v5983
    %v5985 = vand.u32 %v1392, 4294901760
    %5986 = vmatmul.f32.gmra.mxu0 %v5985
    %v5987 = vpop.f32.mrf.mxu0
    %v5988 = vadd.f32 %v5857, %v5987
    %v5989 = vand.u32 %v1395, 4294901760
    %5990 = vmatmul.f32.gmra.mxu0 %v5989
    %v5991 = vpop.f32.mrf.mxu0
    %v5992 = vadd.f32 %v5865, %v5991
    %v5993 = vand.u32 %v1398, 4294901760
    %5994 = vmatmul.f32.gmra.mxu0 %v5993
    %v5995 = vpop.f32.mrf.mxu0
    %v5996 = vadd.f32 %v5873, %v5995
    %v5997 = vand.u32 %v1401, 4294901760
    %5998 = vmatmul.f32.gmra.mxu0 %v5997
    %v5999 = vpop.f32.mrf.mxu0
    %v6000 = vadd.f32 %v5881, %v5999
    %v6001 = vand.u32 %v1404, 4294901760
    %6002 = vmatmul.f32.gmra.mxu0 %v6001
    %v6003 = vpop.f32.mrf.mxu0
    %v6004 = vadd.f32 %v5889, %v6003
    %v6005 = vand.u32 %v1407, 4294901760
    %6006 = vmatmul.f32.gmra.mxu0 %v6005
    %v6007 = vpop.f32.mrf.mxu0
    %v6008 = vadd.f32 %v5897, %v6007
    %v6009 = vand.u32 %v1410, 4294901760
    %6010 = vmatmul.f32.gmra.mxu0 %v6009
    %v6011 = vpop.f32.mrf.mxu0
    %v6012 = vadd.f32 %v5905, %v6011
    %v6013 = vand.u32 %v1413, 4294901760
    %6014 = vmatmul.f32.gmra.mxu0 %v6013
    %v6015 = vpop.f32.mrf.mxu0
    %v6016 = vadd.f32 %v5913, %v6015
    %v6017 = vand.u32 %v1416, 4294901760
    %6018 = vmatmul.f32.gmra.mxu0 %v6017
    %v6019 = vpop.f32.mrf.mxu0
    %v6020 = vadd.f32 %v5921, %v6019
    %v6021 = vand.u32 %v1419, 4294901760
    %6022 = vmatmul.f32.gmra.mxu0 %v6021
    %v6023 = vpop.f32.mrf.mxu0
    %v6024 = vadd.f32 %v5929, %v6023
    %v6025 = vand.u32 %v1422, 4294901760
    %6026 = vmatmul.f32.gmra.mxu0 %v6025
    %v6027 = vpop.f32.mrf.mxu0
    %v6028 = vadd.f32 %v5937, %v6027
    %6029 = vdwg.mxu0
    %6030 = vmatpush.msra.mxu0 0.0
    %6031 = vmatpush.msra.mxu0 0.0
    %6032 = vmatpush.msra.mxu0 0.0
    %6033 = vmatpush.msra.mxu0 0.0
    %6034 = vmatpush.msra.mxu0 0.0
    %6035 = vmatpush.msra.mxu0 0.0
    %6036 = vmatpush.msra.mxu0 0.0
    %6037 = vmatpush.msra.mxu0 0.0
    %6038 = vmatpush.msra.mxu0 0.0
    %6039 = vmatpush.msra.mxu0 0.0
    %6040 = vmatpush.msra.mxu0 0.0
    %6041 = vmatpush.msra.mxu0 0.0
    %6042 = vmatpush.msra.mxu0 0.0
    %6043 = vmatpush.msra.mxu0 0.0
    %v6044 = vand.u32 %v1373, 4294901760
    %v6045 = vsub.f32 %v1373, %v6044
    %6046 = vmatpush.msra.mxu0 %v6045
    %v6047 = vand.u32 %v1363, 4294901760
    %v6048 = vsub.f32 %v1363, %v6047
    %6049 = vmatpush.msra.mxu0 %v6048
    %v6050 = vand.u32 %v1377, 4294901760
    %v6051 = vsub.f32 %v1377, %v6050
    %6052 = vmatmul.f32.gmra.mxu0 %v6051
    %v6053 = vpop.f32.mrf.mxu0
    %v6054 = vadd.f32 %v5968, %v6053
    %v6055 = vand.u32 %v1380, 4294901760
    %v6056 = vsub.f32 %v1380, %v6055
    %6057 = vmatmul.f32.gmra.mxu0 %v6056
    %v6058 = vpop.f32.mrf.mxu0
    %v6059 = vadd.f32 %v5972, %v6058
    %v6060 = vand.u32 %v1383, 4294901760
    %v6061 = vsub.f32 %v1383, %v6060
    %6062 = vmatmul.f32.gmra.mxu0 %v6061
    %v6063 = vpop.f32.mrf.mxu0
    %v6064 = vadd.f32 %v5976, %v6063
    %v6065 = vand.u32 %v1386, 4294901760
    %v6066 = vsub.f32 %v1386, %v6065
    %6067 = vmatmul.f32.gmra.mxu0 %v6066
    %v6068 = vpop.f32.mrf.mxu0
    %v6069 = vadd.f32 %v5980, %v6068
    %v6070 = vand.u32 %v1389, 4294901760
    %v6071 = vsub.f32 %v1389, %v6070
    %6072 = vmatmul.f32.gmra.mxu0 %v6071
    %v6073 = vpop.f32.mrf.mxu0
    %v6074 = vadd.f32 %v5984, %v6073
    %v6075 = vand.u32 %v1392, 4294901760
    %v6076 = vsub.f32 %v1392, %v6075
    %6077 = vmatmul.f32.gmra.mxu0 %v6076
    %v6078 = vpop.f32.mrf.mxu0
    %v6079 = vadd.f32 %v5988, %v6078
    %v6080 = vand.u32 %v1395, 4294901760
    %v6081 = vsub.f32 %v1395, %v6080
    %6082 = vmatmul.f32.gmra.mxu0 %v6081
    %v6083 = vpop.f32.mrf.mxu0
    %v6084 = vadd.f32 %v5992, %v6083
    %v6085 = vand.u32 %v1398, 4294901760
    %v6086 = vsub.f32 %v1398, %v6085
    %6087 = vmatmul.f32.gmra.mxu0 %v6086
    %v6088 = vpop.f32.mrf.mxu0
    %v6089 = vadd.f32 %v5996, %v6088
    %v6090 = vand.u32 %v1401, 4294901760
    %v6091 = vsub.f32 %v1401, %v6090
    %6092 = vmatmul.f32.gmra.mxu0 %v6091
    %v6093 = vpop.f32.mrf.mxu0
    %v6094 = vadd.f32 %v6000, %v6093
    %v6095 = vand.u32 %v1404, 4294901760
    %v6096 = vsub.f32 %v1404, %v6095
    %6097 = vmatmul.f32.gmra.mxu0 %v6096
    %v6098 = vpop.f32.mrf.mxu0
    %v6099 = vadd.f32 %v6004, %v6098
    %v6100 = vand.u32 %v1407, 4294901760
    %v6101 = vsub.f32 %v1407, %v6100
    %6102 = vmatmul.f32.gmra.mxu0 %v6101
    %v6103 = vpop.f32.mrf.mxu0
    %v6104 = vadd.f32 %v6008, %v6103
    %v6105 = vand.u32 %v1410, 4294901760
    %v6106 = vsub.f32 %v1410, %v6105
    %6107 = vmatmul.f32.gmra.mxu0 %v6106
    %v6108 = vpop.f32.mrf.mxu0
    %v6109 = vadd.f32 %v6012, %v6108
    %v6110 = vand.u32 %v1413, 4294901760
    %v6111 = vsub.f32 %v1413, %v6110
    %6112 = vmatmul.f32.gmra.mxu0 %v6111
    %v6113 = vpop.f32.mrf.mxu0
    %v6114 = vadd.f32 %v6016, %v6113
    %v6115 = vand.u32 %v1416, 4294901760
    %v6116 = vsub.f32 %v1416, %v6115
    %6117 = vmatmul.f32.gmra.mxu0 %v6116
    %v6118 = vpop.f32.mrf.mxu0
    %v6119 = vadd.f32 %v6020, %v6118
    %v6120 = vand.u32 %v1419, 4294901760
    %v6121 = vsub.f32 %v1419, %v6120
    %6122 = vmatmul.f32.gmra.mxu0 %v6121
    %v6123 = vpop.f32.mrf.mxu0
    %v6124 = vadd.f32 %v6024, %v6123
    %v6125 = vand.u32 %v1422, 4294901760
    %v6126 = vsub.f32 %v1422, %v6125
    %6127 = vmatmul.f32.gmra.mxu0 %v6126
    %v6128 = vpop.f32.mrf.mxu0
    %v6129 = vadd.f32 %v6028, %v6128
    %6130 = vdwg.mxu0
    %6131 = vmatpush.msra.mxu0 0.0
    %6132 = vmatpush.msra.mxu0 0.0
    %6133 = vmatpush.msra.mxu0 0.0
    %6134 = vmatpush.msra.mxu0 0.0
    %6135 = vmatpush.msra.mxu0 0.0
    %6136 = vmatpush.msra.mxu0 0.0
    %6137 = vmatpush.msra.mxu0 0.0
    %6138 = vmatpush.msra.mxu0 0.0
    %6139 = vmatpush.msra.mxu0 0.0
    %6140 = vmatpush.msra.mxu0 0.0
    %6141 = vmatpush.msra.mxu0 0.0
    %6142 = vmatpush.msra.mxu0 0.0
    %6143 = vmatpush.msra.mxu0 0.0
    %6144 = vmatpush.msra.mxu0 0.0
    %v6145 = vand.u32 %v1373, 4294901760
    %6146 = vmatpush.msra.mxu0 %v6145
    %v6147 = vand.u32 %v1363, 4294901760
    %6148 = vmatpush.msra.mxu0 %v6147
    %v6149 = vand.u32 %v1377, 4294901760
    %v6150 = vsub.f32 %v1377, %v6149
    %v6151 = vand.u32 %v6150, 4294901760
    %6152 = vmatmul.f32.gmra.mxu0 %v6151
    %v6153 = vpop.f32.mrf.mxu0
    %v6154 = vadd.f32 %v6054, %v6153
    %v6155 = vand.u32 %v1380, 4294901760
    %v6156 = vsub.f32 %v1380, %v6155
    %v6157 = vand.u32 %v6156, 4294901760
    %6158 = vmatmul.f32.gmra.mxu0 %v6157
    %v6159 = vpop.f32.mrf.mxu0
    %v6160 = vadd.f32 %v6059, %v6159
    %v6161 = vand.u32 %v1383, 4294901760
    %v6162 = vsub.f32 %v1383, %v6161
    %v6163 = vand.u32 %v6162, 4294901760
    %6164 = vmatmul.f32.gmra.mxu0 %v6163
    %v6165 = vpop.f32.mrf.mxu0
    %v6166 = vadd.f32 %v6064, %v6165
    %v6167 = vand.u32 %v1386, 4294901760
    %v6168 = vsub.f32 %v1386, %v6167
    %v6169 = vand.u32 %v6168, 4294901760
    %6170 = vmatmul.f32.gmra.mxu0 %v6169
    %v6171 = vpop.f32.mrf.mxu0
    %v6172 = vadd.f32 %v6069, %v6171
    %v6173 = vand.u32 %v1389, 4294901760
    %v6174 = vsub.f32 %v1389, %v6173
    %v6175 = vand.u32 %v6174, 4294901760
    %6176 = vmatmul.f32.gmra.mxu0 %v6175
    %v6177 = vpop.f32.mrf.mxu0
    %v6178 = vadd.f32 %v6074, %v6177
    %v6179 = vand.u32 %v1392, 4294901760
    %v6180 = vsub.f32 %v1392, %v6179
    %v6181 = vand.u32 %v6180, 4294901760
    %6182 = vmatmul.f32.gmra.mxu0 %v6181
    %v6183 = vpop.f32.mrf.mxu0
    %v6184 = vadd.f32 %v6079, %v6183
    %v6185 = vand.u32 %v1395, 4294901760
    %v6186 = vsub.f32 %v1395, %v6185
    %v6187 = vand.u32 %v6186, 4294901760
    %6188 = vmatmul.f32.gmra.mxu0 %v6187
    %v6189 = vpop.f32.mrf.mxu0
    %v6190 = vadd.f32 %v6084, %v6189
    %v6191 = vand.u32 %v1398, 4294901760
    %v6192 = vsub.f32 %v1398, %v6191
    %v6193 = vand.u32 %v6192, 4294901760
    %6194 = vmatmul.f32.gmra.mxu0 %v6193
    %v6195 = vpop.f32.mrf.mxu0
    %v6196 = vadd.f32 %v6089, %v6195
    %v6197 = vand.u32 %v1401, 4294901760
    %v6198 = vsub.f32 %v1401, %v6197
    %v6199 = vand.u32 %v6198, 4294901760
    %6200 = vmatmul.f32.gmra.mxu0 %v6199
    %v6201 = vpop.f32.mrf.mxu0
    %v6202 = vadd.f32 %v6094, %v6201
    %v6203 = vand.u32 %v1404, 4294901760
    %v6204 = vsub.f32 %v1404, %v6203
    %v6205 = vand.u32 %v6204, 4294901760
    %6206 = vmatmul.f32.gmra.mxu0 %v6205
    %v6207 = vpop.f32.mrf.mxu0
    %v6208 = vadd.f32 %v6099, %v6207
    %v6209 = vand.u32 %v1407, 4294901760
    %v6210 = vsub.f32 %v1407, %v6209
    %v6211 = vand.u32 %v6210, 4294901760
    %6212 = vmatmul.f32.gmra.mxu0 %v6211
    %v6213 = vpop.f32.mrf.mxu0
    %v6214 = vadd.f32 %v6104, %v6213
    %v6215 = vand.u32 %v1410, 4294901760
    %v6216 = vsub.f32 %v1410, %v6215
    %v6217 = vand.u32 %v6216, 4294901760
    %6218 = vmatmul.f32.gmra.mxu0 %v6217
    %v6219 = vpop.f32.mrf.mxu0
    %v6220 = vadd.f32 %v6109, %v6219
    %v6221 = vand.u32 %v1413, 4294901760
    %v6222 = vsub.f32 %v1413, %v6221
    %v6223 = vand.u32 %v6222, 4294901760
    %6224 = vmatmul.f32.gmra.mxu0 %v6223
    %v6225 = vpop.f32.mrf.mxu0
    %v6226 = vadd.f32 %v6114, %v6225
    %v6227 = vand.u32 %v1416, 4294901760
    %v6228 = vsub.f32 %v1416, %v6227
    %v6229 = vand.u32 %v6228, 4294901760
    %6230 = vmatmul.f32.gmra.mxu0 %v6229
    %v6231 = vpop.f32.mrf.mxu0
    %v6232 = vadd.f32 %v6119, %v6231
    %v6233 = vand.u32 %v1419, 4294901760
    %v6234 = vsub.f32 %v1419, %v6233
    %v6235 = vand.u32 %v6234, 4294901760
    %6236 = vmatmul.f32.gmra.mxu0 %v6235
    %v6237 = vpop.f32.mrf.mxu0
    %v6238 = vadd.f32 %v6124, %v6237
    %v6239 = vand.u32 %v1422, 4294901760
    %v6240 = vsub.f32 %v1422, %v6239
    %v6241 = vand.u32 %v6240, 4294901760
    %6242 = vmatmul.f32.gmra.mxu0 %v6241
    %v6243 = vpop.f32.mrf.mxu0
    %v6244 = vadd.f32 %v6129, %v6243
    %6245 = vdwg.mxu0
    %6246 = vmatpush.msra.mxu0 0.0
    %6247 = vmatpush.msra.mxu0 0.0
    %6248 = vmatpush.msra.mxu0 0.0
    %6249 = vmatpush.msra.mxu0 0.0
    %6250 = vmatpush.msra.mxu0 0.0
    %6251 = vmatpush.msra.mxu0 0.0
    %6252 = vmatpush.msra.mxu0 0.0
    %6253 = vmatpush.msra.mxu0 0.0
    %6254 = vmatpush.msra.mxu0 0.0
    %6255 = vmatpush.msra.mxu0 0.0
    %6256 = vmatpush.msra.mxu0 0.0
    %6257 = vmatpush.msra.mxu0 0.0
    %6258 = vmatpush.msra.mxu0 0.0
    %6259 = vmatpush.msra.mxu0 0.0
    %v6260 = vand.u32 %v1373, 4294901760
    %v6261 = vsub.f32 %v1373, %v6260
    %v6262 = vand.u32 %v6261, 4294901760
    %6263 = vmatpush.msra.mxu0 %v6262
    %v6264 = vand.u32 %v1363, 4294901760
    %v6265 = vsub.f32 %v1363, %v6264
    %v6266 = vand.u32 %v6265, 4294901760
    %6267 = vmatpush.msra.mxu0 %v6266
    %v6268 = vand.u32 %v1377, 4294901760
    %6269 = vmatmul.f32.gmra.mxu0 %v6268
    %v6270 = vpop.f32.mrf.mxu0
    %v6271 = vadd.f32 %v6154, %v6270
    %v6272 = vand.u32 %v1380, 4294901760
    %6273 = vmatmul.f32.gmra.mxu0 %v6272
    %v6274 = vpop.f32.mrf.mxu0
    %v6275 = vadd.f32 %v6160, %v6274
    %v6276 = vand.u32 %v1383, 4294901760
    %6277 = vmatmul.f32.gmra.mxu0 %v6276
    %v6278 = vpop.f32.mrf.mxu0
    %v6279 = vadd.f32 %v6166, %v6278
    %v6280 = vand.u32 %v1386, 4294901760
    %6281 = vmatmul.f32.gmra.mxu0 %v6280
    %v6282 = vpop.f32.mrf.mxu0
    %v6283 = vadd.f32 %v6172, %v6282
    %v6284 = vand.u32 %v1389, 4294901760
    %6285 = vmatmul.f32.gmra.mxu0 %v6284
    %v6286 = vpop.f32.mrf.mxu0
    %v6287 = vadd.f32 %v6178, %v6286
    %v6288 = vand.u32 %v1392, 4294901760
    %6289 = vmatmul.f32.gmra.mxu0 %v6288
    %v6290 = vpop.f32.mrf.mxu0
    %v6291 = vadd.f32 %v6184, %v6290
    %v6292 = vand.u32 %v1395, 4294901760
    %6293 = vmatmul.f32.gmra.mxu0 %v6292
    %v6294 = vpop.f32.mrf.mxu0
    %v6295 = vadd.f32 %v6190, %v6294
    %v6296 = vand.u32 %v1398, 4294901760
    %6297 = vmatmul.f32.gmra.mxu0 %v6296
    %v6298 = vpop.f32.mrf.mxu0
    %v6299 = vadd.f32 %v6196, %v6298
    %v6300 = vand.u32 %v1401, 4294901760
    %6301 = vmatmul.f32.gmra.mxu0 %v6300
    %v6302 = vpop.f32.mrf.mxu0
    %v6303 = vadd.f32 %v6202, %v6302
    %v6304 = vand.u32 %v1404, 4294901760
    %6305 = vmatmul.f32.gmra.mxu0 %v6304
    %v6306 = vpop.f32.mrf.mxu0
    %v6307 = vadd.f32 %v6208, %v6306
    %v6308 = vand.u32 %v1407, 4294901760
    %6309 = vmatmul.f32.gmra.mxu0 %v6308
    %v6310 = vpop.f32.mrf.mxu0
    %v6311 = vadd.f32 %v6214, %v6310
    %v6312 = vand.u32 %v1410, 4294901760
    %6313 = vmatmul.f32.gmra.mxu0 %v6312
    %v6314 = vpop.f32.mrf.mxu0
    %v6315 = vadd.f32 %v6220, %v6314
    %v6316 = vand.u32 %v1413, 4294901760
    %6317 = vmatmul.f32.gmra.mxu0 %v6316
    %v6318 = vpop.f32.mrf.mxu0
    %v6319 = vadd.f32 %v6226, %v6318
    %v6320 = vand.u32 %v1416, 4294901760
    %6321 = vmatmul.f32.gmra.mxu0 %v6320
    %v6322 = vpop.f32.mrf.mxu0
    %v6323 = vadd.f32 %v6232, %v6322
    %v6324 = vand.u32 %v1419, 4294901760
    %6325 = vmatmul.f32.gmra.mxu0 %v6324
    %v6326 = vpop.f32.mrf.mxu0
    %v6327 = vadd.f32 %v6238, %v6326
    %v6328 = vand.u32 %v1422, 4294901760
    %6329 = vmatmul.f32.gmra.mxu0 %v6328
    %v6330 = vpop.f32.mrf.mxu0
    %v6331 = vadd.f32 %v6244, %v6330
    %6332 = vdwg.mxu0
    %6333 = vmatpush.msra.mxu0 0.0
    %6334 = vmatpush.msra.mxu0 0.0
    %6335 = vmatpush.msra.mxu0 0.0
    %6336 = vmatpush.msra.mxu0 0.0
    %6337 = vmatpush.msra.mxu0 0.0
    %6338 = vmatpush.msra.mxu0 0.0
    %6339 = vmatpush.msra.mxu0 0.0
    %6340 = vmatpush.msra.mxu0 0.0
    %6341 = vmatpush.msra.mxu0 0.0
    %6342 = vmatpush.msra.mxu0 0.0
    %6343 = vmatpush.msra.mxu0 0.0
    %6344 = vmatpush.msra.mxu0 0.0
    %6345 = vmatpush.msra.mxu0 0.0
    %6346 = vmatpush.msra.mxu0 0.0
    %v6347 = vand.u32 %v1373, 4294901760
    %6348 = vmatpush.msra.mxu0 %v6347
    %v6349 = vand.u32 %v1363, 4294901760
    %6350 = vmatpush.msra.mxu0 %v6349
    %v6351 = vand.u32 %v1377, 4294901760
    %6352 = vmatmul.f32.gmra.mxu0 %v6351
    %v6353 = vpop.f32.mrf.mxu0
    %v6354 = vadd.f32 %v6271, %v6353
    %v6355 = vand.u32 %v1380, 4294901760
    %6356 = vmatmul.f32.gmra.mxu0 %v6355
    %v6357 = vpop.f32.mrf.mxu0
    %v6358 = vadd.f32 %v6275, %v6357
    %v6359 = vand.u32 %v1383, 4294901760
    %6360 = vmatmul.f32.gmra.mxu0 %v6359
    %v6361 = vpop.f32.mrf.mxu0
    %v6362 = vadd.f32 %v6279, %v6361
    %v6363 = vand.u32 %v1386, 4294901760
    %6364 = vmatmul.f32.gmra.mxu0 %v6363
    %v6365 = vpop.f32.mrf.mxu0
    %v6366 = vadd.f32 %v6283, %v6365
    %v6367 = vand.u32 %v1389, 4294901760
    %6368 = vmatmul.f32.gmra.mxu0 %v6367
    %v6369 = vpop.f32.mrf.mxu0
    %v6370 = vadd.f32 %v6287, %v6369
    %v6371 = vand.u32 %v1392, 4294901760
    %6372 = vmatmul.f32.gmra.mxu0 %v6371
    %v6373 = vpop.f32.mrf.mxu0
    %v6374 = vadd.f32 %v6291, %v6373
    %v6375 = vand.u32 %v1395, 4294901760
    %6376 = vmatmul.f32.gmra.mxu0 %v6375
    %v6377 = vpop.f32.mrf.mxu0
    %v6378 = vadd.f32 %v6295, %v6377
    %v6379 = vand.u32 %v1398, 4294901760
    %6380 = vmatmul.f32.gmra.mxu0 %v6379
    %v6381 = vpop.f32.mrf.mxu0
    %v6382 = vadd.f32 %v6299, %v6381
    %v6383 = vand.u32 %v1401, 4294901760
    %6384 = vmatmul.f32.gmra.mxu0 %v6383
    %v6385 = vpop.f32.mrf.mxu0
    %v6386 = vadd.f32 %v6303, %v6385
    %v6387 = vand.u32 %v1404, 4294901760
    %6388 = vmatmul.f32.gmra.mxu0 %v6387
    %v6389 = vpop.f32.mrf.mxu0
    %v6390 = vadd.f32 %v6307, %v6389
    %v6391 = vand.u32 %v1407, 4294901760
    %6392 = vmatmul.f32.gmra.mxu0 %v6391
    %v6393 = vpop.f32.mrf.mxu0
    %v6394 = vadd.f32 %v6311, %v6393
    %v6395 = vand.u32 %v1410, 4294901760
    %6396 = vmatmul.f32.gmra.mxu0 %v6395
    %v6397 = vpop.f32.mrf.mxu0
    %v6398 = vadd.f32 %v6315, %v6397
    %v6399 = vand.u32 %v1413, 4294901760
    %6400 = vmatmul.f32.gmra.mxu0 %v6399
    %v6401 = vpop.f32.mrf.mxu0
    %v6402 = vadd.f32 %v6319, %v6401
    %v6403 = vand.u32 %v1416, 4294901760
    %6404 = vmatmul.f32.gmra.mxu0 %v6403
    %v6405 = vpop.f32.mrf.mxu0
    %v6406 = vadd.f32 %v6323, %v6405
    %v6407 = vand.u32 %v1419, 4294901760
    %6408 = vmatmul.f32.gmra.mxu0 %v6407
    %v6409 = vpop.f32.mrf.mxu0
    %v6410 = vadd.f32 %v6327, %v6409
    %v6411 = vand.u32 %v1422, 4294901760
    %6412 = vmatmul.f32.gmra.mxu0 %v6411
    %v6413 = vpop.f32.mrf.mxu0
    %v6414 = vadd.f32 %v6331, %v6413
    %6415 = vdwg.mxu0
    %6416 = vmatpush.msra.mxu0 0.0
    %6417 = vmatpush.msra.mxu0 0.0
    %6418 = vmatpush.msra.mxu0 0.0
    %6419 = vmatpush.msra.mxu0 0.0
    %6420 = vmatpush.msra.mxu0 0.0
    %6421 = vmatpush.msra.mxu0 0.0
    %6422 = vmatpush.msra.mxu0 0.0
    %6423 = vmatpush.msra.mxu0 0.0
    %6424 = vmatpush.msra.mxu0 0.0
    %6425 = vmatpush.msra.mxu0 0.0
    %6426 = vmatpush.msra.mxu0 0.0
    %6427 = vmatpush.msra.mxu0 0.0
    %6428 = vmatpush.msra.mxu0 0.0
    %6429 = vmatpush.msra.mxu0 0.0
    %v6430 = vand.u32 %v1374, 4294901760
    %6431 = vmatpush.msra.mxu0 %v6430
    %v6432 = vand.u32 %v1364, 4294901760
    %6433 = vmatpush.msra.mxu0 %v6432
    %v6434 = vand.u32 %v1377, 4294901760
    %v6435 = vsub.f32 %v1377, %v6434
    %v6436 = vand.u32 %v6435, 4294901760
    %v6437 = vsub.f32 %v6435, %v6436
    %v6438 = vand.u32 %v6437, 4294901760
    %6439 = vmatmul.f32.gmra.mxu0 %v6438
    %v6440 = vpop.f32.mrf.mxu0
    %v6441 = vadd.f32 0.0, %v6440
    %v6442 = vand.u32 %v1380, 4294901760
    %v6443 = vsub.f32 %v1380, %v6442
    %v6444 = vand.u32 %v6443, 4294901760
    %v6445 = vsub.f32 %v6443, %v6444
    %v6446 = vand.u32 %v6445, 4294901760
    %6447 = vmatmul.f32.gmra.mxu0 %v6446
    %v6448 = vpop.f32.mrf.mxu0
    %v6449 = vadd.f32 0.0, %v6448
    %v6450 = vand.u32 %v1383, 4294901760
    %v6451 = vsub.f32 %v1383, %v6450
    %v6452 = vand.u32 %v6451, 4294901760
    %v6453 = vsub.f32 %v6451, %v6452
    %v6454 = vand.u32 %v6453, 4294901760
    %6455 = vmatmul.f32.gmra.mxu0 %v6454
    %v6456 = vpop.f32.mrf.mxu0
    %v6457 = vadd.f32 0.0, %v6456
    %v6458 = vand.u32 %v1386, 4294901760
    %v6459 = vsub.f32 %v1386, %v6458
    %v6460 = vand.u32 %v6459, 4294901760
    %v6461 = vsub.f32 %v6459, %v6460
    %v6462 = vand.u32 %v6461, 4294901760
    %6463 = vmatmul.f32.gmra.mxu0 %v6462
    %v6464 = vpop.f32.mrf.mxu0
    %v6465 = vadd.f32 0.0, %v6464
    %v6466 = vand.u32 %v1389, 4294901760
    %v6467 = vsub.f32 %v1389, %v6466
    %v6468 = vand.u32 %v6467, 4294901760
    %v6469 = vsub.f32 %v6467, %v6468
    %v6470 = vand.u32 %v6469, 4294901760
    %6471 = vmatmul.f32.gmra.mxu0 %v6470
    %v6472 = vpop.f32.mrf.mxu0
    %v6473 = vadd.f32 0.0, %v6472
    %v6474 = vand.u32 %v1392, 4294901760
    %v6475 = vsub.f32 %v1392, %v6474
    %v6476 = vand.u32 %v6475, 4294901760
    %v6477 = vsub.f32 %v6475, %v6476
    %v6478 = vand.u32 %v6477, 4294901760
    %6479 = vmatmul.f32.gmra.mxu0 %v6478
    %v6480 = vpop.f32.mrf.mxu0
    %v6481 = vadd.f32 0.0, %v6480
    %v6482 = vand.u32 %v1395, 4294901760
    %v6483 = vsub.f32 %v1395, %v6482
    %v6484 = vand.u32 %v6483, 4294901760
    %v6485 = vsub.f32 %v6483, %v6484
    %v6486 = vand.u32 %v6485, 4294901760
    %6487 = vmatmul.f32.gmra.mxu0 %v6486
    %v6488 = vpop.f32.mrf.mxu0
    %v6489 = vadd.f32 0.0, %v6488
    %v6490 = vand.u32 %v1398, 4294901760
    %v6491 = vsub.f32 %v1398, %v6490
    %v6492 = vand.u32 %v6491, 4294901760
    %v6493 = vsub.f32 %v6491, %v6492
    %v6494 = vand.u32 %v6493, 4294901760
    %6495 = vmatmul.f32.gmra.mxu0 %v6494
    %v6496 = vpop.f32.mrf.mxu0
    %v6497 = vadd.f32 0.0, %v6496
    %v6498 = vand.u32 %v1401, 4294901760
    %v6499 = vsub.f32 %v1401, %v6498
    %v6500 = vand.u32 %v6499, 4294901760
    %v6501 = vsub.f32 %v6499, %v6500
    %v6502 = vand.u32 %v6501, 4294901760
    %6503 = vmatmul.f32.gmra.mxu0 %v6502
    %v6504 = vpop.f32.mrf.mxu0
    %v6505 = vadd.f32 0.0, %v6504
    %v6506 = vand.u32 %v1404, 4294901760
    %v6507 = vsub.f32 %v1404, %v6506
    %v6508 = vand.u32 %v6507, 4294901760
    %v6509 = vsub.f32 %v6507, %v6508
    %v6510 = vand.u32 %v6509, 4294901760
    %6511 = vmatmul.f32.gmra.mxu0 %v6510
    %v6512 = vpop.f32.mrf.mxu0
    %v6513 = vadd.f32 0.0, %v6512
    %v6514 = vand.u32 %v1407, 4294901760
    %v6515 = vsub.f32 %v1407, %v6514
    %v6516 = vand.u32 %v6515, 4294901760
    %v6517 = vsub.f32 %v6515, %v6516
    %v6518 = vand.u32 %v6517, 4294901760
    %6519 = vmatmul.f32.gmra.mxu0 %v6518
    %v6520 = vpop.f32.mrf.mxu0
    %v6521 = vadd.f32 0.0, %v6520
    %v6522 = vand.u32 %v1410, 4294901760
    %v6523 = vsub.f32 %v1410, %v6522
    %v6524 = vand.u32 %v6523, 4294901760
    %v6525 = vsub.f32 %v6523, %v6524
    %v6526 = vand.u32 %v6525, 4294901760
    %6527 = vmatmul.f32.gmra.mxu0 %v6526
    %v6528 = vpop.f32.mrf.mxu0
    %v6529 = vadd.f32 0.0, %v6528
    %v6530 = vand.u32 %v1413, 4294901760
    %v6531 = vsub.f32 %v1413, %v6530
    %v6532 = vand.u32 %v6531, 4294901760
    %v6533 = vsub.f32 %v6531, %v6532
    %v6534 = vand.u32 %v6533, 4294901760
    %6535 = vmatmul.f32.gmra.mxu0 %v6534
    %v6536 = vpop.f32.mrf.mxu0
    %v6537 = vadd.f32 0.0, %v6536
    %v6538 = vand.u32 %v1416, 4294901760
    %v6539 = vsub.f32 %v1416, %v6538
    %v6540 = vand.u32 %v6539, 4294901760
    %v6541 = vsub.f32 %v6539, %v6540
    %v6542 = vand.u32 %v6541, 4294901760
    %6543 = vmatmul.f32.gmra.mxu0 %v6542
    %v6544 = vpop.f32.mrf.mxu0
    %v6545 = vadd.f32 0.0, %v6544
    %v6546 = vand.u32 %v1419, 4294901760
    %v6547 = vsub.f32 %v1419, %v6546
    %v6548 = vand.u32 %v6547, 4294901760
    %v6549 = vsub.f32 %v6547, %v6548
    %v6550 = vand.u32 %v6549, 4294901760
    %6551 = vmatmul.f32.gmra.mxu0 %v6550
    %v6552 = vpop.f32.mrf.mxu0
    %v6553 = vadd.f32 0.0, %v6552
    %v6554 = vand.u32 %v1422, 4294901760
    %v6555 = vsub.f32 %v1422, %v6554
    %v6556 = vand.u32 %v6555, 4294901760
    %v6557 = vsub.f32 %v6555, %v6556
    %v6558 = vand.u32 %v6557, 4294901760
    %6559 = vmatmul.f32.gmra.mxu0 %v6558
    %v6560 = vpop.f32.mrf.mxu0
    %v6561 = vadd.f32 0.0, %v6560
    %6562 = vdwg.mxu0
    %6563 = vmatpush.msra.mxu0 0.0
    %6564 = vmatpush.msra.mxu0 0.0
    %6565 = vmatpush.msra.mxu0 0.0
    %6566 = vmatpush.msra.mxu0 0.0
    %6567 = vmatpush.msra.mxu0 0.0
    %6568 = vmatpush.msra.mxu0 0.0
    %6569 = vmatpush.msra.mxu0 0.0
    %6570 = vmatpush.msra.mxu0 0.0
    %6571 = vmatpush.msra.mxu0 0.0
    %6572 = vmatpush.msra.mxu0 0.0
    %6573 = vmatpush.msra.mxu0 0.0
    %6574 = vmatpush.msra.mxu0 0.0
    %6575 = vmatpush.msra.mxu0 0.0
    %6576 = vmatpush.msra.mxu0 0.0
    %v6577 = vand.u32 %v1374, 4294901760
    %v6578 = vsub.f32 %v1374, %v6577
    %v6579 = vand.u32 %v6578, 4294901760
    %v6580 = vsub.f32 %v6578, %v6579
    %v6581 = vand.u32 %v6580, 4294901760
    %6582 = vmatpush.msra.mxu0 %v6581
    %v6583 = vand.u32 %v1364, 4294901760
    %v6584 = vsub.f32 %v1364, %v6583
    %v6585 = vand.u32 %v6584, 4294901760
    %v6586 = vsub.f32 %v6584, %v6585
    %v6587 = vand.u32 %v6586, 4294901760
    %6588 = vmatpush.msra.mxu0 %v6587
    %v6589 = vand.u32 %v1377, 4294901760
    %6590 = vmatmul.f32.gmra.mxu0 %v6589
    %v6591 = vpop.f32.mrf.mxu0
    %v6592 = vadd.f32 %v6441, %v6591
    %v6593 = vand.u32 %v1380, 4294901760
    %6594 = vmatmul.f32.gmra.mxu0 %v6593
    %v6595 = vpop.f32.mrf.mxu0
    %v6596 = vadd.f32 %v6449, %v6595
    %v6597 = vand.u32 %v1383, 4294901760
    %6598 = vmatmul.f32.gmra.mxu0 %v6597
    %v6599 = vpop.f32.mrf.mxu0
    %v6600 = vadd.f32 %v6457, %v6599
    %v6601 = vand.u32 %v1386, 4294901760
    %6602 = vmatmul.f32.gmra.mxu0 %v6601
    %v6603 = vpop.f32.mrf.mxu0
    %v6604 = vadd.f32 %v6465, %v6603
    %v6605 = vand.u32 %v1389, 4294901760
    %6606 = vmatmul.f32.gmra.mxu0 %v6605
    %v6607 = vpop.f32.mrf.mxu0
    %v6608 = vadd.f32 %v6473, %v6607
    %v6609 = vand.u32 %v1392, 4294901760
    %6610 = vmatmul.f32.gmra.mxu0 %v6609
    %v6611 = vpop.f32.mrf.mxu0
    %v6612 = vadd.f32 %v6481, %v6611
    %v6613 = vand.u32 %v1395, 4294901760
    %6614 = vmatmul.f32.gmra.mxu0 %v6613
    %v6615 = vpop.f32.mrf.mxu0
    %v6616 = vadd.f32 %v6489, %v6615
    %v6617 = vand.u32 %v1398, 4294901760
    %6618 = vmatmul.f32.gmra.mxu0 %v6617
    %v6619 = vpop.f32.mrf.mxu0
    %v6620 = vadd.f32 %v6497, %v6619
    %v6621 = vand.u32 %v1401, 4294901760
    %6622 = vmatmul.f32.gmra.mxu0 %v6621
    %v6623 = vpop.f32.mrf.mxu0
    %v6624 = vadd.f32 %v6505, %v6623
    %v6625 = vand.u32 %v1404, 4294901760
    %6626 = vmatmul.f32.gmra.mxu0 %v6625
    %v6627 = vpop.f32.mrf.mxu0
    %v6628 = vadd.f32 %v6513, %v6627
    %v6629 = vand.u32 %v1407, 4294901760
    %6630 = vmatmul.f32.gmra.mxu0 %v6629
    %v6631 = vpop.f32.mrf.mxu0
    %v6632 = vadd.f32 %v6521, %v6631
    %v6633 = vand.u32 %v1410, 4294901760
    %6634 = vmatmul.f32.gmra.mxu0 %v6633
    %v6635 = vpop.f32.mrf.mxu0
    %v6636 = vadd.f32 %v6529, %v6635
    %v6637 = vand.u32 %v1413, 4294901760
    %6638 = vmatmul.f32.gmra.mxu0 %v6637
    %v6639 = vpop.f32.mrf.mxu0
    %v6640 = vadd.f32 %v6537, %v6639
    %v6641 = vand.u32 %v1416, 4294901760
    %6642 = vmatmul.f32.gmra.mxu0 %v6641
    %v6643 = vpop.f32.mrf.mxu0
    %v6644 = vadd.f32 %v6545, %v6643
    %v6645 = vand.u32 %v1419, 4294901760
    %6646 = vmatmul.f32.gmra.mxu0 %v6645
    %v6647 = vpop.f32.mrf.mxu0
    %v6648 = vadd.f32 %v6553, %v6647
    %v6649 = vand.u32 %v1422, 4294901760
    %6650 = vmatmul.f32.gmra.mxu0 %v6649
    %v6651 = vpop.f32.mrf.mxu0
    %v6652 = vadd.f32 %v6561, %v6651
    %6653 = vdwg.mxu0
    %6654 = vmatpush.msra.mxu0 0.0
    %6655 = vmatpush.msra.mxu0 0.0
    %6656 = vmatpush.msra.mxu0 0.0
    %6657 = vmatpush.msra.mxu0 0.0
    %6658 = vmatpush.msra.mxu0 0.0
    %6659 = vmatpush.msra.mxu0 0.0
    %6660 = vmatpush.msra.mxu0 0.0
    %6661 = vmatpush.msra.mxu0 0.0
    %6662 = vmatpush.msra.mxu0 0.0
    %6663 = vmatpush.msra.mxu0 0.0
    %6664 = vmatpush.msra.mxu0 0.0
    %6665 = vmatpush.msra.mxu0 0.0
    %6666 = vmatpush.msra.mxu0 0.0
    %6667 = vmatpush.msra.mxu0 0.0
    %v6668 = vand.u32 %v1374, 4294901760
    %v6669 = vsub.f32 %v1374, %v6668
    %6670 = vmatpush.msra.mxu0 %v6669
    %v6671 = vand.u32 %v1364, 4294901760
    %v6672 = vsub.f32 %v1364, %v6671
    %6673 = vmatpush.msra.mxu0 %v6672
    %v6674 = vand.u32 %v1377, 4294901760
    %v6675 = vsub.f32 %v1377, %v6674
    %6676 = vmatmul.f32.gmra.mxu0 %v6675
    %v6677 = vpop.f32.mrf.mxu0
    %v6678 = vadd.f32 %v6592, %v6677
    %v6679 = vand.u32 %v1380, 4294901760
    %v6680 = vsub.f32 %v1380, %v6679
    %6681 = vmatmul.f32.gmra.mxu0 %v6680
    %v6682 = vpop.f32.mrf.mxu0
    %v6683 = vadd.f32 %v6596, %v6682
    %v6684 = vand.u32 %v1383, 4294901760
    %v6685 = vsub.f32 %v1383, %v6684
    %6686 = vmatmul.f32.gmra.mxu0 %v6685
    %v6687 = vpop.f32.mrf.mxu0
    %v6688 = vadd.f32 %v6600, %v6687
    %v6689 = vand.u32 %v1386, 4294901760
    %v6690 = vsub.f32 %v1386, %v6689
    %6691 = vmatmul.f32.gmra.mxu0 %v6690
    %v6692 = vpop.f32.mrf.mxu0
    %v6693 = vadd.f32 %v6604, %v6692
    %v6694 = vand.u32 %v1389, 4294901760
    %v6695 = vsub.f32 %v1389, %v6694
    %6696 = vmatmul.f32.gmra.mxu0 %v6695
    %v6697 = vpop.f32.mrf.mxu0
    %v6698 = vadd.f32 %v6608, %v6697
    %v6699 = vand.u32 %v1392, 4294901760
    %v6700 = vsub.f32 %v1392, %v6699
    %6701 = vmatmul.f32.gmra.mxu0 %v6700
    %v6702 = vpop.f32.mrf.mxu0
    %v6703 = vadd.f32 %v6612, %v6702
    %v6704 = vand.u32 %v1395, 4294901760
    %v6705 = vsub.f32 %v1395, %v6704
    %6706 = vmatmul.f32.gmra.mxu0 %v6705
    %v6707 = vpop.f32.mrf.mxu0
    %v6708 = vadd.f32 %v6616, %v6707
    %v6709 = vand.u32 %v1398, 4294901760
    %v6710 = vsub.f32 %v1398, %v6709
    %6711 = vmatmul.f32.gmra.mxu0 %v6710
    %v6712 = vpop.f32.mrf.mxu0
    %v6713 = vadd.f32 %v6620, %v6712
    %v6714 = vand.u32 %v1401, 4294901760
    %v6715 = vsub.f32 %v1401, %v6714
    %6716 = vmatmul.f32.gmra.mxu0 %v6715
    %v6717 = vpop.f32.mrf.mxu0
    %v6718 = vadd.f32 %v6624, %v6717
    %v6719 = vand.u32 %v1404, 4294901760
    %v6720 = vsub.f32 %v1404, %v6719
    %6721 = vmatmul.f32.gmra.mxu0 %v6720
    %v6722 = vpop.f32.mrf.mxu0
    %v6723 = vadd.f32 %v6628, %v6722
    %v6724 = vand.u32 %v1407, 4294901760
    %v6725 = vsub.f32 %v1407, %v6724
    %6726 = vmatmul.f32.gmra.mxu0 %v6725
    %v6727 = vpop.f32.mrf.mxu0
    %v6728 = vadd.f32 %v6632, %v6727
    %v6729 = vand.u32 %v1410, 4294901760
    %v6730 = vsub.f32 %v1410, %v6729
    %6731 = vmatmul.f32.gmra.mxu0 %v6730
    %v6732 = vpop.f32.mrf.mxu0
    %v6733 = vadd.f32 %v6636, %v6732
    %v6734 = vand.u32 %v1413, 4294901760
    %v6735 = vsub.f32 %v1413, %v6734
    %6736 = vmatmul.f32.gmra.mxu0 %v6735
    %v6737 = vpop.f32.mrf.mxu0
    %v6738 = vadd.f32 %v6640, %v6737
    %v6739 = vand.u32 %v1416, 4294901760
    %v6740 = vsub.f32 %v1416, %v6739
    %6741 = vmatmul.f32.gmra.mxu0 %v6740
    %v6742 = vpop.f32.mrf.mxu0
    %v6743 = vadd.f32 %v6644, %v6742
    %v6744 = vand.u32 %v1419, 4294901760
    %v6745 = vsub.f32 %v1419, %v6744
    %6746 = vmatmul.f32.gmra.mxu0 %v6745
    %v6747 = vpop.f32.mrf.mxu0
    %v6748 = vadd.f32 %v6648, %v6747
    %v6749 = vand.u32 %v1422, 4294901760
    %v6750 = vsub.f32 %v1422, %v6749
    %6751 = vmatmul.f32.gmra.mxu0 %v6750
    %v6752 = vpop.f32.mrf.mxu0
    %v6753 = vadd.f32 %v6652, %v6752
    %6754 = vdwg.mxu0
    %6755 = vmatpush.msra.mxu0 0.0
    %6756 = vmatpush.msra.mxu0 0.0
    %6757 = vmatpush.msra.mxu0 0.0
    %6758 = vmatpush.msra.mxu0 0.0
    %6759 = vmatpush.msra.mxu0 0.0
    %6760 = vmatpush.msra.mxu0 0.0
    %6761 = vmatpush.msra.mxu0 0.0
    %6762 = vmatpush.msra.mxu0 0.0
    %6763 = vmatpush.msra.mxu0 0.0
    %6764 = vmatpush.msra.mxu0 0.0
    %6765 = vmatpush.msra.mxu0 0.0
    %6766 = vmatpush.msra.mxu0 0.0
    %6767 = vmatpush.msra.mxu0 0.0
    %6768 = vmatpush.msra.mxu0 0.0
    %v6769 = vand.u32 %v1374, 4294901760
    %6770 = vmatpush.msra.mxu0 %v6769
    %v6771 = vand.u32 %v1364, 4294901760
    %6772 = vmatpush.msra.mxu0 %v6771
    %v6773 = vand.u32 %v1377, 4294901760
    %v6774 = vsub.f32 %v1377, %v6773
    %v6775 = vand.u32 %v6774, 4294901760
    %6776 = vmatmul.f32.gmra.mxu0 %v6775
    %v6777 = vpop.f32.mrf.mxu0
    %v6778 = vadd.f32 %v6678, %v6777
    %v6779 = vand.u32 %v1380, 4294901760
    %v6780 = vsub.f32 %v1380, %v6779
    %v6781 = vand.u32 %v6780, 4294901760
    %6782 = vmatmul.f32.gmra.mxu0 %v6781
    %v6783 = vpop.f32.mrf.mxu0
    %v6784 = vadd.f32 %v6683, %v6783
    %v6785 = vand.u32 %v1383, 4294901760
    %v6786 = vsub.f32 %v1383, %v6785
    %v6787 = vand.u32 %v6786, 4294901760
    %6788 = vmatmul.f32.gmra.mxu0 %v6787
    %v6789 = vpop.f32.mrf.mxu0
    %v6790 = vadd.f32 %v6688, %v6789
    %v6791 = vand.u32 %v1386, 4294901760
    %v6792 = vsub.f32 %v1386, %v6791
    %v6793 = vand.u32 %v6792, 4294901760
    %6794 = vmatmul.f32.gmra.mxu0 %v6793
    %v6795 = vpop.f32.mrf.mxu0
    %v6796 = vadd.f32 %v6693, %v6795
    %v6797 = vand.u32 %v1389, 4294901760
    %v6798 = vsub.f32 %v1389, %v6797
    %v6799 = vand.u32 %v6798, 4294901760
    %6800 = vmatmul.f32.gmra.mxu0 %v6799
    %v6801 = vpop.f32.mrf.mxu0
    %v6802 = vadd.f32 %v6698, %v6801
    %v6803 = vand.u32 %v1392, 4294901760
    %v6804 = vsub.f32 %v1392, %v6803
    %v6805 = vand.u32 %v6804, 4294901760
    %6806 = vmatmul.f32.gmra.mxu0 %v6805
    %v6807 = vpop.f32.mrf.mxu0
    %v6808 = vadd.f32 %v6703, %v6807
    %v6809 = vand.u32 %v1395, 4294901760
    %v6810 = vsub.f32 %v1395, %v6809
    %v6811 = vand.u32 %v6810, 4294901760
    %6812 = vmatmul.f32.gmra.mxu0 %v6811
    %v6813 = vpop.f32.mrf.mxu0
    %v6814 = vadd.f32 %v6708, %v6813
    %v6815 = vand.u32 %v1398, 4294901760
    %v6816 = vsub.f32 %v1398, %v6815
    %v6817 = vand.u32 %v6816, 4294901760
    %6818 = vmatmul.f32.gmra.mxu0 %v6817
    %v6819 = vpop.f32.mrf.mxu0
    %v6820 = vadd.f32 %v6713, %v6819
    %v6821 = vand.u32 %v1401, 4294901760
    %v6822 = vsub.f32 %v1401, %v6821
    %v6823 = vand.u32 %v6822, 4294901760
    %6824 = vmatmul.f32.gmra.mxu0 %v6823
    %v6825 = vpop.f32.mrf.mxu0
    %v6826 = vadd.f32 %v6718, %v6825
    %v6827 = vand.u32 %v1404, 4294901760
    %v6828 = vsub.f32 %v1404, %v6827
    %v6829 = vand.u32 %v6828, 4294901760
    %6830 = vmatmul.f32.gmra.mxu0 %v6829
    %v6831 = vpop.f32.mrf.mxu0
    %v6832 = vadd.f32 %v6723, %v6831
    %v6833 = vand.u32 %v1407, 4294901760
    %v6834 = vsub.f32 %v1407, %v6833
    %v6835 = vand.u32 %v6834, 4294901760
    %6836 = vmatmul.f32.gmra.mxu0 %v6835
    %v6837 = vpop.f32.mrf.mxu0
    %v6838 = vadd.f32 %v6728, %v6837
    %v6839 = vand.u32 %v1410, 4294901760
    %v6840 = vsub.f32 %v1410, %v6839
    %v6841 = vand.u32 %v6840, 4294901760
    %6842 = vmatmul.f32.gmra.mxu0 %v6841
    %v6843 = vpop.f32.mrf.mxu0
    %v6844 = vadd.f32 %v6733, %v6843
    %v6845 = vand.u32 %v1413, 4294901760
    %v6846 = vsub.f32 %v1413, %v6845
    %v6847 = vand.u32 %v6846, 4294901760
    %6848 = vmatmul.f32.gmra.mxu0 %v6847
    %v6849 = vpop.f32.mrf.mxu0
    %v6850 = vadd.f32 %v6738, %v6849
    %v6851 = vand.u32 %v1416, 4294901760
    %v6852 = vsub.f32 %v1416, %v6851
    %v6853 = vand.u32 %v6852, 4294901760
    %6854 = vmatmul.f32.gmra.mxu0 %v6853
    %v6855 = vpop.f32.mrf.mxu0
    %v6856 = vadd.f32 %v6743, %v6855
    %v6857 = vand.u32 %v1419, 4294901760
    %v6858 = vsub.f32 %v1419, %v6857
    %v6859 = vand.u32 %v6858, 4294901760
    %6860 = vmatmul.f32.gmra.mxu0 %v6859
    %v6861 = vpop.f32.mrf.mxu0
    %v6862 = vadd.f32 %v6748, %v6861
    %v6863 = vand.u32 %v1422, 4294901760
    %v6864 = vsub.f32 %v1422, %v6863
    %v6865 = vand.u32 %v6864, 4294901760
    %6866 = vmatmul.f32.gmra.mxu0 %v6865
    %v6867 = vpop.f32.mrf.mxu0
    %v6868 = vadd.f32 %v6753, %v6867
    %6869 = vdwg.mxu0
    %6870 = vmatpush.msra.mxu0 0.0
    %6871 = vmatpush.msra.mxu0 0.0
    %6872 = vmatpush.msra.mxu0 0.0
    %6873 = vmatpush.msra.mxu0 0.0
    %6874 = vmatpush.msra.mxu0 0.0
    %6875 = vmatpush.msra.mxu0 0.0
    %6876 = vmatpush.msra.mxu0 0.0
    %6877 = vmatpush.msra.mxu0 0.0
    %6878 = vmatpush.msra.mxu0 0.0
    %6879 = vmatpush.msra.mxu0 0.0
    %6880 = vmatpush.msra.mxu0 0.0
    %6881 = vmatpush.msra.mxu0 0.0
    %6882 = vmatpush.msra.mxu0 0.0
    %6883 = vmatpush.msra.mxu0 0.0
    %v6884 = vand.u32 %v1374, 4294901760
    %v6885 = vsub.f32 %v1374, %v6884
    %v6886 = vand.u32 %v6885, 4294901760
    %6887 = vmatpush.msra.mxu0 %v6886
    %v6888 = vand.u32 %v1364, 4294901760
    %v6889 = vsub.f32 %v1364, %v6888
    %v6890 = vand.u32 %v6889, 4294901760
    %6891 = vmatpush.msra.mxu0 %v6890
    %v6892 = vand.u32 %v1377, 4294901760
    %6893 = vmatmul.f32.gmra.mxu0 %v6892
    %v6894 = vpop.f32.mrf.mxu0
    %v6895 = vadd.f32 %v6778, %v6894
    %v6896 = vand.u32 %v1380, 4294901760
    %6897 = vmatmul.f32.gmra.mxu0 %v6896
    %v6898 = vpop.f32.mrf.mxu0
    %v6899 = vadd.f32 %v6784, %v6898
    %v6900 = vand.u32 %v1383, 4294901760
    %6901 = vmatmul.f32.gmra.mxu0 %v6900
    %v6902 = vpop.f32.mrf.mxu0
    %v6903 = vadd.f32 %v6790, %v6902
    %v6904 = vand.u32 %v1386, 4294901760
    %6905 = vmatmul.f32.gmra.mxu0 %v6904
    %v6906 = vpop.f32.mrf.mxu0
    %v6907 = vadd.f32 %v6796, %v6906
    %v6908 = vand.u32 %v1389, 4294901760
    %6909 = vmatmul.f32.gmra.mxu0 %v6908
    %v6910 = vpop.f32.mrf.mxu0
    %v6911 = vadd.f32 %v6802, %v6910
    %v6912 = vand.u32 %v1392, 4294901760
    %6913 = vmatmul.f32.gmra.mxu0 %v6912
    %v6914 = vpop.f32.mrf.mxu0
    %v6915 = vadd.f32 %v6808, %v6914
    %v6916 = vand.u32 %v1395, 4294901760
    %6917 = vmatmul.f32.gmra.mxu0 %v6916
    %v6918 = vpop.f32.mrf.mxu0
    %v6919 = vadd.f32 %v6814, %v6918
    %v6920 = vand.u32 %v1398, 4294901760
    %6921 = vmatmul.f32.gmra.mxu0 %v6920
    %v6922 = vpop.f32.mrf.mxu0
    %v6923 = vadd.f32 %v6820, %v6922
    %v6924 = vand.u32 %v1401, 4294901760
    %6925 = vmatmul.f32.gmra.mxu0 %v6924
    %v6926 = vpop.f32.mrf.mxu0
    %v6927 = vadd.f32 %v6826, %v6926
    %v6928 = vand.u32 %v1404, 4294901760
    %6929 = vmatmul.f32.gmra.mxu0 %v6928
    %v6930 = vpop.f32.mrf.mxu0
    %v6931 = vadd.f32 %v6832, %v6930
    %v6932 = vand.u32 %v1407, 4294901760
    %6933 = vmatmul.f32.gmra.mxu0 %v6932
    %v6934 = vpop.f32.mrf.mxu0
    %v6935 = vadd.f32 %v6838, %v6934
    %v6936 = vand.u32 %v1410, 4294901760
    %6937 = vmatmul.f32.gmra.mxu0 %v6936
    %v6938 = vpop.f32.mrf.mxu0
    %v6939 = vadd.f32 %v6844, %v6938
    %v6940 = vand.u32 %v1413, 4294901760
    %6941 = vmatmul.f32.gmra.mxu0 %v6940
    %v6942 = vpop.f32.mrf.mxu0
    %v6943 = vadd.f32 %v6850, %v6942
    %v6944 = vand.u32 %v1416, 4294901760
    %6945 = vmatmul.f32.gmra.mxu0 %v6944
    %v6946 = vpop.f32.mrf.mxu0
    %v6947 = vadd.f32 %v6856, %v6946
    %v6948 = vand.u32 %v1419, 4294901760
    %6949 = vmatmul.f32.gmra.mxu0 %v6948
    %v6950 = vpop.f32.mrf.mxu0
    %v6951 = vadd.f32 %v6862, %v6950
    %v6952 = vand.u32 %v1422, 4294901760
    %6953 = vmatmul.f32.gmra.mxu0 %v6952
    %v6954 = vpop.f32.mrf.mxu0
    %v6955 = vadd.f32 %v6868, %v6954
    %6956 = vdwg.mxu0
    %6957 = vmatpush.msra.mxu0 0.0
    %6958 = vmatpush.msra.mxu0 0.0
    %6959 = vmatpush.msra.mxu0 0.0
    %6960 = vmatpush.msra.mxu0 0.0
    %6961 = vmatpush.msra.mxu0 0.0
    %6962 = vmatpush.msra.mxu0 0.0
    %6963 = vmatpush.msra.mxu0 0.0
    %6964 = vmatpush.msra.mxu0 0.0
    %6965 = vmatpush.msra.mxu0 0.0
    %6966 = vmatpush.msra.mxu0 0.0
    %6967 = vmatpush.msra.mxu0 0.0
    %6968 = vmatpush.msra.mxu0 0.0
    %6969 = vmatpush.msra.mxu0 0.0
    %6970 = vmatpush.msra.mxu0 0.0
    %v6971 = vand.u32 %v1374, 4294901760
    %6972 = vmatpush.msra.mxu0 %v6971
    %v6973 = vand.u32 %v1364, 4294901760
    %6974 = vmatpush.msra.mxu0 %v6973
    %v6975 = vand.u32 %v1377, 4294901760
    %6976 = vmatmul.f32.gmra.mxu0 %v6975
    %v6977 = vpop.f32.mrf.mxu0
    %v6978 = vadd.f32 %v6895, %v6977
    %v6979 = vand.u32 %v1380, 4294901760
    %6980 = vmatmul.f32.gmra.mxu0 %v6979
    %v6981 = vpop.f32.mrf.mxu0
    %v6982 = vadd.f32 %v6899, %v6981
    %v6983 = vand.u32 %v1383, 4294901760
    %6984 = vmatmul.f32.gmra.mxu0 %v6983
    %v6985 = vpop.f32.mrf.mxu0
    %v6986 = vadd.f32 %v6903, %v6985
    %v6987 = vand.u32 %v1386, 4294901760
    %6988 = vmatmul.f32.gmra.mxu0 %v6987
    %v6989 = vpop.f32.mrf.mxu0
    %v6990 = vadd.f32 %v6907, %v6989
    %v6991 = vand.u32 %v1389, 4294901760
    %6992 = vmatmul.f32.gmra.mxu0 %v6991
    %v6993 = vpop.f32.mrf.mxu0
    %v6994 = vadd.f32 %v6911, %v6993
    %v6995 = vand.u32 %v1392, 4294901760
    %6996 = vmatmul.f32.gmra.mxu0 %v6995
    %v6997 = vpop.f32.mrf.mxu0
    %v6998 = vadd.f32 %v6915, %v6997
    %v6999 = vand.u32 %v1395, 4294901760
    %7000 = vmatmul.f32.gmra.mxu0 %v6999
    %v7001 = vpop.f32.mrf.mxu0
    %v7002 = vadd.f32 %v6919, %v7001
    %v7003 = vand.u32 %v1398, 4294901760
    %7004 = vmatmul.f32.gmra.mxu0 %v7003
    %v7005 = vpop.f32.mrf.mxu0
    %v7006 = vadd.f32 %v6923, %v7005
    %v7007 = vand.u32 %v1401, 4294901760
    %7008 = vmatmul.f32.gmra.mxu0 %v7007
    %v7009 = vpop.f32.mrf.mxu0
    %v7010 = vadd.f32 %v6927, %v7009
    %v7011 = vand.u32 %v1404, 4294901760
    %7012 = vmatmul.f32.gmra.mxu0 %v7011
    %v7013 = vpop.f32.mrf.mxu0
    %v7014 = vadd.f32 %v6931, %v7013
    %v7015 = vand.u32 %v1407, 4294901760
    %7016 = vmatmul.f32.gmra.mxu0 %v7015
    %v7017 = vpop.f32.mrf.mxu0
    %v7018 = vadd.f32 %v6935, %v7017
    %v7019 = vand.u32 %v1410, 4294901760
    %7020 = vmatmul.f32.gmra.mxu0 %v7019
    %v7021 = vpop.f32.mrf.mxu0
    %v7022 = vadd.f32 %v6939, %v7021
    %v7023 = vand.u32 %v1413, 4294901760
    %7024 = vmatmul.f32.gmra.mxu0 %v7023
    %v7025 = vpop.f32.mrf.mxu0
    %v7026 = vadd.f32 %v6943, %v7025
    %v7027 = vand.u32 %v1416, 4294901760
    %7028 = vmatmul.f32.gmra.mxu0 %v7027
    %v7029 = vpop.f32.mrf.mxu0
    %v7030 = vadd.f32 %v6947, %v7029
    %v7031 = vand.u32 %v1419, 4294901760
    %7032 = vmatmul.f32.gmra.mxu0 %v7031
    %v7033 = vpop.f32.mrf.mxu0
    %v7034 = vadd.f32 %v6951, %v7033
    %v7035 = vand.u32 %v1422, 4294901760
    %7036 = vmatmul.f32.gmra.mxu0 %v7035
    %v7037 = vpop.f32.mrf.mxu0
    %v7038 = vadd.f32 %v6955, %v7037
    %7039 = vdwg.mxu0
    %7040 = vmatpush.msra.mxu0 0.0
    %7041 = vmatpush.msra.mxu0 0.0
    %7042 = vmatpush.msra.mxu0 0.0
    %7043 = vmatpush.msra.mxu0 0.0
    %7044 = vmatpush.msra.mxu0 0.0
    %7045 = vmatpush.msra.mxu0 0.0
    %7046 = vmatpush.msra.mxu0 0.0
    %7047 = vmatpush.msra.mxu0 0.0
    %7048 = vmatpush.msra.mxu0 0.0
    %7049 = vmatpush.msra.mxu0 0.0
    %7050 = vmatpush.msra.mxu0 0.0
    %7051 = vmatpush.msra.mxu0 0.0
    %7052 = vmatpush.msra.mxu0 0.0
    %7053 = vmatpush.msra.mxu0 0.0
    %v7054 = vand.u32 %v1375, 4294901760
    %7055 = vmatpush.msra.mxu0 %v7054
    %v7056 = vand.u32 %v1365, 4294901760
    %7057 = vmatpush.msra.mxu0 %v7056
    %v7058 = vand.u32 %v1377, 4294901760
    %v7059 = vsub.f32 %v1377, %v7058
    %v7060 = vand.u32 %v7059, 4294901760
    %v7061 = vsub.f32 %v7059, %v7060
    %v7062 = vand.u32 %v7061, 4294901760
    %7063 = vmatmul.f32.gmra.mxu0 %v7062
    %v7064 = vpop.f32.mrf.mxu0
    %v7065 = vadd.f32 0.0, %v7064
    %v7066 = vand.u32 %v1380, 4294901760
    %v7067 = vsub.f32 %v1380, %v7066
    %v7068 = vand.u32 %v7067, 4294901760
    %v7069 = vsub.f32 %v7067, %v7068
    %v7070 = vand.u32 %v7069, 4294901760
    %7071 = vmatmul.f32.gmra.mxu0 %v7070
    %v7072 = vpop.f32.mrf.mxu0
    %v7073 = vadd.f32 0.0, %v7072
    %v7074 = vand.u32 %v1383, 4294901760
    %v7075 = vsub.f32 %v1383, %v7074
    %v7076 = vand.u32 %v7075, 4294901760
    %v7077 = vsub.f32 %v7075, %v7076
    %v7078 = vand.u32 %v7077, 4294901760
    %7079 = vmatmul.f32.gmra.mxu0 %v7078
    %v7080 = vpop.f32.mrf.mxu0
    %v7081 = vadd.f32 0.0, %v7080
    %v7082 = vand.u32 %v1386, 4294901760
    %v7083 = vsub.f32 %v1386, %v7082
    %v7084 = vand.u32 %v7083, 4294901760
    %v7085 = vsub.f32 %v7083, %v7084
    %v7086 = vand.u32 %v7085, 4294901760
    %7087 = vmatmul.f32.gmra.mxu0 %v7086
    %v7088 = vpop.f32.mrf.mxu0
    %v7089 = vadd.f32 0.0, %v7088
    %v7090 = vand.u32 %v1389, 4294901760
    %v7091 = vsub.f32 %v1389, %v7090
    %v7092 = vand.u32 %v7091, 4294901760
    %v7093 = vsub.f32 %v7091, %v7092
    %v7094 = vand.u32 %v7093, 4294901760
    %7095 = vmatmul.f32.gmra.mxu0 %v7094
    %v7096 = vpop.f32.mrf.mxu0
    %v7097 = vadd.f32 0.0, %v7096
    %v7098 = vand.u32 %v1392, 4294901760
    %v7099 = vsub.f32 %v1392, %v7098
    %v7100 = vand.u32 %v7099, 4294901760
    %v7101 = vsub.f32 %v7099, %v7100
    %v7102 = vand.u32 %v7101, 4294901760
    %7103 = vmatmul.f32.gmra.mxu0 %v7102
    %v7104 = vpop.f32.mrf.mxu0
    %v7105 = vadd.f32 0.0, %v7104
    %v7106 = vand.u32 %v1395, 4294901760
    %v7107 = vsub.f32 %v1395, %v7106
    %v7108 = vand.u32 %v7107, 4294901760
    %v7109 = vsub.f32 %v7107, %v7108
    %v7110 = vand.u32 %v7109, 4294901760
    %7111 = vmatmul.f32.gmra.mxu0 %v7110
    %v7112 = vpop.f32.mrf.mxu0
    %v7113 = vadd.f32 0.0, %v7112
    %v7114 = vand.u32 %v1398, 4294901760
    %v7115 = vsub.f32 %v1398, %v7114
    %v7116 = vand.u32 %v7115, 4294901760
    %v7117 = vsub.f32 %v7115, %v7116
    %v7118 = vand.u32 %v7117, 4294901760
    %7119 = vmatmul.f32.gmra.mxu0 %v7118
    %v7120 = vpop.f32.mrf.mxu0
    %v7121 = vadd.f32 0.0, %v7120
    %v7122 = vand.u32 %v1401, 4294901760
    %v7123 = vsub.f32 %v1401, %v7122
    %v7124 = vand.u32 %v7123, 4294901760
    %v7125 = vsub.f32 %v7123, %v7124
    %v7126 = vand.u32 %v7125, 4294901760
    %7127 = vmatmul.f32.gmra.mxu0 %v7126
    %v7128 = vpop.f32.mrf.mxu0
    %v7129 = vadd.f32 0.0, %v7128
    %v7130 = vand.u32 %v1404, 4294901760
    %v7131 = vsub.f32 %v1404, %v7130
    %v7132 = vand.u32 %v7131, 4294901760
    %v7133 = vsub.f32 %v7131, %v7132
    %v7134 = vand.u32 %v7133, 4294901760
    %7135 = vmatmul.f32.gmra.mxu0 %v7134
    %v7136 = vpop.f32.mrf.mxu0
    %v7137 = vadd.f32 0.0, %v7136
    %v7138 = vand.u32 %v1407, 4294901760
    %v7139 = vsub.f32 %v1407, %v7138
    %v7140 = vand.u32 %v7139, 4294901760
    %v7141 = vsub.f32 %v7139, %v7140
    %v7142 = vand.u32 %v7141, 4294901760
    %7143 = vmatmul.f32.gmra.mxu0 %v7142
    %v7144 = vpop.f32.mrf.mxu0
    %v7145 = vadd.f32 0.0, %v7144
    %v7146 = vand.u32 %v1410, 4294901760
    %v7147 = vsub.f32 %v1410, %v7146
    %v7148 = vand.u32 %v7147, 4294901760
    %v7149 = vsub.f32 %v7147, %v7148
    %v7150 = vand.u32 %v7149, 4294901760
    %7151 = vmatmul.f32.gmra.mxu0 %v7150
    %v7152 = vpop.f32.mrf.mxu0
    %v7153 = vadd.f32 0.0, %v7152
    %v7154 = vand.u32 %v1413, 4294901760
    %v7155 = vsub.f32 %v1413, %v7154
    %v7156 = vand.u32 %v7155, 4294901760
    %v7157 = vsub.f32 %v7155, %v7156
    %v7158 = vand.u32 %v7157, 4294901760
    %7159 = vmatmul.f32.gmra.mxu0 %v7158
    %v7160 = vpop.f32.mrf.mxu0
    %v7161 = vadd.f32 0.0, %v7160
    %v7162 = vand.u32 %v1416, 4294901760
    %v7163 = vsub.f32 %v1416, %v7162
    %v7164 = vand.u32 %v7163, 4294901760
    %v7165 = vsub.f32 %v7163, %v7164
    %v7166 = vand.u32 %v7165, 4294901760
    %7167 = vmatmul.f32.gmra.mxu0 %v7166
    %v7168 = vpop.f32.mrf.mxu0
    %v7169 = vadd.f32 0.0, %v7168
    %v7170 = vand.u32 %v1419, 4294901760
    %v7171 = vsub.f32 %v1419, %v7170
    %v7172 = vand.u32 %v7171, 4294901760
    %v7173 = vsub.f32 %v7171, %v7172
    %v7174 = vand.u32 %v7173, 4294901760
    %7175 = vmatmul.f32.gmra.mxu0 %v7174
    %v7176 = vpop.f32.mrf.mxu0
    %v7177 = vadd.f32 0.0, %v7176
    %v7178 = vand.u32 %v1422, 4294901760
    %v7179 = vsub.f32 %v1422, %v7178
    %v7180 = vand.u32 %v7179, 4294901760
    %v7181 = vsub.f32 %v7179, %v7180
    %v7182 = vand.u32 %v7181, 4294901760
    %7183 = vmatmul.f32.gmra.mxu0 %v7182
    %v7184 = vpop.f32.mrf.mxu0
    %v7185 = vadd.f32 0.0, %v7184
    %7186 = vdwg.mxu0
    %7187 = vmatpush.msra.mxu0 0.0
    %7188 = vmatpush.msra.mxu0 0.0
    %7189 = vmatpush.msra.mxu0 0.0
    %7190 = vmatpush.msra.mxu0 0.0
    %7191 = vmatpush.msra.mxu0 0.0
    %7192 = vmatpush.msra.mxu0 0.0
    %7193 = vmatpush.msra.mxu0 0.0
    %7194 = vmatpush.msra.mxu0 0.0
    %7195 = vmatpush.msra.mxu0 0.0
    %7196 = vmatpush.msra.mxu0 0.0
    %7197 = vmatpush.msra.mxu0 0.0
    %7198 = vmatpush.msra.mxu0 0.0
    %7199 = vmatpush.msra.mxu0 0.0
    %7200 = vmatpush.msra.mxu0 0.0
    %v7201 = vand.u32 %v1375, 4294901760
    %v7202 = vsub.f32 %v1375, %v7201
    %v7203 = vand.u32 %v7202, 4294901760
    %v7204 = vsub.f32 %v7202, %v7203
    %v7205 = vand.u32 %v7204, 4294901760
    %7206 = vmatpush.msra.mxu0 %v7205
    %v7207 = vand.u32 %v1365, 4294901760
    %v7208 = vsub.f32 %v1365, %v7207
    %v7209 = vand.u32 %v7208, 4294901760
    %v7210 = vsub.f32 %v7208, %v7209
    %v7211 = vand.u32 %v7210, 4294901760
    %7212 = vmatpush.msra.mxu0 %v7211
    %v7213 = vand.u32 %v1377, 4294901760
    %7214 = vmatmul.f32.gmra.mxu0 %v7213
    %v7215 = vpop.f32.mrf.mxu0
    %v7216 = vadd.f32 %v7065, %v7215
    %v7217 = vand.u32 %v1380, 4294901760
    %7218 = vmatmul.f32.gmra.mxu0 %v7217
    %v7219 = vpop.f32.mrf.mxu0
    %v7220 = vadd.f32 %v7073, %v7219
    %v7221 = vand.u32 %v1383, 4294901760
    %7222 = vmatmul.f32.gmra.mxu0 %v7221
    %v7223 = vpop.f32.mrf.mxu0
    %v7224 = vadd.f32 %v7081, %v7223
    %v7225 = vand.u32 %v1386, 4294901760
    %7226 = vmatmul.f32.gmra.mxu0 %v7225
    %v7227 = vpop.f32.mrf.mxu0
    %v7228 = vadd.f32 %v7089, %v7227
    %v7229 = vand.u32 %v1389, 4294901760
    %7230 = vmatmul.f32.gmra.mxu0 %v7229
    %v7231 = vpop.f32.mrf.mxu0
    %v7232 = vadd.f32 %v7097, %v7231
    %v7233 = vand.u32 %v1392, 4294901760
    %7234 = vmatmul.f32.gmra.mxu0 %v7233
    %v7235 = vpop.f32.mrf.mxu0
    %v7236 = vadd.f32 %v7105, %v7235
    %v7237 = vand.u32 %v1395, 4294901760
    %7238 = vmatmul.f32.gmra.mxu0 %v7237
    %v7239 = vpop.f32.mrf.mxu0
    %v7240 = vadd.f32 %v7113, %v7239
    %v7241 = vand.u32 %v1398, 4294901760
    %7242 = vmatmul.f32.gmra.mxu0 %v7241
    %v7243 = vpop.f32.mrf.mxu0
    %v7244 = vadd.f32 %v7121, %v7243
    %v7245 = vand.u32 %v1401, 4294901760
    %7246 = vmatmul.f32.gmra.mxu0 %v7245
    %v7247 = vpop.f32.mrf.mxu0
    %v7248 = vadd.f32 %v7129, %v7247
    %v7249 = vand.u32 %v1404, 4294901760
    %7250 = vmatmul.f32.gmra.mxu0 %v7249
    %v7251 = vpop.f32.mrf.mxu0
    %v7252 = vadd.f32 %v7137, %v7251
    %v7253 = vand.u32 %v1407, 4294901760
    %7254 = vmatmul.f32.gmra.mxu0 %v7253
    %v7255 = vpop.f32.mrf.mxu0
    %v7256 = vadd.f32 %v7145, %v7255
    %v7257 = vand.u32 %v1410, 4294901760
    %7258 = vmatmul.f32.gmra.mxu0 %v7257
    %v7259 = vpop.f32.mrf.mxu0
    %v7260 = vadd.f32 %v7153, %v7259
    %v7261 = vand.u32 %v1413, 4294901760
    %7262 = vmatmul.f32.gmra.mxu0 %v7261
    %v7263 = vpop.f32.mrf.mxu0
    %v7264 = vadd.f32 %v7161, %v7263
    %v7265 = vand.u32 %v1416, 4294901760
    %7266 = vmatmul.f32.gmra.mxu0 %v7265
    %v7267 = vpop.f32.mrf.mxu0
    %v7268 = vadd.f32 %v7169, %v7267
    %v7269 = vand.u32 %v1419, 4294901760
    %7270 = vmatmul.f32.gmra.mxu0 %v7269
    %v7271 = vpop.f32.mrf.mxu0
    %v7272 = vadd.f32 %v7177, %v7271
    %v7273 = vand.u32 %v1422, 4294901760
    %7274 = vmatmul.f32.gmra.mxu0 %v7273
    %v7275 = vpop.f32.mrf.mxu0
    %v7276 = vadd.f32 %v7185, %v7275
    %7277 = vdwg.mxu0
    %7278 = vmatpush.msra.mxu0 0.0
    %7279 = vmatpush.msra.mxu0 0.0
    %7280 = vmatpush.msra.mxu0 0.0
    %7281 = vmatpush.msra.mxu0 0.0
    %7282 = vmatpush.msra.mxu0 0.0
    %7283 = vmatpush.msra.mxu0 0.0
    %7284 = vmatpush.msra.mxu0 0.0
    %7285 = vmatpush.msra.mxu0 0.0
    %7286 = vmatpush.msra.mxu0 0.0
    %7287 = vmatpush.msra.mxu0 0.0
    %7288 = vmatpush.msra.mxu0 0.0
    %7289 = vmatpush.msra.mxu0 0.0
    %7290 = vmatpush.msra.mxu0 0.0
    %7291 = vmatpush.msra.mxu0 0.0
    %v7292 = vand.u32 %v1375, 4294901760
    %v7293 = vsub.f32 %v1375, %v7292
    %7294 = vmatpush.msra.mxu0 %v7293
    %v7295 = vand.u32 %v1365, 4294901760
    %v7296 = vsub.f32 %v1365, %v7295
    %7297 = vmatpush.msra.mxu0 %v7296
    %v7298 = vand.u32 %v1377, 4294901760
    %v7299 = vsub.f32 %v1377, %v7298
    %7300 = vmatmul.f32.gmra.mxu0 %v7299
    %v7301 = vpop.f32.mrf.mxu0
    %v7302 = vadd.f32 %v7216, %v7301
    %v7303 = vand.u32 %v1380, 4294901760
    %v7304 = vsub.f32 %v1380, %v7303
    %7305 = vmatmul.f32.gmra.mxu0 %v7304
    %v7306 = vpop.f32.mrf.mxu0
    %v7307 = vadd.f32 %v7220, %v7306
    %v7308 = vand.u32 %v1383, 4294901760
    %v7309 = vsub.f32 %v1383, %v7308
    %7310 = vmatmul.f32.gmra.mxu0 %v7309
    %v7311 = vpop.f32.mrf.mxu0
    %v7312 = vadd.f32 %v7224, %v7311
    %v7313 = vand.u32 %v1386, 4294901760
    %v7314 = vsub.f32 %v1386, %v7313
    %7315 = vmatmul.f32.gmra.mxu0 %v7314
    %v7316 = vpop.f32.mrf.mxu0
    %v7317 = vadd.f32 %v7228, %v7316
    %v7318 = vand.u32 %v1389, 4294901760
    %v7319 = vsub.f32 %v1389, %v7318
    %7320 = vmatmul.f32.gmra.mxu0 %v7319
    %v7321 = vpop.f32.mrf.mxu0
    %v7322 = vadd.f32 %v7232, %v7321
    %v7323 = vand.u32 %v1392, 4294901760
    %v7324 = vsub.f32 %v1392, %v7323
    %7325 = vmatmul.f32.gmra.mxu0 %v7324
    %v7326 = vpop.f32.mrf.mxu0
    %v7327 = vadd.f32 %v7236, %v7326
    %v7328 = vand.u32 %v1395, 4294901760
    %v7329 = vsub.f32 %v1395, %v7328
    %7330 = vmatmul.f32.gmra.mxu0 %v7329
    %v7331 = vpop.f32.mrf.mxu0
    %v7332 = vadd.f32 %v7240, %v7331
    %v7333 = vand.u32 %v1398, 4294901760
    %v7334 = vsub.f32 %v1398, %v7333
    %7335 = vmatmul.f32.gmra.mxu0 %v7334
    %v7336 = vpop.f32.mrf.mxu0
    %v7337 = vadd.f32 %v7244, %v7336
    %v7338 = vand.u32 %v1401, 4294901760
    %v7339 = vsub.f32 %v1401, %v7338
    %7340 = vmatmul.f32.gmra.mxu0 %v7339
    %v7341 = vpop.f32.mrf.mxu0
    %v7342 = vadd.f32 %v7248, %v7341
    %v7343 = vand.u32 %v1404, 4294901760
    %v7344 = vsub.f32 %v1404, %v7343
    %7345 = vmatmul.f32.gmra.mxu0 %v7344
    %v7346 = vpop.f32.mrf.mxu0
    %v7347 = vadd.f32 %v7252, %v7346
    %v7348 = vand.u32 %v1407, 4294901760
    %v7349 = vsub.f32 %v1407, %v7348
    %7350 = vmatmul.f32.gmra.mxu0 %v7349
    %v7351 = vpop.f32.mrf.mxu0
    %v7352 = vadd.f32 %v7256, %v7351
    %v7353 = vand.u32 %v1410, 4294901760
    %v7354 = vsub.f32 %v1410, %v7353
    %7355 = vmatmul.f32.gmra.mxu0 %v7354
    %v7356 = vpop.f32.mrf.mxu0
    %v7357 = vadd.f32 %v7260, %v7356
    %v7358 = vand.u32 %v1413, 4294901760
    %v7359 = vsub.f32 %v1413, %v7358
    %7360 = vmatmul.f32.gmra.mxu0 %v7359
    %v7361 = vpop.f32.mrf.mxu0
    %v7362 = vadd.f32 %v7264, %v7361
    %v7363 = vand.u32 %v1416, 4294901760
    %v7364 = vsub.f32 %v1416, %v7363
    %7365 = vmatmul.f32.gmra.mxu0 %v7364
    %v7366 = vpop.f32.mrf.mxu0
    %v7367 = vadd.f32 %v7268, %v7366
    %v7368 = vand.u32 %v1419, 4294901760
    %v7369 = vsub.f32 %v1419, %v7368
    %7370 = vmatmul.f32.gmra.mxu0 %v7369
    %v7371 = vpop.f32.mrf.mxu0
    %v7372 = vadd.f32 %v7272, %v7371
    %v7373 = vand.u32 %v1422, 4294901760
    %v7374 = vsub.f32 %v1422, %v7373
    %7375 = vmatmul.f32.gmra.mxu0 %v7374
    %v7376 = vpop.f32.mrf.mxu0
    %v7377 = vadd.f32 %v7276, %v7376
    %7378 = vdwg.mxu0
    %7379 = vmatpush.msra.mxu0 0.0
    %7380 = vmatpush.msra.mxu0 0.0
    %7381 = vmatpush.msra.mxu0 0.0
    %7382 = vmatpush.msra.mxu0 0.0
    %7383 = vmatpush.msra.mxu0 0.0
    %7384 = vmatpush.msra.mxu0 0.0
    %7385 = vmatpush.msra.mxu0 0.0
    %7386 = vmatpush.msra.mxu0 0.0
    %7387 = vmatpush.msra.mxu0 0.0
    %7388 = vmatpush.msra.mxu0 0.0
    %7389 = vmatpush.msra.mxu0 0.0
    %7390 = vmatpush.msra.mxu0 0.0
    %7391 = vmatpush.msra.mxu0 0.0
    %7392 = vmatpush.msra.mxu0 0.0
    %v7393 = vand.u32 %v1375, 4294901760
    %7394 = vmatpush.msra.mxu0 %v7393
    %v7395 = vand.u32 %v1365, 4294901760
    %7396 = vmatpush.msra.mxu0 %v7395
    %v7397 = vand.u32 %v1377, 4294901760
    %v7398 = vsub.f32 %v1377, %v7397
    %v7399 = vand.u32 %v7398, 4294901760
    %7400 = vmatmul.f32.gmra.mxu0 %v7399
    %v7401 = vpop.f32.mrf.mxu0
    %v7402 = vadd.f32 %v7302, %v7401
    %v7403 = vand.u32 %v1380, 4294901760
    %v7404 = vsub.f32 %v1380, %v7403
    %v7405 = vand.u32 %v7404, 4294901760
    %7406 = vmatmul.f32.gmra.mxu0 %v7405
    %v7407 = vpop.f32.mrf.mxu0
    %v7408 = vadd.f32 %v7307, %v7407
    %v7409 = vand.u32 %v1383, 4294901760
    %v7410 = vsub.f32 %v1383, %v7409
    %v7411 = vand.u32 %v7410, 4294901760
    %7412 = vmatmul.f32.gmra.mxu0 %v7411
    %v7413 = vpop.f32.mrf.mxu0
    %v7414 = vadd.f32 %v7312, %v7413
    %v7415 = vand.u32 %v1386, 4294901760
    %v7416 = vsub.f32 %v1386, %v7415
    %v7417 = vand.u32 %v7416, 4294901760
    %7418 = vmatmul.f32.gmra.mxu0 %v7417
    %v7419 = vpop.f32.mrf.mxu0
    %v7420 = vadd.f32 %v7317, %v7419
    %v7421 = vand.u32 %v1389, 4294901760
    %v7422 = vsub.f32 %v1389, %v7421
    %v7423 = vand.u32 %v7422, 4294901760
    %7424 = vmatmul.f32.gmra.mxu0 %v7423
    %v7425 = vpop.f32.mrf.mxu0
    %v7426 = vadd.f32 %v7322, %v7425
    %v7427 = vand.u32 %v1392, 4294901760
    %v7428 = vsub.f32 %v1392, %v7427
    %v7429 = vand.u32 %v7428, 4294901760
    %7430 = vmatmul.f32.gmra.mxu0 %v7429
    %v7431 = vpop.f32.mrf.mxu0
    %v7432 = vadd.f32 %v7327, %v7431
    %v7433 = vand.u32 %v1395, 4294901760
    %v7434 = vsub.f32 %v1395, %v7433
    %v7435 = vand.u32 %v7434, 4294901760
    %7436 = vmatmul.f32.gmra.mxu0 %v7435
    %v7437 = vpop.f32.mrf.mxu0
    %v7438 = vadd.f32 %v7332, %v7437
    %v7439 = vand.u32 %v1398, 4294901760
    %v7440 = vsub.f32 %v1398, %v7439
    %v7441 = vand.u32 %v7440, 4294901760
    %7442 = vmatmul.f32.gmra.mxu0 %v7441
    %v7443 = vpop.f32.mrf.mxu0
    %v7444 = vadd.f32 %v7337, %v7443
    %v7445 = vand.u32 %v1401, 4294901760
    %v7446 = vsub.f32 %v1401, %v7445
    %v7447 = vand.u32 %v7446, 4294901760
    %7448 = vmatmul.f32.gmra.mxu0 %v7447
    %v7449 = vpop.f32.mrf.mxu0
    %v7450 = vadd.f32 %v7342, %v7449
    %v7451 = vand.u32 %v1404, 4294901760
    %v7452 = vsub.f32 %v1404, %v7451
    %v7453 = vand.u32 %v7452, 4294901760
    %7454 = vmatmul.f32.gmra.mxu0 %v7453
    %v7455 = vpop.f32.mrf.mxu0
    %v7456 = vadd.f32 %v7347, %v7455
    %v7457 = vand.u32 %v1407, 4294901760
    %v7458 = vsub.f32 %v1407, %v7457
    %v7459 = vand.u32 %v7458, 4294901760
    %7460 = vmatmul.f32.gmra.mxu0 %v7459
    %v7461 = vpop.f32.mrf.mxu0
    %v7462 = vadd.f32 %v7352, %v7461
    %v7463 = vand.u32 %v1410, 4294901760
    %v7464 = vsub.f32 %v1410, %v7463
    %v7465 = vand.u32 %v7464, 4294901760
    %7466 = vmatmul.f32.gmra.mxu0 %v7465
    %v7467 = vpop.f32.mrf.mxu0
    %v7468 = vadd.f32 %v7357, %v7467
    %v7469 = vand.u32 %v1413, 4294901760
    %v7470 = vsub.f32 %v1413, %v7469
    %v7471 = vand.u32 %v7470, 4294901760
    %7472 = vmatmul.f32.gmra.mxu0 %v7471
    %v7473 = vpop.f32.mrf.mxu0
    %v7474 = vadd.f32 %v7362, %v7473
    %v7475 = vand.u32 %v1416, 4294901760
    %v7476 = vsub.f32 %v1416, %v7475
    %v7477 = vand.u32 %v7476, 4294901760
    %7478 = vmatmul.f32.gmra.mxu0 %v7477
    %v7479 = vpop.f32.mrf.mxu0
    %v7480 = vadd.f32 %v7367, %v7479
    %v7481 = vand.u32 %v1419, 4294901760
    %v7482 = vsub.f32 %v1419, %v7481
    %v7483 = vand.u32 %v7482, 4294901760
    %7484 = vmatmul.f32.gmra.mxu0 %v7483
    %v7485 = vpop.f32.mrf.mxu0
    %v7486 = vadd.f32 %v7372, %v7485
    %v7487 = vand.u32 %v1422, 4294901760
    %v7488 = vsub.f32 %v1422, %v7487
    %v7489 = vand.u32 %v7488, 4294901760
    %7490 = vmatmul.f32.gmra.mxu0 %v7489
    %v7491 = vpop.f32.mrf.mxu0
    %v7492 = vadd.f32 %v7377, %v7491
    %7493 = vdwg.mxu0
    %7494 = vmatpush.msra.mxu0 0.0
    %7495 = vmatpush.msra.mxu0 0.0
    %7496 = vmatpush.msra.mxu0 0.0
    %7497 = vmatpush.msra.mxu0 0.0
    %7498 = vmatpush.msra.mxu0 0.0
    %7499 = vmatpush.msra.mxu0 0.0
    %7500 = vmatpush.msra.mxu0 0.0
    %7501 = vmatpush.msra.mxu0 0.0
    %7502 = vmatpush.msra.mxu0 0.0
    %7503 = vmatpush.msra.mxu0 0.0
    %7504 = vmatpush.msra.mxu0 0.0
    %7505 = vmatpush.msra.mxu0 0.0
    %7506 = vmatpush.msra.mxu0 0.0
    %7507 = vmatpush.msra.mxu0 0.0
    %v7508 = vand.u32 %v1375, 4294901760
    %v7509 = vsub.f32 %v1375, %v7508
    %v7510 = vand.u32 %v7509, 4294901760
    %7511 = vmatpush.msra.mxu0 %v7510
    %v7512 = vand.u32 %v1365, 4294901760
    %v7513 = vsub.f32 %v1365, %v7512
    %v7514 = vand.u32 %v7513, 4294901760
    %7515 = vmatpush.msra.mxu0 %v7514
    %v7516 = vand.u32 %v1377, 4294901760
    %7517 = vmatmul.f32.gmra.mxu0 %v7516
    %v7518 = vpop.f32.mrf.mxu0
    %v7519 = vadd.f32 %v7402, %v7518
    %v7520 = vand.u32 %v1380, 4294901760
    %7521 = vmatmul.f32.gmra.mxu0 %v7520
    %v7522 = vpop.f32.mrf.mxu0
    %v7523 = vadd.f32 %v7408, %v7522
    %v7524 = vand.u32 %v1383, 4294901760
    %7525 = vmatmul.f32.gmra.mxu0 %v7524
    %v7526 = vpop.f32.mrf.mxu0
    %v7527 = vadd.f32 %v7414, %v7526
    %v7528 = vand.u32 %v1386, 4294901760
    %7529 = vmatmul.f32.gmra.mxu0 %v7528
    %v7530 = vpop.f32.mrf.mxu0
    %v7531 = vadd.f32 %v7420, %v7530
    %v7532 = vand.u32 %v1389, 4294901760
    %7533 = vmatmul.f32.gmra.mxu0 %v7532
    %v7534 = vpop.f32.mrf.mxu0
    %v7535 = vadd.f32 %v7426, %v7534
    %v7536 = vand.u32 %v1392, 4294901760
    %7537 = vmatmul.f32.gmra.mxu0 %v7536
    %v7538 = vpop.f32.mrf.mxu0
    %v7539 = vadd.f32 %v7432, %v7538
    %v7540 = vand.u32 %v1395, 4294901760
    %7541 = vmatmul.f32.gmra.mxu0 %v7540
    %v7542 = vpop.f32.mrf.mxu0
    %v7543 = vadd.f32 %v7438, %v7542
    %v7544 = vand.u32 %v1398, 4294901760
    %7545 = vmatmul.f32.gmra.mxu0 %v7544
    %v7546 = vpop.f32.mrf.mxu0
    %v7547 = vadd.f32 %v7444, %v7546
    %v7548 = vand.u32 %v1401, 4294901760
    %7549 = vmatmul.f32.gmra.mxu0 %v7548
    %v7550 = vpop.f32.mrf.mxu0
    %v7551 = vadd.f32 %v7450, %v7550
    %v7552 = vand.u32 %v1404, 4294901760
    %7553 = vmatmul.f32.gmra.mxu0 %v7552
    %v7554 = vpop.f32.mrf.mxu0
    %v7555 = vadd.f32 %v7456, %v7554
    %v7556 = vand.u32 %v1407, 4294901760
    %7557 = vmatmul.f32.gmra.mxu0 %v7556
    %v7558 = vpop.f32.mrf.mxu0
    %v7559 = vadd.f32 %v7462, %v7558
    %v7560 = vand.u32 %v1410, 4294901760
    %7561 = vmatmul.f32.gmra.mxu0 %v7560
    %v7562 = vpop.f32.mrf.mxu0
    %v7563 = vadd.f32 %v7468, %v7562
    %v7564 = vand.u32 %v1413, 4294901760
    %7565 = vmatmul.f32.gmra.mxu0 %v7564
    %v7566 = vpop.f32.mrf.mxu0
    %v7567 = vadd.f32 %v7474, %v7566
    %v7568 = vand.u32 %v1416, 4294901760
    %7569 = vmatmul.f32.gmra.mxu0 %v7568
    %v7570 = vpop.f32.mrf.mxu0
    %v7571 = vadd.f32 %v7480, %v7570
    %v7572 = vand.u32 %v1419, 4294901760
    %7573 = vmatmul.f32.gmra.mxu0 %v7572
    %v7574 = vpop.f32.mrf.mxu0
    %v7575 = vadd.f32 %v7486, %v7574
    %v7576 = vand.u32 %v1422, 4294901760
    %7577 = vmatmul.f32.gmra.mxu0 %v7576
    %v7578 = vpop.f32.mrf.mxu0
    %v7579 = vadd.f32 %v7492, %v7578
    %7580 = vdwg.mxu0
    %7581 = vmatpush.msra.mxu0 0.0
    %7582 = vmatpush.msra.mxu0 0.0
    %7583 = vmatpush.msra.mxu0 0.0
    %7584 = vmatpush.msra.mxu0 0.0
    %7585 = vmatpush.msra.mxu0 0.0
    %7586 = vmatpush.msra.mxu0 0.0
    %7587 = vmatpush.msra.mxu0 0.0
    %7588 = vmatpush.msra.mxu0 0.0
    %7589 = vmatpush.msra.mxu0 0.0
    %7590 = vmatpush.msra.mxu0 0.0
    %7591 = vmatpush.msra.mxu0 0.0
    %7592 = vmatpush.msra.mxu0 0.0
    %7593 = vmatpush.msra.mxu0 0.0
    %7594 = vmatpush.msra.mxu0 0.0
    %v7595 = vand.u32 %v1375, 4294901760
    %7596 = vmatpush.msra.mxu0 %v7595
    %v7597 = vand.u32 %v1365, 4294901760
    %7598 = vmatpush.msra.mxu0 %v7597
    %v7599 = vand.u32 %v1377, 4294901760
    %7600 = vmatmul.f32.gmra.mxu0 %v7599
    %v7601 = vpop.f32.mrf.mxu0
    %v7602 = vadd.f32 %v7519, %v7601
    %v7603 = vand.u32 %v1380, 4294901760
    %7604 = vmatmul.f32.gmra.mxu0 %v7603
    %v7605 = vpop.f32.mrf.mxu0
    %v7606 = vadd.f32 %v7523, %v7605
    %v7607 = vand.u32 %v1383, 4294901760
    %7608 = vmatmul.f32.gmra.mxu0 %v7607
    %v7609 = vpop.f32.mrf.mxu0
    %v7610 = vadd.f32 %v7527, %v7609
    %v7611 = vand.u32 %v1386, 4294901760
    %7612 = vmatmul.f32.gmra.mxu0 %v7611
    %v7613 = vpop.f32.mrf.mxu0
    %v7614 = vadd.f32 %v7531, %v7613
    %v7615 = vand.u32 %v1389, 4294901760
    %7616 = vmatmul.f32.gmra.mxu0 %v7615
    %v7617 = vpop.f32.mrf.mxu0
    %v7618 = vadd.f32 %v7535, %v7617
    %v7619 = vand.u32 %v1392, 4294901760
    %7620 = vmatmul.f32.gmra.mxu0 %v7619
    %v7621 = vpop.f32.mrf.mxu0
    %v7622 = vadd.f32 %v7539, %v7621
    %v7623 = vand.u32 %v1395, 4294901760
    %7624 = vmatmul.f32.gmra.mxu0 %v7623
    %v7625 = vpop.f32.mrf.mxu0
    %v7626 = vadd.f32 %v7543, %v7625
    %v7627 = vand.u32 %v1398, 4294901760
    %7628 = vmatmul.f32.gmra.mxu0 %v7627
    %v7629 = vpop.f32.mrf.mxu0
    %v7630 = vadd.f32 %v7547, %v7629
    %v7631 = vand.u32 %v1401, 4294901760
    %7632 = vmatmul.f32.gmra.mxu0 %v7631
    %v7633 = vpop.f32.mrf.mxu0
    %v7634 = vadd.f32 %v7551, %v7633
    %v7635 = vand.u32 %v1404, 4294901760
    %7636 = vmatmul.f32.gmra.mxu0 %v7635
    %v7637 = vpop.f32.mrf.mxu0
    %v7638 = vadd.f32 %v7555, %v7637
    %v7639 = vand.u32 %v1407, 4294901760
    %7640 = vmatmul.f32.gmra.mxu0 %v7639
    %v7641 = vpop.f32.mrf.mxu0
    %v7642 = vadd.f32 %v7559, %v7641
    %v7643 = vand.u32 %v1410, 4294901760
    %7644 = vmatmul.f32.gmra.mxu0 %v7643
    %v7645 = vpop.f32.mrf.mxu0
    %v7646 = vadd.f32 %v7563, %v7645
    %v7647 = vand.u32 %v1413, 4294901760
    %7648 = vmatmul.f32.gmra.mxu0 %v7647
    %v7649 = vpop.f32.mrf.mxu0
    %v7650 = vadd.f32 %v7567, %v7649
    %v7651 = vand.u32 %v1416, 4294901760
    %7652 = vmatmul.f32.gmra.mxu0 %v7651
    %v7653 = vpop.f32.mrf.mxu0
    %v7654 = vadd.f32 %v7571, %v7653
    %v7655 = vand.u32 %v1419, 4294901760
    %7656 = vmatmul.f32.gmra.mxu0 %v7655
    %v7657 = vpop.f32.mrf.mxu0
    %v7658 = vadd.f32 %v7575, %v7657
    %v7659 = vand.u32 %v1422, 4294901760
    %7660 = vmatmul.f32.gmra.mxu0 %v7659
    %v7661 = vpop.f32.mrf.mxu0
    %v7662 = vadd.f32 %v7579, %v7661
    %7663 = vdwg.mxu0
    %7664 = vst [vmem:[#allocation4] sm:$0xff] %v1986
    %7665 = vst [vmem:[#allocation4 + $0x8] sm:$0xff] %v2610
    %7666 = vst [vmem:[#allocation4 + $0x10] sm:$0xff] %v3234
    %7667 = vst [vmem:[#allocation4 + $0x18] sm:$0xff] %v3858
    %7668 = vst [vmem:[#allocation4 + $0x20] sm:$0xff] %v4482
    %7669 = vst [vmem:[#allocation4 + $0x28] sm:$0xff] %v5106
    %7670 = vst [vmem:[#allocation4 + $0x30] sm:$0xff] %v5730
    %7671 = vst [vmem:[#allocation4 + $0x38] sm:$0xff] %v6354
    %7672 = vst [vmem:[#allocation4 + $0x40] sm:$0xff] %v6978
    %7673 = vst [vmem:[#allocation4 + $0x48] sm:$0xff] %v7602
    %7674 = vst [vmem:[#allocation4 + $0x50] sm:$0xff] %v1990
    %7675 = vst [vmem:[#allocation4 + $0x58] sm:$0xff] %v2614
    %7676 = vst [vmem:[#allocation4 + $0x60] sm:$0xff] %v3238
    %7677 = vst [vmem:[#allocation4 + $0x68] sm:$0xff] %v3862
    %7678 = vst [vmem:[#allocation4 + $0x70] sm:$0xff] %v4486
    %7679 = vst [vmem:[#allocation4 + $0x78] sm:$0xff] %v5110
    %7680 = vst [vmem:[#allocation4 + $0x80] sm:$0xff] %v5734
    %7681 = vst [vmem:[#allocation4 + $0x88] sm:$0xff] %v6358
    %7682 = vst [vmem:[#allocation4 + $0x90] sm:$0xff] %v6982
    %7683 = vst [vmem:[#allocation4 + $0x98] sm:$0xff] %v7606
    %7684 = vst [vmem:[#allocation4 + $0xa0] sm:$0xff] %v1994
    %7685 = vst [vmem:[#allocation4 + $0xa8] sm:$0xff] %v2618
    %7686 = vst [vmem:[#allocation4 + $0xb0] sm:$0xff] %v3242
    %7687 = vst [vmem:[#allocation4 + $0xb8] sm:$0xff] %v3866
    %7688 = vst [vmem:[#allocation4 + $0xc0] sm:$0xff] %v4490
    %7689 = vst [vmem:[#allocation4 + $0xc8] sm:$0xff] %v5114
    %7690 = vst [vmem:[#allocation4 + $0xd0] sm:$0xff] %v5738
    %7691 = vst [vmem:[#allocation4 + $0xd8] sm:$0xff] %v6362
    %7692 = vst [vmem:[#allocation4 + $0xe0] sm:$0xff] %v6986
    %7693 = vst [vmem:[#allocation4 + $0xe8] sm:$0xff] %v7610
    %7694 = vst [vmem:[#allocation4 + $0xf0] sm:$0xff] %v1998
    %7695 = vst [vmem:[#allocation4 + $0xf8] sm:$0xff] %v2622
    %7696 = vst [vmem:[#allocation4 + $0x100] sm:$0xff] %v3246
    %7697 = vst [vmem:[#allocation4 + $0x108] sm:$0xff] %v3870
    %7698 = vst [vmem:[#allocation4 + $0x110] sm:$0xff] %v4494
    %7699 = vst [vmem:[#allocation4 + $0x118] sm:$0xff] %v5118
    %7700 = vst [vmem:[#allocation4 + $0x120] sm:$0xff] %v5742
    %7701 = vst [vmem:[#allocation4 + $0x128] sm:$0xff] %v6366
    %7702 = vst [vmem:[#allocation4 + $0x130] sm:$0xff] %v6990
    %7703 = vst [vmem:[#allocation4 + $0x138] sm:$0xff] %v7614
    %7704 = vst [vmem:[#allocation4 + $0x140] sm:$0xff] %v2002
    %7705 = vst [vmem:[#allocation4 + $0x148] sm:$0xff] %v2626
    %7706 = vst [vmem:[#allocation4 + $0x150] sm:$0xff] %v3250
    %7707 = vst [vmem:[#allocation4 + $0x158] sm:$0xff] %v3874
    %7708 = vst [vmem:[#allocation4 + $0x160] sm:$0xff] %v4498
    %7709 = vst [vmem:[#allocation4 + $0x168] sm:$0xff] %v5122
    %7710 = vst [vmem:[#allocation4 + $0x170] sm:$0xff] %v5746
    %7711 = vst [vmem:[#allocation4 + $0x178] sm:$0xff] %v6370
    %7712 = vst [vmem:[#allocation4 + $0x180] sm:$0xff] %v6994
    %7713 = vst [vmem:[#allocation4 + $0x188] sm:$0xff] %v7618
    %7714 = vst [vmem:[#allocation4 + $0x190] sm:$0xff] %v2006
    %7715 = vst [vmem:[#allocation4 + $0x198] sm:$0xff] %v2630
    %7716 = vst [vmem:[#allocation4 + $0x1a0] sm:$0xff] %v3254
    %7717 = vst [vmem:[#allocation4 + $0x1a8] sm:$0xff] %v3878
    %7718 = vst [vmem:[#allocation4 + $0x1b0] sm:$0xff] %v4502
    %7719 = vst [vmem:[#allocation4 + $0x1b8] sm:$0xff] %v5126
    %7720 = vst [vmem:[#allocation4 + $0x1c0] sm:$0xff] %v5750
    %7721 = vst [vmem:[#allocation4 + $0x1c8] sm:$0xff] %v6374
    %7722 = vst [vmem:[#allocation4 + $0x1d0] sm:$0xff] %v6998
    %7723 = vst [vmem:[#allocation4 + $0x1d8] sm:$0xff] %v7622
    %7724 = vst [vmem:[#allocation4 + $0x1e0] sm:$0xff] %v2010
    %7725 = vst [vmem:[#allocation4 + $0x1e8] sm:$0xff] %v2634
    %7726 = vst [vmem:[#allocation4 + $0x1f0] sm:$0xff] %v3258
    %7727 = vst [vmem:[#allocation4 + $0x1f8] sm:$0xff] %v3882
    %7728 = vst [vmem:[#allocation4 + $0x200] sm:$0xff] %v4506
    %7729 = vst [vmem:[#allocation4 + $0x208] sm:$0xff] %v5130
    %7730 = vst [vmem:[#allocation4 + $0x210] sm:$0xff] %v5754
    %7731 = vst [vmem:[#allocation4 + $0x218] sm:$0xff] %v6378
    %7732 = vst [vmem:[#allocation4 + $0x220] sm:$0xff] %v7002
    %7733 = vst [vmem:[#allocation4 + $0x228] sm:$0xff] %v7626
    %7734 = vst [vmem:[#allocation4 + $0x230] sm:$0xff] %v2014
    %7735 = vst [vmem:[#allocation4 + $0x238] sm:$0xff] %v2638
    %7736 = vst [vmem:[#allocation4 + $0x240] sm:$0xff] %v3262
    %7737 = vst [vmem:[#allocation4 + $0x248] sm:$0xff] %v3886
    %7738 = vst [vmem:[#allocation4 + $0x250] sm:$0xff] %v4510
    %7739 = vst [vmem:[#allocation4 + $0x258] sm:$0xff] %v5134
    %7740 = vst [vmem:[#allocation4 + $0x260] sm:$0xff] %v5758
    %7741 = vst [vmem:[#allocation4 + $0x268] sm:$0xff] %v6382
    %7742 = vst [vmem:[#allocation4 + $0x270] sm:$0xff] %v7006
    %7743 = vst [vmem:[#allocation4 + $0x278] sm:$0xff] %v7630
    %7744 = vst [vmem:[#allocation4 + $0x280] sm:$0xff] %v2018
    %7745 = vst [vmem:[#allocation4 + $0x288] sm:$0xff] %v2642
    %7746 = vst [vmem:[#allocation4 + $0x290] sm:$0xff] %v3266
    %7747 = vst [vmem:[#allocation4 + $0x298] sm:$0xff] %v3890
    %7748 = vst [vmem:[#allocation4 + $0x2a0] sm:$0xff] %v4514
    %7749 = vst [vmem:[#allocation4 + $0x2a8] sm:$0xff] %v5138
    %7750 = vst [vmem:[#allocation4 + $0x2b0] sm:$0xff] %v5762
    %7751 = vst [vmem:[#allocation4 + $0x2b8] sm:$0xff] %v6386
    %7752 = vst [vmem:[#allocation4 + $0x2c0] sm:$0xff] %v7010
    %7753 = vst [vmem:[#allocation4 + $0x2c8] sm:$0xff] %v7634
    %7754 = vst [vmem:[#allocation4 + $0x2d0] sm:$0xff] %v2022
    %7755 = vst [vmem:[#allocation4 + $0x2d8] sm:$0xff] %v2646
    %7756 = vst [vmem:[#allocation4 + $0x2e0] sm:$0xff] %v3270
    %7757 = vst [vmem:[#allocation4 + $0x2e8] sm:$0xff] %v3894
    %7758 = vst [vmem:[#allocation4 + $0x2f0] sm:$0xff] %v4518
    %7759 = vst [vmem:[#allocation4 + $0x2f8] sm:$0xff] %v5142
    %7760 = vst [vmem:[#allocation4 + $0x300] sm:$0xff] %v5766
    %7761 = vst [vmem:[#allocation4 + $0x308] sm:$0xff] %v6390
    %7762 = vst [vmem:[#allocation4 + $0x310] sm:$0xff] %v7014
    %7763 = vst [vmem:[#allocation4 + $0x318] sm:$0xff] %v7638
    %7764 = vst [vmem:[#allocation4 + $0x320] sm:$0xff] %v2026
    %7765 = vst [vmem:[#allocation4 + $0x328] sm:$0xff] %v2650
    %7766 = vst [vmem:[#allocation4 + $0x330] sm:$0xff] %v3274
    %7767 = vst [vmem:[#allocation4 + $0x338] sm:$0xff] %v3898
    %7768 = vst [vmem:[#allocation4 + $0x340] sm:$0xff] %v4522
    %7769 = vst [vmem:[#allocation4 + $0x348] sm:$0xff] %v5146
    %7770 = vst [vmem:[#allocation4 + $0x350] sm:$0xff] %v5770
    %7771 = vst [vmem:[#allocation4 + $0x358] sm:$0xff] %v6394
    %7772 = vst [vmem:[#allocation4 + $0x360] sm:$0xff] %v7018
    %7773 = vst [vmem:[#allocation4 + $0x368] sm:$0xff] %v7642
    %7774 = vst [vmem:[#allocation4 + $0x370] sm:$0xff] %v2030
    %7775 = vst [vmem:[#allocation4 + $0x378] sm:$0xff] %v2654
    %7776 = vst [vmem:[#allocation4 + $0x380] sm:$0xff] %v3278
    %7777 = vst [vmem:[#allocation4 + $0x388] sm:$0xff] %v3902
    %7778 = vst [vmem:[#allocation4 + $0x390] sm:$0xff] %v4526
    %7779 = vst [vmem:[#allocation4 + $0x398] sm:$0xff] %v5150
    %7780 = vst [vmem:[#allocation4 + $0x3a0] sm:$0xff] %v5774
    %7781 = vst [vmem:[#allocation4 + $0x3a8] sm:$0xff] %v6398
    %7782 = vst [vmem:[#allocation4 + $0x3b0] sm:$0xff] %v7022
    %7783 = vst [vmem:[#allocation4 + $0x3b8] sm:$0xff] %v7646
    %7784 = vst [vmem:[#allocation4 + $0x3c0] sm:$0xff] %v2034
    %7785 = vst [vmem:[#allocation4 + $0x3c8] sm:$0xff] %v2658
    %7786 = vst [vmem:[#allocation4 + $0x3d0] sm:$0xff] %v3282
    %7787 = vst [vmem:[#allocation4 + $0x3d8] sm:$0xff] %v3906
    %7788 = vst [vmem:[#allocation4 + $0x3e0] sm:$0xff] %v4530
    %7789 = vst [vmem:[#allocation4 + $0x3e8] sm:$0xff] %v5154
    %7790 = vst [vmem:[#allocation4 + $0x3f0] sm:$0xff] %v5778
    %7791 = vst [vmem:[#allocation4 + $0x3f8] sm:$0xff] %v6402
    %7792 = vst [vmem:[#allocation4 + $0x400] sm:$0xff] %v7026
    %7793 = vst [vmem:[#allocation4 + $0x408] sm:$0xff] %v7650
    %7794 = vst [vmem:[#allocation4 + $0x410] sm:$0xff] %v2038
    %7795 = vst [vmem:[#allocation4 + $0x418] sm:$0xff] %v2662
    %7796 = vst [vmem:[#allocation4 + $0x420] sm:$0xff] %v3286
    %7797 = vst [vmem:[#allocation4 + $0x428] sm:$0xff] %v3910
    %7798 = vst [vmem:[#allocation4 + $0x430] sm:$0xff] %v4534
    %7799 = vst [vmem:[#allocation4 + $0x438] sm:$0xff] %v5158
    %7800 = vst [vmem:[#allocation4 + $0x440] sm:$0xff] %v5782
    %7801 = vst [vmem:[#allocation4 + $0x448] sm:$0xff] %v6406
    %7802 = vst [vmem:[#allocation4 + $0x450] sm:$0xff] %v7030
    %7803 = vst [vmem:[#allocation4 + $0x458] sm:$0xff] %v7654
    %7804 = vst [vmem:[#allocation4 + $0x460] sm:$0xff] %v2042
    %7805 = vst [vmem:[#allocation4 + $0x468] sm:$0xff] %v2666
    %7806 = vst [vmem:[#allocation4 + $0x470] sm:$0xff] %v3290
    %7807 = vst [vmem:[#allocation4 + $0x478] sm:$0xff] %v3914
    %7808 = vst [vmem:[#allocation4 + $0x480] sm:$0xff] %v4538
    %7809 = vst [vmem:[#allocation4 + $0x488] sm:$0xff] %v5162
    %7810 = vst [vmem:[#allocation4 + $0x490] sm:$0xff] %v5786
    %7811 = vst [vmem:[#allocation4 + $0x498] sm:$0xff] %v6410
    %7812 = vst [vmem:[#allocation4 + $0x4a0] sm:$0xff] %v7034
    %7813 = vst [vmem:[#allocation4 + $0x4a8] sm:$0xff] %v7658
    %7814 = vst [vmem:[#allocation4 + $0x4b0] sm:$0xff] %v2046
    %7815 = vst [vmem:[#allocation4 + $0x4b8] sm:$0xff] %v2670
    %7816 = vst [vmem:[#allocation4 + $0x4c0] sm:$0xff] %v3294
    %7817 = vst [vmem:[#allocation4 + $0x4c8] sm:$0xff] %v3918
    %7818 = vst [vmem:[#allocation4 + $0x4d0] sm:$0xff] %v4542
    %7819 = vst [vmem:[#allocation4 + $0x4d8] sm:$0xff] %v5166
    %7820 = vst [vmem:[#allocation4 + $0x4e0] sm:$0xff] %v5790
    %7821 = vst [vmem:[#allocation4 + $0x4e8] sm:$0xff] %v6414
    %7822 = vst [vmem:[#allocation4 + $0x4f0] sm:$0xff] %v7038
    %7823 = vst [vmem:[#allocation4 + $0x4f8] sm:$0xff] %v7662
    %v7824 = vld [vmem:[#allocation4] sm:$0xff]
    %v7825 = vld [vmem:[#allocation4 + $0x50] sm:$0xff]
    %v7826 = vld [vmem:[#allocation4 + $0xa0] sm:$0xff]
    %v7827 = vld [vmem:[#allocation4 + $0xf0] sm:$0xff]
    %v7828 = vld [vmem:[#allocation4 + $0x140] sm:$0xff]
    %v7829 = vld [vmem:[#allocation4 + $0x190] sm:$0xff]
    %v7830 = vld [vmem:[#allocation4 + $0x1e0] sm:$0xff]
    %v7831 = vld [vmem:[#allocation4 + $0x230] sm:$0xff]
    %v7832 = vld [vmem:[#allocation4 + $0x280] sm:$0xff]
    %v7833 = vld [vmem:[#allocation4 + $0x2d0] sm:$0xff]
    %v7834 = vld [vmem:[#allocation4 + $0x320] sm:$0xff]
    %v7835 = vld [vmem:[#allocation4 + $0x370] sm:$0xff]
    %v7836 = vld [vmem:[#allocation4 + $0x3c0] sm:$0xff]
    %v7837 = vld [vmem:[#allocation4 + $0x410] sm:$0xff]
    %v7838 = vld [vmem:[#allocation4 + $0x460] sm:$0xff]
    %v7839 = vld [vmem:[#allocation4 + $0x4b0] sm:$0xff]
    %v7840 = vld [vmem:[#allocation4 + $0x8] sm:$0xff]
    %v7841 = vld [vmem:[#allocation4 + $0x58] sm:$0xff]
    %v7842 = vld [vmem:[#allocation4 + $0xa8] sm:$0xff]
    %v7843 = vld [vmem:[#allocation4 + $0xf8] sm:$0xff]
    %v7844 = vld [vmem:[#allocation4 + $0x148] sm:$0xff]
    %v7845 = vld [vmem:[#allocation4 + $0x198] sm:$0xff]
    %v7846 = vld [vmem:[#allocation4 + $0x1e8] sm:$0xff]
    %v7847 = vld [vmem:[#allocation4 + $0x238] sm:$0xff]
    %v7848 = vld [vmem:[#allocation4 + $0x288] sm:$0xff]
    %v7849 = vld [vmem:[#allocation4 + $0x2d8] sm:$0xff]
    %v7850 = vld [vmem:[#allocation4 + $0x328] sm:$0xff]
    %v7851 = vld [vmem:[#allocation4 + $0x378] sm:$0xff]
    %v7852 = vld [vmem:[#allocation4 + $0x3c8] sm:$0xff]
    %v7853 = vld [vmem:[#allocation4 + $0x418] sm:$0xff]
    %v7854 = vld [vmem:[#allocation4 + $0x468] sm:$0xff]
    %v7855 = vld [vmem:[#allocation4 + $0x4b8] sm:$0xff]
    %v7856 = vmax.f32 %v7824, %v7840
    %v7857 = vmax.f32 %v7825, %v7841
    %v7858 = vmax.f32 %v7826, %v7842
    %v7859 = vmax.f32 %v7827, %v7843
    %v7860 = vmax.f32 %v7828, %v7844
    %v7861 = vmax.f32 %v7829, %v7845
    %v7862 = vmax.f32 %v7830, %v7846
    %v7863 = vmax.f32 %v7831, %v7847
    %v7864 = vmax.f32 %v7832, %v7848
    %v7865 = vmax.f32 %v7833, %v7849
    %v7866 = vmax.f32 %v7834, %v7850
    %v7867 = vmax.f32 %v7835, %v7851
    %v7868 = vmax.f32 %v7836, %v7852
    %v7869 = vmax.f32 %v7837, %v7853
    %v7870 = vmax.f32 %v7838, %v7854
    %v7871 = vmax.f32 %v7839, %v7855
    %v7872 = vld [vmem:[#allocation4 + $0x10] sm:$0xff]
    %v7873 = vld [vmem:[#allocation4 + $0x60] sm:$0xff]
    %v7874 = vld [vmem:[#allocation4 + $0xb0] sm:$0xff]
    %v7875 = vld [vmem:[#allocation4 + $0x100] sm:$0xff]
    %v7876 = vld [vmem:[#allocation4 + $0x150] sm:$0xff]
    %v7877 = vld [vmem:[#allocation4 + $0x1a0] sm:$0xff]
    %v7878 = vld [vmem:[#allocation4 + $0x1f0] sm:$0xff]
    %v7879 = vld [vmem:[#allocation4 + $0x240] sm:$0xff]
    %v7880 = vld [vmem:[#allocation4 + $0x290] sm:$0xff]
    %v7881 = vld [vmem:[#allocation4 + $0x2e0] sm:$0xff]
    %v7882 = vld [vmem:[#allocation4 + $0x330] sm:$0xff]
    %v7883 = vld [vmem:[#allocation4 + $0x380] sm:$0xff]
    %v7884 = vld [vmem:[#allocation4 + $0x3d0] sm:$0xff]
    %v7885 = vld [vmem:[#allocation4 + $0x420] sm:$0xff]
    %v7886 = vld [vmem:[#allocation4 + $0x470] sm:$0xff]
    %v7887 = vld [vmem:[#allocation4 + $0x4c0] sm:$0xff]
    %v7888 = vmax.f32 %v7856, %v7872
    %v7889 = vmax.f32 %v7857, %v7873
    %v7890 = vmax.f32 %v7858, %v7874
    %v7891 = vmax.f32 %v7859, %v7875
    %v7892 = vmax.f32 %v7860, %v7876
    %v7893 = vmax.f32 %v7861, %v7877
    %v7894 = vmax.f32 %v7862, %v7878
    %v7895 = vmax.f32 %v7863, %v7879
    %v7896 = vmax.f32 %v7864, %v7880
    %v7897 = vmax.f32 %v7865, %v7881
    %v7898 = vmax.f32 %v7866, %v7882
    %v7899 = vmax.f32 %v7867, %v7883
    %v7900 = vmax.f32 %v7868, %v7884
    %v7901 = vmax.f32 %v7869, %v7885
    %v7902 = vmax.f32 %v7870, %v7886
    %v7903 = vmax.f32 %v7871, %v7887
    %v7904 = vld [vmem:[#allocation4 + $0x18] sm:$0xff]
    %v7905 = vld [vmem:[#allocation4 + $0x68] sm:$0xff]
    %v7906 = vld [vmem:[#allocation4 + $0xb8] sm:$0xff]
    %v7907 = vld [vmem:[#allocation4 + $0x108] sm:$0xff]
    %v7908 = vld [vmem:[#allocation4 + $0x158] sm:$0xff]
    %v7909 = vld [vmem:[#allocation4 + $0x1a8] sm:$0xff]
    %v7910 = vld [vmem:[#allocation4 + $0x1f8] sm:$0xff]
    %v7911 = vld [vmem:[#allocation4 + $0x248] sm:$0xff]
    %v7912 = vld [vmem:[#allocation4 + $0x298] sm:$0xff]
    %v7913 = vld [vmem:[#allocation4 + $0x2e8] sm:$0xff]
    %v7914 = vld [vmem:[#allocation4 + $0x338] sm:$0xff]
    %v7915 = vld [vmem:[#allocation4 + $0x388] sm:$0xff]
    %v7916 = vld [vmem:[#allocation4 + $0x3d8] sm:$0xff]
    %v7917 = vld [vmem:[#allocation4 + $0x428] sm:$0xff]
    %v7918 = vld [vmem:[#allocation4 + $0x478] sm:$0xff]
    %v7919 = vld [vmem:[#allocation4 + $0x4c8] sm:$0xff]
    %v7920 = vmax.f32 %v7888, %v7904
    %v7921 = vmax.f32 %v7889, %v7905
    %v7922 = vmax.f32 %v7890, %v7906
    %v7923 = vmax.f32 %v7891, %v7907
    %v7924 = vmax.f32 %v7892, %v7908
    %v7925 = vmax.f32 %v7893, %v7909
    %v7926 = vmax.f32 %v7894, %v7910
    %v7927 = vmax.f32 %v7895, %v7911
    %v7928 = vmax.f32 %v7896, %v7912
    %v7929 = vmax.f32 %v7897, %v7913
    %v7930 = vmax.f32 %v7898, %v7914
    %v7931 = vmax.f32 %v7899, %v7915
    %v7932 = vmax.f32 %v7900, %v7916
    %v7933 = vmax.f32 %v7901, %v7917
    %v7934 = vmax.f32 %v7902, %v7918
    %v7935 = vmax.f32 %v7903, %v7919
    %v7936 = vld [vmem:[#allocation4 + $0x20] sm:$0xff]
    %v7937 = vld [vmem:[#allocation4 + $0x70] sm:$0xff]
    %v7938 = vld [vmem:[#allocation4 + $0xc0] sm:$0xff]
    %v7939 = vld [vmem:[#allocation4 + $0x110] sm:$0xff]
    %v7940 = vld [vmem:[#allocation4 + $0x160] sm:$0xff]
    %v7941 = vld [vmem:[#allocation4 + $0x1b0] sm:$0xff]
    %v7942 = vld [vmem:[#allocation4 + $0x200] sm:$0xff]
    %v7943 = vld [vmem:[#allocation4 + $0x250] sm:$0xff]
    %v7944 = vld [vmem:[#allocation4 + $0x2a0] sm:$0xff]
    %v7945 = vld [vmem:[#allocation4 + $0x2f0] sm:$0xff]
    %v7946 = vld [vmem:[#allocation4 + $0x340] sm:$0xff]
    %v7947 = vld [vmem:[#allocation4 + $0x390] sm:$0xff]
    %v7948 = vld [vmem:[#allocation4 + $0x3e0] sm:$0xff]
    %v7949 = vld [vmem:[#allocation4 + $0x430] sm:$0xff]
    %v7950 = vld [vmem:[#allocation4 + $0x480] sm:$0xff]
    %v7951 = vld [vmem:[#allocation4 + $0x4d0] sm:$0xff]
    %v7952 = vmax.f32 %v7920, %v7936
    %v7953 = vmax.f32 %v7921, %v7937
    %v7954 = vmax.f32 %v7922, %v7938
    %v7955 = vmax.f32 %v7923, %v7939
    %v7956 = vmax.f32 %v7924, %v7940
    %v7957 = vmax.f32 %v7925, %v7941
    %v7958 = vmax.f32 %v7926, %v7942
    %v7959 = vmax.f32 %v7927, %v7943
    %v7960 = vmax.f32 %v7928, %v7944
    %v7961 = vmax.f32 %v7929, %v7945
    %v7962 = vmax.f32 %v7930, %v7946
    %v7963 = vmax.f32 %v7931, %v7947
    %v7964 = vmax.f32 %v7932, %v7948
    %v7965 = vmax.f32 %v7933, %v7949
    %v7966 = vmax.f32 %v7934, %v7950
    %v7967 = vmax.f32 %v7935, %v7951
    %v7968 = vsub.f32 %v7824, %v7952
    %v7969 = vsub.f32 %v7825, %v7953
    %v7970 = vsub.f32 %v7826, %v7954
    %v7971 = vsub.f32 %v7827, %v7955
    %v7972 = vsub.f32 %v7828, %v7956
    %v7973 = vsub.f32 %v7829, %v7957
    %v7974 = vsub.f32 %v7830, %v7958
    %v7975 = vsub.f32 %v7831, %v7959
    %v7976 = vsub.f32 %v7832, %v7960
    %v7977 = vsub.f32 %v7833, %v7961
    %v7978 = vsub.f32 %v7834, %v7962
    %v7979 = vsub.f32 %v7835, %v7963
    %v7980 = vsub.f32 %v7836, %v7964
    %v7981 = vsub.f32 %v7837, %v7965
    %v7982 = vsub.f32 %v7838, %v7966
    %v7983 = vsub.f32 %v7839, %v7967
    %v7984 = vmul.f32 %v7968, 1.442695
    %v7985 = vpow.pop %v7984
    %v7986 = vmul.f32 %v7969, 1.442695
    %v7987 = vpow.pop %v7986
    %v7988 = vmul.f32 %v7970, 1.442695
    %v7989 = vpow.pop %v7988
    %v7990 = vmul.f32 %v7971, 1.442695
    %v7991 = vpow.pop %v7990
    %v7992 = vmul.f32 %v7972, 1.442695
    %v7993 = vpow.pop %v7992
    %v7994 = vmul.f32 %v7973, 1.442695
    %v7995 = vpow.pop %v7994
    %v7996 = vmul.f32 %v7974, 1.442695
    %v7997 = vpow.pop %v7996
    %v7998 = vmul.f32 %v7975, 1.442695
    %v7999 = vpow.pop %v7998
    %v8000 = vmul.f32 %v7976, 1.442695
    %v8001 = vpow.pop %v8000
    %v8002 = vmul.f32 %v7977, 1.442695
    %v8003 = vpow.pop %v8002
    %v8004 = vmul.f32 %v7978, 1.442695
    %v8005 = vpow.pop %v8004
    %v8006 = vmul.f32 %v7979, 1.442695
    %v8007 = vpow.pop %v8006
    %v8008 = vmul.f32 %v7980, 1.442695
    %v8009 = vpow.pop %v8008
    %v8010 = vmul.f32 %v7981, 1.442695
    %v8011 = vpow.pop %v8010
    %v8012 = vmul.f32 %v7982, 1.442695
    %v8013 = vpow.pop %v8012
    %v8014 = vmul.f32 %v7983, 1.442695
    %v8015 = vpow.pop %v8014
    %v8016 = vsub.f32 %v7840, %v7952
    %v8017 = vsub.f32 %v7841, %v7953
    %v8018 = vsub.f32 %v7842, %v7954
    %v8019 = vsub.f32 %v7843, %v7955
    %v8020 = vsub.f32 %v7844, %v7956
    %v8021 = vsub.f32 %v7845, %v7957
    %v8022 = vsub.f32 %v7846, %v7958
    %v8023 = vsub.f32 %v7847, %v7959
    %v8024 = vsub.f32 %v7848, %v7960
    %v8025 = vsub.f32 %v7849, %v7961
    %v8026 = vsub.f32 %v7850, %v7962
    %v8027 = vsub.f32 %v7851, %v7963
    %v8028 = vsub.f32 %v7852, %v7964
    %v8029 = vsub.f32 %v7853, %v7965
    %v8030 = vsub.f32 %v7854, %v7966
    %v8031 = vsub.f32 %v7855, %v7967
    %v8032 = vmul.f32 %v8016, 1.442695
    %v8033 = vpow.pop %v8032
    %v8034 = vmul.f32 %v8017, 1.442695
    %v8035 = vpow.pop %v8034
    %v8036 = vmul.f32 %v8018, 1.442695
    %v8037 = vpow.pop %v8036
    %v8038 = vmul.f32 %v8019, 1.442695
    %v8039 = vpow.pop %v8038
    %v8040 = vmul.f32 %v8020, 1.442695
    %v8041 = vpow.pop %v8040
    %v8042 = vmul.f32 %v8021, 1.442695
    %v8043 = vpow.pop %v8042
    %v8044 = vmul.f32 %v8022, 1.442695
    %v8045 = vpow.pop %v8044
    %v8046 = vmul.f32 %v8023, 1.442695
    %v8047 = vpow.pop %v8046
    %v8048 = vmul.f32 %v8024, 1.442695
    %v8049 = vpow.pop %v8048
    %v8050 = vmul.f32 %v8025, 1.442695
    %v8051 = vpow.pop %v8050
    %v8052 = vmul.f32 %v8026, 1.442695
    %v8053 = vpow.pop %v8052
    %v8054 = vmul.f32 %v8027, 1.442695
    %v8055 = vpow.pop %v8054
    %v8056 = vmul.f32 %v8028, 1.442695
    %v8057 = vpow.pop %v8056
    %v8058 = vmul.f32 %v8029, 1.442695
    %v8059 = vpow.pop %v8058
    %v8060 = vmul.f32 %v8030, 1.442695
    %v8061 = vpow.pop %v8060
    %v8062 = vmul.f32 %v8031, 1.442695
    %v8063 = vpow.pop %v8062
    %v8064 = vadd.f32 %v7985, %v8033
    %v8065 = vadd.f32 %v7987, %v8035
    %v8066 = vadd.f32 %v7989, %v8037
    %v8067 = vadd.f32 %v7991, %v8039
    %v8068 = vadd.f32 %v7993, %v8041
    %v8069 = vadd.f32 %v7995, %v8043
    %v8070 = vadd.f32 %v7997, %v8045
    %v8071 = vadd.f32 %v7999, %v8047
    %v8072 = vadd.f32 %v8001, %v8049
    %v8073 = vadd.f32 %v8003, %v8051
    %v8074 = vadd.f32 %v8005, %v8053
    %v8075 = vadd.f32 %v8007, %v8055
    %v8076 = vadd.f32 %v8009, %v8057
    %v8077 = vadd.f32 %v8011, %v8059
    %v8078 = vadd.f32 %v8013, %v8061
    %v8079 = vadd.f32 %v8015, %v8063
    %v8080 = vsub.f32 %v7872, %v7952
    %v8081 = vsub.f32 %v7873, %v7953
    %v8082 = vsub.f32 %v7874, %v7954
    %v8083 = vsub.f32 %v7875, %v7955
    %v8084 = vsub.f32 %v7876, %v7956
    %v8085 = vsub.f32 %v7877, %v7957
    %v8086 = vsub.f32 %v7878, %v7958
    %v8087 = vsub.f32 %v7879, %v7959
    %v8088 = vsub.f32 %v7880, %v7960
    %v8089 = vsub.f32 %v7881, %v7961
    %v8090 = vsub.f32 %v7882, %v7962
    %v8091 = vsub.f32 %v7883, %v7963
    %v8092 = vsub.f32 %v7884, %v7964
    %v8093 = vsub.f32 %v7885, %v7965
    %v8094 = vsub.f32 %v7886, %v7966
    %v8095 = vsub.f32 %v7887, %v7967
    %v8096 = vmul.f32 %v8080, 1.442695
    %v8097 = vpow.pop %v8096
    %v8098 = vmul.f32 %v8081, 1.442695
    %v8099 = vpow.pop %v8098
    %v8100 = vmul.f32 %v8082, 1.442695
    %v8101 = vpow.pop %v8100
    %v8102 = vmul.f32 %v8083, 1.442695
    %v8103 = vpow.pop %v8102
    %v8104 = vmul.f32 %v8084, 1.442695
    %v8105 = vpow.pop %v8104
    %v8106 = vmul.f32 %v8085, 1.442695
    %v8107 = vpow.pop %v8106
    %v8108 = vmul.f32 %v8086, 1.442695
    %v8109 = vpow.pop %v8108
    %v8110 = vmul.f32 %v8087, 1.442695
    %v8111 = vpow.pop %v8110
    %v8112 = vmul.f32 %v8088, 1.442695
    %v8113 = vpow.pop %v8112
    %v8114 = vmul.f32 %v8089, 1.442695
    %v8115 = vpow.pop %v8114
    %v8116 = vmul.f32 %v8090, 1.442695
    %v8117 = vpow.pop %v8116
    %v8118 = vmul.f32 %v8091, 1.442695
    %v8119 = vpow.pop %v8118
    %v8120 = vmul.f32 %v8092, 1.442695
    %v8121 = vpow.pop %v8120
    %v8122 = vmul.f32 %v8093, 1.442695
    %v8123 = vpow.pop %v8122
    %v8124 = vmul.f32 %v8094, 1.442695
    %v8125 = vpow.pop %v8124
    %v8126 = vmul.f32 %v8095, 1.442695
    %v8127 = vpow.pop %v8126
    %v8128 = vadd.f32 %v8064, %v8097
    %v8129 = vadd.f32 %v8065, %v8099
    %v8130 = vadd.f32 %v8066, %v8101
    %v8131 = vadd.f32 %v8067, %v8103
    %v8132 = vadd.f32 %v8068, %v8105
    %v8133 = vadd.f32 %v8069, %v8107
    %v8134 = vadd.f32 %v8070, %v8109
    %v8135 = vadd.f32 %v8071, %v8111
    %v8136 = vadd.f32 %v8072, %v8113
    %v8137 = vadd.f32 %v8073, %v8115
    %v8138 = vadd.f32 %v8074, %v8117
    %v8139 = vadd.f32 %v8075, %v8119
    %v8140 = vadd.f32 %v8076, %v8121
    %v8141 = vadd.f32 %v8077, %v8123
    %v8142 = vadd.f32 %v8078, %v8125
    %v8143 = vadd.f32 %v8079, %v8127
    %v8144 = vsub.f32 %v7904, %v7952
    %v8145 = vsub.f32 %v7905, %v7953
    %v8146 = vsub.f32 %v7906, %v7954
    %v8147 = vsub.f32 %v7907, %v7955
    %v8148 = vsub.f32 %v7908, %v7956
    %v8149 = vsub.f32 %v7909, %v7957
    %v8150 = vsub.f32 %v7910, %v7958
    %v8151 = vsub.f32 %v7911, %v7959
    %v8152 = vsub.f32 %v7912, %v7960
    %v8153 = vsub.f32 %v7913, %v7961
    %v8154 = vsub.f32 %v7914, %v7962
    %v8155 = vsub.f32 %v7915, %v7963
    %v8156 = vsub.f32 %v7916, %v7964
    %v8157 = vsub.f32 %v7917, %v7965
    %v8158 = vsub.f32 %v7918, %v7966
    %v8159 = vsub.f32 %v7919, %v7967
    %v8160 = vmul.f32 %v8144, 1.442695
    %v8161 = vpow.pop %v8160
    %v8162 = vmul.f32 %v8145, 1.442695
    %v8163 = vpow.pop %v8162
    %v8164 = vmul.f32 %v8146, 1.442695
    %v8165 = vpow.pop %v8164
    %v8166 = vmul.f32 %v8147, 1.442695
    %v8167 = vpow.pop %v8166
    %v8168 = vmul.f32 %v8148, 1.442695
    %v8169 = vpow.pop %v8168
    %v8170 = vmul.f32 %v8149, 1.442695
    %v8171 = vpow.pop %v8170
    %v8172 = vmul.f32 %v8150, 1.442695
    %v8173 = vpow.pop %v8172
    %v8174 = vmul.f32 %v8151, 1.442695
    %v8175 = vpow.pop %v8174
    %v8176 = vmul.f32 %v8152, 1.442695
    %v8177 = vpow.pop %v8176
    %v8178 = vmul.f32 %v8153, 1.442695
    %v8179 = vpow.pop %v8178
    %v8180 = vmul.f32 %v8154, 1.442695
    %v8181 = vpow.pop %v8180
    %v8182 = vmul.f32 %v8155, 1.442695
    %v8183 = vpow.pop %v8182
    %v8184 = vmul.f32 %v8156, 1.442695
    %v8185 = vpow.pop %v8184
    %v8186 = vmul.f32 %v8157, 1.442695
    %v8187 = vpow.pop %v8186
    %v8188 = vmul.f32 %v8158, 1.442695
    %v8189 = vpow.pop %v8188
    %v8190 = vmul.f32 %v8159, 1.442695
    %v8191 = vpow.pop %v8190
    %v8192 = vadd.f32 %v8128, %v8161
    %v8193 = vadd.f32 %v8129, %v8163
    %v8194 = vadd.f32 %v8130, %v8165
    %v8195 = vadd.f32 %v8131, %v8167
    %v8196 = vadd.f32 %v8132, %v8169
    %v8197 = vadd.f32 %v8133, %v8171
    %v8198 = vadd.f32 %v8134, %v8173
    %v8199 = vadd.f32 %v8135, %v8175
    %v8200 = vadd.f32 %v8136, %v8177
    %v8201 = vadd.f32 %v8137, %v8179
    %v8202 = vadd.f32 %v8138, %v8181
    %v8203 = vadd.f32 %v8139, %v8183
    %v8204 = vadd.f32 %v8140, %v8185
    %v8205 = vadd.f32 %v8141, %v8187
    %v8206 = vadd.f32 %v8142, %v8189
    %v8207 = vadd.f32 %v8143, %v8191
    %v8208 = vsub.f32 %v7936, %v7952
    %v8209 = vsub.f32 %v7937, %v7953
    %v8210 = vsub.f32 %v7938, %v7954
    %v8211 = vsub.f32 %v7939, %v7955
    %v8212 = vsub.f32 %v7940, %v7956
    %v8213 = vsub.f32 %v7941, %v7957
    %v8214 = vsub.f32 %v7942, %v7958
    %v8215 = vsub.f32 %v7943, %v7959
    %v8216 = vsub.f32 %v7944, %v7960
    %v8217 = vsub.f32 %v7945, %v7961
    %v8218 = vsub.f32 %v7946, %v7962
    %v8219 = vsub.f32 %v7947, %v7963
    %v8220 = vsub.f32 %v7948, %v7964
    %v8221 = vsub.f32 %v7949, %v7965
    %v8222 = vsub.f32 %v7950, %v7966
    %v8223 = vsub.f32 %v7951, %v7967
    %v8224 = vmul.f32 %v8208, 1.442695
    %v8225 = vpow.pop %v8224
    %v8226 = vmul.f32 %v8209, 1.442695
    %v8227 = vpow.pop %v8226
    %v8228 = vmul.f32 %v8210, 1.442695
    %v8229 = vpow.pop %v8228
    %v8230 = vmul.f32 %v8211, 1.442695
    %v8231 = vpow.pop %v8230
    %v8232 = vmul.f32 %v8212, 1.442695
    %v8233 = vpow.pop %v8232
    %v8234 = vmul.f32 %v8213, 1.442695
    %v8235 = vpow.pop %v8234
    %v8236 = vmul.f32 %v8214, 1.442695
    %v8237 = vpow.pop %v8236
    %v8238 = vmul.f32 %v8215, 1.442695
    %v8239 = vpow.pop %v8238
    %v8240 = vmul.f32 %v8216, 1.442695
    %v8241 = vpow.pop %v8240
    %v8242 = vmul.f32 %v8217, 1.442695
    %v8243 = vpow.pop %v8242
    %v8244 = vmul.f32 %v8218, 1.442695
    %v8245 = vpow.pop %v8244
    %v8246 = vmul.f32 %v8219, 1.442695
    %v8247 = vpow.pop %v8246
    %v8248 = vmul.f32 %v8220, 1.442695
    %v8249 = vpow.pop %v8248
    %v8250 = vmul.f32 %v8221, 1.442695
    %v8251 = vpow.pop %v8250
    %v8252 = vmul.f32 %v8222, 1.442695
    %v8253 = vpow.pop %v8252
    %v8254 = vmul.f32 %v8223, 1.442695
    %v8255 = vpow.pop %v8254
    %v8256 = vadd.f32 %v8192, %v8225
    %v8257 = vadd.f32 %v8193, %v8227
    %v8258 = vadd.f32 %v8194, %v8229
    %v8259 = vadd.f32 %v8195, %v8231
    %v8260 = vadd.f32 %v8196, %v8233
    %v8261 = vadd.f32 %v8197, %v8235
    %v8262 = vadd.f32 %v8198, %v8237
    %v8263 = vadd.f32 %v8199, %v8239
    %v8264 = vadd.f32 %v8200, %v8241
    %v8265 = vadd.f32 %v8201, %v8243
    %v8266 = vadd.f32 %v8202, %v8245
    %v8267 = vadd.f32 %v8203, %v8247
    %v8268 = vadd.f32 %v8204, %v8249
    %v8269 = vadd.f32 %v8205, %v8251
    %v8270 = vadd.f32 %v8206, %v8253
    %v8271 = vadd.f32 %v8207, %v8255
    %v8272 = vlog2.pop %v8256
    %v8273 = vmul.f32 %v8272, 0.6931472
    %v8274 = vlog2.pop %v8257
    %v8275 = vmul.f32 %v8274, 0.6931472
    %v8276 = vlog2.pop %v8258
    %v8277 = vmul.f32 %v8276, 0.6931472
    %v8278 = vlog2.pop %v8259
    %v8279 = vmul.f32 %v8278, 0.6931472
    %v8280 = vlog2.pop %v8260
    %v8281 = vmul.f32 %v8280, 0.6931472
    %v8282 = vlog2.pop %v8261
    %v8283 = vmul.f32 %v8282, 0.6931472
    %v8284 = vlog2.pop %v8262
    %v8285 = vmul.f32 %v8284, 0.6931472
    %v8286 = vlog2.pop %v8263
    %v8287 = vmul.f32 %v8286, 0.6931472
    %v8288 = vlog2.pop %v8264
    %v8289 = vmul.f32 %v8288, 0.6931472
    %v8290 = vlog2.pop %v8265
    %v8291 = vmul.f32 %v8290, 0.6931472
    %v8292 = vlog2.pop %v8266
    %v8293 = vmul.f32 %v8292, 0.6931472
    %v8294 = vlog2.pop %v8267
    %v8295 = vmul.f32 %v8294, 0.6931472
    %v8296 = vlog2.pop %v8268
    %v8297 = vmul.f32 %v8296, 0.6931472
    %v8298 = vlog2.pop %v8269
    %v8299 = vmul.f32 %v8298, 0.6931472
    %v8300 = vlog2.pop %v8270
    %v8301 = vmul.f32 %v8300, 0.6931472
    %v8302 = vlog2.pop %v8271
    %v8303 = vmul.f32 %v8302, 0.6931472
    %v8304 = vadd.f32 %v7952, %v8273
    %v8305 = vadd.f32 %v7953, %v8275
    %v8306 = vadd.f32 %v7954, %v8277
    %v8307 = vadd.f32 %v7955, %v8279
    %v8308 = vadd.f32 %v7956, %v8281
    %v8309 = vadd.f32 %v7957, %v8283
    %v8310 = vadd.f32 %v7958, %v8285
    %v8311 = vadd.f32 %v7959, %v8287
    %v8312 = vadd.f32 %v7960, %v8289
    %v8313 = vadd.f32 %v7961, %v8291
    %v8314 = vadd.f32 %v7962, %v8293
    %v8315 = vadd.f32 %v7963, %v8295
    %v8316 = vadd.f32 %v7964, %v8297
    %v8317 = vadd.f32 %v7965, %v8299
    %v8318 = vadd.f32 %v7966, %v8301
    %v8319 = vadd.f32 %v7967, %v8303
    %v8320 = vsub.f32 %v7824, %v8304
    %v8321 = vsub.f32 %v7825, %v8305
    %v8322 = vsub.f32 %v7826, %v8306
    %v8323 = vsub.f32 %v7827, %v8307
    %v8324 = vsub.f32 %v7828, %v8308
    %v8325 = vsub.f32 %v7829, %v8309
    %v8326 = vsub.f32 %v7830, %v8310
    %v8327 = vsub.f32 %v7831, %v8311
    %v8328 = vsub.f32 %v7832, %v8312
    %v8329 = vsub.f32 %v7833, %v8313
    %v8330 = vsub.f32 %v7834, %v8314
    %v8331 = vsub.f32 %v7835, %v8315
    %v8332 = vsub.f32 %v7836, %v8316
    %v8333 = vsub.f32 %v7837, %v8317
    %v8334 = vsub.f32 %v7838, %v8318
    %v8335 = vsub.f32 %v7839, %v8319
    %8336 = vst [vmem:[#allocation12] sm:$0xff] %v8320
    %8337 = vst [vmem:[#allocation12 + $0x8] sm:$0xff] %v8321
    %8338 = vst [vmem:[#allocation12 + $0x10] sm:$0xff] %v8322
    %8339 = vst [vmem:[#allocation12 + $0x18] sm:$0xff] %v8323
    %8340 = vst [vmem:[#allocation12 + $0x20] sm:$0xff] %v8324
    %8341 = vst [vmem:[#allocation12 + $0x28] sm:$0xff] %v8325
    %8342 = vst [vmem:[#allocation12 + $0x30] sm:$0xff] %v8326
    %8343 = vst [vmem:[#allocation12 + $0x38] sm:$0xff] %v8327
    %8344 = vst [vmem:[#allocation12 + $0x40] sm:$0xff] %v8328
    %8345 = vst [vmem:[#allocation12 + $0x48] sm:$0xff] %v8329
    %8346 = vst [vmem:[#allocation12 + $0x50] sm:$0xff] %v8330
    %8347 = vst [vmem:[#allocation12 + $0x58] sm:$0xff] %v8331
    %8348 = vst [vmem:[#allocation12 + $0x60] sm:$0xff] %v8332
    %8349 = vst [vmem:[#allocation12 + $0x68] sm:$0xff] %v8333
    %8350 = vst [vmem:[#allocation12 + $0x70] sm:$0xff] %v8334
    %8351 = vst [vmem:[#allocation12 + $0x78] sm:$0xff] %v8335
    %v8352 = vld [vmem:[#allocation4 + $0x8] sm:$0xff]
    %v8353 = vld [vmem:[#allocation4 + $0x58] sm:$0xff]
    %v8354 = vld [vmem:[#allocation4 + $0xa8] sm:$0xff]
    %v8355 = vld [vmem:[#allocation4 + $0xf8] sm:$0xff]
    %v8356 = vld [vmem:[#allocation4 + $0x148] sm:$0xff]
    %v8357 = vld [vmem:[#allocation4 + $0x198] sm:$0xff]
    %v8358 = vld [vmem:[#allocation4 + $0x1e8] sm:$0xff]
    %v8359 = vld [vmem:[#allocation4 + $0x238] sm:$0xff]
    %v8360 = vld [vmem:[#allocation4 + $0x288] sm:$0xff]
    %v8361 = vld [vmem:[#allocation4 + $0x2d8] sm:$0xff]
    %v8362 = vld [vmem:[#allocation4 + $0x328] sm:$0xff]
    %v8363 = vld [vmem:[#allocation4 + $0x378] sm:$0xff]
    %v8364 = vld [vmem:[#allocation4 + $0x3c8] sm:$0xff]
    %v8365 = vld [vmem:[#allocation4 + $0x418] sm:$0xff]
    %v8366 = vld [vmem:[#allocation4 + $0x468] sm:$0xff]
    %v8367 = vld [vmem:[#allocation4 + $0x4b8] sm:$0xff]
    %v8368 = vsub.f32 %v8352, %v8304
    %v8369 = vsub.f32 %v8353, %v8305
    %v8370 = vsub.f32 %v8354, %v8306
    %v8371 = vsub.f32 %v8355, %v8307
    %v8372 = vsub.f32 %v8356, %v8308
    %v8373 = vsub.f32 %v8357, %v8309
    %v8374 = vsub.f32 %v8358, %v8310
    %v8375 = vsub.f32 %v8359, %v8311
    %v8376 = vsub.f32 %v8360, %v8312
    %v8377 = vsub.f32 %v8361, %v8313
    %v8378 = vsub.f32 %v8362, %v8314
    %v8379 = vsub.f32 %v8363, %v8315
    %v8380 = vsub.f32 %v8364, %v8316
    %v8381 = vsub.f32 %v8365, %v8317
    %v8382 = vsub.f32 %v8366, %v8318
    %v8383 = vsub.f32 %v8367, %v8319
    %s8384 = scalar_lea.vmem [#allocation12], 128
    %8385 = vst [vmem:[%s8384] sm:$0xff] %v8368
    %8386 = vst [vmem:[%s8384 + $0x8] sm:$0xff] %v8369
    %8387 = vst [vmem:[%s8384 + $0x10] sm:$0xff] %v8370
    %8388 = vst [vmem:[%s8384 + $0x18] sm:$0xff] %v8371
    %8389 = vst [vmem:[%s8384 + $0x20] sm:$0xff] %v8372
    %8390 = vst [vmem:[%s8384 + $0x28] sm:$0xff] %v8373
    %8391 = vst [vmem:[%s8384 + $0x30] sm:$0xff] %v8374
    %8392 = vst [vmem:[%s8384 + $0x38] sm:$0xff] %v8375
    %8393 = vst [vmem:[%s8384 + $0x40] sm:$0xff] %v8376
    %8394 = vst [vmem:[%s8384 + $0x48] sm:$0xff] %v8377
    %8395 = vst [vmem:[%s8384 + $0x50] sm:$0xff] %v8378
    %8396 = vst [vmem:[%s8384 + $0x58] sm:$0xff] %v8379
    %8397 = vst [vmem:[%s8384 + $0x60] sm:$0xff] %v8380
    %8398 = vst [vmem:[%s8384 + $0x68] sm:$0xff] %v8381
    %8399 = vst [vmem:[%s8384 + $0x70] sm:$0xff] %v8382
    %8400 = vst [vmem:[%s8384 + $0x78] sm:$0xff] %v8383
    %v8401 = vld [vmem:[#allocation4 + $0x10] sm:$0xff]
    %v8402 = vld [vmem:[#allocation4 + $0x60] sm:$0xff]
    %v8403 = vld [vmem:[#allocation4 + $0xb0] sm:$0xff]
    %v8404 = vld [vmem:[#allocation4 + $0x100] sm:$0xff]
    %v8405 = vld [vmem:[#allocation4 + $0x150] sm:$0xff]
    %v8406 = vld [vmem:[#allocation4 + $0x1a0] sm:$0xff]
    %v8407 = vld [vmem:[#allocation4 + $0x1f0] sm:$0xff]
    %v8408 = vld [vmem:[#allocation4 + $0x240] sm:$0xff]
    %v8409 = vld [vmem:[#allocation4 + $0x290] sm:$0xff]
    %v8410 = vld [vmem:[#allocation4 + $0x2e0] sm:$0xff]
    %v8411 = vld [vmem:[#allocation4 + $0x330] sm:$0xff]
    %v8412 = vld [vmem:[#allocation4 + $0x380] sm:$0xff]
    %v8413 = vld [vmem:[#allocation4 + $0x3d0] sm:$0xff]
    %v8414 = vld [vmem:[#allocation4 + $0x420] sm:$0xff]
    %v8415 = vld [vmem:[#allocation4 + $0x470] sm:$0xff]
    %v8416 = vld [vmem:[#allocation4 + $0x4c0] sm:$0xff]
    %v8417 = vsub.f32 %v8401, %v8304
    %v8418 = vsub.f32 %v8402, %v8305
    %v8419 = vsub.f32 %v8403, %v8306
    %v8420 = vsub.f32 %v8404, %v8307
    %v8421 = vsub.f32 %v8405, %v8308
    %v8422 = vsub.f32 %v8406, %v8309
    %v8423 = vsub.f32 %v8407, %v8310
    %v8424 = vsub.f32 %v8408, %v8311
    %v8425 = vsub.f32 %v8409, %v8312
    %v8426 = vsub.f32 %v8410, %v8313
    %v8427 = vsub.f32 %v8411, %v8314
    %v8428 = vsub.f32 %v8412, %v8315
    %v8429 = vsub.f32 %v8413, %v8316
    %v8430 = vsub.f32 %v8414, %v8317
    %v8431 = vsub.f32 %v8415, %v8318
    %v8432 = vsub.f32 %v8416, %v8319
    %s8433 = scalar_lea.vmem [#allocation12], 256
    %8434 = vst [vmem:[%s8433] sm:$0xff] %v8417
    %8435 = vst [vmem:[%s8433 + $0x8] sm:$0xff] %v8418
    %8436 = vst [vmem:[%s8433 + $0x10] sm:$0xff] %v8419
    %8437 = vst [vmem:[%s8433 + $0x18] sm:$0xff] %v8420
    %8438 = vst [vmem:[%s8433 + $0x20] sm:$0xff] %v8421
    %8439 = vst [vmem:[%s8433 + $0x28] sm:$0xff] %v8422
    %8440 = vst [vmem:[%s8433 + $0x30] sm:$0xff] %v8423
    %8441 = vst [vmem:[%s8433 + $0x38] sm:$0xff] %v8424
    %8442 = vst [vmem:[%s8433 + $0x40] sm:$0xff] %v8425
    %8443 = vst [vmem:[%s8433 + $0x48] sm:$0xff] %v8426
    %8444 = vst [vmem:[%s8433 + $0x50] sm:$0xff] %v8427
    %8445 = vst [vmem:[%s8433 + $0x58] sm:$0xff] %v8428
    %8446 = vst [vmem:[%s8433 + $0x60] sm:$0xff] %v8429
    %8447 = vst [vmem:[%s8433 + $0x68] sm:$0xff] %v8430
    %8448 = vst [vmem:[%s8433 + $0x70] sm:$0xff] %v8431
    %8449 = vst [vmem:[%s8433 + $0x78] sm:$0xff] %v8432
    %v8450 = vld [vmem:[#allocation4 + $0x18] sm:$0xff]
    %v8451 = vld [vmem:[#allocation4 + $0x68] sm:$0xff]
    %v8452 = vld [vmem:[#allocation4 + $0xb8] sm:$0xff]
    %v8453 = vld [vmem:[#allocation4 + $0x108] sm:$0xff]
    %v8454 = vld [vmem:[#allocation4 + $0x158] sm:$0xff]
    %v8455 = vld [vmem:[#allocation4 + $0x1a8] sm:$0xff]
    %v8456 = vld [vmem:[#allocation4 + $0x1f8] sm:$0xff]
    %v8457 = vld [vmem:[#allocation4 + $0x248] sm:$0xff]
    %v8458 = vld [vmem:[#allocation4 + $0x298] sm:$0xff]
    %v8459 = vld [vmem:[#allocation4 + $0x2e8] sm:$0xff]
    %v8460 = vld [vmem:[#allocation4 + $0x338] sm:$0xff]
    %v8461 = vld [vmem:[#allocation4 + $0x388] sm:$0xff]
    %v8462 = vld [vmem:[#allocation4 + $0x3d8] sm:$0xff]
    %v8463 = vld [vmem:[#allocation4 + $0x428] sm:$0xff]
    %v8464 = vld [vmem:[#allocation4 + $0x478] sm:$0xff]
    %v8465 = vld [vmem:[#allocation4 + $0x4c8] sm:$0xff]
    %v8466 = vsub.f32 %v8450, %v8304
    %v8467 = vsub.f32 %v8451, %v8305
    %v8468 = vsub.f32 %v8452, %v8306
    %v8469 = vsub.f32 %v8453, %v8307
    %v8470 = vsub.f32 %v8454, %v8308
    %v8471 = vsub.f32 %v8455, %v8309
    %v8472 = vsub.f32 %v8456, %v8310
    %v8473 = vsub.f32 %v8457, %v8311
    %v8474 = vsub.f32 %v8458, %v8312
    %v8475 = vsub.f32 %v8459, %v8313
    %v8476 = vsub.f32 %v8460, %v8314
    %v8477 = vsub.f32 %v8461, %v8315
    %v8478 = vsub.f32 %v8462, %v8316
    %v8479 = vsub.f32 %v8463, %v8317
    %v8480 = vsub.f32 %v8464, %v8318
    %v8481 = vsub.f32 %v8465, %v8319
    %s8482 = scalar_lea.vmem [#allocation12], 384
    %8483 = vst [vmem:[%s8482] sm:$0xff] %v8466
    %8484 = vst [vmem:[%s8482 + $0x8] sm:$0xff] %v8467
    %8485 = vst [vmem:[%s8482 + $0x10] sm:$0xff] %v8468
    %8486 = vst [vmem:[%s8482 + $0x18] sm:$0xff] %v8469
    %8487 = vst [vmem:[%s8482 + $0x20] sm:$0xff] %v8470
    %8488 = vst [vmem:[%s8482 + $0x28] sm:$0xff] %v8471
    %8489 = vst [vmem:[%s8482 + $0x30] sm:$0xff] %v8472
    %8490 = vst [vmem:[%s8482 + $0x38] sm:$0xff] %v8473
    %8491 = vst [vmem:[%s8482 + $0x40] sm:$0xff] %v8474
    %8492 = vst [vmem:[%s8482 + $0x48] sm:$0xff] %v8475
    %8493 = vst [vmem:[%s8482 + $0x50] sm:$0xff] %v8476
    %8494 = vst [vmem:[%s8482 + $0x58] sm:$0xff] %v8477
    %8495 = vst [vmem:[%s8482 + $0x60] sm:$0xff] %v8478
    %8496 = vst [vmem:[%s8482 + $0x68] sm:$0xff] %v8479
    %8497 = vst [vmem:[%s8482 + $0x70] sm:$0xff] %v8480
    %8498 = vst [vmem:[%s8482 + $0x78] sm:$0xff] %v8481
    %v8499 = vld [vmem:[#allocation4 + $0x20] sm:$0xff]
    %v8500 = vld [vmem:[#allocation4 + $0x70] sm:$0xff]
    %v8501 = vld [vmem:[#allocation4 + $0xc0] sm:$0xff]
    %v8502 = vld [vmem:[#allocation4 + $0x110] sm:$0xff]
    %v8503 = vld [vmem:[#allocation4 + $0x160] sm:$0xff]
    %v8504 = vld [vmem:[#allocation4 + $0x1b0] sm:$0xff]
    %v8505 = vld [vmem:[#allocation4 + $0x200] sm:$0xff]
    %v8506 = vld [vmem:[#allocation4 + $0x250] sm:$0xff]
    %v8507 = vld [vmem:[#allocation4 + $0x2a0] sm:$0xff]
    %v8508 = vld [vmem:[#allocation4 + $0x2f0] sm:$0xff]
    %v8509 = vld [vmem:[#allocation4 + $0x340] sm:$0xff]
    %v8510 = vld [vmem:[#allocation4 + $0x390] sm:$0xff]
    %v8511 = vld [vmem:[#allocation4 + $0x3e0] sm:$0xff]
    %v8512 = vld [vmem:[#allocation4 + $0x430] sm:$0xff]
    %v8513 = vld [vmem:[#allocation4 + $0x480] sm:$0xff]
    %v8514 = vld [vmem:[#allocation4 + $0x4d0] sm:$0xff]
    %v8515 = vsub.f32 %v8499, %v8304
    %v8516 = vsub.f32 %v8500, %v8305
    %v8517 = vsub.f32 %v8501, %v8306
    %v8518 = vsub.f32 %v8502, %v8307
    %v8519 = vsub.f32 %v8503, %v8308
    %v8520 = vsub.f32 %v8504, %v8309
    %v8521 = vsub.f32 %v8505, %v8310
    %v8522 = vsub.f32 %v8506, %v8311
    %v8523 = vsub.f32 %v8507, %v8312
    %v8524 = vsub.f32 %v8508, %v8313
    %v8525 = vsub.f32 %v8509, %v8314
    %v8526 = vsub.f32 %v8510, %v8315
    %v8527 = vsub.f32 %v8511, %v8316
    %v8528 = vsub.f32 %v8512, %v8317
    %v8529 = vsub.f32 %v8513, %v8318
    %v8530 = vsub.f32 %v8514, %v8319
    %s8531 = scalar_lea.vmem [#allocation12], 512
    %8532 = vst [vmem:[%s8531] sm:$0xff] %v8515
    %8533 = vst [vmem:[%s8531 + $0x8] sm:$0xff] %v8516
    %8534 = vst [vmem:[%s8531 + $0x10] sm:$0xff] %v8517
    %8535 = vst [vmem:[%s8531 + $0x18] sm:$0xff] %v8518
    %8536 = vst [vmem:[%s8531 + $0x20] sm:$0xff] %v8519
    %8537 = vst [vmem:[%s8531 + $0x28] sm:$0xff] %v8520
    %8538 = vst [vmem:[%s8531 + $0x30] sm:$0xff] %v8521
    %8539 = vst [vmem:[%s8531 + $0x38] sm:$0xff] %v8522
    %8540 = vst [vmem:[%s8531 + $0x40] sm:$0xff] %v8523
    %8541 = vst [vmem:[%s8531 + $0x48] sm:$0xff] %v8524
    %8542 = vst [vmem:[%s8531 + $0x50] sm:$0xff] %v8525
    %8543 = vst [vmem:[%s8531 + $0x58] sm:$0xff] %v8526
    %8544 = vst [vmem:[%s8531 + $0x60] sm:$0xff] %v8527
    %8545 = vst [vmem:[%s8531 + $0x68] sm:$0xff] %v8528
    %8546 = vst [vmem:[%s8531 + $0x70] sm:$0xff] %v8529
    %8547 = vst [vmem:[%s8531 + $0x78] sm:$0xff] %v8530
    %v8548 = vld [vmem:[#allocation4 + $0x28] sm:$0xff]
    %v8549 = vld [vmem:[#allocation4 + $0x78] sm:$0xff]
    %v8550 = vld [vmem:[#allocation4 + $0xc8] sm:$0xff]
    %v8551 = vld [vmem:[#allocation4 + $0x118] sm:$0xff]
    %v8552 = vld [vmem:[#allocation4 + $0x168] sm:$0xff]
    %v8553 = vld [vmem:[#allocation4 + $0x1b8] sm:$0xff]
    %v8554 = vld [vmem:[#allocation4 + $0x208] sm:$0xff]
    %v8555 = vld [vmem:[#allocation4 + $0x258] sm:$0xff]
    %v8556 = vld [vmem:[#allocation4 + $0x2a8] sm:$0xff]
    %v8557 = vld [vmem:[#allocation4 + $0x2f8] sm:$0xff]
    %v8558 = vld [vmem:[#allocation4 + $0x348] sm:$0xff]
    %v8559 = vld [vmem:[#allocation4 + $0x398] sm:$0xff]
    %v8560 = vld [vmem:[#allocation4 + $0x3e8] sm:$0xff]
    %v8561 = vld [vmem:[#allocation4 + $0x438] sm:$0xff]
    %v8562 = vld [vmem:[#allocation4 + $0x488] sm:$0xff]
    %v8563 = vld [vmem:[#allocation4 + $0x4d8] sm:$0xff]
    %v8564 = vld [vmem:[#allocation4 + $0x30] sm:$0xff]
    %v8565 = vld [vmem:[#allocation4 + $0x80] sm:$0xff]
    %v8566 = vld [vmem:[#allocation4 + $0xd0] sm:$0xff]
    %v8567 = vld [vmem:[#allocation4 + $0x120] sm:$0xff]
    %v8568 = vld [vmem:[#allocation4 + $0x170] sm:$0xff]
    %v8569 = vld [vmem:[#allocation4 + $0x1c0] sm:$0xff]
    %v8570 = vld [vmem:[#allocation4 + $0x210] sm:$0xff]
    %v8571 = vld [vmem:[#allocation4 + $0x260] sm:$0xff]
    %v8572 = vld [vmem:[#allocation4 + $0x2b0] sm:$0xff]
    %v8573 = vld [vmem:[#allocation4 + $0x300] sm:$0xff]
    %v8574 = vld [vmem:[#allocation4 + $0x350] sm:$0xff]
    %v8575 = vld [vmem:[#allocation4 + $0x3a0] sm:$0xff]
    %v8576 = vld [vmem:[#allocation4 + $0x3f0] sm:$0xff]
    %v8577 = vld [vmem:[#allocation4 + $0x440] sm:$0xff]
    %v8578 = vld [vmem:[#allocation4 + $0x490] sm:$0xff]
    %v8579 = vld [vmem:[#allocation4 + $0x4e0] sm:$0xff]
    %v8580 = vmax.f32 %v8548, %v8564
    %v8581 = vmax.f32 %v8549, %v8565
    %v8582 = vmax.f32 %v8550, %v8566
    %v8583 = vmax.f32 %v8551, %v8567
    %v8584 = vmax.f32 %v8552, %v8568
    %v8585 = vmax.f32 %v8553, %v8569
    %v8586 = vmax.f32 %v8554, %v8570
    %v8587 = vmax.f32 %v8555, %v8571
    %v8588 = vmax.f32 %v8556, %v8572
    %v8589 = vmax.f32 %v8557, %v8573
    %v8590 = vmax.f32 %v8558, %v8574
    %v8591 = vmax.f32 %v8559, %v8575
    %v8592 = vmax.f32 %v8560, %v8576
    %v8593 = vmax.f32 %v8561, %v8577
    %v8594 = vmax.f32 %v8562, %v8578
    %v8595 = vmax.f32 %v8563, %v8579
    %v8596 = vld [vmem:[#allocation4 + $0x38] sm:$0xff]
    %v8597 = vld [vmem:[#allocation4 + $0x88] sm:$0xff]
    %v8598 = vld [vmem:[#allocation4 + $0xd8] sm:$0xff]
    %v8599 = vld [vmem:[#allocation4 + $0x128] sm:$0xff]
    %v8600 = vld [vmem:[#allocation4 + $0x178] sm:$0xff]
    %v8601 = vld [vmem:[#allocation4 + $0x1c8] sm:$0xff]
    %v8602 = vld [vmem:[#allocation4 + $0x218] sm:$0xff]
    %v8603 = vld [vmem:[#allocation4 + $0x268] sm:$0xff]
    %v8604 = vld [vmem:[#allocation4 + $0x2b8] sm:$0xff]
    %v8605 = vld [vmem:[#allocation4 + $0x308] sm:$0xff]
    %v8606 = vld [vmem:[#allocation4 + $0x358] sm:$0xff]
    %v8607 = vld [vmem:[#allocation4 + $0x3a8] sm:$0xff]
    %v8608 = vld [vmem:[#allocation4 + $0x3f8] sm:$0xff]
    %v8609 = vld [vmem:[#allocation4 + $0x448] sm:$0xff]
    %v8610 = vld [vmem:[#allocation4 + $0x498] sm:$0xff]
    %v8611 = vld [vmem:[#allocation4 + $0x4e8] sm:$0xff]
    %v8612 = vmax.f32 %v8580, %v8596
    %v8613 = vmax.f32 %v8581, %v8597
    %v8614 = vmax.f32 %v8582, %v8598
    %v8615 = vmax.f32 %v8583, %v8599
    %v8616 = vmax.f32 %v8584, %v8600
    %v8617 = vmax.f32 %v8585, %v8601
    %v8618 = vmax.f32 %v8586, %v8602
    %v8619 = vmax.f32 %v8587, %v8603
    %v8620 = vmax.f32 %v8588, %v8604
    %v8621 = vmax.f32 %v8589, %v8605
    %v8622 = vmax.f32 %v8590, %v8606
    %v8623 = vmax.f32 %v8591, %v8607
    %v8624 = vmax.f32 %v8592, %v8608
    %v8625 = vmax.f32 %v8593, %v8609
    %v8626 = vmax.f32 %v8594, %v8610
    %v8627 = vmax.f32 %v8595, %v8611
    %v8628 = vld [vmem:[#allocation4 + $0x40] sm:$0xff]
    %v8629 = vld [vmem:[#allocation4 + $0x90] sm:$0xff]
    %v8630 = vld [vmem:[#allocation4 + $0xe0] sm:$0xff]
    %v8631 = vld [vmem:[#allocation4 + $0x130] sm:$0xff]
    %v8632 = vld [vmem:[#allocation4 + $0x180] sm:$0xff]
    %v8633 = vld [vmem:[#allocation4 + $0x1d0] sm:$0xff]
    %v8634 = vld [vmem:[#allocation4 + $0x220] sm:$0xff]
    %v8635 = vld [vmem:[#allocation4 + $0x270] sm:$0xff]
    %v8636 = vld [vmem:[#allocation4 + $0x2c0] sm:$0xff]
    %v8637 = vld [vmem:[#allocation4 + $0x310] sm:$0xff]
    %v8638 = vld [vmem:[#allocation4 + $0x360] sm:$0xff]
    %v8639 = vld [vmem:[#allocation4 + $0x3b0] sm:$0xff]
    %v8640 = vld [vmem:[#allocation4 + $0x400] sm:$0xff]
    %v8641 = vld [vmem:[#allocation4 + $0x450] sm:$0xff]
    %v8642 = vld [vmem:[#allocation4 + $0x4a0] sm:$0xff]
    %v8643 = vld [vmem:[#allocation4 + $0x4f0] sm:$0xff]
    %v8644 = vmax.f32 %v8612, %v8628
    %v8645 = vmax.f32 %v8613, %v8629
    %v8646 = vmax.f32 %v8614, %v8630
    %v8647 = vmax.f32 %v8615, %v8631
    %v8648 = vmax.f32 %v8616, %v8632
    %v8649 = vmax.f32 %v8617, %v8633
    %v8650 = vmax.f32 %v8618, %v8634
    %v8651 = vmax.f32 %v8619, %v8635
    %v8652 = vmax.f32 %v8620, %v8636
    %v8653 = vmax.f32 %v8621, %v8637
    %v8654 = vmax.f32 %v8622, %v8638
    %v8655 = vmax.f32 %v8623, %v8639
    %v8656 = vmax.f32 %v8624, %v8640
    %v8657 = vmax.f32 %v8625, %v8641
    %v8658 = vmax.f32 %v8626, %v8642
    %v8659 = vmax.f32 %v8627, %v8643
    %v8660 = vld [vmem:[#allocation4 + $0x48] sm:$0xff]
    %v8661 = vld [vmem:[#allocation4 + $0x98] sm:$0xff]
    %v8662 = vld [vmem:[#allocation4 + $0xe8] sm:$0xff]
    %v8663 = vld [vmem:[#allocation4 + $0x138] sm:$0xff]
    %v8664 = vld [vmem:[#allocation4 + $0x188] sm:$0xff]
    %v8665 = vld [vmem:[#allocation4 + $0x1d8] sm:$0xff]
    %v8666 = vld [vmem:[#allocation4 + $0x228] sm:$0xff]
    %v8667 = vld [vmem:[#allocation4 + $0x278] sm:$0xff]
    %v8668 = vld [vmem:[#allocation4 + $0x2c8] sm:$0xff]
    %v8669 = vld [vmem:[#allocation4 + $0x318] sm:$0xff]
    %v8670 = vld [vmem:[#allocation4 + $0x368] sm:$0xff]
    %v8671 = vld [vmem:[#allocation4 + $0x3b8] sm:$0xff]
    %v8672 = vld [vmem:[#allocation4 + $0x408] sm:$0xff]
    %v8673 = vld [vmem:[#allocation4 + $0x458] sm:$0xff]
    %v8674 = vld [vmem:[#allocation4 + $0x4a8] sm:$0xff]
    %v8675 = vld [vmem:[#allocation4 + $0x4f8] sm:$0xff]
    %v8676 = vmax.f32 %v8644, %v8660
    %v8677 = vmax.f32 %v8645, %v8661
    %v8678 = vmax.f32 %v8646, %v8662
    %v8679 = vmax.f32 %v8647, %v8663
    %v8680 = vmax.f32 %v8648, %v8664
    %v8681 = vmax.f32 %v8649, %v8665
    %v8682 = vmax.f32 %v8650, %v8666
    %v8683 = vmax.f32 %v8651, %v8667
    %v8684 = vmax.f32 %v8652, %v8668
    %v8685 = vmax.f32 %v8653, %v8669
    %v8686 = vmax.f32 %v8654, %v8670
    %v8687 = vmax.f32 %v8655, %v8671
    %v8688 = vmax.f32 %v8656, %v8672
    %v8689 = vmax.f32 %v8657, %v8673
    %v8690 = vmax.f32 %v8658, %v8674
    %v8691 = vmax.f32 %v8659, %v8675
    %v8692 = vsub.f32 %v8548, %v8676
    %v8693 = vsub.f32 %v8549, %v8677
    %v8694 = vsub.f32 %v8550, %v8678
    %v8695 = vsub.f32 %v8551, %v8679
    %v8696 = vsub.f32 %v8552, %v8680
    %v8697 = vsub.f32 %v8553, %v8681
    %v8698 = vsub.f32 %v8554, %v8682
    %v8699 = vsub.f32 %v8555, %v8683
    %v8700 = vsub.f32 %v8556, %v8684
    %v8701 = vsub.f32 %v8557, %v8685
    %v8702 = vsub.f32 %v8558, %v8686
    %v8703 = vsub.f32 %v8559, %v8687
    %v8704 = vsub.f32 %v8560, %v8688
    %v8705 = vsub.f32 %v8561, %v8689
    %v8706 = vsub.f32 %v8562, %v8690
    %v8707 = vsub.f32 %v8563, %v8691
    %v8708 = vmul.f32 %v8692, 1.442695
    %v8709 = vpow.pop %v8708
    %v8710 = vmul.f32 %v8693, 1.442695
    %v8711 = vpow.pop %v8710
    %v8712 = vmul.f32 %v8694, 1.442695
    %v8713 = vpow.pop %v8712
    %v8714 = vmul.f32 %v8695, 1.442695
    %v8715 = vpow.pop %v8714
    %v8716 = vmul.f32 %v8696, 1.442695
    %v8717 = vpow.pop %v8716
    %v8718 = vmul.f32 %v8697, 1.442695
    %v8719 = vpow.pop %v8718
    %v8720 = vmul.f32 %v8698, 1.442695
    %v8721 = vpow.pop %v8720
    %v8722 = vmul.f32 %v8699, 1.442695
    %v8723 = vpow.pop %v8722
    %v8724 = vmul.f32 %v8700, 1.442695
    %v8725 = vpow.pop %v8724
    %v8726 = vmul.f32 %v8701, 1.442695
    %v8727 = vpow.pop %v8726
    %v8728 = vmul.f32 %v8702, 1.442695
    %v8729 = vpow.pop %v8728
    %v8730 = vmul.f32 %v8703, 1.442695
    %v8731 = vpow.pop %v8730
    %v8732 = vmul.f32 %v8704, 1.442695
    %v8733 = vpow.pop %v8732
    %v8734 = vmul.f32 %v8705, 1.442695
    %v8735 = vpow.pop %v8734
    %v8736 = vmul.f32 %v8706, 1.442695
    %v8737 = vpow.pop %v8736
    %v8738 = vmul.f32 %v8707, 1.442695
    %v8739 = vpow.pop %v8738
    %v8740 = vsub.f32 %v8564, %v8676
    %v8741 = vsub.f32 %v8565, %v8677
    %v8742 = vsub.f32 %v8566, %v8678
    %v8743 = vsub.f32 %v8567, %v8679
    %v8744 = vsub.f32 %v8568, %v8680
    %v8745 = vsub.f32 %v8569, %v8681
    %v8746 = vsub.f32 %v8570, %v8682
    %v8747 = vsub.f32 %v8571, %v8683
    %v8748 = vsub.f32 %v8572, %v8684
    %v8749 = vsub.f32 %v8573, %v8685
    %v8750 = vsub.f32 %v8574, %v8686
    %v8751 = vsub.f32 %v8575, %v8687
    %v8752 = vsub.f32 %v8576, %v8688
    %v8753 = vsub.f32 %v8577, %v8689
    %v8754 = vsub.f32 %v8578, %v8690
    %v8755 = vsub.f32 %v8579, %v8691
    %v8756 = vmul.f32 %v8740, 1.442695
    %v8757 = vpow.pop %v8756
    %v8758 = vmul.f32 %v8741, 1.442695
    %v8759 = vpow.pop %v8758
    %v8760 = vmul.f32 %v8742, 1.442695
    %v8761 = vpow.pop %v8760
    %v8762 = vmul.f32 %v8743, 1.442695
    %v8763 = vpow.pop %v8762
    %v8764 = vmul.f32 %v8744, 1.442695
    %v8765 = vpow.pop %v8764
    %v8766 = vmul.f32 %v8745, 1.442695
    %v8767 = vpow.pop %v8766
    %v8768 = vmul.f32 %v8746, 1.442695
    %v8769 = vpow.pop %v8768
    %v8770 = vmul.f32 %v8747, 1.442695
    %v8771 = vpow.pop %v8770
    %v8772 = vmul.f32 %v8748, 1.442695
    %v8773 = vpow.pop %v8772
    %v8774 = vmul.f32 %v8749, 1.442695
    %v8775 = vpow.pop %v8774
    %v8776 = vmul.f32 %v8750, 1.442695
    %v8777 = vpow.pop %v8776
    %v8778 = vmul.f32 %v8751, 1.442695
    %v8779 = vpow.pop %v8778
    %v8780 = vmul.f32 %v8752, 1.442695
    %v8781 = vpow.pop %v8780
    %v8782 = vmul.f32 %v8753, 1.442695
    %v8783 = vpow.pop %v8782
    %v8784 = vmul.f32 %v8754, 1.442695
    %v8785 = vpow.pop %v8784
    %v8786 = vmul.f32 %v8755, 1.442695
    %v8787 = vpow.pop %v8786
    %v8788 = vadd.f32 %v8709, %v8757
    %v8789 = vadd.f32 %v8711, %v8759
    %v8790 = vadd.f32 %v8713, %v8761
    %v8791 = vadd.f32 %v8715, %v8763
    %v8792 = vadd.f32 %v8717, %v8765
    %v8793 = vadd.f32 %v8719, %v8767
    %v8794 = vadd.f32 %v8721, %v8769
    %v8795 = vadd.f32 %v8723, %v8771
    %v8796 = vadd.f32 %v8725, %v8773
    %v8797 = vadd.f32 %v8727, %v8775
    %v8798 = vadd.f32 %v8729, %v8777
    %v8799 = vadd.f32 %v8731, %v8779
    %v8800 = vadd.f32 %v8733, %v8781
    %v8801 = vadd.f32 %v8735, %v8783
    %v8802 = vadd.f32 %v8737, %v8785
    %v8803 = vadd.f32 %v8739, %v8787
    %v8804 = vsub.f32 %v8596, %v8676
    %v8805 = vsub.f32 %v8597, %v8677
    %v8806 = vsub.f32 %v8598, %v8678
    %v8807 = vsub.f32 %v8599, %v8679
    %v8808 = vsub.f32 %v8600, %v8680
    %v8809 = vsub.f32 %v8601, %v8681
    %v8810 = vsub.f32 %v8602, %v8682
    %v8811 = vsub.f32 %v8603, %v8683
    %v8812 = vsub.f32 %v8604, %v8684
    %v8813 = vsub.f32 %v8605, %v8685
    %v8814 = vsub.f32 %v8606, %v8686
    %v8815 = vsub.f32 %v8607, %v8687
    %v8816 = vsub.f32 %v8608, %v8688
    %v8817 = vsub.f32 %v8609, %v8689
    %v8818 = vsub.f32 %v8610, %v8690
    %v8819 = vsub.f32 %v8611, %v8691
    %v8820 = vmul.f32 %v8804, 1.442695
    %v8821 = vpow.pop %v8820
    %v8822 = vmul.f32 %v8805, 1.442695
    %v8823 = vpow.pop %v8822
    %v8824 = vmul.f32 %v8806, 1.442695
    %v8825 = vpow.pop %v8824
    %v8826 = vmul.f32 %v8807, 1.442695
    %v8827 = vpow.pop %v8826
    %v8828 = vmul.f32 %v8808, 1.442695
    %v8829 = vpow.pop %v8828
    %v8830 = vmul.f32 %v8809, 1.442695
    %v8831 = vpow.pop %v8830
    %v8832 = vmul.f32 %v8810, 1.442695
    %v8833 = vpow.pop %v8832
    %v8834 = vmul.f32 %v8811, 1.442695
    %v8835 = vpow.pop %v8834
    %v8836 = vmul.f32 %v8812, 1.442695
    %v8837 = vpow.pop %v8836
    %v8838 = vmul.f32 %v8813, 1.442695
    %v8839 = vpow.pop %v8838
    %v8840 = vmul.f32 %v8814, 1.442695
    %v8841 = vpow.pop %v8840
    %v8842 = vmul.f32 %v8815, 1.442695
    %v8843 = vpow.pop %v8842
    %v8844 = vmul.f32 %v8816, 1.442695
    %v8845 = vpow.pop %v8844
    %v8846 = vmul.f32 %v8817, 1.442695
    %v8847 = vpow.pop %v8846
    %v8848 = vmul.f32 %v8818, 1.442695
    %v8849 = vpow.pop %v8848
    %v8850 = vmul.f32 %v8819, 1.442695
    %v8851 = vpow.pop %v8850
    %v8852 = vadd.f32 %v8788, %v8821
    %v8853 = vadd.f32 %v8789, %v8823
    %v8854 = vadd.f32 %v8790, %v8825
    %v8855 = vadd.f32 %v8791, %v8827
    %v8856 = vadd.f32 %v8792, %v8829
    %v8857 = vadd.f32 %v8793, %v8831
    %v8858 = vadd.f32 %v8794, %v8833
    %v8859 = vadd.f32 %v8795, %v8835
    %v8860 = vadd.f32 %v8796, %v8837
    %v8861 = vadd.f32 %v8797, %v8839
    %v8862 = vadd.f32 %v8798, %v8841
    %v8863 = vadd.f32 %v8799, %v8843
    %v8864 = vadd.f32 %v8800, %v8845
    %v8865 = vadd.f32 %v8801, %v8847
    %v8866 = vadd.f32 %v8802, %v8849
    %v8867 = vadd.f32 %v8803, %v8851
    %v8868 = vsub.f32 %v8628, %v8676
    %v8869 = vsub.f32 %v8629, %v8677
    %v8870 = vsub.f32 %v8630, %v8678
    %v8871 = vsub.f32 %v8631, %v8679
    %v8872 = vsub.f32 %v8632, %v8680
    %v8873 = vsub.f32 %v8633, %v8681
    %v8874 = vsub.f32 %v8634, %v8682
    %v8875 = vsub.f32 %v8635, %v8683
    %v8876 = vsub.f32 %v8636, %v8684
    %v8877 = vsub.f32 %v8637, %v8685
    %v8878 = vsub.f32 %v8638, %v8686
    %v8879 = vsub.f32 %v8639, %v8687
    %v8880 = vsub.f32 %v8640, %v8688
    %v8881 = vsub.f32 %v8641, %v8689
    %v8882 = vsub.f32 %v8642, %v8690
    %v8883 = vsub.f32 %v8643, %v8691
    %v8884 = vmul.f32 %v8868, 1.442695
    %v8885 = vpow.pop %v8884
    %v8886 = vmul.f32 %v8869, 1.442695
    %v8887 = vpow.pop %v8886
    %v8888 = vmul.f32 %v8870, 1.442695
    %v8889 = vpow.pop %v8888
    %v8890 = vmul.f32 %v8871, 1.442695
    %v8891 = vpow.pop %v8890
    %v8892 = vmul.f32 %v8872, 1.442695
    %v8893 = vpow.pop %v8892
    %v8894 = vmul.f32 %v8873, 1.442695
    %v8895 = vpow.pop %v8894
    %v8896 = vmul.f32 %v8874, 1.442695
    %v8897 = vpow.pop %v8896
    %v8898 = vmul.f32 %v8875, 1.442695
    %v8899 = vpow.pop %v8898
    %v8900 = vmul.f32 %v8876, 1.442695
    %v8901 = vpow.pop %v8900
    %v8902 = vmul.f32 %v8877, 1.442695
    %v8903 = vpow.pop %v8902
    %v8904 = vmul.f32 %v8878, 1.442695
    %v8905 = vpow.pop %v8904
    %v8906 = vmul.f32 %v8879, 1.442695
    %v8907 = vpow.pop %v8906
    %v8908 = vmul.f32 %v8880, 1.442695
    %v8909 = vpow.pop %v8908
    %v8910 = vmul.f32 %v8881, 1.442695
    %v8911 = vpow.pop %v8910
    %v8912 = vmul.f32 %v8882, 1.442695
    %v8913 = vpow.pop %v8912
    %v8914 = vmul.f32 %v8883, 1.442695
    %v8915 = vpow.pop %v8914
    %v8916 = vadd.f32 %v8852, %v8885
    %v8917 = vadd.f32 %v8853, %v8887
    %v8918 = vadd.f32 %v8854, %v8889
    %v8919 = vadd.f32 %v8855, %v8891
    %v8920 = vadd.f32 %v8856, %v8893
    %v8921 = vadd.f32 %v8857, %v8895
    %v8922 = vadd.f32 %v8858, %v8897
    %v8923 = vadd.f32 %v8859, %v8899
    %v8924 = vadd.f32 %v8860, %v8901
    %v8925 = vadd.f32 %v8861, %v8903
    %v8926 = vadd.f32 %v8862, %v8905
    %v8927 = vadd.f32 %v8863, %v8907
    %v8928 = vadd.f32 %v8864, %v8909
    %v8929 = vadd.f32 %v8865, %v8911
    %v8930 = vadd.f32 %v8866, %v8913
    %v8931 = vadd.f32 %v8867, %v8915
    %v8932 = vsub.f32 %v8660, %v8676
    %v8933 = vsub.f32 %v8661, %v8677
    %v8934 = vsub.f32 %v8662, %v8678
    %v8935 = vsub.f32 %v8663, %v8679
    %v8936 = vsub.f32 %v8664, %v8680
    %v8937 = vsub.f32 %v8665, %v8681
    %v8938 = vsub.f32 %v8666, %v8682
    %v8939 = vsub.f32 %v8667, %v8683
    %v8940 = vsub.f32 %v8668, %v8684
    %v8941 = vsub.f32 %v8669, %v8685
    %v8942 = vsub.f32 %v8670, %v8686
    %v8943 = vsub.f32 %v8671, %v8687
    %v8944 = vsub.f32 %v8672, %v8688
    %v8945 = vsub.f32 %v8673, %v8689
    %v8946 = vsub.f32 %v8674, %v8690
    %v8947 = vsub.f32 %v8675, %v8691
    %v8948 = vmul.f32 %v8932, 1.442695
    %v8949 = vpow.pop %v8948
    %v8950 = vmul.f32 %v8933, 1.442695
    %v8951 = vpow.pop %v8950
    %v8952 = vmul.f32 %v8934, 1.442695
    %v8953 = vpow.pop %v8952
    %v8954 = vmul.f32 %v8935, 1.442695
    %v8955 = vpow.pop %v8954
    %v8956 = vmul.f32 %v8936, 1.442695
    %v8957 = vpow.pop %v8956
    %v8958 = vmul.f32 %v8937, 1.442695
    %v8959 = vpow.pop %v8958
    %v8960 = vmul.f32 %v8938, 1.442695
    %v8961 = vpow.pop %v8960
    %v8962 = vmul.f32 %v8939, 1.442695
    %v8963 = vpow.pop %v8962
    %v8964 = vmul.f32 %v8940, 1.442695
    %v8965 = vpow.pop %v8964
    %v8966 = vmul.f32 %v8941, 1.442695
    %v8967 = vpow.pop %v8966
    %v8968 = vmul.f32 %v8942, 1.442695
    %v8969 = vpow.pop %v8968
    %v8970 = vmul.f32 %v8943, 1.442695
    %v8971 = vpow.pop %v8970
    %v8972 = vmul.f32 %v8944, 1.442695
    %v8973 = vpow.pop %v8972
    %v8974 = vmul.f32 %v8945, 1.442695
    %v8975 = vpow.pop %v8974
    %v8976 = vmul.f32 %v8946, 1.442695
    %v8977 = vpow.pop %v8976
    %v8978 = vmul.f32 %v8947, 1.442695
    %v8979 = vpow.pop %v8978
    %v8980 = vadd.f32 %v8916, %v8949
    %v8981 = vadd.f32 %v8917, %v8951
    %v8982 = vadd.f32 %v8918, %v8953
    %v8983 = vadd.f32 %v8919, %v8955
    %v8984 = vadd.f32 %v8920, %v8957
    %v8985 = vadd.f32 %v8921, %v8959
    %v8986 = vadd.f32 %v8922, %v8961
    %v8987 = vadd.f32 %v8923, %v8963
    %v8988 = vadd.f32 %v8924, %v8965
    %v8989 = vadd.f32 %v8925, %v8967
    %v8990 = vadd.f32 %v8926, %v8969
    %v8991 = vadd.f32 %v8927, %v8971
    %v8992 = vadd.f32 %v8928, %v8973
    %v8993 = vadd.f32 %v8929, %v8975
    %v8994 = vadd.f32 %v8930, %v8977
    %v8995 = vadd.f32 %v8931, %v8979
    %v8996 = vlog2.pop %v8980
    %v8997 = vmul.f32 %v8996, 0.6931472
    %v8998 = vlog2.pop %v8981
    %v8999 = vmul.f32 %v8998, 0.6931472
    %v9000 = vlog2.pop %v8982
    %v9001 = vmul.f32 %v9000, 0.6931472
    %v9002 = vlog2.pop %v8983
    %v9003 = vmul.f32 %v9002, 0.6931472
    %v9004 = vlog2.pop %v8984
    %v9005 = vmul.f32 %v9004, 0.6931472
    %v9006 = vlog2.pop %v8985
    %v9007 = vmul.f32 %v9006, 0.6931472
    %v9008 = vlog2.pop %v8986
    %v9009 = vmul.f32 %v9008, 0.6931472
    %v9010 = vlog2.pop %v8987
    %v9011 = vmul.f32 %v9010, 0.6931472
    %v9012 = vlog2.pop %v8988
    %v9013 = vmul.f32 %v9012, 0.6931472
    %v9014 = vlog2.pop %v8989
    %v9015 = vmul.f32 %v9014, 0.6931472
    %v9016 = vlog2.pop %v8990
    %v9017 = vmul.f32 %v9016, 0.6931472
    %v9018 = vlog2.pop %v8991
    %v9019 = vmul.f32 %v9018, 0.6931472
    %v9020 = vlog2.pop %v8992
    %v9021 = vmul.f32 %v9020, 0.6931472
    %v9022 = vlog2.pop %v8993
    %v9023 = vmul.f32 %v9022, 0.6931472
    %v9024 = vlog2.pop %v8994
    %v9025 = vmul.f32 %v9024, 0.6931472
    %v9026 = vlog2.pop %v8995
    %v9027 = vmul.f32 %v9026, 0.6931472
    %v9028 = vadd.f32 %v8676, %v8997
    %v9029 = vadd.f32 %v8677, %v8999
    %v9030 = vadd.f32 %v8678, %v9001
    %v9031 = vadd.f32 %v8679, %v9003
    %v9032 = vadd.f32 %v8680, %v9005
    %v9033 = vadd.f32 %v8681, %v9007
    %v9034 = vadd.f32 %v8682, %v9009
    %v9035 = vadd.f32 %v8683, %v9011
    %v9036 = vadd.f32 %v8684, %v9013
    %v9037 = vadd.f32 %v8685, %v9015
    %v9038 = vadd.f32 %v8686, %v9017
    %v9039 = vadd.f32 %v8687, %v9019
    %v9040 = vadd.f32 %v8688, %v9021
    %v9041 = vadd.f32 %v8689, %v9023
    %v9042 = vadd.f32 %v8690, %v9025
    %v9043 = vadd.f32 %v8691, %v9027
    %v9044 = vsub.f32 %v8548, %v9028
    %v9045 = vsub.f32 %v8549, %v9029
    %v9046 = vsub.f32 %v8550, %v9030
    %v9047 = vsub.f32 %v8551, %v9031
    %v9048 = vsub.f32 %v8552, %v9032
    %v9049 = vsub.f32 %v8553, %v9033
    %v9050 = vsub.f32 %v8554, %v9034
    %v9051 = vsub.f32 %v8555, %v9035
    %v9052 = vsub.f32 %v8556, %v9036
    %v9053 = vsub.f32 %v8557, %v9037
    %v9054 = vsub.f32 %v8558, %v9038
    %v9055 = vsub.f32 %v8559, %v9039
    %v9056 = vsub.f32 %v8560, %v9040
    %v9057 = vsub.f32 %v8561, %v9041
    %v9058 = vsub.f32 %v8562, %v9042
    %v9059 = vsub.f32 %v8563, %v9043
    %s9060 = scalar_lea.vmem [#allocation12], 640
    %9061 = vst [vmem:[%s9060] sm:$0xff] %v9044
    %9062 = vst [vmem:[%s9060 + $0x8] sm:$0xff] %v9045
    %9063 = vst [vmem:[%s9060 + $0x10] sm:$0xff] %v9046
    %9064 = vst [vmem:[%s9060 + $0x18] sm:$0xff] %v9047
    %9065 = vst [vmem:[%s9060 + $0x20] sm:$0xff] %v9048
    %9066 = vst [vmem:[%s9060 + $0x28] sm:$0xff] %v9049
    %9067 = vst [vmem:[%s9060 + $0x30] sm:$0xff] %v9050
    %9068 = vst [vmem:[%s9060 + $0x38] sm:$0xff] %v9051
    %9069 = vst [vmem:[%s9060 + $0x40] sm:$0xff] %v9052
    %9070 = vst [vmem:[%s9060 + $0x48] sm:$0xff] %v9053
    %9071 = vst [vmem:[%s9060 + $0x50] sm:$0xff] %v9054
    %9072 = vst [vmem:[%s9060 + $0x58] sm:$0xff] %v9055
    %9073 = vst [vmem:[%s9060 + $0x60] sm:$0xff] %v9056
    %9074 = vst [vmem:[%s9060 + $0x68] sm:$0xff] %v9057
    %9075 = vst [vmem:[%s9060 + $0x70] sm:$0xff] %v9058
    %9076 = vst [vmem:[%s9060 + $0x78] sm:$0xff] %v9059
    %v9077 = vld [vmem:[#allocation4 + $0x30] sm:$0xff]
    %v9078 = vld [vmem:[#allocation4 + $0x80] sm:$0xff]
    %v9079 = vld [vmem:[#allocation4 + $0xd0] sm:$0xff]
    %v9080 = vld [vmem:[#allocation4 + $0x120] sm:$0xff]
    %v9081 = vld [vmem:[#allocation4 + $0x170] sm:$0xff]
    %v9082 = vld [vmem:[#allocation4 + $0x1c0] sm:$0xff]
    %v9083 = vld [vmem:[#allocation4 + $0x210] sm:$0xff]
    %v9084 = vld [vmem:[#allocation4 + $0x260] sm:$0xff]
    %v9085 = vld [vmem:[#allocation4 + $0x2b0] sm:$0xff]
    %v9086 = vld [vmem:[#allocation4 + $0x300] sm:$0xff]
    %v9087 = vld [vmem:[#allocation4 + $0x350] sm:$0xff]
    %v9088 = vld [vmem:[#allocation4 + $0x3a0] sm:$0xff]
    %v9089 = vld [vmem:[#allocation4 + $0x3f0] sm:$0xff]
    %v9090 = vld [vmem:[#allocation4 + $0x440] sm:$0xff]
    %v9091 = vld [vmem:[#allocation4 + $0x490] sm:$0xff]
    %v9092 = vld [vmem:[#allocation4 + $0x4e0] sm:$0xff]
    %v9093 = vsub.f32 %v9077, %v9028
    %v9094 = vsub.f32 %v9078, %v9029
    %v9095 = vsub.f32 %v9079, %v9030
    %v9096 = vsub.f32 %v9080, %v9031
    %v9097 = vsub.f32 %v9081, %v9032
    %v9098 = vsub.f32 %v9082, %v9033
    %v9099 = vsub.f32 %v9083, %v9034
    %v9100 = vsub.f32 %v9084, %v9035
    %v9101 = vsub.f32 %v9085, %v9036
    %v9102 = vsub.f32 %v9086, %v9037
    %v9103 = vsub.f32 %v9087, %v9038
    %v9104 = vsub.f32 %v9088, %v9039
    %v9105 = vsub.f32 %v9089, %v9040
    %v9106 = vsub.f32 %v9090, %v9041
    %v9107 = vsub.f32 %v9091, %v9042
    %v9108 = vsub.f32 %v9092, %v9043
    %s9109 = scalar_lea.vmem [#allocation12], 768
    %9110 = vst [vmem:[%s9109] sm:$0xff] %v9093
    %9111 = vst [vmem:[%s9109 + $0x8] sm:$0xff] %v9094
    %9112 = vst [vmem:[%s9109 + $0x10] sm:$0xff] %v9095
    %9113 = vst [vmem:[%s9109 + $0x18] sm:$0xff] %v9096
    %9114 = vst [vmem:[%s9109 + $0x20] sm:$0xff] %v9097
    %9115 = vst [vmem:[%s9109 + $0x28] sm:$0xff] %v9098
    %9116 = vst [vmem:[%s9109 + $0x30] sm:$0xff] %v9099
    %9117 = vst [vmem:[%s9109 + $0x38] sm:$0xff] %v9100
    %9118 = vst [vmem:[%s9109 + $0x40] sm:$0xff] %v9101
    %9119 = vst [vmem:[%s9109 + $0x48] sm:$0xff] %v9102
    %9120 = vst [vmem:[%s9109 + $0x50] sm:$0xff] %v9103
    %9121 = vst [vmem:[%s9109 + $0x58] sm:$0xff] %v9104
    %9122 = vst [vmem:[%s9109 + $0x60] sm:$0xff] %v9105
    %9123 = vst [vmem:[%s9109 + $0x68] sm:$0xff] %v9106
    %9124 = vst [vmem:[%s9109 + $0x70] sm:$0xff] %v9107
    %9125 = vst [vmem:[%s9109 + $0x78] sm:$0xff] %v9108
    %v9126 = vld [vmem:[#allocation4 + $0x38] sm:$0xff]
    %v9127 = vld [vmem:[#allocation4 + $0x88] sm:$0xff]
    %v9128 = vld [vmem:[#allocation4 + $0xd8] sm:$0xff]
    %v9129 = vld [vmem:[#allocation4 + $0x128] sm:$0xff]
    %v9130 = vld [vmem:[#allocation4 + $0x178] sm:$0xff]
    %v9131 = vld [vmem:[#allocation4 + $0x1c8] sm:$0xff]
    %v9132 = vld [vmem:[#allocation4 + $0x218] sm:$0xff]
    %v9133 = vld [vmem:[#allocation4 + $0x268] sm:$0xff]
    %v9134 = vld [vmem:[#allocation4 + $0x2b8] sm:$0xff]
    %v9135 = vld [vmem:[#allocation4 + $0x308] sm:$0xff]
    %v9136 = vld [vmem:[#allocation4 + $0x358] sm:$0xff]
    %v9137 = vld [vmem:[#allocation4 + $0x3a8] sm:$0xff]
    %v9138 = vld [vmem:[#allocation4 + $0x3f8] sm:$0xff]
    %v9139 = vld [vmem:[#allocation4 + $0x448] sm:$0xff]
    %v9140 = vld [vmem:[#allocation4 + $0x498] sm:$0xff]
    %v9141 = vld [vmem:[#allocation4 + $0x4e8] sm:$0xff]
    %v9142 = vsub.f32 %v9126, %v9028
    %v9143 = vsub.f32 %v9127, %v9029
    %v9144 = vsub.f32 %v9128, %v9030
    %v9145 = vsub.f32 %v9129, %v9031
    %v9146 = vsub.f32 %v9130, %v9032
    %v9147 = vsub.f32 %v9131, %v9033
    %v9148 = vsub.f32 %v9132, %v9034
    %v9149 = vsub.f32 %v9133, %v9035
    %v9150 = vsub.f32 %v9134, %v9036
    %v9151 = vsub.f32 %v9135, %v9037
    %v9152 = vsub.f32 %v9136, %v9038
    %v9153 = vsub.f32 %v9137, %v9039
    %v9154 = vsub.f32 %v9138, %v9040
    %v9155 = vsub.f32 %v9139, %v9041
    %v9156 = vsub.f32 %v9140, %v9042
    %v9157 = vsub.f32 %v9141, %v9043
    %s9158 = scalar_lea.vmem [#allocation12], 896
    %9159 = vst [vmem:[%s9158] sm:$0xff] %v9142
    %9160 = vst [vmem:[%s9158 + $0x8] sm:$0xff] %v9143
    %9161 = vst [vmem:[%s9158 + $0x10] sm:$0xff] %v9144
    %9162 = vst [vmem:[%s9158 + $0x18] sm:$0xff] %v9145
    %9163 = vst [vmem:[%s9158 + $0x20] sm:$0xff] %v9146
    %9164 = vst [vmem:[%s9158 + $0x28] sm:$0xff] %v9147
    %9165 = vst [vmem:[%s9158 + $0x30] sm:$0xff] %v9148
    %9166 = vst [vmem:[%s9158 + $0x38] sm:$0xff] %v9149
    %9167 = vst [vmem:[%s9158 + $0x40] sm:$0xff] %v9150
    %9168 = vst [vmem:[%s9158 + $0x48] sm:$0xff] %v9151
    %9169 = vst [vmem:[%s9158 + $0x50] sm:$0xff] %v9152
    %9170 = vst [vmem:[%s9158 + $0x58] sm:$0xff] %v9153
    %9171 = vst [vmem:[%s9158 + $0x60] sm:$0xff] %v9154
    %9172 = vst [vmem:[%s9158 + $0x68] sm:$0xff] %v9155
    %9173 = vst [vmem:[%s9158 + $0x70] sm:$0xff] %v9156
    %9174 = vst [vmem:[%s9158 + $0x78] sm:$0xff] %v9157
    %v9175 = vld [vmem:[#allocation4 + $0x40] sm:$0xff]
    %v9176 = vld [vmem:[#allocation4 + $0x90] sm:$0xff]
    %v9177 = vld [vmem:[#allocation4 + $0xe0] sm:$0xff]
    %v9178 = vld [vmem:[#allocation4 + $0x130] sm:$0xff]
    %v9179 = vld [vmem:[#allocation4 + $0x180] sm:$0xff]
    %v9180 = vld [vmem:[#allocation4 + $0x1d0] sm:$0xff]
    %v9181 = vld [vmem:[#allocation4 + $0x220] sm:$0xff]
    %v9182 = vld [vmem:[#allocation4 + $0x270] sm:$0xff]
    %v9183 = vld [vmem:[#allocation4 + $0x2c0] sm:$0xff]
    %v9184 = vld [vmem:[#allocation4 + $0x310] sm:$0xff]
    %v9185 = vld [vmem:[#allocation4 + $0x360] sm:$0xff]
    %v9186 = vld [vmem:[#allocation4 + $0x3b0] sm:$0xff]
    %v9187 = vld [vmem:[#allocation4 + $0x400] sm:$0xff]
    %v9188 = vld [vmem:[#allocation4 + $0x450] sm:$0xff]
    %v9189 = vld [vmem:[#allocation4 + $0x4a0] sm:$0xff]
    %v9190 = vld [vmem:[#allocation4 + $0x4f0] sm:$0xff]
    %v9191 = vsub.f32 %v9175, %v9028
    %v9192 = vsub.f32 %v9176, %v9029
    %v9193 = vsub.f32 %v9177, %v9030
    %v9194 = vsub.f32 %v9178, %v9031
    %v9195 = vsub.f32 %v9179, %v9032
    %v9196 = vsub.f32 %v9180, %v9033
    %v9197 = vsub.f32 %v9181, %v9034
    %v9198 = vsub.f32 %v9182, %v9035
    %v9199 = vsub.f32 %v9183, %v9036
    %v9200 = vsub.f32 %v9184, %v9037
    %v9201 = vsub.f32 %v9185, %v9038
    %v9202 = vsub.f32 %v9186, %v9039
    %v9203 = vsub.f32 %v9187, %v9040
    %v9204 = vsub.f32 %v9188, %v9041
    %v9205 = vsub.f32 %v9189, %v9042
    %v9206 = vsub.f32 %v9190, %v9043
    %s9207 = scalar_lea.vmem [#allocation12], 1024
    %9208 = vst [vmem:[%s9207] sm:$0xff] %v9191
    %9209 = vst [vmem:[%s9207 + $0x8] sm:$0xff] %v9192
    %9210 = vst [vmem:[%s9207 + $0x10] sm:$0xff] %v9193
    %9211 = vst [vmem:[%s9207 + $0x18] sm:$0xff] %v9194
    %9212 = vst [vmem:[%s9207 + $0x20] sm:$0xff] %v9195
    %9213 = vst [vmem:[%s9207 + $0x28] sm:$0xff] %v9196
    %9214 = vst [vmem:[%s9207 + $0x30] sm:$0xff] %v9197
    %9215 = vst [vmem:[%s9207 + $0x38] sm:$0xff] %v9198
    %9216 = vst [vmem:[%s9207 + $0x40] sm:$0xff] %v9199
    %9217 = vst [vmem:[%s9207 + $0x48] sm:$0xff] %v9200
    %9218 = vst [vmem:[%s9207 + $0x50] sm:$0xff] %v9201
    %9219 = vst [vmem:[%s9207 + $0x58] sm:$0xff] %v9202
    %9220 = vst [vmem:[%s9207 + $0x60] sm:$0xff] %v9203
    %9221 = vst [vmem:[%s9207 + $0x68] sm:$0xff] %v9204
    %9222 = vst [vmem:[%s9207 + $0x70] sm:$0xff] %v9205
    %9223 = vst [vmem:[%s9207 + $0x78] sm:$0xff] %v9206
    %v9224 = vld [vmem:[#allocation4 + $0x48] sm:$0xff]
    %v9225 = vld [vmem:[#allocation4 + $0x98] sm:$0xff]
    %v9226 = vld [vmem:[#allocation4 + $0xe8] sm:$0xff]
    %v9227 = vld [vmem:[#allocation4 + $0x138] sm:$0xff]
    %v9228 = vld [vmem:[#allocation4 + $0x188] sm:$0xff]
    %v9229 = vld [vmem:[#allocation4 + $0x1d8] sm:$0xff]
    %v9230 = vld [vmem:[#allocation4 + $0x228] sm:$0xff]
    %v9231 = vld [vmem:[#allocation4 + $0x278] sm:$0xff]
    %v9232 = vld [vmem:[#allocation4 + $0x2c8] sm:$0xff]
    %v9233 = vld [vmem:[#allocation4 + $0x318] sm:$0xff]
    %v9234 = vld [vmem:[#allocation4 + $0x368] sm:$0xff]
    %v9235 = vld [vmem:[#allocation4 + $0x3b8] sm:$0xff]
    %v9236 = vld [vmem:[#allocation4 + $0x408] sm:$0xff]
    %v9237 = vld [vmem:[#allocation4 + $0x458] sm:$0xff]
    %v9238 = vld [vmem:[#allocation4 + $0x4a8] sm:$0xff]
    %v9239 = vld [vmem:[#allocation4 + $0x4f8] sm:$0xff]
    %v9240 = vsub.f32 %v9224, %v9028
    %v9241 = vsub.f32 %v9225, %v9029
    %v9242 = vsub.f32 %v9226, %v9030
    %v9243 = vsub.f32 %v9227, %v9031
    %v9244 = vsub.f32 %v9228, %v9032
    %v9245 = vsub.f32 %v9229, %v9033
    %v9246 = vsub.f32 %v9230, %v9034
    %v9247 = vsub.f32 %v9231, %v9035
    %v9248 = vsub.f32 %v9232, %v9036
    %v9249 = vsub.f32 %v9233, %v9037
    %v9250 = vsub.f32 %v9234, %v9038
    %v9251 = vsub.f32 %v9235, %v9039
    %v9252 = vsub.f32 %v9236, %v9040
    %v9253 = vsub.f32 %v9237, %v9041
    %v9254 = vsub.f32 %v9238, %v9042
    %v9255 = vsub.f32 %v9239, %v9043
    %s9256 = scalar_lea.vmem [#allocation12], 1152
    %9257 = vst [vmem:[%s9256] sm:$0xff] %v9240
    %9258 = vst [vmem:[%s9256 + $0x8] sm:$0xff] %v9241
    %9259 = vst [vmem:[%s9256 + $0x10] sm:$0xff] %v9242
    %9260 = vst [vmem:[%s9256 + $0x18] sm:$0xff] %v9243
    %9261 = vst [vmem:[%s9256 + $0x20] sm:$0xff] %v9244
    %9262 = vst [vmem:[%s9256 + $0x28] sm:$0xff] %v9245
    %9263 = vst [vmem:[%s9256 + $0x30] sm:$0xff] %v9246
    %9264 = vst [vmem:[%s9256 + $0x38] sm:$0xff] %v9247
    %9265 = vst [vmem:[%s9256 + $0x40] sm:$0xff] %v9248
    %9266 = vst [vmem:[%s9256 + $0x48] sm:$0xff] %v9249
    %9267 = vst [vmem:[%s9256 + $0x50] sm:$0xff] %v9250
    %9268 = vst [vmem:[%s9256 + $0x58] sm:$0xff] %v9251
    %9269 = vst [vmem:[%s9256 + $0x60] sm:$0xff] %v9252
    %9270 = vst [vmem:[%s9256 + $0x68] sm:$0xff] %v9253
    %9271 = vst [vmem:[%s9256 + $0x70] sm:$0xff] %v9254
    %9272 = vst [vmem:[%s9256 + $0x78] sm:$0xff] %v9255
    // Predicated region
    $region38: #{tpu_custom_call.1} parent=1 // pred_check
      _
    $region39: #{tpu_custom_call.1} parent=1 // pred_check_branch
      %9274 = sbr.rel (0) target = $region41
    $region40: #{tpu_custom_call.1} parent=1 // pred_region
      %9276 = vsyncadd [#allocation7], 0
      %s9277 = sshll.u32 [#allocation12], 4
      %s9278 = int_to_ptr.vmem [resolvable:$true] %s9277
      %s9279 = sshll.u32 %s6, 4
      %s9280 = int_to_ptr.hbm [resolvable:$true] %s9279
      %9285 = dma.vmem_to_hbm [thread:$0]  %s9278, 20480, %s9280, [#allocation7], 128, 128, 8
    $region41: #{tpu_custom_call.1} parent=1 // pred_fallthru
      _
    // Predicated region
    $region42: #{tpu_custom_call.1} parent=1 // pred_check
      _
    $region43: #{tpu_custom_call.1} parent=1 // pred_check_branch
      %9287 = sbr.rel (0) target = $region45
    $region44: #{tpu_custom_call.1} parent=1 // pred_region
      %9289 = vsyncadd [#allocation14], 0
      %s9290 = sshll.u32 [#allocation13], 4
      %s9291 = int_to_ptr.vmem [resolvable:$true] %s9290
      %s9292 = sshll.u32 %s7, 4
      %s9293 = int_to_ptr.hbm [resolvable:$true] %s9292
      %9298 = dma.vmem_to_hbm [thread:$0]  %s9291, 320, %s9293, [#allocation14], 32, 32, 2
    $region45: #{tpu_custom_call.1} parent=1 // pred_fallthru
      _
    // Predicated region
    $region46: #{tpu_custom_call.1} parent=1 // pred_check
      _
    $region47: #{tpu_custom_call.1} parent=1 // pred_check_branch
      %9300 = sbr.rel (0) target = $region49
    $region48: #{tpu_custom_call.1} parent=1 // pred_region
      %9302 = dma.done [#allocation7], 20480
    $region49: #{tpu_custom_call.1} parent=1 // pred_fallthru
      _
    // Predicated region
    $region50: #{tpu_custom_call.1} parent=1 // pred_check
      _
    $region51: #{tpu_custom_call.1} parent=1 // pred_check_branch
      %9304 = sbr.rel (0) target = $region53
    $region52: #{tpu_custom_call.1} parent=1 // pred_region
      %9306 = dma.done [#allocation14], 320
    $region53: #{tpu_custom_call.1} parent=1 // pred_fallthru
      _
    %9307 = vsyncpa [#allocation6], 1
    %9308 = vsyncpa [#allocation7], 1
    %9309 = vsyncpa [#allocation14], 1
    %9310 = vsyncpa [#allocation8], 1
    %9311 = vsyncpa [#allocation10], 1

</llo_original>
